<compile_context>
chip_gen: v6e
topology: v6e:2x2x1
jax: 0.10.0
libtpu: 0.0.40
codegen_flags: <defaults>
</compile_context>

<pallas_src>
import random

import jax
import jax.numpy as jnp
from jax import lax
from jax.experimental import pallas as pl
from jax.experimental.pallas import tpu as pltpu

# ------------------------- hyper-parameters (small) -------------------------
SRC_LEN = 8
TGT_LEN = 8
BATCH = 8          # must equal TGT_LEN to reproduce torch's `outputs[t] = output`
EMB = 16
HID = 32
SRC_VOCAB = 64
TGT_VOCAB = 64     # len(persian.vocab) stand-in
VPAD = 128         # vocab padded to a full 128-lane tile for lane-dense stores

_VMEM = pl.BlockSpec(memory_space=pltpu.MemorySpace.VMEM)
_SMEM = pl.BlockSpec(memory_space=pltpu.MemorySpace.SMEM)


# ------------------------------ fused kernel --------------------------------
def _seq2seq_kernel(
    tf_ref,                      # SMEM (T,) int32 teacher-forcing flags
    src_emb_ref,                 # (S*B, E)
    tgt_emb_ref,                 # (T*B, E)
    enc_wih_ref,                 # (E, 8H)  [wih_f | wih_b]
    enc_whh_ref,                 # (H, 8H)  [whh_f | whh_b]
    enc_b_ref,                   # (1, 8H)  [b_f   | b_b  ]
    fc_h_w_ref, fc_h_b_ref,      # (2H,H), (1,H)
    fc_c_w_ref, fc_c_b_ref,      # (2H,H), (1,H)
    att_wh_ref,                  # (1, H)   energy weight, hidden slice (row)
    att_we_ref,                  # (1, 2H)  energy weight, encoder slice
    att_b_ref,                   # (1, 1)
    w_ctx_ref,                   # (2H, 4H) context block of decoder W_ih
    w_emb_ref,                   # (E, 4H)  embedding block of decoder W_ih
    whh_dec_ref,                 # (H, 4H)
    b_dec_ref,                   # (1, 4H)
    w_out_ref,                   # (H, VPAD)
    b_out_ref,                   # (1, VPAD)
    emb_dec_ref,                 # (V, E)
    out_ref,                     # (T, B, VPAD)
    src_xw_sc,                   # VMEM (S*B, 8H)  precomputed encoder x@W_ih
    enc_cat_sc,                  # VMEM (S, B, 2H) [enc_fwd | enc_bwd]
    tgt_xw_sc,                   # VMEM (T*B, 4H)  precomputed tgt_emb @ w_emb
    emb_gate_sc,                 # VMEM (V, 4H)    emb_dec @ w_emb fused table
):
    H = HID
    G = 4 * H
    B = BATCH
    S = SRC_LEN
    T = TGT_LEN

    def gates_to_hc(gates, c):
        i_g = jax.nn.sigmoid(gates[:, 0 * H:1 * H])
        f_g = jax.nn.sigmoid(gates[:, 1 * H:2 * H])
        g_g = jnp.tanh(gates[:, 2 * H:3 * H])
        o_g = jax.nn.sigmoid(gates[:, 3 * H:4 * H])
        c_new = f_g * c + i_g * g_g
        return o_g * jnp.tanh(c_new), c_new

    # ------------------------------ encoder ---------------------------------
    # All per-step input projections, both directions, in ONE MXU matmul.
    src_xw_sc[...] = jnp.dot(src_emb_ref[...], enc_wih_ref[...],
                             preferred_element_type=jnp.float32)        # (S*B, 8H)

    b_f = enc_b_ref[:, :G]                                              # (1, 4H)
    b_b = enc_b_ref[:, G:]                                              # (1, 4H)
    z = jnp.zeros((B, H), jnp.float32)

    def enc_step(t, carry):
        h_f, c_f, h_b, c_b = carry
        tb = S - 1 - t
        i_f = pl.multiple_of(t * B, B)
        i_b = pl.multiple_of(tb * B, B)
        xw_f = src_xw_sc[pl.ds(i_f, B), :G]                             # (B, 4H)
        xw_b = src_xw_sc[pl.ds(i_b, B), G:]                             # (B, 4H)
        # both directions' hidden recurrences fused into ONE MXU matmul
        hh = jnp.dot(jnp.concatenate([h_f, h_b], axis=0), enc_whh_ref[...],
                     preferred_element_type=jnp.float32)                # (2B, 8H)
        h_f, c_f = gates_to_hc(xw_f + hh[:B, :G] + b_f, c_f)
        h_b, c_b = gates_to_hc(xw_b + hh[B:, G:] + b_b, c_b)
        # encoder states written straight into the concatenated VMEM scratch
        enc_cat_sc[t, :, :H] = h_f
        enc_cat_sc[tb, :, H:] = h_b
        return h_f, c_f, h_b, c_b

    h_f, c_f, h_b, c_b = lax.fori_loop(0, S, enc_step, (z, z, z, z), unroll=True)

    # bridge: hidden = fc_h([h_fwd ; h_bwd]), cell = fc_c([c_fwd ; c_bwd])
    hidden = (jnp.dot(h_f, fc_h_w_ref[:H, :], preferred_element_type=jnp.float32)
              + jnp.dot(h_b, fc_h_w_ref[H:, :], preferred_element_type=jnp.float32)
              + fc_h_b_ref[...])
    cell = (jnp.dot(c_f, fc_c_w_ref[:H, :], preferred_element_type=jnp.float32)
            + jnp.dot(c_b, fc_c_w_ref[H:, :], preferred_element_type=jnp.float32)
            + fc_c_b_ref[...])

    # ------------------------------ decoder ---------------------------------
    # All target-embedding gate contributions in ONE matmul.
    tgt_xw_sc[...] = jnp.dot(tgt_emb_ref[...], w_emb_ref[...],
                             preferred_element_type=jnp.float32)        # (T*B, 4H)
    # Fused table: vocab one-hot -> decoder-LSTM gate contribution (greedy path).
    emb_gate_sc[...] = jnp.dot(emb_dec_ref[...], w_emb_ref[...],
                               preferred_element_type=jnp.float32)      # (V, 4H)

    # encoder-only part of the attention energy, hoisted out of the decode loop
    enc_part = jnp.sum(enc_cat_sc[...] * att_we_ref[...][None, :, :],
                       axis=-1)                                         # (S, B)
    e_bias = att_b_ref[...]                                             # (1, 1)
    att_row = att_wh_ref[...]                                           # (1, H)

    col_pad = lax.broadcasted_iota(jnp.int32, (B, VPAD), 1)
    col_pad_f = col_pad.astype(jnp.float32)
    col_voc_f = lax.broadcasted_iota(jnp.int32, (B, TGT_VOCAB), 1).astype(jnp.float32)

    # outputs[0] stays zero, like the torch module (rows 1..T-1 are written below)
    out_ref[0] = jnp.zeros((B, VPAD), jnp.float32)

    def dec_step(t, carry):
        emb_gate, h, c = carry
        # --- attention: hidden-dependent energy term on the VPU (no MXU) ---
        h_part = jnp.sum(h * att_row, axis=-1, keepdims=True)           # (B, 1)
        energy = jnp.maximum(jnp.transpose(h_part) + enc_part + e_bias, 0.0)  # (S,B)
        m = jnp.max(energy, axis=0, keepdims=True)
        e = jnp.exp(energy - m)
        denom = jnp.sum(e, axis=0, keepdims=True)
        attn = e * pl.reciprocal(denom, approx=True)                    # (S, B)
        ctx = jnp.sum(attn[:, :, None] * enc_cat_sc[...], axis=0)       # (B, 2H)
        # --- decoder LSTM cell, input = [context ; embedding] ---
        gates = (jnp.dot(ctx, w_ctx_ref[...], preferred_element_type=jnp.float32)
                 + emb_gate
                 + jnp.dot(h, whh_dec_ref[...], preferred_element_type=jnp.float32)
                 + b_dec_ref[...])
        h_new, c_new = gates_to_hc(gates, c)
        # --- output projection, lane-dense (padded to 128) ---
        logits = (jnp.dot(h_new, w_out_ref[...],
                          preferred_element_type=jnp.float32) + b_out_ref[...])
        out_ref[t] = logits                                             # (B, VPAD)
        # --- greedy argmax over the real vocab (first-index tie-break) ---
        masked = jnp.where(col_pad < TGT_VOCAB, logits, -1e30)
        mx = jnp.max(masked, axis=-1, keepdims=True)
        best = jnp.min(jnp.where(masked == mx, col_pad_f, float(VPAD)),
                       axis=-1, keepdims=True)                          # (B, 1)
        one_hot = (col_voc_f == best).astype(jnp.float32)               # (B, V)
        guess_gate = jnp.dot(one_hot, emb_gate_sc[...],
                             preferred_element_type=jnp.float32)        # (B, 4H)
        # --- teacher forcing (flag precomputed on host, read from SMEM) ---
        w_tf = (tf_ref[t] > 0).astype(jnp.float32)
        i_t = pl.multiple_of(t * B, B)
        tf_gate = tgt_xw_sc[pl.ds(i_t, B), :]                           # (B, 4H)
        emb_next = w_tf * tf_gate + (1.0 - w_tf) * guess_gate
        return emb_next, h_new, c_new

    lax.fori_loop(1, T, dec_step, (tgt_xw_sc[:B, :], hidden, cell), unroll=True)


def _seq2seq_call(tf_flags, src_emb2d, tgt_emb2d, p):
    return pl.pallas_call(
        _seq2seq_kernel,
        out_shape=jax.ShapeDtypeStruct((TGT_LEN, BATCH, VPAD), jnp.float32),
        in_specs=[_SMEM] + [_VMEM] * 19,
        out_specs=_VMEM,
        scratch_shapes=[
            pltpu.VMEM((SRC_LEN * BATCH, 8 * HID), jnp.float32),   # src_xw
            pltpu.VMEM((SRC_LEN, BATCH, 2 * HID), jnp.float32),    # enc_cat
            pltpu.VMEM((TGT_LEN * BATCH, 4 * HID), jnp.float32),   # tgt_xw
            pltpu.VMEM((TGT_VOCAB, 4 * HID), jnp.float32),         # emb_gate table
        ],
    )(tf_flags, src_emb2d, tgt_emb2d,
      p["enc_wih_cat"], p["enc_whh_cat"], p["enc_b_cat"],
      p["fc_h_w"], p["fc_h_b"], p["fc_c_w"], p["fc_c_b"],
      p["att_wh"], p["att_we"], p["att_b"],
      p["dec_w_ctx"], p["dec_w_emb"], p["dec_whh"], p["dec_b"],
      p["fc_out_w"], p["fc_out_b"], p["emb_dec"])


# ------------------------------ parameter init -------------------------------
def init_params(key):
    def nrm(k, shape, scale=0.1):
        return scale * jax.random.normal(k, shape, jnp.float32)

    ks = jax.random.split(key, 22)
    fc_out_w = nrm(ks[18], (HID, TGT_VOCAB))
    fc_out_b = nrm(ks[19], (1, TGT_VOCAB))
    wih_f = nrm(ks[1], (EMB, 4 * HID))
    whh_f = nrm(ks[2], (HID, 4 * HID))
    b_f = nrm(ks[3], (1, 4 * HID))
    wih_b = nrm(ks[4], (EMB, 4 * HID))
    whh_b = nrm(ks[5], (HID, 4 * HID))
    b_b = nrm(ks[6], (1, 4 * HID))
    p = {
        # encoder (bidirectional LSTM weights pre-concatenated along N so the
        # per-step recurrence and the input projection are each one matmul)
        "emb_enc":     nrm(ks[0], (SRC_VOCAB, EMB)),
        "enc_wih_cat": jnp.concatenate([wih_f, wih_b], axis=1),   # (E, 8H)
        "enc_whh_cat": jnp.concatenate([whh_f, whh_b], axis=1),   # (H, 8H)
        "enc_b_cat":   jnp.concatenate([b_f, b_b], axis=1),       # (1, 8H)
        "fc_h_w":      nrm(ks[7], (2 * HID, HID)),
        "fc_h_b":      nrm(ks[8], (1, HID)),
        "fc_c_w":      nrm(ks[9], (2 * HID, HID)),
        "fc_c_b":      nrm(ks[10], (1, HID)),
        # decoder (attention + LSTM cell + output projection)
        "emb_dec":     nrm(ks[11], (TGT_VOCAB, EMB)),
        "att_wh":      nrm(ks[12], (1, HID)),        # energy weight, hidden slice
        "att_we":      nrm(ks[13], (1, 2 * HID)),    # energy weight, encoder slice
        "att_b":       nrm(ks[14], (1, 1)),
        "dec_w_ctx":   nrm(ks[15], (2 * HID, 4 * HID)),  # context block of dec W_ih
        "dec_w_emb":   nrm(ks[20], (EMB, 4 * HID)),      # embedding block of dec W_ih
        "dec_whh":     nrm(ks[16], (HID, 4 * HID)),
        "dec_b":       nrm(ks[17], (1, 4 * HID)),
        # output projection padded 64 -> 128 lanes (pad columns are zero and
        # masked out of the argmax, then sliced away before returning)
        "fc_out_w":    jnp.pad(fc_out_w, ((0, 0), (0, VPAD - TGT_VOCAB))),
        "fc_out_b":    jnp.pad(fc_out_b, ((0, 0), (0, VPAD - TGT_VOCAB))),
    }
    return p


# -------------------------------- forward pass --------------------------------
@jax.jit
def _forward_device(p, source, target, tf_flags):
    # embedding gathers: one XLA gather each, directly in (S*B, E) layout
    # TODO(synk): could be folded into the kernel via one-hot matmuls if even
    # this tiny HBM hop ever shows up in the trace.
    src_emb2d = jnp.take(p["emb_enc"], source.reshape(-1), axis=0)   # (S*B, E)
    tgt_emb2d = jnp.take(p["emb_dec"], target.reshape(-1), axis=0)   # (T*B, E)

    out_padded = _seq2seq_call(tf_flags, src_emb2d, tgt_emb2d, p)    # (T, B, VPAD)
    # original module: outputs = zeros(source.shape[0], target_len, vocab);
    # outputs[t] = output.  Shapes coincide here (src_len == batch == target_len).
    return out_padded[:, :, :TGT_VOCAB]


def seq2seq_forward(p, source, target, teacher_force_ratio=0.5):
    target_len = target.shape[0]
    # one host random.random() per decode step, same draw order as the torch loop
    flags = [0] * target_len
    for t in range(1, target_len):
        flags[t] = 1 if random.random() < teacher_force_ratio else 0
    tf_flags = jnp.asarray(flags, dtype=jnp.int32)
    return _forward_device(p, source, target, tf_flags)


# ------------------------------------ main ------------------------------------
if __name__ == "__main__":
    random.seed(0)  # deterministic teacher forcing
    key = jax.random.PRNGKey(0)
    pkey, skey, tkey = jax.random.split(key, 3)

    params = init_params(pkey)
    source = jax.random.randint(skey, (SRC_LEN, BATCH), 0, SRC_VOCAB, dtype=jnp.int32)
    target = jax.random.randint(tkey, (TGT_LEN, BATCH), 0, TGT_VOCAB, dtype=jnp.int32)

    outputs = seq2seq_forward(params, source, target, teacher_force_ratio=0.5)
    outputs = jax.block_until_ready(outputs)

    assert outputs.shape == (BATCH, TGT_LEN, TGT_VOCAB)
    assert bool(jnp.all(jnp.isfinite(outputs)))
    print("KERNEL_OK")
</pallas_src>

<mosaic_0001>
module attributes {stable_mosaic.version = 11 : i64} {
  func.func @_seq2seq_kernel(%arg0: memref<8xi32, #tpu.memory_space<smem>>, %arg1: memref<64x16xf32, #tpu.memory_space<vmem>>, %arg2: memref<64x16xf32, #tpu.memory_space<vmem>>, %arg3: memref<16x256xf32, #tpu.memory_space<vmem>>, %arg4: memref<32x256xf32, #tpu.memory_space<vmem>>, %arg5: memref<1x256xf32, #tpu.memory_space<vmem>>, %arg6: memref<64x32xf32, #tpu.memory_space<vmem>>, %arg7: memref<1x32xf32, #tpu.memory_space<vmem>>, %arg8: memref<64x32xf32, #tpu.memory_space<vmem>>, %arg9: memref<1x32xf32, #tpu.memory_space<vmem>>, %arg10: memref<1x32xf32, #tpu.memory_space<vmem>>, %arg11: memref<1x64xf32, #tpu.memory_space<vmem>>, %arg12: memref<1x1xf32, #tpu.memory_space<vmem>>, %arg13: memref<64x128xf32, #tpu.memory_space<vmem>>, %arg14: memref<16x128xf32, #tpu.memory_space<vmem>>, %arg15: memref<32x128xf32, #tpu.memory_space<vmem>>, %arg16: memref<1x128xf32, #tpu.memory_space<vmem>>, %arg17: memref<32x128xf32, #tpu.memory_space<vmem>>, %arg18: memref<1x128xf32, #tpu.memory_space<vmem>>, %arg19: memref<64x16xf32, #tpu.memory_space<vmem>>, %arg20: memref<8x8x128xf32, #tpu.memory_space<vmem>>, %arg21: memref<64x256xf32, #tpu.memory_space<vmem>>, %arg22: memref<8x8x64xf32, #tpu.memory_space<vmem>>, %arg23: memref<64x128xf32, #tpu.memory_space<vmem>>, %arg24: memref<64x128xf32, #tpu.memory_space<vmem>>) attributes {dimension_semantics = [], scalar_prefetch = 0 : i64, scratch_operands = 4 : i64, tpu.core_type = #tpu.core_type<tc>} {
    %c0 = arith.constant 0 : index
    %c0_0 = arith.constant 0 : index
    %0 = vector.load %arg1[%c0, %c0_0] : memref<64x16xf32, #tpu.memory_space<vmem>>, vector<64x16xf32>
    %c0_1 = arith.constant 0 : index
    %c0_2 = arith.constant 0 : index
    %1 = vector.load %arg3[%c0_1, %c0_2] : memref<16x256xf32, #tpu.memory_space<vmem>>, vector<16x256xf32>
    %cst = arith.constant dense<0.000000e+00> : vector<64x256xf32>
    %2 = tpu.matmul %0, %1, %cst {dimension_numbers = #tpu.dot_dimension_numbers<[1], [0], [0], [1], [0, 0, 1, 1], [], []>} : vector<64x16xf32>, vector<16x256xf32>, vector<64x256xf32> -> vector<64x256xf32>
    %c0_3 = arith.constant 0 : index
    %c0_4 = arith.constant 0 : index
    %3 = vector.load %arg21[%c0_3, %c0_4] : memref<64x256xf32, #tpu.memory_space<vmem>>, vector<64x256xf32>
    tpu.vector_store %arg21[%c0_3, %c0_4], %2 {strides = array<i32>} : memref<64x256xf32, #tpu.memory_space<vmem>>, vector<64x256xf32>,
    %c0_5 = arith.constant 0 : index
    %c0_6 = arith.constant 0 : index
    %4 = vector.load %arg5[%c0_5, %c0_6] : memref<1x256xf32, #tpu.memory_space<vmem>>, vector<1x128xf32>
    %c0_7 = arith.constant 0 : index
    %c128 = arith.constant 128 : index
    %5 = vector.load %arg5[%c0_7, %c128] : memref<1x256xf32, #tpu.memory_space<vmem>>, vector<1x128xf32>
    %cst_8 = arith.constant 0.000000e+00 : f32
    %6 = vector.broadcast %cst_8 : f32 to vector<8x32xf32>
    %c0_i32 = arith.constant 0 : i32
    %c7_i32 = arith.constant 7 : i32
    %7 = arith.subi %c7_i32, %c0_i32 : i32
    %c8_i32 = arith.constant 8 : i32
    %8 = arith.muli %c0_i32, %c8_i32 : i32
    %9 = tpu.assume_multiple %8, 8 : i32
    %c8_i32_9 = arith.constant 8 : i32
    %10 = arith.muli %7, %c8_i32_9 : i32
    %11 = tpu.assume_multiple %10, 8 : i32
    %12 = arith.index_cast %9 : i32 to index
    %c0_10 = arith.constant 0 : index
    %13 = vector.load %arg21[%12, %c0_10] : memref<64x256xf32, #tpu.memory_space<vmem>>, vector<8x128xf32>
    %14 = arith.index_cast %11 : i32 to index
    %c128_11 = arith.constant 128 : index
    %15 = vector.load %arg21[%14, %c128_11] : memref<64x256xf32, #tpu.memory_space<vmem>>, vector<8x128xf32>
    %16 = tpu.concatenate %6, %6 in 0 : vector<8x32xf32>, vector<8x32xf32> -> vector<16x32xf32>
    %c0_12 = arith.constant 0 : index
    %c0_13 = arith.constant 0 : index
    %17 = vector.load %arg4[%c0_12, %c0_13] : memref<32x256xf32, #tpu.memory_space<vmem>>, vector<32x256xf32>
    %cst_14 = arith.constant dense<0.000000e+00> : vector<16x256xf32>
    %18 = tpu.matmul %16, %17, %cst_14 {dimension_numbers = #tpu.dot_dimension_numbers<[1], [0], [0], [1], [0, 0, 1, 1], [], []>} : vector<16x32xf32>, vector<32x256xf32>, vector<16x256xf32> -> vector<16x256xf32>
    %19 = vector.extract_strided_slice %18 {offsets = [0, 0], sizes = [8, 128], strides = [1, 1]} : vector<16x256xf32> to vector<8x128xf32>
    %20 = arith.addf %13, %19 : vector<8x128xf32>
    %21 = vector.broadcast %4 : vector<1x128xf32> to vector<8x128xf32>
    %22 = arith.addf %20, %21 : vector<8x128xf32>
    %23 = vector.extract_strided_slice %22 {offsets = [0, 0], sizes = [8, 32], strides = [1, 1]} : vector<8x128xf32> to vector<8x32xf32>
    %24 = arith.negf %23 : vector<8x32xf32>
    %25 = math.exp %24 : vector<8x32xf32>
    %cst_15 = arith.constant 1.000000e+00 : f32
    %26 = vector.broadcast %cst_15 : f32 to vector<8x32xf32>
    %27 = arith.addf %26, %25 : vector<8x32xf32>
    %28 = arith.divf %26, %27 : vector<8x32xf32>
    %29 = vector.extract_strided_slice %22 {offsets = [0, 32], sizes = [8, 32], strides = [1, 1]} : vector<8x128xf32> to vector<8x32xf32>
    %30 = arith.negf %29 : vector<8x32xf32>
    %31 = math.exp %30 : vector<8x32xf32>
    %cst_16 = arith.constant 1.000000e+00 : f32
    %32 = vector.broadcast %cst_16 : f32 to vector<8x32xf32>
    %33 = arith.addf %32, %31 : vector<8x32xf32>
    %34 = arith.divf %32, %33 : vector<8x32xf32>
    %35 = vector.extract_strided_slice %22 {offsets = [0, 64], sizes = [8, 32], strides = [1, 1]} : vector<8x128xf32> to vector<8x32xf32>
    %36 = math.tanh %35 : vector<8x32xf32>
    %37 = vector.extract_strided_slice %22 {offsets = [0, 96], sizes = [8, 32], strides = [1, 1]} : vector<8x128xf32> to vector<8x32xf32>
    %38 = arith.negf %37 : vector<8x32xf32>
    %39 = math.exp %38 : vector<8x32xf32>
    %cst_17 = arith.constant 1.000000e+00 : f32
    %40 = vector.broadcast %cst_17 : f32 to vector<8x32xf32>
    %41 = arith.addf %40, %39 : vector<8x32xf32>
    %42 = arith.divf %40, %41 : vector<8x32xf32>
    %43 = arith.mulf %34, %6 : vector<8x32xf32>
    %44 = arith.mulf %28, %36 : vector<8x32xf32>
    %45 = arith.addf %43, %44 : vector<8x32xf32>
    %46 = math.tanh %45 : vector<8x32xf32>
    %47 = arith.mulf %42, %46 : vector<8x32xf32>
    %48 = vector.extract_strided_slice %18 {offsets = [8, 128], sizes = [8, 128], strides = [1, 1]} : vector<16x256xf32> to vector<8x128xf32>
    %49 = arith.addf %15, %48 : vector<8x128xf32>
    %50 = vector.broadcast %5 : vector<1x128xf32> to vector<8x128xf32>
    %51 = arith.addf %49, %50 : vector<8x128xf32>
    %52 = vector.extract_strided_slice %51 {offsets = [0, 0], sizes = [8, 32], strides = [1, 1]} : vector<8x128xf32> to vector<8x32xf32>
    %53 = arith.negf %52 : vector<8x32xf32>
    %54 = math.exp %53 : vector<8x32xf32>
    %cst_18 = arith.constant 1.000000e+00 : f32
    %55 = vector.broadcast %cst_18 : f32 to vector<8x32xf32>
    %56 = arith.addf %55, %54 : vector<8x32xf32>
    %57 = arith.divf %55, %56 : vector<8x32xf32>
    %58 = vector.extract_strided_slice %51 {offsets = [0, 32], sizes = [8, 32], strides = [1, 1]} : vector<8x128xf32> to vector<8x32xf32>
    %59 = arith.negf %58 : vector<8x32xf32>
    %60 = math.exp %59 : vector<8x32xf32>
    %cst_19 = arith.constant 1.000000e+00 : f32
    %61 = vector.broadcast %cst_19 : f32 to vector<8x32xf32>
    %62 = arith.addf %61, %60 : vector<8x32xf32>
    %63 = arith.divf %61, %62 : vector<8x32xf32>
    %64 = vector.extract_strided_slice %51 {offsets = [0, 64], sizes = [8, 32], strides = [1, 1]} : vector<8x128xf32> to vector<8x32xf32>
    %65 = math.tanh %64 : vector<8x32xf32>
    %66 = vector.extract_strided_slice %51 {offsets = [0, 96], sizes = [8, 32], strides = [1, 1]} : vector<8x128xf32> to vector<8x32xf32>
    %67 = arith.negf %66 : vector<8x32xf32>
    %68 = math.exp %67 : vector<8x32xf32>
    %cst_20 = arith.constant 1.000000e+00 : f32
    %69 = vector.broadcast %cst_20 : f32 to vector<8x32xf32>
    %70 = arith.addf %69, %68 : vector<8x32xf32>
    %71 = arith.divf %69, %70 : vector<8x32xf32>
    %72 = arith.mulf %63, %6 : vector<8x32xf32>
    %73 = arith.mulf %57, %65 : vector<8x32xf32>
    %74 = arith.addf %72, %73 : vector<8x32xf32>
    %75 = math.tanh %74 : vector<8x32xf32>
    %76 = arith.mulf %71, %75 : vector<8x32xf32>
    %77 = arith.index_cast %c0_i32 : i32 to index
    %c0_21 = arith.constant 0 : index
    %c0_22 = arith.constant 0 : index
    %78 = vector.load %arg22[%77, %c0_21, %c0_22] : memref<8x8x64xf32, #tpu.memory_space<vmem>>, vector<1x8x32xf32>
    %79 = vector.shape_cast %78 : vector<1x8x32xf32> to vector<8x32xf32>
    %80 = vector.shape_cast %47 : vector<8x32xf32> to vector<1x8x32xf32>
    tpu.vector_store %arg22[%77, %c0_21, %c0_22], %80 {strides = array<i32>} : memref<8x8x64xf32, #tpu.memory_space<vmem>>, vector<1x8x32xf32>,
    %81 = arith.index_cast %7 : i32 to index
    %c0_23 = arith.constant 0 : index
    %c32 = arith.constant 32 : index
    %82 = vector.load %arg22[%81, %c0_23, %c32] : memref<8x8x64xf32, #tpu.memory_space<vmem>>, vector<1x8x32xf32>
    %83 = vector.shape_cast %82 : vector<1x8x32xf32> to vector<8x32xf32>
    %84 = vector.shape_cast %76 : vector<8x32xf32> to vector<1x8x32xf32>
    tpu.vector_store %arg22[%81, %c0_23, %c32], %84 {strides = array<i32>} : memref<8x8x64xf32, #tpu.memory_space<vmem>>, vector<1x8x32xf32>,
    %c1_i32 = arith.constant 1 : i32
    %c7_i32_24 = arith.constant 7 : i32
    %85 = arith.subi %c7_i32_24, %c1_i32 : i32
    %c8_i32_25 = arith.constant 8 : i32
    %86 = arith.muli %c1_i32, %c8_i32_25 : i32
    %87 = tpu.assume_multiple %86, 8 : i32
    %c8_i32_26 = arith.constant 8 : i32
    %88 = arith.muli %85, %c8_i32_26 : i32
    %89 = tpu.assume_multiple %88, 8 : i32
    %90 = arith.index_cast %87 : i32 to index
    %c0_27 = arith.constant 0 : index
    %91 = vector.load %arg21[%90, %c0_27] : memref<64x256xf32, #tpu.memory_space<vmem>>, vector<8x128xf32>
    %92 = arith.index_cast %89 : i32 to index
    %c128_28 = arith.constant 128 : index
    %93 = vector.load %arg21[%92, %c128_28] : memref<64x256xf32, #tpu.memory_space<vmem>>, vector<8x128xf32>
    %94 = tpu.concatenate %47, %76 in 0 : vector<8x32xf32>, vector<8x32xf32> -> vector<16x32xf32>
    %c0_29 = arith.constant 0 : index
    %c0_30 = arith.constant 0 : index
    %95 = vector.load %arg4[%c0_29, %c0_30] : memref<32x256xf32, #tpu.memory_space<vmem>>, vector<32x256xf32>
    %cst_31 = arith.constant dense<0.000000e+00> : vector<16x256xf32>
    %96 = tpu.matmul %94, %95, %cst_31 {dimension_numbers = #tpu.dot_dimension_numbers<[1], [0], [0], [1], [0, 0, 1, 1], [], []>} : vector<16x32xf32>, vector<32x256xf32>, vector<16x256xf32> -> vector<16x256xf32>
    %97 = vector.extract_strided_slice %96 {offsets = [0, 0], sizes = [8, 128], strides = [1, 1]} : vector<16x256xf32> to vector<8x128xf32>
    %98 = arith.addf %91, %97 : vector<8x128xf32>
    %99 = vector.broadcast %4 : vector<1x128xf32> to vector<8x128xf32>
    %100 = arith.addf %98, %99 : vector<8x128xf32>
    %101 = vector.extract_strided_slice %100 {offsets = [0, 0], sizes = [8, 32], strides = [1, 1]} : vector<8x128xf32> to vector<8x32xf32>
    %102 = arith.negf %101 : vector<8x32xf32>
    %103 = math.exp %102 : vector<8x32xf32>
    %cst_32 = arith.constant 1.000000e+00 : f32
    %104 = vector.broadcast %cst_32 : f32 to vector<8x32xf32>
    %105 = arith.addf %104, %103 : vector<8x32xf32>
    %106 = arith.divf %104, %105 : vector<8x32xf32>
    %107 = vector.extract_strided_slice %100 {offsets = [0, 32], sizes = [8, 32], strides = [1, 1]} : vector<8x128xf32> to vector<8x32xf32>
    %108 = arith.negf %107 : vector<8x32xf32>
    %109 = math.exp %108 : vector<8x32xf32>
    %cst_33 = arith.constant 1.000000e+00 : f32
    %110 = vector.broadcast %cst_33 : f32 to vector<8x32xf32>
    %111 = arith.addf %110, %109 : vector<8x32xf32>
    %112 = arith.divf %110, %111 : vector<8x32xf32>
    %113 = vector.extract_strided_slice %100 {offsets = [0, 64], sizes = [8, 32], strides = [1, 1]} : vector<8x128xf32> to vector<8x32xf32>
    %114 = math.tanh %113 : vector<8x32xf32>
    %115 = vector.extract_strided_slice %100 {offsets = [0, 96], sizes = [8, 32], strides = [1, 1]} : vector<8x128xf32> to vector<8x32xf32>
    %116 = arith.negf %115 : vector<8x32xf32>
    %117 = math.exp %116 : vector<8x32xf32>
    %cst_34 = arith.constant 1.000000e+00 : f32
    %118 = vector.broadcast %cst_34 : f32 to vector<8x32xf32>
    %119 = arith.addf %118, %117 : vector<8x32xf32>
    %120 = arith.divf %118, %119 : vector<8x32xf32>
    %121 = arith.mulf %112, %45 : vector<8x32xf32>
    %122 = arith.mulf %106, %114 : vector<8x32xf32>
    %123 = arith.addf %121, %122 : vector<8x32xf32>
    %124 = math.tanh %123 : vector<8x32xf32>
    %125 = arith.mulf %120, %124 : vector<8x32xf32>
    %126 = vector.extract_strided_slice %96 {offsets = [8, 128], sizes = [8, 128], strides = [1, 1]} : vector<16x256xf32> to vector<8x128xf32>
    %127 = arith.addf %93, %126 : vector<8x128xf32>
    %128 = vector.broadcast %5 : vector<1x128xf32> to vector<8x128xf32>
    %129 = arith.addf %127, %128 : vector<8x128xf32>
    %130 = vector.extract_strided_slice %129 {offsets = [0, 0], sizes = [8, 32], strides = [1, 1]} : vector<8x128xf32> to vector<8x32xf32>
    %131 = arith.negf %130 : vector<8x32xf32>
    %132 = math.exp %131 : vector<8x32xf32>
    %cst_35 = arith.constant 1.000000e+00 : f32
    %133 = vector.broadcast %cst_35 : f32 to vector<8x32xf32>
    %134 = arith.addf %133, %132 : vector<8x32xf32>
    %135 = arith.divf %133, %134 : vector<8x32xf32>
    %136 = vector.extract_strided_slice %129 {offsets = [0, 32], sizes = [8, 32], strides = [1, 1]} : vector<8x128xf32> to vector<8x32xf32>
    %137 = arith.negf %136 : vector<8x32xf32>
    %138 = math.exp %137 : vector<8x32xf32>
    %cst_36 = arith.constant 1.000000e+00 : f32
    %139 = vector.broadcast %cst_36 : f32 to vector<8x32xf32>
    %140 = arith.addf %139, %138 : vector<8x32xf32>
    %141 = arith.divf %139, %140 : vector<8x32xf32>
    %142 = vector.extract_strided_slice %129 {offsets = [0, 64], sizes = [8, 32], strides = [1, 1]} : vector<8x128xf32> to vector<8x32xf32>
    %143 = math.tanh %142 : vector<8x32xf32>
    %144 = vector.extract_strided_slice %129 {offsets = [0, 96], sizes = [8, 32], strides = [1, 1]} : vector<8x128xf32> to vector<8x32xf32>
    %145 = arith.negf %144 : vector<8x32xf32>
    %146 = math.exp %145 : vector<8x32xf32>
    %cst_37 = arith.constant 1.000000e+00 : f32
    %147 = vector.broadcast %cst_37 : f32 to vector<8x32xf32>
    %148 = arith.addf %147, %146 : vector<8x32xf32>
    %149 = arith.divf %147, %148 : vector<8x32xf32>
    %150 = arith.mulf %141, %74 : vector<8x32xf32>
    %151 = arith.mulf %135, %143 : vector<8x32xf32>
    %152 = arith.addf %150, %151 : vector<8x32xf32>
    %153 = math.tanh %152 : vector<8x32xf32>
    %154 = arith.mulf %149, %153 : vector<8x32xf32>
    %155 = arith.index_cast %c1_i32 : i32 to index
    %c0_38 = arith.constant 0 : index
    %c0_39 = arith.constant 0 : index
    %156 = vector.load %arg22[%155, %c0_38, %c0_39] : memref<8x8x64xf32, #tpu.memory_space<vmem>>, vector<1x8x32xf32>
    %157 = vector.shape_cast %156 : vector<1x8x32xf32> to vector<8x32xf32>
    %158 = vector.shape_cast %125 : vector<8x32xf32> to vector<1x8x32xf32>
    tpu.vector_store %arg22[%155, %c0_38, %c0_39], %158 {strides = array<i32>} : memref<8x8x64xf32, #tpu.memory_space<vmem>>, vector<1x8x32xf32>,
    %159 = arith.index_cast %85 : i32 to index
    %c0_40 = arith.constant 0 : index
    %c32_41 = arith.constant 32 : index
    %160 = vector.load %arg22[%159, %c0_40, %c32_41] : memref<8x8x64xf32, #tpu.memory_space<vmem>>, vector<1x8x32xf32>
    %161 = vector.shape_cast %160 : vector<1x8x32xf32> to vector<8x32xf32>
    %162 = vector.shape_cast %154 : vector<8x32xf32> to vector<1x8x32xf32>
    tpu.vector_store %arg22[%159, %c0_40, %c32_41], %162 {strides = array<i32>} : memref<8x8x64xf32, #tpu.memory_space<vmem>>, vector<1x8x32xf32>,
    %c2_i32 = arith.constant 2 : i32
    %c7_i32_42 = arith.constant 7 : i32
    %163 = arith.subi %c7_i32_42, %c2_i32 : i32
    %c8_i32_43 = arith.constant 8 : i32
    %164 = arith.muli %c2_i32, %c8_i32_43 : i32
    %165 = tpu.assume_multiple %164, 8 : i32
    %c8_i32_44 = arith.constant 8 : i32
    %166 = arith.muli %163, %c8_i32_44 : i32
    %167 = tpu.assume_multiple %166, 8 : i32
    %168 = arith.index_cast %165 : i32 to index
    %c0_45 = arith.constant 0 : index
    %169 = vector.load %arg21[%168, %c0_45] : memref<64x256xf32, #tpu.memory_space<vmem>>, vector<8x128xf32>
    %170 = arith.index_cast %167 : i32 to index
    %c128_46 = arith.constant 128 : index
    %171 = vector.load %arg21[%170, %c128_46] : memref<64x256xf32, #tpu.memory_space<vmem>>, vector<8x128xf32>
    %172 = tpu.concatenate %125, %154 in 0 : vector<8x32xf32>, vector<8x32xf32> -> vector<16x32xf32>
    %c0_47 = arith.constant 0 : index
    %c0_48 = arith.constant 0 : index
    %173 = vector.load %arg4[%c0_47, %c0_48] : memref<32x256xf32, #tpu.memory_space<vmem>>, vector<32x256xf32>
    %cst_49 = arith.constant dense<0.000000e+00> : vector<16x256xf32>
    %174 = tpu.matmul %172, %173, %cst_49 {dimension_numbers = #tpu.dot_dimension_numbers<[1], [0], [0], [1], [0, 0, 1, 1], [], []>} : vector<16x32xf32>, vector<32x256xf32>, vector<16x256xf32> -> vector<16x256xf32>
    %175 = vector.extract_strided_slice %174 {offsets = [0, 0], sizes = [8, 128], strides = [1, 1]} : vector<16x256xf32> to vector<8x128xf32>
    %176 = arith.addf %169, %175 : vector<8x128xf32>
    %177 = vector.broadcast %4 : vector<1x128xf32> to vector<8x128xf32>
    %178 = arith.addf %176, %177 : vector<8x128xf32>
    %179 = vector.extract_strided_slice %178 {offsets = [0, 0], sizes = [8, 32], strides = [1, 1]} : vector<8x128xf32> to vector<8x32xf32>
    %180 = arith.negf %179 : vector<8x32xf32>
    %181 = math.exp %180 : vector<8x32xf32>
    %cst_50 = arith.constant 1.000000e+00 : f32
    %182 = vector.broadcast %cst_50 : f32 to vector<8x32xf32>
    %183 = arith.addf %182, %181 : vector<8x32xf32>
    %184 = arith.divf %182, %183 : vector<8x32xf32>
    %185 = vector.extract_strided_slice %178 {offsets = [0, 32], sizes = [8, 32], strides = [1, 1]} : vector<8x128xf32> to vector<8x32xf32>
    %186 = arith.negf %185 : vector<8x32xf32>
    %187 = math.exp %186 : vector<8x32xf32>
    %cst_51 = arith.constant 1.000000e+00 : f32
    %188 = vector.broadcast %cst_51 : f32 to vector<8x32xf32>
    %189 = arith.addf %188, %187 : vector<8x32xf32>
    %190 = arith.divf %188, %189 : vector<8x32xf32>
    %191 = vector.extract_strided_slice %178 {offsets = [0, 64], sizes = [8, 32], strides = [1, 1]} : vector<8x128xf32> to vector<8x32xf32>
    %192 = math.tanh %191 : vector<8x32xf32>
    %193 = vector.extract_strided_slice %178 {offsets = [0, 96], sizes = [8, 32], strides = [1, 1]} : vector<8x128xf32> to vector<8x32xf32>
    %194 = arith.negf %193 : vector<8x32xf32>
    %195 = math.exp %194 : vector<8x32xf32>
    %cst_52 = arith.constant 1.000000e+00 : f32
    %196 = vector.broadcast %cst_52 : f32 to vector<8x32xf32>
    %197 = arith.addf %196, %195 : vector<8x32xf32>
    %198 = arith.divf %196, %197 : vector<8x32xf32>
    %199 = arith.mulf %190, %123 : vector<8x32xf32>
    %200 = arith.mulf %184, %192 : vector<8x32xf32>
    %201 = arith.addf %199, %200 : vector<8x32xf32>
    %202 = math.tanh %201 : vector<8x32xf32>
    %203 = arith.mulf %198, %202 : vector<8x32xf32>
    %204 = vector.extract_strided_slice %174 {offsets = [8, 128], sizes = [8, 128], strides = [1, 1]} : vector<16x256xf32> to vector<8x128xf32>
    %205 = arith.addf %171, %204 : vector<8x128xf32>
    %206 = vector.broadcast %5 : vector<1x128xf32> to vector<8x128xf32>
    %207 = arith.addf %205, %206 : vector<8x128xf32>
    %208 = vector.extract_strided_slice %207 {offsets = [0, 0], sizes = [8, 32], strides = [1, 1]} : vector<8x128xf32> to vector<8x32xf32>
    %209 = arith.negf %208 : vector<8x32xf32>
    %210 = math.exp %209 : vector<8x32xf32>
    %cst_53 = arith.constant 1.000000e+00 : f32
    %211 = vector.broadcast %cst_53 : f32 to vector<8x32xf32>
    %212 = arith.addf %211, %210 : vector<8x32xf32>
    %213 = arith.divf %211, %212 : vector<8x32xf32>
    %214 = vector.extract_strided_slice %207 {offsets = [0, 32], sizes = [8, 32], strides = [1, 1]} : vector<8x128xf32> to vector<8x32xf32>
    %215 = arith.negf %214 : vector<8x32xf32>
    %216 = math.exp %215 : vector<8x32xf32>
    %cst_54 = arith.constant 1.000000e+00 : f32
    %217 = vector.broadcast %cst_54 : f32 to vector<8x32xf32>
    %218 = arith.addf %217, %216 : vector<8x32xf32>
    %219 = arith.divf %217, %218 : vector<8x32xf32>
    %220 = vector.extract_strided_slice %207 {offsets = [0, 64], sizes = [8, 32], strides = [1, 1]} : vector<8x128xf32> to vector<8x32xf32>
    %221 = math.tanh %220 : vector<8x32xf32>
    %222 = vector.extract_strided_slice %207 {offsets = [0, 96], sizes = [8, 32], strides = [1, 1]} : vector<8x128xf32> to vector<8x32xf32>
    %223 = arith.negf %222 : vector<8x32xf32>
    %224 = math.exp %223 : vector<8x32xf32>
    %cst_55 = arith.constant 1.000000e+00 : f32
    %225 = vector.broadcast %cst_55 : f32 to vector<8x32xf32>
    %226 = arith.addf %225, %224 : vector<8x32xf32>
    %227 = arith.divf %225, %226 : vector<8x32xf32>
    %228 = arith.mulf %219, %152 : vector<8x32xf32>
    %229 = arith.mulf %213, %221 : vector<8x32xf32>
    %230 = arith.addf %228, %229 : vector<8x32xf32>
    %231 = math.tanh %230 : vector<8x32xf32>
    %232 = arith.mulf %227, %231 : vector<8x32xf32>
    %233 = arith.index_cast %c2_i32 : i32 to index
    %c0_56 = arith.constant 0 : index
    %c0_57 = arith.constant 0 : index
    %234 = vector.load %arg22[%233, %c0_56, %c0_57] : memref<8x8x64xf32, #tpu.memory_space<vmem>>, vector<1x8x32xf32>
    %235 = vector.shape_cast %234 : vector<1x8x32xf32> to vector<8x32xf32>
    %236 = vector.shape_cast %203 : vector<8x32xf32> to vector<1x8x32xf32>
    tpu.vector_store %arg22[%233, %c0_56, %c0_57], %236 {strides = array<i32>} : memref<8x8x64xf32, #tpu.memory_space<vmem>>, vector<1x8x32xf32>,
    %237 = arith.index_cast %163 : i32 to index
    %c0_58 = arith.constant 0 : index
    %c32_59 = arith.constant 32 : index
    %238 = vector.load %arg22[%237, %c0_58, %c32_59] : memref<8x8x64xf32, #tpu.memory_space<vmem>>, vector<1x8x32xf32>
    %239 = vector.shape_cast %238 : vector<1x8x32xf32> to vector<8x32xf32>
    %240 = vector.shape_cast %232 : vector<8x32xf32> to vector<1x8x32xf32>
    tpu.vector_store %arg22[%237, %c0_58, %c32_59], %240 {strides = array<i32>} : memref<8x8x64xf32, #tpu.memory_space<vmem>>, vector<1x8x32xf32>,
    %c3_i32 = arith.constant 3 : i32
    %c7_i32_60 = arith.constant 7 : i32
    %241 = arith.subi %c7_i32_60, %c3_i32 : i32
    %c8_i32_61 = arith.constant 8 : i32
    %242 = arith.muli %c3_i32, %c8_i32_61 : i32
    %243 = tpu.assume_multiple %242, 8 : i32
    %c8_i32_62 = arith.constant 8 : i32
    %244 = arith.muli %241, %c8_i32_62 : i32
    %245 = tpu.assume_multiple %244, 8 : i32
    %246 = arith.index_cast %243 : i32 to index
    %c0_63 = arith.constant 0 : index
    %247 = vector.load %arg21[%246, %c0_63] : memref<64x256xf32, #tpu.memory_space<vmem>>, vector<8x128xf32>
    %248 = arith.index_cast %245 : i32 to index
    %c128_64 = arith.constant 128 : index
    %249 = vector.load %arg21[%248, %c128_64] : memref<64x256xf32, #tpu.memory_space<vmem>>, vector<8x128xf32>
    %250 = tpu.concatenate %203, %232 in 0 : vector<8x32xf32>, vector<8x32xf32> -> vector<16x32xf32>
    %c0_65 = arith.constant 0 : index
    %c0_66 = arith.constant 0 : index
    %251 = vector.load %arg4[%c0_65, %c0_66] : memref<32x256xf32, #tpu.memory_space<vmem>>, vector<32x256xf32>
    %cst_67 = arith.constant dense<0.000000e+00> : vector<16x256xf32>
    %252 = tpu.matmul %250, %251, %cst_67 {dimension_numbers = #tpu.dot_dimension_numbers<[1], [0], [0], [1], [0, 0, 1, 1], [], []>} : vector<16x32xf32>, vector<32x256xf32>, vector<16x256xf32> -> vector<16x256xf32>
    %253 = vector.extract_strided_slice %252 {offsets = [0, 0], sizes = [8, 128], strides = [1, 1]} : vector<16x256xf32> to vector<8x128xf32>
    %254 = arith.addf %247, %253 : vector<8x128xf32>
    %255 = vector.broadcast %4 : vector<1x128xf32> to vector<8x128xf32>
    %256 = arith.addf %254, %255 : vector<8x128xf32>
    %257 = vector.extract_strided_slice %256 {offsets = [0, 0], sizes = [8, 32], strides = [1, 1]} : vector<8x128xf32> to vector<8x32xf32>
    %258 = arith.negf %257 : vector<8x32xf32>
    %259 = math.exp %258 : vector<8x32xf32>
    %cst_68 = arith.constant 1.000000e+00 : f32
    %260 = vector.broadcast %cst_68 : f32 to vector<8x32xf32>
    %261 = arith.addf %260, %259 : vector<8x32xf32>
    %262 = arith.divf %260, %261 : vector<8x32xf32>
    %263 = vector.extract_strided_slice %256 {offsets = [0, 32], sizes = [8, 32], strides = [1, 1]} : vector<8x128xf32> to vector<8x32xf32>
    %264 = arith.negf %263 : vector<8x32xf32>
    %265 = math.exp %264 : vector<8x32xf32>
    %cst_69 = arith.constant 1.000000e+00 : f32
    %266 = vector.broadcast %cst_69 : f32 to vector<8x32xf32>
    %267 = arith.addf %266, %265 : vector<8x32xf32>
    %268 = arith.divf %266, %267 : vector<8x32xf32>
    %269 = vector.extract_strided_slice %256 {offsets = [0, 64], sizes = [8, 32], strides = [1, 1]} : vector<8x128xf32> to vector<8x32xf32>
    %270 = math.tanh %269 : vector<8x32xf32>
    %271 = vector.extract_strided_slice %256 {offsets = [0, 96], sizes = [8, 32], strides = [1, 1]} : vector<8x128xf32> to vector<8x32xf32>
    %272 = arith.negf %271 : vector<8x32xf32>
    %273 = math.exp %272 : vector<8x32xf32>
    %cst_70 = arith.constant 1.000000e+00 : f32
    %274 = vector.broadcast %cst_70 : f32 to vector<8x32xf32>
    %275 = arith.addf %274, %273 : vector<8x32xf32>
    %276 = arith.divf %274, %275 : vector<8x32xf32>
    %277 = arith.mulf %268, %201 : vector<8x32xf32>
    %278 = arith.mulf %262, %270 : vector<8x32xf32>
    %279 = arith.addf %277, %278 : vector<8x32xf32>
    %280 = math.tanh %279 : vector<8x32xf32>
    %281 = arith.mulf %276, %280 : vector<8x32xf32>
    %282 = vector.extract_strided_slice %252 {offsets = [8, 128], sizes = [8, 128], strides = [1, 1]} : vector<16x256xf32> to vector<8x128xf32>
    %283 = arith.addf %249, %282 : vector<8x128xf32>
    %284 = vector.broadcast %5 : vector<1x128xf32> to vector<8x128xf32>
    %285 = arith.addf %283, %284 : vector<8x128xf32>
    %286 = vector.extract_strided_slice %285 {offsets = [0, 0], sizes = [8, 32], strides = [1, 1]} : vector<8x128xf32> to vector<8x32xf32>
    %287 = arith.negf %286 : vector<8x32xf32>
    %288 = math.exp %287 : vector<8x32xf32>
    %cst_71 = arith.constant 1.000000e+00 : f32
    %289 = vector.broadcast %cst_71 : f32 to vector<8x32xf32>
    %290 = arith.addf %289, %288 : vector<8x32xf32>
    %291 = arith.divf %289, %290 : vector<8x32xf32>
    %292 = vector.extract_strided_slice %285 {offsets = [0, 32], sizes = [8, 32], strides = [1, 1]} : vector<8x128xf32> to vector<8x32xf32>
    %293 = arith.negf %292 : vector<8x32xf32>
    %294 = math.exp %293 : vector<8x32xf32>
    %cst_72 = arith.constant 1.000000e+00 : f32
    %295 = vector.broadcast %cst_72 : f32 to vector<8x32xf32>
    %296 = arith.addf %295, %294 : vector<8x32xf32>
    %297 = arith.divf %295, %296 : vector<8x32xf32>
    %298 = vector.extract_strided_slice %285 {offsets = [0, 64], sizes = [8, 32], strides = [1, 1]} : vector<8x128xf32> to vector<8x32xf32>
    %299 = math.tanh %298 : vector<8x32xf32>
    %300 = vector.extract_strided_slice %285 {offsets = [0, 96], sizes = [8, 32], strides = [1, 1]} : vector<8x128xf32> to vector<8x32xf32>
    %301 = arith.negf %300 : vector<8x32xf32>
    %302 = math.exp %301 : vector<8x32xf32>
    %cst_73 = arith.constant 1.000000e+00 : f32
    %303 = vector.broadcast %cst_73 : f32 to vector<8x32xf32>
    %304 = arith.addf %303, %302 : vector<8x32xf32>
    %305 = arith.divf %303, %304 : vector<8x32xf32>
    %306 = arith.mulf %297, %230 : vector<8x32xf32>
    %307 = arith.mulf %291, %299 : vector<8x32xf32>
    %308 = arith.addf %306, %307 : vector<8x32xf32>
    %309 = math.tanh %308 : vector<8x32xf32>
    %310 = arith.mulf %305, %309 : vector<8x32xf32>
    %311 = arith.index_cast %c3_i32 : i32 to index
    %c0_74 = arith.constant 0 : index
    %c0_75 = arith.constant 0 : index
    %312 = vector.load %arg22[%311, %c0_74, %c0_75] : memref<8x8x64xf32, #tpu.memory_space<vmem>>, vector<1x8x32xf32>
    %313 = vector.shape_cast %312 : vector<1x8x32xf32> to vector<8x32xf32>
    %314 = vector.shape_cast %281 : vector<8x32xf32> to vector<1x8x32xf32>
    tpu.vector_store %arg22[%311, %c0_74, %c0_75], %314 {strides = array<i32>} : memref<8x8x64xf32, #tpu.memory_space<vmem>>, vector<1x8x32xf32>,
    %315 = arith.index_cast %241 : i32 to index
    %c0_76 = arith.constant 0 : index
    %c32_77 = arith.constant 32 : index
    %316 = vector.load %arg22[%315, %c0_76, %c32_77] : memref<8x8x64xf32, #tpu.memory_space<vmem>>, vector<1x8x32xf32>
    %317 = vector.shape_cast %316 : vector<1x8x32xf32> to vector<8x32xf32>
    %318 = vector.shape_cast %310 : vector<8x32xf32> to vector<1x8x32xf32>
    tpu.vector_store %arg22[%315, %c0_76, %c32_77], %318 {strides = array<i32>} : memref<8x8x64xf32, #tpu.memory_space<vmem>>, vector<1x8x32xf32>,
    %c4_i32 = arith.constant 4 : i32
    %c7_i32_78 = arith.constant 7 : i32
    %319 = arith.subi %c7_i32_78, %c4_i32 : i32
    %c8_i32_79 = arith.constant 8 : i32
    %320 = arith.muli %c4_i32, %c8_i32_79 : i32
    %321 = tpu.assume_multiple %320, 8 : i32
    %c8_i32_80 = arith.constant 8 : i32
    %322 = arith.muli %319, %c8_i32_80 : i32
    %323 = tpu.assume_multiple %322, 8 : i32
    %324 = arith.index_cast %321 : i32 to index
    %c0_81 = arith.constant 0 : index
    %325 = vector.load %arg21[%324, %c0_81] : memref<64x256xf32, #tpu.memory_space<vmem>>, vector<8x128xf32>
    %326 = arith.index_cast %323 : i32 to index
    %c128_82 = arith.constant 128 : index
    %327 = vector.load %arg21[%326, %c128_82] : memref<64x256xf32, #tpu.memory_space<vmem>>, vector<8x128xf32>
    %328 = tpu.concatenate %281, %310 in 0 : vector<8x32xf32>, vector<8x32xf32> -> vector<16x32xf32>
    %c0_83 = arith.constant 0 : index
    %c0_84 = arith.constant 0 : index
    %329 = vector.load %arg4[%c0_83, %c0_84] : memref<32x256xf32, #tpu.memory_space<vmem>>, vector<32x256xf32>
    %cst_85 = arith.constant dense<0.000000e+00> : vector<16x256xf32>
    %330 = tpu.matmul %328, %329, %cst_85 {dimension_numbers = #tpu.dot_dimension_numbers<[1], [0], [0], [1], [0, 0, 1, 1], [], []>} : vector<16x32xf32>, vector<32x256xf32>, vector<16x256xf32> -> vector<16x256xf32>
    %331 = vector.extract_strided_slice %330 {offsets = [0, 0], sizes = [8, 128], strides = [1, 1]} : vector<16x256xf32> to vector<8x128xf32>
    %332 = arith.addf %325, %331 : vector<8x128xf32>
    %333 = vector.broadcast %4 : vector<1x128xf32> to vector<8x128xf32>
    %334 = arith.addf %332, %333 : vector<8x128xf32>
    %335 = vector.extract_strided_slice %334 {offsets = [0, 0], sizes = [8, 32], strides = [1, 1]} : vector<8x128xf32> to vector<8x32xf32>
    %336 = arith.negf %335 : vector<8x32xf32>
    %337 = math.exp %336 : vector<8x32xf32>
    %cst_86 = arith.constant 1.000000e+00 : f32
    %338 = vector.broadcast %cst_86 : f32 to vector<8x32xf32>
    %339 = arith.addf %338, %337 : vector<8x32xf32>
    %340 = arith.divf %338, %339 : vector<8x32xf32>
    %341 = vector.extract_strided_slice %334 {offsets = [0, 32], sizes = [8, 32], strides = [1, 1]} : vector<8x128xf32> to vector<8x32xf32>
    %342 = arith.negf %341 : vector<8x32xf32>
    %343 = math.exp %342 : vector<8x32xf32>
    %cst_87 = arith.constant 1.000000e+00 : f32
    %344 = vector.broadcast %cst_87 : f32 to vector<8x32xf32>
    %345 = arith.addf %344, %343 : vector<8x32xf32>
    %346 = arith.divf %344, %345 : vector<8x32xf32>
    %347 = vector.extract_strided_slice %334 {offsets = [0, 64], sizes = [8, 32], strides = [1, 1]} : vector<8x128xf32> to vector<8x32xf32>
    %348 = math.tanh %347 : vector<8x32xf32>
    %349 = vector.extract_strided_slice %334 {offsets = [0, 96], sizes = [8, 32], strides = [1, 1]} : vector<8x128xf32> to vector<8x32xf32>
    %350 = arith.negf %349 : vector<8x32xf32>
    %351 = math.exp %350 : vector<8x32xf32>
    %cst_88 = arith.constant 1.000000e+00 : f32
    %352 = vector.broadcast %cst_88 : f32 to vector<8x32xf32>
    %353 = arith.addf %352, %351 : vector<8x32xf32>
    %354 = arith.divf %352, %353 : vector<8x32xf32>
    %355 = arith.mulf %346, %279 : vector<8x32xf32>
    %356 = arith.mulf %340, %348 : vector<8x32xf32>
    %357 = arith.addf %355, %356 : vector<8x32xf32>
    %358 = math.tanh %357 : vector<8x32xf32>
    %359 = arith.mulf %354, %358 : vector<8x32xf32>
    %360 = vector.extract_strided_slice %330 {offsets = [8, 128], sizes = [8, 128], strides = [1, 1]} : vector<16x256xf32> to vector<8x128xf32>
    %361 = arith.addf %327, %360 : vector<8x128xf32>
    %362 = vector.broadcast %5 : vector<1x128xf32> to vector<8x128xf32>
    %363 = arith.addf %361, %362 : vector<8x128xf32>
    %364 = vector.extract_strided_slice %363 {offsets = [0, 0], sizes = [8, 32], strides = [1, 1]} : vector<8x128xf32> to vector<8x32xf32>
    %365 = arith.negf %364 : vector<8x32xf32>
    %366 = math.exp %365 : vector<8x32xf32>
    %cst_89 = arith.constant 1.000000e+00 : f32
    %367 = vector.broadcast %cst_89 : f32 to vector<8x32xf32>
    %368 = arith.addf %367, %366 : vector<8x32xf32>
    %369 = arith.divf %367, %368 : vector<8x32xf32>
    %370 = vector.extract_strided_slice %363 {offsets = [0, 32], sizes = [8, 32], strides = [1, 1]} : vector<8x128xf32> to vector<8x32xf32>
    %371 = arith.negf %370 : vector<8x32xf32>
    %372 = math.exp %371 : vector<8x32xf32>
    %cst_90 = arith.constant 1.000000e+00 : f32
    %373 = vector.broadcast %cst_90 : f32 to vector<8x32xf32>
    %374 = arith.addf %373, %372 : vector<8x32xf32>
    %375 = arith.divf %373, %374 : vector<8x32xf32>
    %376 = vector.extract_strided_slice %363 {offsets = [0, 64], sizes = [8, 32], strides = [1, 1]} : vector<8x128xf32> to vector<8x32xf32>
    %377 = math.tanh %376 : vector<8x32xf32>
    %378 = vector.extract_strided_slice %363 {offsets = [0, 96], sizes = [8, 32], strides = [1, 1]} : vector<8x128xf32> to vector<8x32xf32>
    %379 = arith.negf %378 : vector<8x32xf32>
    %380 = math.exp %379 : vector<8x32xf32>
    %cst_91 = arith.constant 1.000000e+00 : f32
    %381 = vector.broadcast %cst_91 : f32 to vector<8x32xf32>
    %382 = arith.addf %381, %380 : vector<8x32xf32>
    %383 = arith.divf %381, %382 : vector<8x32xf32>
    %384 = arith.mulf %375, %308 : vector<8x32xf32>
    %385 = arith.mulf %369, %377 : vector<8x32xf32>
    %386 = arith.addf %384, %385 : vector<8x32xf32>
    %387 = math.tanh %386 : vector<8x32xf32>
    %388 = arith.mulf %383, %387 : vector<8x32xf32>
    %389 = arith.index_cast %c4_i32 : i32 to index
    %c0_92 = arith.constant 0 : index
    %c0_93 = arith.constant 0 : index
    %390 = vector.load %arg22[%389, %c0_92, %c0_93] : memref<8x8x64xf32, #tpu.memory_space<vmem>>, vector<1x8x32xf32>
    %391 = vector.shape_cast %390 : vector<1x8x32xf32> to vector<8x32xf32>
    %392 = vector.shape_cast %359 : vector<8x32xf32> to vector<1x8x32xf32>
    tpu.vector_store %arg22[%389, %c0_92, %c0_93], %392 {strides = array<i32>} : memref<8x8x64xf32, #tpu.memory_space<vmem>>, vector<1x8x32xf32>,
    %393 = arith.index_cast %319 : i32 to index
    %c0_94 = arith.constant 0 : index
    %c32_95 = arith.constant 32 : index
    %394 = vector.load %arg22[%393, %c0_94, %c32_95] : memref<8x8x64xf32, #tpu.memory_space<vmem>>, vector<1x8x32xf32>
    %395 = vector.shape_cast %394 : vector<1x8x32xf32> to vector<8x32xf32>
    %396 = vector.shape_cast %388 : vector<8x32xf32> to vector<1x8x32xf32>
    tpu.vector_store %arg22[%393, %c0_94, %c32_95], %396 {strides = array<i32>} : memref<8x8x64xf32, #tpu.memory_space<vmem>>, vector<1x8x32xf32>,
    %c5_i32 = arith.constant 5 : i32
    %c7_i32_96 = arith.constant 7 : i32
    %397 = arith.subi %c7_i32_96, %c5_i32 : i32
    %c8_i32_97 = arith.constant 8 : i32
    %398 = arith.muli %c5_i32, %c8_i32_97 : i32
    %399 = tpu.assume_multiple %398, 8 : i32
    %c8_i32_98 = arith.constant 8 : i32
    %400 = arith.muli %397, %c8_i32_98 : i32
    %401 = tpu.assume_multiple %400, 8 : i32
    %402 = arith.index_cast %399 : i32 to index
    %c0_99 = arith.constant 0 : index
    %403 = vector.load %arg21[%402, %c0_99] : memref<64x256xf32, #tpu.memory_space<vmem>>, vector<8x128xf32>
    %404 = arith.index_cast %401 : i32 to index
    %c128_100 = arith.constant 128 : index
    %405 = vector.load %arg21[%404, %c128_100] : memref<64x256xf32, #tpu.memory_space<vmem>>, vector<8x128xf32>
    %406 = tpu.concatenate %359, %388 in 0 : vector<8x32xf32>, vector<8x32xf32> -> vector<16x32xf32>
    %c0_101 = arith.constant 0 : index
    %c0_102 = arith.constant 0 : index
    %407 = vector.load %arg4[%c0_101, %c0_102] : memref<32x256xf32, #tpu.memory_space<vmem>>, vector<32x256xf32>
    %cst_103 = arith.constant dense<0.000000e+00> : vector<16x256xf32>
    %408 = tpu.matmul %406, %407, %cst_103 {dimension_numbers = #tpu.dot_dimension_numbers<[1], [0], [0], [1], [0, 0, 1, 1], [], []>} : vector<16x32xf32>, vector<32x256xf32>, vector<16x256xf32> -> vector<16x256xf32>
    %409 = vector.extract_strided_slice %408 {offsets = [0, 0], sizes = [8, 128], strides = [1, 1]} : vector<16x256xf32> to vector<8x128xf32>
    %410 = arith.addf %403, %409 : vector<8x128xf32>
    %411 = vector.broadcast %4 : vector<1x128xf32> to vector<8x128xf32>
    %412 = arith.addf %410, %411 : vector<8x128xf32>
    %413 = vector.extract_strided_slice %412 {offsets = [0, 0], sizes = [8, 32], strides = [1, 1]} : vector<8x128xf32> to vector<8x32xf32>
    %414 = arith.negf %413 : vector<8x32xf32>
    %415 = math.exp %414 : vector<8x32xf32>
    %cst_104 = arith.constant 1.000000e+00 : f32
    %416 = vector.broadcast %cst_104 : f32 to vector<8x32xf32>
    %417 = arith.addf %416, %415 : vector<8x32xf32>
    %418 = arith.divf %416, %417 : vector<8x32xf32>
    %419 = vector.extract_strided_slice %412 {offsets = [0, 32], sizes = [8, 32], strides = [1, 1]} : vector<8x128xf32> to vector<8x32xf32>
    %420 = arith.negf %419 : vector<8x32xf32>
    %421 = math.exp %420 : vector<8x32xf32>
    %cst_105 = arith.constant 1.000000e+00 : f32
    %422 = vector.broadcast %cst_105 : f32 to vector<8x32xf32>
    %423 = arith.addf %422, %421 : vector<8x32xf32>
    %424 = arith.divf %422, %423 : vector<8x32xf32>
    %425 = vector.extract_strided_slice %412 {offsets = [0, 64], sizes = [8, 32], strides = [1, 1]} : vector<8x128xf32> to vector<8x32xf32>
    %426 = math.tanh %425 : vector<8x32xf32>
    %427 = vector.extract_strided_slice %412 {offsets = [0, 96], sizes = [8, 32], strides = [1, 1]} : vector<8x128xf32> to vector<8x32xf32>
    %428 = arith.negf %427 : vector<8x32xf32>
    %429 = math.exp %428 : vector<8x32xf32>
    %cst_106 = arith.constant 1.000000e+00 : f32
    %430 = vector.broadcast %cst_106 : f32 to vector<8x32xf32>
    %431 = arith.addf %430, %429 : vector<8x32xf32>
    %432 = arith.divf %430, %431 : vector<8x32xf32>
    %433 = arith.mulf %424, %357 : vector<8x32xf32>
    %434 = arith.mulf %418, %426 : vector<8x32xf32>
    %435 = arith.addf %433, %434 : vector<8x32xf32>
    %436 = math.tanh %435 : vector<8x32xf32>
    %437 = arith.mulf %432, %436 : vector<8x32xf32>
    %438 = vector.extract_strided_slice %408 {offsets = [8, 128], sizes = [8, 128], strides = [1, 1]} : vector<16x256xf32> to vector<8x128xf32>
    %439 = arith.addf %405, %438 : vector<8x128xf32>
    %440 = vector.broadcast %5 : vector<1x128xf32> to vector<8x128xf32>
    %441 = arith.addf %439, %440 : vector<8x128xf32>
    %442 = vector.extract_strided_slice %441 {offsets = [0, 0], sizes = [8, 32], strides = [1, 1]} : vector<8x128xf32> to vector<8x32xf32>
    %443 = arith.negf %442 : vector<8x32xf32>
    %444 = math.exp %443 : vector<8x32xf32>
    %cst_107 = arith.constant 1.000000e+00 : f32
    %445 = vector.broadcast %cst_107 : f32 to vector<8x32xf32>
    %446 = arith.addf %445, %444 : vector<8x32xf32>
    %447 = arith.divf %445, %446 : vector<8x32xf32>
    %448 = vector.extract_strided_slice %441 {offsets = [0, 32], sizes = [8, 32], strides = [1, 1]} : vector<8x128xf32> to vector<8x32xf32>
    %449 = arith.negf %448 : vector<8x32xf32>
    %450 = math.exp %449 : vector<8x32xf32>
    %cst_108 = arith.constant 1.000000e+00 : f32
    %451 = vector.broadcast %cst_108 : f32 to vector<8x32xf32>
    %452 = arith.addf %451, %450 : vector<8x32xf32>
    %453 = arith.divf %451, %452 : vector<8x32xf32>
    %454 = vector.extract_strided_slice %441 {offsets = [0, 64], sizes = [8, 32], strides = [1, 1]} : vector<8x128xf32> to vector<8x32xf32>
    %455 = math.tanh %454 : vector<8x32xf32>
    %456 = vector.extract_strided_slice %441 {offsets = [0, 96], sizes = [8, 32], strides = [1, 1]} : vector<8x128xf32> to vector<8x32xf32>
    %457 = arith.negf %456 : vector<8x32xf32>
    %458 = math.exp %457 : vector<8x32xf32>
    %cst_109 = arith.constant 1.000000e+00 : f32
    %459 = vector.broadcast %cst_109 : f32 to vector<8x32xf32>
    %460 = arith.addf %459, %458 : vector<8x32xf32>
    %461 = arith.divf %459, %460 : vector<8x32xf32>
    %462 = arith.mulf %453, %386 : vector<8x32xf32>
    %463 = arith.mulf %447, %455 : vector<8x32xf32>
    %464 = arith.addf %462, %463 : vector<8x32xf32>
    %465 = math.tanh %464 : vector<8x32xf32>
    %466 = arith.mulf %461, %465 : vector<8x32xf32>
    %467 = arith.index_cast %c5_i32 : i32 to index
    %c0_110 = arith.constant 0 : index
    %c0_111 = arith.constant 0 : index
    %468 = vector.load %arg22[%467, %c0_110, %c0_111] : memref<8x8x64xf32, #tpu.memory_space<vmem>>, vector<1x8x32xf32>
    %469 = vector.shape_cast %468 : vector<1x8x32xf32> to vector<8x32xf32>
    %470 = vector.shape_cast %437 : vector<8x32xf32> to vector<1x8x32xf32>
    tpu.vector_store %arg22[%467, %c0_110, %c0_111], %470 {strides = array<i32>} : memref<8x8x64xf32, #tpu.memory_space<vmem>>, vector<1x8x32xf32>,
    %471 = arith.index_cast %397 : i32 to index
    %c0_112 = arith.constant 0 : index
    %c32_113 = arith.constant 32 : index
    %472 = vector.load %arg22[%471, %c0_112, %c32_113] : memref<8x8x64xf32, #tpu.memory_space<vmem>>, vector<1x8x32xf32>
    %473 = vector.shape_cast %472 : vector<1x8x32xf32> to vector<8x32xf32>
    %474 = vector.shape_cast %466 : vector<8x32xf32> to vector<1x8x32xf32>
    tpu.vector_store %arg22[%471, %c0_112, %c32_113], %474 {strides = array<i32>} : memref<8x8x64xf32, #tpu.memory_space<vmem>>, vector<1x8x32xf32>,
    %c6_i32 = arith.constant 6 : i32
    %c7_i32_114 = arith.constant 7 : i32
    %475 = arith.subi %c7_i32_114, %c6_i32 : i32
    %c8_i32_115 = arith.constant 8 : i32
    %476 = arith.muli %c6_i32, %c8_i32_115 : i32
    %477 = tpu.assume_multiple %476, 8 : i32
    %c8_i32_116 = arith.constant 8 : i32
    %478 = arith.muli %475, %c8_i32_116 : i32
    %479 = tpu.assume_multiple %478, 8 : i32
    %480 = arith.index_cast %477 : i32 to index
    %c0_117 = arith.constant 0 : index
    %481 = vector.load %arg21[%480, %c0_117] : memref<64x256xf32, #tpu.memory_space<vmem>>, vector<8x128xf32>
    %482 = arith.index_cast %479 : i32 to index
    %c128_118 = arith.constant 128 : index
    %483 = vector.load %arg21[%482, %c128_118] : memref<64x256xf32, #tpu.memory_space<vmem>>, vector<8x128xf32>
    %484 = tpu.concatenate %437, %466 in 0 : vector<8x32xf32>, vector<8x32xf32> -> vector<16x32xf32>
    %c0_119 = arith.constant 0 : index
    %c0_120 = arith.constant 0 : index
    %485 = vector.load %arg4[%c0_119, %c0_120] : memref<32x256xf32, #tpu.memory_space<vmem>>, vector<32x256xf32>
    %cst_121 = arith.constant dense<0.000000e+00> : vector<16x256xf32>
    %486 = tpu.matmul %484, %485, %cst_121 {dimension_numbers = #tpu.dot_dimension_numbers<[1], [0], [0], [1], [0, 0, 1, 1], [], []>} : vector<16x32xf32>, vector<32x256xf32>, vector<16x256xf32> -> vector<16x256xf32>
    %487 = vector.extract_strided_slice %486 {offsets = [0, 0], sizes = [8, 128], strides = [1, 1]} : vector<16x256xf32> to vector<8x128xf32>
    %488 = arith.addf %481, %487 : vector<8x128xf32>
    %489 = vector.broadcast %4 : vector<1x128xf32> to vector<8x128xf32>
    %490 = arith.addf %488, %489 : vector<8x128xf32>
    %491 = vector.extract_strided_slice %490 {offsets = [0, 0], sizes = [8, 32], strides = [1, 1]} : vector<8x128xf32> to vector<8x32xf32>
    %492 = arith.negf %491 : vector<8x32xf32>
    %493 = math.exp %492 : vector<8x32xf32>
    %cst_122 = arith.constant 1.000000e+00 : f32
    %494 = vector.broadcast %cst_122 : f32 to vector<8x32xf32>
    %495 = arith.addf %494, %493 : vector<8x32xf32>
    %496 = arith.divf %494, %495 : vector<8x32xf32>
    %497 = vector.extract_strided_slice %490 {offsets = [0, 32], sizes = [8, 32], strides = [1, 1]} : vector<8x128xf32> to vector<8x32xf32>
    %498 = arith.negf %497 : vector<8x32xf32>
    %499 = math.exp %498 : vector<8x32xf32>
    %cst_123 = arith.constant 1.000000e+00 : f32
    %500 = vector.broadcast %cst_123 : f32 to vector<8x32xf32>
    %501 = arith.addf %500, %499 : vector<8x32xf32>
    %502 = arith.divf %500, %501 : vector<8x32xf32>
    %503 = vector.extract_strided_slice %490 {offsets = [0, 64], sizes = [8, 32], strides = [1, 1]} : vector<8x128xf32> to vector<8x32xf32>
    %504 = math.tanh %503 : vector<8x32xf32>
    %505 = vector.extract_strided_slice %490 {offsets = [0, 96], sizes = [8, 32], strides = [1, 1]} : vector<8x128xf32> to vector<8x32xf32>
    %506 = arith.negf %505 : vector<8x32xf32>
    %507 = math.exp %506 : vector<8x32xf32>
    %cst_124 = arith.constant 1.000000e+00 : f32
    %508 = vector.broadcast %cst_124 : f32 to vector<8x32xf32>
    %509 = arith.addf %508, %507 : vector<8x32xf32>
    %510 = arith.divf %508, %509 : vector<8x32xf32>
    %511 = arith.mulf %502, %435 : vector<8x32xf32>
    %512 = arith.mulf %496, %504 : vector<8x32xf32>
    %513 = arith.addf %511, %512 : vector<8x32xf32>
    %514 = math.tanh %513 : vector<8x32xf32>
    %515 = arith.mulf %510, %514 : vector<8x32xf32>
    %516 = vector.extract_strided_slice %486 {offsets = [8, 128], sizes = [8, 128], strides = [1, 1]} : vector<16x256xf32> to vector<8x128xf32>
    %517 = arith.addf %483, %516 : vector<8x128xf32>
    %518 = vector.broadcast %5 : vector<1x128xf32> to vector<8x128xf32>
    %519 = arith.addf %517, %518 : vector<8x128xf32>
    %520 = vector.extract_strided_slice %519 {offsets = [0, 0], sizes = [8, 32], strides = [1, 1]} : vector<8x128xf32> to vector<8x32xf32>
    %521 = arith.negf %520 : vector<8x32xf32>
    %522 = math.exp %521 : vector<8x32xf32>
    %cst_125 = arith.constant 1.000000e+00 : f32
    %523 = vector.broadcast %cst_125 : f32 to vector<8x32xf32>
    %524 = arith.addf %523, %522 : vector<8x32xf32>
    %525 = arith.divf %523, %524 : vector<8x32xf32>
    %526 = vector.extract_strided_slice %519 {offsets = [0, 32], sizes = [8, 32], strides = [1, 1]} : vector<8x128xf32> to vector<8x32xf32>
    %527 = arith.negf %526 : vector<8x32xf32>
    %528 = math.exp %527 : vector<8x32xf32>
    %cst_126 = arith.constant 1.000000e+00 : f32
    %529 = vector.broadcast %cst_126 : f32 to vector<8x32xf32>
    %530 = arith.addf %529, %528 : vector<8x32xf32>
    %531 = arith.divf %529, %530 : vector<8x32xf32>
    %532 = vector.extract_strided_slice %519 {offsets = [0, 64], sizes = [8, 32], strides = [1, 1]} : vector<8x128xf32> to vector<8x32xf32>
    %533 = math.tanh %532 : vector<8x32xf32>
    %534 = vector.extract_strided_slice %519 {offsets = [0, 96], sizes = [8, 32], strides = [1, 1]} : vector<8x128xf32> to vector<8x32xf32>
    %535 = arith.negf %534 : vector<8x32xf32>
    %536 = math.exp %535 : vector<8x32xf32>
    %cst_127 = arith.constant 1.000000e+00 : f32
    %537 = vector.broadcast %cst_127 : f32 to vector<8x32xf32>
    %538 = arith.addf %537, %536 : vector<8x32xf32>
    %539 = arith.divf %537, %538 : vector<8x32xf32>
    %540 = arith.mulf %531, %464 : vector<8x32xf32>
    %541 = arith.mulf %525, %533 : vector<8x32xf32>
    %542 = arith.addf %540, %541 : vector<8x32xf32>
    %543 = math.tanh %542 : vector<8x32xf32>
    %544 = arith.mulf %539, %543 : vector<8x32xf32>
    %545 = arith.index_cast %c6_i32 : i32 to index
    %c0_128 = arith.constant 0 : index
    %c0_129 = arith.constant 0 : index
    %546 = vector.load %arg22[%545, %c0_128, %c0_129] : memref<8x8x64xf32, #tpu.memory_space<vmem>>, vector<1x8x32xf32>
    %547 = vector.shape_cast %546 : vector<1x8x32xf32> to vector<8x32xf32>
    %548 = vector.shape_cast %515 : vector<8x32xf32> to vector<1x8x32xf32>
    tpu.vector_store %arg22[%545, %c0_128, %c0_129], %548 {strides = array<i32>} : memref<8x8x64xf32, #tpu.memory_space<vmem>>, vector<1x8x32xf32>,
    %549 = arith.index_cast %475 : i32 to index
    %c0_130 = arith.constant 0 : index
    %c32_131 = arith.constant 32 : index
    %550 = vector.load %arg22[%549, %c0_130, %c32_131] : memref<8x8x64xf32, #tpu.memory_space<vmem>>, vector<1x8x32xf32>
    %551 = vector.shape_cast %550 : vector<1x8x32xf32> to vector<8x32xf32>
    %552 = vector.shape_cast %544 : vector<8x32xf32> to vector<1x8x32xf32>
    tpu.vector_store %arg22[%549, %c0_130, %c32_131], %552 {strides = array<i32>} : memref<8x8x64xf32, #tpu.memory_space<vmem>>, vector<1x8x32xf32>,
    %c7_i32_132 = arith.constant 7 : i32
    %c7_i32_133 = arith.constant 7 : i32
    %553 = arith.subi %c7_i32_133, %c7_i32_132 : i32
    %c8_i32_134 = arith.constant 8 : i32
    %554 = arith.muli %c7_i32_132, %c8_i32_134 : i32
    %555 = tpu.assume_multiple %554, 8 : i32
    %c8_i32_135 = arith.constant 8 : i32
    %556 = arith.muli %553, %c8_i32_135 : i32
    %557 = tpu.assume_multiple %556, 8 : i32
    %558 = arith.index_cast %555 : i32 to index
    %c0_136 = arith.constant 0 : index
    %559 = vector.load %arg21[%558, %c0_136] : memref<64x256xf32, #tpu.memory_space<vmem>>, vector<8x128xf32>
    %560 = arith.index_cast %557 : i32 to index
    %c128_137 = arith.constant 128 : index
    %561 = vector.load %arg21[%560, %c128_137] : memref<64x256xf32, #tpu.memory_space<vmem>>, vector<8x128xf32>
    %562 = tpu.concatenate %515, %544 in 0 : vector<8x32xf32>, vector<8x32xf32> -> vector<16x32xf32>
    %c0_138 = arith.constant 0 : index
    %c0_139 = arith.constant 0 : index
    %563 = vector.load %arg4[%c0_138, %c0_139] : memref<32x256xf32, #tpu.memory_space<vmem>>, vector<32x256xf32>
    %cst_140 = arith.constant dense<0.000000e+00> : vector<16x256xf32>
    %564 = tpu.matmul %562, %563, %cst_140 {dimension_numbers = #tpu.dot_dimension_numbers<[1], [0], [0], [1], [0, 0, 1, 1], [], []>} : vector<16x32xf32>, vector<32x256xf32>, vector<16x256xf32> -> vector<16x256xf32>
    %565 = vector.extract_strided_slice %564 {offsets = [0, 0], sizes = [8, 128], strides = [1, 1]} : vector<16x256xf32> to vector<8x128xf32>
    %566 = arith.addf %559, %565 : vector<8x128xf32>
    %567 = vector.broadcast %4 : vector<1x128xf32> to vector<8x128xf32>
    %568 = arith.addf %566, %567 : vector<8x128xf32>
    %569 = vector.extract_strided_slice %568 {offsets = [0, 0], sizes = [8, 32], strides = [1, 1]} : vector<8x128xf32> to vector<8x32xf32>
    %570 = arith.negf %569 : vector<8x32xf32>
    %571 = math.exp %570 : vector<8x32xf32>
    %cst_141 = arith.constant 1.000000e+00 : f32
    %572 = vector.broadcast %cst_141 : f32 to vector<8x32xf32>
    %573 = arith.addf %572, %571 : vector<8x32xf32>
    %574 = arith.divf %572, %573 : vector<8x32xf32>
    %575 = vector.extract_strided_slice %568 {offsets = [0, 32], sizes = [8, 32], strides = [1, 1]} : vector<8x128xf32> to vector<8x32xf32>
    %576 = arith.negf %575 : vector<8x32xf32>
    %577 = math.exp %576 : vector<8x32xf32>
    %cst_142 = arith.constant 1.000000e+00 : f32
    %578 = vector.broadcast %cst_142 : f32 to vector<8x32xf32>
    %579 = arith.addf %578, %577 : vector<8x32xf32>
    %580 = arith.divf %578, %579 : vector<8x32xf32>
    %581 = vector.extract_strided_slice %568 {offsets = [0, 64], sizes = [8, 32], strides = [1, 1]} : vector<8x128xf32> to vector<8x32xf32>
    %582 = math.tanh %581 : vector<8x32xf32>
    %583 = vector.extract_strided_slice %568 {offsets = [0, 96], sizes = [8, 32], strides = [1, 1]} : vector<8x128xf32> to vector<8x32xf32>
    %584 = arith.negf %583 : vector<8x32xf32>
    %585 = math.exp %584 : vector<8x32xf32>
    %cst_143 = arith.constant 1.000000e+00 : f32
    %586 = vector.broadcast %cst_143 : f32 to vector<8x32xf32>
    %587 = arith.addf %586, %585 : vector<8x32xf32>
    %588 = arith.divf %586, %587 : vector<8x32xf32>
    %589 = arith.mulf %580, %513 : vector<8x32xf32>
    %590 = arith.mulf %574, %582 : vector<8x32xf32>
    %591 = arith.addf %589, %590 : vector<8x32xf32>
    %592 = math.tanh %591 : vector<8x32xf32>
    %593 = arith.mulf %588, %592 : vector<8x32xf32>
    %594 = vector.extract_strided_slice %564 {offsets = [8, 128], sizes = [8, 128], strides = [1, 1]} : vector<16x256xf32> to vector<8x128xf32>
    %595 = arith.addf %561, %594 : vector<8x128xf32>
    %596 = vector.broadcast %5 : vector<1x128xf32> to vector<8x128xf32>
    %597 = arith.addf %595, %596 : vector<8x128xf32>
    %598 = vector.extract_strided_slice %597 {offsets = [0, 0], sizes = [8, 32], strides = [1, 1]} : vector<8x128xf32> to vector<8x32xf32>
    %599 = arith.negf %598 : vector<8x32xf32>
    %600 = math.exp %599 : vector<8x32xf32>
    %cst_144 = arith.constant 1.000000e+00 : f32
    %601 = vector.broadcast %cst_144 : f32 to vector<8x32xf32>
    %602 = arith.addf %601, %600 : vector<8x32xf32>
    %603 = arith.divf %601, %602 : vector<8x32xf32>
    %604 = vector.extract_strided_slice %597 {offsets = [0, 32], sizes = [8, 32], strides = [1, 1]} : vector<8x128xf32> to vector<8x32xf32>
    %605 = arith.negf %604 : vector<8x32xf32>
    %606 = math.exp %605 : vector<8x32xf32>
    %cst_145 = arith.constant 1.000000e+00 : f32
    %607 = vector.broadcast %cst_145 : f32 to vector<8x32xf32>
    %608 = arith.addf %607, %606 : vector<8x32xf32>
    %609 = arith.divf %607, %608 : vector<8x32xf32>
    %610 = vector.extract_strided_slice %597 {offsets = [0, 64], sizes = [8, 32], strides = [1, 1]} : vector<8x128xf32> to vector<8x32xf32>
    %611 = math.tanh %610 : vector<8x32xf32>
    %612 = vector.extract_strided_slice %597 {offsets = [0, 96], sizes = [8, 32], strides = [1, 1]} : vector<8x128xf32> to vector<8x32xf32>
    %613 = arith.negf %612 : vector<8x32xf32>
    %614 = math.exp %613 : vector<8x32xf32>
    %cst_146 = arith.constant 1.000000e+00 : f32
    %615 = vector.broadcast %cst_146 : f32 to vector<8x32xf32>
    %616 = arith.addf %615, %614 : vector<8x32xf32>
    %617 = arith.divf %615, %616 : vector<8x32xf32>
    %618 = arith.mulf %609, %542 : vector<8x32xf32>
    %619 = arith.mulf %603, %611 : vector<8x32xf32>
    %620 = arith.addf %618, %619 : vector<8x32xf32>
    %621 = math.tanh %620 : vector<8x32xf32>
    %622 = arith.mulf %617, %621 : vector<8x32xf32>
    %623 = arith.index_cast %c7_i32_132 : i32 to index
    %c0_147 = arith.constant 0 : index
    %c0_148 = arith.constant 0 : index
    %624 = vector.load %arg22[%623, %c0_147, %c0_148] : memref<8x8x64xf32, #tpu.memory_space<vmem>>, vector<1x8x32xf32>
    %625 = vector.shape_cast %624 : vector<1x8x32xf32> to vector<8x32xf32>
    %626 = vector.shape_cast %593 : vector<8x32xf32> to vector<1x8x32xf32>
    tpu.vector_store %arg22[%623, %c0_147, %c0_148], %626 {strides = array<i32>} : memref<8x8x64xf32, #tpu.memory_space<vmem>>, vector<1x8x32xf32>,
    %627 = arith.index_cast %553 : i32 to index
    %c0_149 = arith.constant 0 : index
    %c32_150 = arith.constant 32 : index
    %628 = vector.load %arg22[%627, %c0_149, %c32_150] : memref<8x8x64xf32, #tpu.memory_space<vmem>>, vector<1x8x32xf32>
    %629 = vector.shape_cast %628 : vector<1x8x32xf32> to vector<8x32xf32>
    %630 = vector.shape_cast %622 : vector<8x32xf32> to vector<1x8x32xf32>
    tpu.vector_store %arg22[%627, %c0_149, %c32_150], %630 {strides = array<i32>} : memref<8x8x64xf32, #tpu.memory_space<vmem>>, vector<1x8x32xf32>,
    %c8_i32_151 = arith.constant 8 : i32
    %c0_152 = arith.constant 0 : index
    %c0_153 = arith.constant 0 : index
    %631 = vector.load %arg6[%c0_152, %c0_153] : memref<64x32xf32, #tpu.memory_space<vmem>>, vector<32x32xf32>
    %cst_154 = arith.constant dense<0.000000e+00> : vector<8x32xf32>
    %632 = tpu.matmul %593, %631, %cst_154 {dimension_numbers = #tpu.dot_dimension_numbers<[1], [0], [0], [1], [0, 0, 1, 1], [], []>} : vector<8x32xf32>, vector<32x32xf32>, vector<8x32xf32> -> vector<8x32xf32>
    %c32_155 = arith.constant 32 : index
    %c0_156 = arith.constant 0 : index
    %633 = vector.load %arg6[%c32_155, %c0_156] : memref<64x32xf32, #tpu.memory_space<vmem>>, vector<32x32xf32>
    %cst_157 = arith.constant dense<0.000000e+00> : vector<8x32xf32>
    %634 = tpu.matmul %622, %633, %cst_157 {dimension_numbers = #tpu.dot_dimension_numbers<[1], [0], [0], [1], [0, 0, 1, 1], [], []>} : vector<8x32xf32>, vector<32x32xf32>, vector<8x32xf32> -> vector<8x32xf32>
    %635 = arith.addf %632, %634 : vector<8x32xf32>
    %c0_158 = arith.constant 0 : index
    %c0_159 = arith.constant 0 : index
    %636 = vector.load %arg7[%c0_158, %c0_159] : memref<1x32xf32, #tpu.memory_space<vmem>>, vector<1x32xf32>
    %637 = vector.broadcast %636 : vector<1x32xf32> to vector<8x32xf32>
    %638 = arith.addf %635, %637 : vector<8x32xf32>
    %c0_160 = arith.constant 0 : index
    %c0_161 = arith.constant 0 : index
    %639 = vector.load %arg8[%c0_160, %c0_161] : memref<64x32xf32, #tpu.memory_space<vmem>>, vector<32x32xf32>
    %cst_162 = arith.constant dense<0.000000e+00> : vector<8x32xf32>
    %640 = tpu.matmul %591, %639, %cst_162 {dimension_numbers = #tpu.dot_dimension_numbers<[1], [0], [0], [1], [0, 0, 1, 1], [], []>} : vector<8x32xf32>, vector<32x32xf32>, vector<8x32xf32> -> vector<8x32xf32>
    %c32_163 = arith.constant 32 : index
    %c0_164 = arith.constant 0 : index
    %641 = vector.load %arg8[%c32_163, %c0_164] : memref<64x32xf32, #tpu.memory_space<vmem>>, vector<32x32xf32>
    %cst_165 = arith.constant dense<0.000000e+00> : vector<8x32xf32>
    %642 = tpu.matmul %620, %641, %cst_165 {dimension_numbers = #tpu.dot_dimension_numbers<[1], [0], [0], [1], [0, 0, 1, 1], [], []>} : vector<8x32xf32>, vector<32x32xf32>, vector<8x32xf32> -> vector<8x32xf32>
    %643 = arith.addf %640, %642 : vector<8x32xf32>
    %c0_166 = arith.constant 0 : index
    %c0_167 = arith.constant 0 : index
    %644 = vector.load %arg9[%c0_166, %c0_167] : memref<1x32xf32, #tpu.memory_space<vmem>>, vector<1x32xf32>
    %645 = vector.broadcast %644 : vector<1x32xf32> to vector<8x32xf32>
    %646 = arith.addf %643, %645 : vector<8x32xf32>
    %c0_168 = arith.constant 0 : index
    %c0_169 = arith.constant 0 : index
    %647 = vector.load %arg2[%c0_168, %c0_169] : memref<64x16xf32, #tpu.memory_space<vmem>>, vector<64x16xf32>
    %c0_170 = arith.constant 0 : index
    %c0_171 = arith.constant 0 : index
    %648 = vector.load %arg14[%c0_170, %c0_171] : memref<16x128xf32, #tpu.memory_space<vmem>>, vector<16x128xf32>
    %cst_172 = arith.constant dense<0.000000e+00> : vector<64x128xf32>
    %649 = tpu.matmul %647, %648, %cst_172 {dimension_numbers = #tpu.dot_dimension_numbers<[1], [0], [0], [1], [0, 0, 1, 1], [], []>} : vector<64x16xf32>, vector<16x128xf32>, vector<64x128xf32> -> vector<64x128xf32>
    %c0_173 = arith.constant 0 : index
    %c0_174 = arith.constant 0 : index
    %650 = vector.load %arg23[%c0_173, %c0_174] : memref<64x128xf32, #tpu.memory_space<vmem>>, vector<64x128xf32>
    tpu.vector_store %arg23[%c0_173, %c0_174], %649 {strides = array<i32>} : memref<64x128xf32, #tpu.memory_space<vmem>>, vector<64x128xf32>,
    %c0_175 = arith.constant 0 : index
    %c0_176 = arith.constant 0 : index
    %651 = vector.load %arg19[%c0_175, %c0_176] : memref<64x16xf32, #tpu.memory_space<vmem>>, vector<64x16xf32>
    %c0_177 = arith.constant 0 : index
    %c0_178 = arith.constant 0 : index
    %652 = vector.load %arg14[%c0_177, %c0_178] : memref<16x128xf32, #tpu.memory_space<vmem>>, vector<16x128xf32>
    %cst_179 = arith.constant dense<0.000000e+00> : vector<64x128xf32>
    %653 = tpu.matmul %651, %652, %cst_179 {dimension_numbers = #tpu.dot_dimension_numbers<[1], [0], [0], [1], [0, 0, 1, 1], [], []>} : vector<64x16xf32>, vector<16x128xf32>, vector<64x128xf32> -> vector<64x128xf32>
    %c0_180 = arith.constant 0 : index
    %c0_181 = arith.constant 0 : index
    %654 = vector.load %arg24[%c0_180, %c0_181] : memref<64x128xf32, #tpu.memory_space<vmem>>, vector<64x128xf32>
    tpu.vector_store %arg24[%c0_180, %c0_181], %653 {strides = array<i32>} : memref<64x128xf32, #tpu.memory_space<vmem>>, vector<64x128xf32>,
    %c0_182 = arith.constant 0 : index
    %c0_183 = arith.constant 0 : index
    %c0_184 = arith.constant 0 : index
    %655 = vector.load %arg22[%c0_182, %c0_183, %c0_184] : memref<8x8x64xf32, #tpu.memory_space<vmem>>, vector<8x8x64xf32>
    %c0_185 = arith.constant 0 : index
    %c0_186 = arith.constant 0 : index
    %656 = vector.load %arg11[%c0_185, %c0_186] : memref<1x64xf32, #tpu.memory_space<vmem>>, vector<1x64xf32>
    %657 = vector.shape_cast %656 : vector<1x64xf32> to vector<1x1x64xf32>
    %658 = vector.broadcast %657 : vector<1x1x64xf32> to vector<8x8x64xf32>
    %659 = arith.mulf %655, %658 : vector<8x8x64xf32>
    %cst_187 = arith.constant dense<0.000000e+00> : vector<8x8xf32>
    %660 = vector.multi_reduction <add>, %659, %cst_187 [2] : vector<8x8x64xf32> to vector<8x8xf32>
    %c0_188 = arith.constant 0 : index
    %c0_189 = arith.constant 0 : index
    %661 = vector.load %arg12[%c0_188, %c0_189] : memref<1x1xf32, #tpu.memory_space<vmem>>, vector<1x1xf32>
    %c0_190 = arith.constant 0 : index
    %c0_191 = arith.constant 0 : index
    %662 = vector.load %arg10[%c0_190, %c0_191] : memref<1x32xf32, #tpu.memory_space<vmem>>, vector<1x32xf32>
    %663 = tpu.iota {dimensions = array<i32: 1>} : vector<8x128xi32>
    %664 = arith.sitofp %663 : vector<8x128xi32> to vector<8x128xf32>
    %665 = tpu.iota {dimensions = array<i32: 1>} : vector<8x64xi32>
    %666 = arith.sitofp %665 : vector<8x64xi32> to vector<8x64xf32>
    %cst_192 = arith.constant 0.000000e+00 : f32
    %667 = vector.broadcast %cst_192 : f32 to vector<8x128xf32>
    %c0_193 = arith.constant 0 : index
    %c0_194 = arith.constant 0 : index
    %c0_195 = arith.constant 0 : index
    %668 = vector.load %arg20[%c0_193, %c0_194, %c0_195] : memref<8x8x128xf32, #tpu.memory_space<vmem>>, vector<1x8x128xf32>
    %669 = vector.shape_cast %668 : vector<1x8x128xf32> to vector<8x128xf32>
    %670 = vector.shape_cast %667 : vector<8x128xf32> to vector<1x8x128xf32>
    tpu.vector_store %arg20[%c0_193, %c0_194, %c0_195], %670 {strides = array<i32>} : memref<8x8x128xf32, #tpu.memory_space<vmem>>, vector<1x8x128xf32>,
    %c0_196 = arith.constant 0 : index
    %c0_197 = arith.constant 0 : index
    %671 = vector.load %arg23[%c0_196, %c0_197] : memref<64x128xf32, #tpu.memory_space<vmem>>, vector<8x128xf32>
    %c1_i32_198 = arith.constant 1 : i32
    %672 = vector.broadcast %662 : vector<1x32xf32> to vector<8x32xf32>
    %673 = arith.mulf %638, %672 : vector<8x32xf32>
    %cst_199 = arith.constant dense<0.000000e+00> : vector<8xf32>
    %674 = vector.multi_reduction <add>, %673, %cst_199 [1] : vector<8x32xf32> to vector<8xf32>
    %675 = vector.shape_cast %674 : vector<8xf32> to vector<8x1xf32>
    %676 = tpu.transpose %675, [1, 0] : vector<8x1xf32> -> vector<1x8xf32>
    %677 = vector.broadcast %676 : vector<1x8xf32> to vector<8x8xf32>
    %678 = arith.addf %677, %660 : vector<8x8xf32>
    %679 = vector.broadcast %661 : vector<1x1xf32> to vector<8x8xf32>
    %680 = arith.addf %678, %679 : vector<8x8xf32>
    %cst_200 = arith.constant 0.000000e+00 : f32
    %681 = vector.broadcast %cst_200 : f32 to vector<8x8xf32>
    %682 = arith.maximumf %680, %681 : vector<8x8xf32>
    %cst_201 = arith.constant dense<0xFF800000> : vector<8xf32>
    %683 = vector.multi_reduction <maximumf>, %682, %cst_201 [0] : vector<8x8xf32> to vector<8xf32>
    %684 = vector.shape_cast %683 : vector<8xf32> to vector<1x8xf32>
    %685 = vector.broadcast %684 : vector<1x8xf32> to vector<8x8xf32>
    %686 = arith.subf %682, %685 : vector<8x8xf32>
    %687 = math.exp %686 : vector<8x8xf32>
    %cst_202 = arith.constant dense<0.000000e+00> : vector<8xf32>
    %688 = vector.multi_reduction <add>, %687, %cst_202 [0] : vector<8x8xf32> to vector<8xf32>
    %689 = vector.shape_cast %688 : vector<8xf32> to vector<1x8xf32>
    %690 = tpu.reciprocal %689 {approx = true} : vector<1x8xf32> -> vector<1x8xf32>
    %691 = vector.broadcast %690 : vector<1x8xf32> to vector<8x8xf32>
    %692 = arith.mulf %687, %691 : vector<8x8xf32>
    %693 = vector.shape_cast %692 : vector<8x8xf32> to vector<8x8x1xf32>
    %c0_203 = arith.constant 0 : index
    %c0_204 = arith.constant 0 : index
    %c0_205 = arith.constant 0 : index
    %694 = vector.load %arg22[%c0_203, %c0_204, %c0_205] : memref<8x8x64xf32, #tpu.memory_space<vmem>>, vector<8x8x64xf32>
    %695 = vector.broadcast %693 : vector<8x8x1xf32> to vector<8x8x64xf32>
    %696 = arith.mulf %695, %694 : vector<8x8x64xf32>
    %cst_206 = arith.constant dense<0.000000e+00> : vector<8x64xf32>
    %697 = vector.multi_reduction <add>, %696, %cst_206 [0] : vector<8x8x64xf32> to vector<8x64xf32>
    %c0_207 = arith.constant 0 : index
    %c0_208 = arith.constant 0 : index
    %698 = vector.load %arg13[%c0_207, %c0_208] : memref<64x128xf32, #tpu.memory_space<vmem>>, vector<64x128xf32>
    %cst_209 = arith.constant dense<0.000000e+00> : vector<8x128xf32>
    %699 = tpu.matmul %697, %698, %cst_209 {dimension_numbers = #tpu.dot_dimension_numbers<[1], [0], [0], [1], [0, 0, 1, 1], [], []>} : vector<8x64xf32>, vector<64x128xf32>, vector<8x128xf32> -> vector<8x128xf32>
    %700 = arith.addf %699, %671 : vector<8x128xf32>
    %c0_210 = arith.constant 0 : index
    %c0_211 = arith.constant 0 : index
    %701 = vector.load %arg15[%c0_210, %c0_211] : memref<32x128xf32, #tpu.memory_space<vmem>>, vector<32x128xf32>
    %cst_212 = arith.constant dense<0.000000e+00> : vector<8x128xf32>
    %702 = tpu.matmul %638, %701, %cst_212 {dimension_numbers = #tpu.dot_dimension_numbers<[1], [0], [0], [1], [0, 0, 1, 1], [], []>} : vector<8x32xf32>, vector<32x128xf32>, vector<8x128xf32> -> vector<8x128xf32>
    %703 = arith.addf %700, %702 : vector<8x128xf32>
    %c0_213 = arith.constant 0 : index
    %c0_214 = arith.constant 0 : index
    %704 = vector.load %arg16[%c0_213, %c0_214] : memref<1x128xf32, #tpu.memory_space<vmem>>, vector<1x128xf32>
    %705 = vector.broadcast %704 : vector<1x128xf32> to vector<8x128xf32>
    %706 = arith.addf %703, %705 : vector<8x128xf32>
    %707 = vector.extract_strided_slice %706 {offsets = [0, 0], sizes = [8, 32], strides = [1, 1]} : vector<8x128xf32> to vector<8x32xf32>
    %708 = arith.negf %707 : vector<8x32xf32>
    %709 = math.exp %708 : vector<8x32xf32>
    %cst_215 = arith.constant 1.000000e+00 : f32
    %710 = vector.broadcast %cst_215 : f32 to vector<8x32xf32>
    %711 = arith.addf %710, %709 : vector<8x32xf32>
    %712 = arith.divf %710, %711 : vector<8x32xf32>
    %713 = vector.extract_strided_slice %706 {offsets = [0, 32], sizes = [8, 32], strides = [1, 1]} : vector<8x128xf32> to vector<8x32xf32>
    %714 = arith.negf %713 : vector<8x32xf32>
    %715 = math.exp %714 : vector<8x32xf32>
    %cst_216 = arith.constant 1.000000e+00 : f32
    %716 = vector.broadcast %cst_216 : f32 to vector<8x32xf32>
    %717 = arith.addf %716, %715 : vector<8x32xf32>
    %718 = arith.divf %716, %717 : vector<8x32xf32>
    %719 = vector.extract_strided_slice %706 {offsets = [0, 64], sizes = [8, 32], strides = [1, 1]} : vector<8x128xf32> to vector<8x32xf32>
    %720 = math.tanh %719 : vector<8x32xf32>
    %721 = vector.extract_strided_slice %706 {offsets = [0, 96], sizes = [8, 32], strides = [1, 1]} : vector<8x128xf32> to vector<8x32xf32>
    %722 = arith.negf %721 : vector<8x32xf32>
    %723 = math.exp %722 : vector<8x32xf32>
    %cst_217 = arith.constant 1.000000e+00 : f32
    %724 = vector.broadcast %cst_217 : f32 to vector<8x32xf32>
    %725 = arith.addf %724, %723 : vector<8x32xf32>
    %726 = arith.divf %724, %725 : vector<8x32xf32>
    %727 = arith.mulf %718, %646 : vector<8x32xf32>
    %728 = arith.mulf %712, %720 : vector<8x32xf32>
    %729 = arith.addf %727, %728 : vector<8x32xf32>
    %730 = math.tanh %729 : vector<8x32xf32>
    %731 = arith.mulf %726, %730 : vector<8x32xf32>
    %c0_218 = arith.constant 0 : index
    %c0_219 = arith.constant 0 : index
    %732 = vector.load %arg17[%c0_218, %c0_219] : memref<32x128xf32, #tpu.memory_space<vmem>>, vector<32x128xf32>
    %cst_220 = arith.constant dense<0.000000e+00> : vector<8x128xf32>
    %733 = tpu.matmul %731, %732, %cst_220 {dimension_numbers = #tpu.dot_dimension_numbers<[1], [0], [0], [1], [0, 0, 1, 1], [], []>} : vector<8x32xf32>, vector<32x128xf32>, vector<8x128xf32> -> vector<8x128xf32>
    %c0_221 = arith.constant 0 : index
    %c0_222 = arith.constant 0 : index
    %734 = vector.load %arg18[%c0_221, %c0_222] : memref<1x128xf32, #tpu.memory_space<vmem>>, vector<1x128xf32>
    %735 = vector.broadcast %734 : vector<1x128xf32> to vector<8x128xf32>
    %736 = arith.addf %733, %735 : vector<8x128xf32>
    %737 = arith.index_cast %c1_i32_198 : i32 to index
    %c0_223 = arith.constant 0 : index
    %c0_224 = arith.constant 0 : index
    %738 = vector.load %arg20[%737, %c0_223, %c0_224] : memref<8x8x128xf32, #tpu.memory_space<vmem>>, vector<1x8x128xf32>
    %739 = vector.shape_cast %738 : vector<1x8x128xf32> to vector<8x128xf32>
    %740 = vector.shape_cast %736 : vector<8x128xf32> to vector<1x8x128xf32>
    tpu.vector_store %arg20[%737, %c0_223, %c0_224], %740 {strides = array<i32>} : memref<8x8x128xf32, #tpu.memory_space<vmem>>, vector<1x8x128xf32>,
    %c64_i32 = arith.constant 64 : i32
    %741 = vector.broadcast %c64_i32 : i32 to vector<8x128xi32>
    %742 = arith.cmpi slt, %663, %741 : vector<8x128xi32>
    %cst_225 = arith.constant -1.000000e+30 : f32
    %743 = vector.broadcast %cst_225 : f32 to vector<8x128xf32>
    %744 = arith.select %742, %736, %743 : vector<8x128xi1>, vector<8x128xf32>
    %cst_226 = arith.constant dense<0xFF800000> : vector<8xf32>
    %745 = vector.multi_reduction <maximumf>, %744, %cst_226 [1] : vector<8x128xf32> to vector<8xf32>
    %746 = vector.shape_cast %745 : vector<8xf32> to vector<8x1xf32>
    %747 = vector.broadcast %746 : vector<8x1xf32> to vector<8x128xf32>
    %748 = arith.cmpf oeq, %744, %747 : vector<8x128xf32>
    %cst_227 = arith.constant 1.280000e+02 : f32
    %749 = vector.broadcast %cst_227 : f32 to vector<8x128xf32>
    %750 = arith.select %748, %664, %749 : vector<8x128xi1>, vector<8x128xf32>
    %cst_228 = arith.constant dense<0x7F800000> : vector<8xf32>
    %751 = vector.multi_reduction <minimumf>, %750, %cst_228 [1] : vector<8x128xf32> to vector<8xf32>
    %752 = vector.shape_cast %751 : vector<8xf32> to vector<8x1xf32>
    %753 = vector.broadcast %752 : vector<8x1xf32> to vector<8x64xf32>
    %754 = arith.cmpf oeq, %666, %753 : vector<8x64xf32>
    %755 = arith.extui %754 : vector<8x64xi1> to vector<8x64xi32>
    %756 = arith.sitofp %755 : vector<8x64xi32> to vector<8x64xf32>
    %c0_229 = arith.constant 0 : index
    %c0_230 = arith.constant 0 : index
    %757 = vector.load %arg24[%c0_229, %c0_230] : memref<64x128xf32, #tpu.memory_space<vmem>>, vector<64x128xf32>
    %cst_231 = arith.constant dense<0.000000e+00> : vector<8x128xf32>
    %758 = tpu.matmul %756, %757, %cst_231 {dimension_numbers = #tpu.dot_dimension_numbers<[1], [0], [0], [1], [0, 0, 1, 1], [], []>} : vector<8x64xf32>, vector<64x128xf32>, vector<8x128xf32> -> vector<8x128xf32>
    %759 = arith.index_cast %c1_i32_198 : i32 to index
    %760 = memref.load %arg0[%759] : memref<8xi32, #tpu.memory_space<smem>>
    %c0_i32_232 = arith.constant 0 : i32
    %761 = arith.cmpi sgt, %760, %c0_i32_232 : i32
    %762 = arith.extui %761 : i1 to i32
    %763 = arith.sitofp %762 : i32 to f32
    %c8_i32_233 = arith.constant 8 : i32
    %764 = arith.muli %c1_i32_198, %c8_i32_233 : i32
    %765 = tpu.assume_multiple %764, 8 : i32
    %766 = arith.index_cast %765 : i32 to index
    %c0_234 = arith.constant 0 : index
    %767 = vector.load %arg23[%766, %c0_234] : memref<64x128xf32, #tpu.memory_space<vmem>>, vector<8x128xf32>
    %768 = vector.broadcast %763 : f32 to vector<8x128xf32>
    %769 = arith.mulf %768, %767 : vector<8x128xf32>
    %cst_235 = arith.constant 1.000000e+00 : f32
    %770 = arith.subf %cst_235, %763 : f32
    %771 = vector.broadcast %770 : f32 to vector<8x128xf32>
    %772 = arith.mulf %771, %758 : vector<8x128xf32>
    %773 = arith.addf %769, %772 : vector<8x128xf32>
    %c2_i32_236 = arith.constant 2 : i32
    %774 = vector.broadcast %662 : vector<1x32xf32> to vector<8x32xf32>
    %775 = arith.mulf %731, %774 : vector<8x32xf32>
    %cst_237 = arith.constant dense<0.000000e+00> : vector<8xf32>
    %776 = vector.multi_reduction <add>, %775, %cst_237 [1] : vector<8x32xf32> to vector<8xf32>
    %777 = vector.shape_cast %776 : vector<8xf32> to vector<8x1xf32>
    %778 = tpu.transpose %777, [1, 0] : vector<8x1xf32> -> vector<1x8xf32>
    %779 = vector.broadcast %778 : vector<1x8xf32> to vector<8x8xf32>
    %780 = arith.addf %779, %660 : vector<8x8xf32>
    %781 = vector.broadcast %661 : vector<1x1xf32> to vector<8x8xf32>
    %782 = arith.addf %780, %781 : vector<8x8xf32>
    %cst_238 = arith.constant 0.000000e+00 : f32
    %783 = vector.broadcast %cst_238 : f32 to vector<8x8xf32>
    %784 = arith.maximumf %782, %783 : vector<8x8xf32>
    %cst_239 = arith.constant dense<0xFF800000> : vector<8xf32>
    %785 = vector.multi_reduction <maximumf>, %784, %cst_239 [0] : vector<8x8xf32> to vector<8xf32>
    %786 = vector.shape_cast %785 : vector<8xf32> to vector<1x8xf32>
    %787 = vector.broadcast %786 : vector<1x8xf32> to vector<8x8xf32>
    %788 = arith.subf %784, %787 : vector<8x8xf32>
    %789 = math.exp %788 : vector<8x8xf32>
    %cst_240 = arith.constant dense<0.000000e+00> : vector<8xf32>
    %790 = vector.multi_reduction <add>, %789, %cst_240 [0] : vector<8x8xf32> to vector<8xf32>
    %791 = vector.shape_cast %790 : vector<8xf32> to vector<1x8xf32>
    %792 = tpu.reciprocal %791 {approx = true} : vector<1x8xf32> -> vector<1x8xf32>
    %793 = vector.broadcast %792 : vector<1x8xf32> to vector<8x8xf32>
    %794 = arith.mulf %789, %793 : vector<8x8xf32>
    %795 = vector.shape_cast %794 : vector<8x8xf32> to vector<8x8x1xf32>
    %c0_241 = arith.constant 0 : index
    %c0_242 = arith.constant 0 : index
    %c0_243 = arith.constant 0 : index
    %796 = vector.load %arg22[%c0_241, %c0_242, %c0_243] : memref<8x8x64xf32, #tpu.memory_space<vmem>>, vector<8x8x64xf32>
    %797 = vector.broadcast %795 : vector<8x8x1xf32> to vector<8x8x64xf32>
    %798 = arith.mulf %797, %796 : vector<8x8x64xf32>
    %cst_244 = arith.constant dense<0.000000e+00> : vector<8x64xf32>
    %799 = vector.multi_reduction <add>, %798, %cst_244 [0] : vector<8x8x64xf32> to vector<8x64xf32>
    %c0_245 = arith.constant 0 : index
    %c0_246 = arith.constant 0 : index
    %800 = vector.load %arg13[%c0_245, %c0_246] : memref<64x128xf32, #tpu.memory_space<vmem>>, vector<64x128xf32>
    %cst_247 = arith.constant dense<0.000000e+00> : vector<8x128xf32>
    %801 = tpu.matmul %799, %800, %cst_247 {dimension_numbers = #tpu.dot_dimension_numbers<[1], [0], [0], [1], [0, 0, 1, 1], [], []>} : vector<8x64xf32>, vector<64x128xf32>, vector<8x128xf32> -> vector<8x128xf32>
    %802 = arith.addf %801, %773 : vector<8x128xf32>
    %c0_248 = arith.constant 0 : index
    %c0_249 = arith.constant 0 : index
    %803 = vector.load %arg15[%c0_248, %c0_249] : memref<32x128xf32, #tpu.memory_space<vmem>>, vector<32x128xf32>
    %cst_250 = arith.constant dense<0.000000e+00> : vector<8x128xf32>
    %804 = tpu.matmul %731, %803, %cst_250 {dimension_numbers = #tpu.dot_dimension_numbers<[1], [0], [0], [1], [0, 0, 1, 1], [], []>} : vector<8x32xf32>, vector<32x128xf32>, vector<8x128xf32> -> vector<8x128xf32>
    %805 = arith.addf %802, %804 : vector<8x128xf32>
    %c0_251 = arith.constant 0 : index
    %c0_252 = arith.constant 0 : index
    %806 = vector.load %arg16[%c0_251, %c0_252] : memref<1x128xf32, #tpu.memory_space<vmem>>, vector<1x128xf32>
    %807 = vector.broadcast %806 : vector<1x128xf32> to vector<8x128xf32>
    %808 = arith.addf %805, %807 : vector<8x128xf32>
    %809 = vector.extract_strided_slice %808 {offsets = [0, 0], sizes = [8, 32], strides = [1, 1]} : vector<8x128xf32> to vector<8x32xf32>
    %810 = arith.negf %809 : vector<8x32xf32>
    %811 = math.exp %810 : vector<8x32xf32>
    %cst_253 = arith.constant 1.000000e+00 : f32
    %812 = vector.broadcast %cst_253 : f32 to vector<8x32xf32>
    %813 = arith.addf %812, %811 : vector<8x32xf32>
    %814 = arith.divf %812, %813 : vector<8x32xf32>
    %815 = vector.extract_strided_slice %808 {offsets = [0, 32], sizes = [8, 32], strides = [1, 1]} : vector<8x128xf32> to vector<8x32xf32>
    %816 = arith.negf %815 : vector<8x32xf32>
    %817 = math.exp %816 : vector<8x32xf32>
    %cst_254 = arith.constant 1.000000e+00 : f32
    %818 = vector.broadcast %cst_254 : f32 to vector<8x32xf32>
    %819 = arith.addf %818, %817 : vector<8x32xf32>
    %820 = arith.divf %818, %819 : vector<8x32xf32>
    %821 = vector.extract_strided_slice %808 {offsets = [0, 64], sizes = [8, 32], strides = [1, 1]} : vector<8x128xf32> to vector<8x32xf32>
    %822 = math.tanh %821 : vector<8x32xf32>
    %823 = vector.extract_strided_slice %808 {offsets = [0, 96], sizes = [8, 32], strides = [1, 1]} : vector<8x128xf32> to vector<8x32xf32>
    %824 = arith.negf %823 : vector<8x32xf32>
    %825 = math.exp %824 : vector<8x32xf32>
    %cst_255 = arith.constant 1.000000e+00 : f32
    %826 = vector.broadcast %cst_255 : f32 to vector<8x32xf32>
    %827 = arith.addf %826, %825 : vector<8x32xf32>
    %828 = arith.divf %826, %827 : vector<8x32xf32>
    %829 = arith.mulf %820, %729 : vector<8x32xf32>
    %830 = arith.mulf %814, %822 : vector<8x32xf32>
    %831 = arith.addf %829, %830 : vector<8x32xf32>
    %832 = math.tanh %831 : vector<8x32xf32>
    %833 = arith.mulf %828, %832 : vector<8x32xf32>
    %c0_256 = arith.constant 0 : index
    %c0_257 = arith.constant 0 : index
    %834 = vector.load %arg17[%c0_256, %c0_257] : memref<32x128xf32, #tpu.memory_space<vmem>>, vector<32x128xf32>
    %cst_258 = arith.constant dense<0.000000e+00> : vector<8x128xf32>
    %835 = tpu.matmul %833, %834, %cst_258 {dimension_numbers = #tpu.dot_dimension_numbers<[1], [0], [0], [1], [0, 0, 1, 1], [], []>} : vector<8x32xf32>, vector<32x128xf32>, vector<8x128xf32> -> vector<8x128xf32>
    %c0_259 = arith.constant 0 : index
    %c0_260 = arith.constant 0 : index
    %836 = vector.load %arg18[%c0_259, %c0_260] : memref<1x128xf32, #tpu.memory_space<vmem>>, vector<1x128xf32>
    %837 = vector.broadcast %836 : vector<1x128xf32> to vector<8x128xf32>
    %838 = arith.addf %835, %837 : vector<8x128xf32>
    %839 = arith.index_cast %c2_i32_236 : i32 to index
    %c0_261 = arith.constant 0 : index
    %c0_262 = arith.constant 0 : index
    %840 = vector.load %arg20[%839, %c0_261, %c0_262] : memref<8x8x128xf32, #tpu.memory_space<vmem>>, vector<1x8x128xf32>
    %841 = vector.shape_cast %840 : vector<1x8x128xf32> to vector<8x128xf32>
    %842 = vector.shape_cast %838 : vector<8x128xf32> to vector<1x8x128xf32>
    tpu.vector_store %arg20[%839, %c0_261, %c0_262], %842 {strides = array<i32>} : memref<8x8x128xf32, #tpu.memory_space<vmem>>, vector<1x8x128xf32>,
    %c64_i32_263 = arith.constant 64 : i32
    %843 = vector.broadcast %c64_i32_263 : i32 to vector<8x128xi32>
    %844 = arith.cmpi slt, %663, %843 : vector<8x128xi32>
    %cst_264 = arith.constant -1.000000e+30 : f32
    %845 = vector.broadcast %cst_264 : f32 to vector<8x128xf32>
    %846 = arith.select %844, %838, %845 : vector<8x128xi1>, vector<8x128xf32>
    %cst_265 = arith.constant dense<0xFF800000> : vector<8xf32>
    %847 = vector.multi_reduction <maximumf>, %846, %cst_265 [1] : vector<8x128xf32> to vector<8xf32>
    %848 = vector.shape_cast %847 : vector<8xf32> to vector<8x1xf32>
    %849 = vector.broadcast %848 : vector<8x1xf32> to vector<8x128xf32>
    %850 = arith.cmpf oeq, %846, %849 : vector<8x128xf32>
    %cst_266 = arith.constant 1.280000e+02 : f32
    %851 = vector.broadcast %cst_266 : f32 to vector<8x128xf32>
    %852 = arith.select %850, %664, %851 : vector<8x128xi1>, vector<8x128xf32>
    %cst_267 = arith.constant dense<0x7F800000> : vector<8xf32>
    %853 = vector.multi_reduction <minimumf>, %852, %cst_267 [1] : vector<8x128xf32> to vector<8xf32>
    %854 = vector.shape_cast %853 : vector<8xf32> to vector<8x1xf32>
    %855 = vector.broadcast %854 : vector<8x1xf32> to vector<8x64xf32>
    %856 = arith.cmpf oeq, %666, %855 : vector<8x64xf32>
    %857 = arith.extui %856 : vector<8x64xi1> to vector<8x64xi32>
    %858 = arith.sitofp %857 : vector<8x64xi32> to vector<8x64xf32>
    %c0_268 = arith.constant 0 : index
    %c0_269 = arith.constant 0 : index
    %859 = vector.load %arg24[%c0_268, %c0_269] : memref<64x128xf32, #tpu.memory_space<vmem>>, vector<64x128xf32>
    %cst_270 = arith.constant dense<0.000000e+00> : vector<8x128xf32>
    %860 = tpu.matmul %858, %859, %cst_270 {dimension_numbers = #tpu.dot_dimension_numbers<[1], [0], [0], [1], [0, 0, 1, 1], [], []>} : vector<8x64xf32>, vector<64x128xf32>, vector<8x128xf32> -> vector<8x128xf32>
    %861 = arith.index_cast %c2_i32_236 : i32 to index
    %862 = memref.load %arg0[%861] : memref<8xi32, #tpu.memory_space<smem>>
    %c0_i32_271 = arith.constant 0 : i32
    %863 = arith.cmpi sgt, %862, %c0_i32_271 : i32
    %864 = arith.extui %863 : i1 to i32
    %865 = arith.sitofp %864 : i32 to f32
    %c8_i32_272 = arith.constant 8 : i32
    %866 = arith.muli %c2_i32_236, %c8_i32_272 : i32
    %867 = tpu.assume_multiple %866, 8 : i32
    %868 = arith.index_cast %867 : i32 to index
    %c0_273 = arith.constant 0 : index
    %869 = vector.load %arg23[%868, %c0_273] : memref<64x128xf32, #tpu.memory_space<vmem>>, vector<8x128xf32>
    %870 = vector.broadcast %865 : f32 to vector<8x128xf32>
    %871 = arith.mulf %870, %869 : vector<8x128xf32>
    %cst_274 = arith.constant 1.000000e+00 : f32
    %872 = arith.subf %cst_274, %865 : f32
    %873 = vector.broadcast %872 : f32 to vector<8x128xf32>
    %874 = arith.mulf %873, %860 : vector<8x128xf32>
    %875 = arith.addf %871, %874 : vector<8x128xf32>
    %c3_i32_275 = arith.constant 3 : i32
    %876 = vector.broadcast %662 : vector<1x32xf32> to vector<8x32xf32>
    %877 = arith.mulf %833, %876 : vector<8x32xf32>
    %cst_276 = arith.constant dense<0.000000e+00> : vector<8xf32>
    %878 = vector.multi_reduction <add>, %877, %cst_276 [1] : vector<8x32xf32> to vector<8xf32>
    %879 = vector.shape_cast %878 : vector<8xf32> to vector<8x1xf32>
    %880 = tpu.transpose %879, [1, 0] : vector<8x1xf32> -> vector<1x8xf32>
    %881 = vector.broadcast %880 : vector<1x8xf32> to vector<8x8xf32>
    %882 = arith.addf %881, %660 : vector<8x8xf32>
    %883 = vector.broadcast %661 : vector<1x1xf32> to vector<8x8xf32>
    %884 = arith.addf %882, %883 : vector<8x8xf32>
    %cst_277 = arith.constant 0.000000e+00 : f32
    %885 = vector.broadcast %cst_277 : f32 to vector<8x8xf32>
    %886 = arith.maximumf %884, %885 : vector<8x8xf32>
    %cst_278 = arith.constant dense<0xFF800000> : vector<8xf32>
    %887 = vector.multi_reduction <maximumf>, %886, %cst_278 [0] : vector<8x8xf32> to vector<8xf32>
    %888 = vector.shape_cast %887 : vector<8xf32> to vector<1x8xf32>
    %889 = vector.broadcast %888 : vector<1x8xf32> to vector<8x8xf32>
    %890 = arith.subf %886, %889 : vector<8x8xf32>
    %891 = math.exp %890 : vector<8x8xf32>
    %cst_279 = arith.constant dense<0.000000e+00> : vector<8xf32>
    %892 = vector.multi_reduction <add>, %891, %cst_279 [0] : vector<8x8xf32> to vector<8xf32>
    %893 = vector.shape_cast %892 : vector<8xf32> to vector<1x8xf32>
    %894 = tpu.reciprocal %893 {approx = true} : vector<1x8xf32> -> vector<1x8xf32>
    %895 = vector.broadcast %894 : vector<1x8xf32> to vector<8x8xf32>
    %896 = arith.mulf %891, %895 : vector<8x8xf32>
    %897 = vector.shape_cast %896 : vector<8x8xf32> to vector<8x8x1xf32>
    %c0_280 = arith.constant 0 : index
    %c0_281 = arith.constant 0 : index
    %c0_282 = arith.constant 0 : index
    %898 = vector.load %arg22[%c0_280, %c0_281, %c0_282] : memref<8x8x64xf32, #tpu.memory_space<vmem>>, vector<8x8x64xf32>
    %899 = vector.broadcast %897 : vector<8x8x1xf32> to vector<8x8x64xf32>
    %900 = arith.mulf %899, %898 : vector<8x8x64xf32>
    %cst_283 = arith.constant dense<0.000000e+00> : vector<8x64xf32>
    %901 = vector.multi_reduction <add>, %900, %cst_283 [0] : vector<8x8x64xf32> to vector<8x64xf32>
    %c0_284 = arith.constant 0 : index
    %c0_285 = arith.constant 0 : index
    %902 = vector.load %arg13[%c0_284, %c0_285] : memref<64x128xf32, #tpu.memory_space<vmem>>, vector<64x128xf32>
    %cst_286 = arith.constant dense<0.000000e+00> : vector<8x128xf32>
    %903 = tpu.matmul %901, %902, %cst_286 {dimension_numbers = #tpu.dot_dimension_numbers<[1], [0], [0], [1], [0, 0, 1, 1], [], []>} : vector<8x64xf32>, vector<64x128xf32>, vector<8x128xf32> -> vector<8x128xf32>
    %904 = arith.addf %903, %875 : vector<8x128xf32>
    %c0_287 = arith.constant 0 : index
    %c0_288 = arith.constant 0 : index
    %905 = vector.load %arg15[%c0_287, %c0_288] : memref<32x128xf32, #tpu.memory_space<vmem>>, vector<32x128xf32>
    %cst_289 = arith.constant dense<0.000000e+00> : vector<8x128xf32>
    %906 = tpu.matmul %833, %905, %cst_289 {dimension_numbers = #tpu.dot_dimension_numbers<[1], [0], [0], [1], [0, 0, 1, 1], [], []>} : vector<8x32xf32>, vector<32x128xf32>, vector<8x128xf32> -> vector<8x128xf32>
    %907 = arith.addf %904, %906 : vector<8x128xf32>
    %c0_290 = arith.constant 0 : index
    %c0_291 = arith.constant 0 : index
    %908 = vector.load %arg16[%c0_290, %c0_291] : memref<1x128xf32, #tpu.memory_space<vmem>>, vector<1x128xf32>
    %909 = vector.broadcast %908 : vector<1x128xf32> to vector<8x128xf32>
    %910 = arith.addf %907, %909 : vector<8x128xf32>
    %911 = vector.extract_strided_slice %910 {offsets = [0, 0], sizes = [8, 32], strides = [1, 1]} : vector<8x128xf32> to vector<8x32xf32>
    %912 = arith.negf %911 : vector<8x32xf32>
    %913 = math.exp %912 : vector<8x32xf32>
    %cst_292 = arith.constant 1.000000e+00 : f32
    %914 = vector.broadcast %cst_292 : f32 to vector<8x32xf32>
    %915 = arith.addf %914, %913 : vector<8x32xf32>
    %916 = arith.divf %914, %915 : vector<8x32xf32>
    %917 = vector.extract_strided_slice %910 {offsets = [0, 32], sizes = [8, 32], strides = [1, 1]} : vector<8x128xf32> to vector<8x32xf32>
    %918 = arith.negf %917 : vector<8x32xf32>
    %919 = math.exp %918 : vector<8x32xf32>
    %cst_293 = arith.constant 1.000000e+00 : f32
    %920 = vector.broadcast %cst_293 : f32 to vector<8x32xf32>
    %921 = arith.addf %920, %919 : vector<8x32xf32>
    %922 = arith.divf %920, %921 : vector<8x32xf32>
    %923 = vector.extract_strided_slice %910 {offsets = [0, 64], sizes = [8, 32], strides = [1, 1]} : vector<8x128xf32> to vector<8x32xf32>
    %924 = math.tanh %923 : vector<8x32xf32>
    %925 = vector.extract_strided_slice %910 {offsets = [0, 96], sizes = [8, 32], strides = [1, 1]} : vector<8x128xf32> to vector<8x32xf32>
    %926 = arith.negf %925 : vector<8x32xf32>
    %927 = math.exp %926 : vector<8x32xf32>
    %cst_294 = arith.constant 1.000000e+00 : f32
    %928 = vector.broadcast %cst_294 : f32 to vector<8x32xf32>
    %929 = arith.addf %928, %927 : vector<8x32xf32>
    %930 = arith.divf %928, %929 : vector<8x32xf32>
    %931 = arith.mulf %922, %831 : vector<8x32xf32>
    %932 = arith.mulf %916, %924 : vector<8x32xf32>
    %933 = arith.addf %931, %932 : vector<8x32xf32>
    %934 = math.tanh %933 : vector<8x32xf32>
    %935 = arith.mulf %930, %934 : vector<8x32xf32>
    %c0_295 = arith.constant 0 : index
    %c0_296 = arith.constant 0 : index
    %936 = vector.load %arg17[%c0_295, %c0_296] : memref<32x128xf32, #tpu.memory_space<vmem>>, vector<32x128xf32>
    %cst_297 = arith.constant dense<0.000000e+00> : vector<8x128xf32>
    %937 = tpu.matmul %935, %936, %cst_297 {dimension_numbers = #tpu.dot_dimension_numbers<[1], [0], [0], [1], [0, 0, 1, 1], [], []>} : vector<8x32xf32>, vector<32x128xf32>, vector<8x128xf32> -> vector<8x128xf32>
    %c0_298 = arith.constant 0 : index
    %c0_299 = arith.constant 0 : index
    %938 = vector.load %arg18[%c0_298, %c0_299] : memref<1x128xf32, #tpu.memory_space<vmem>>, vector<1x128xf32>
    %939 = vector.broadcast %938 : vector<1x128xf32> to vector<8x128xf32>
    %940 = arith.addf %937, %939 : vector<8x128xf32>
    %941 = arith.index_cast %c3_i32_275 : i32 to index
    %c0_300 = arith.constant 0 : index
    %c0_301 = arith.constant 0 : index
    %942 = vector.load %arg20[%941, %c0_300, %c0_301] : memref<8x8x128xf32, #tpu.memory_space<vmem>>, vector<1x8x128xf32>
    %943 = vector.shape_cast %942 : vector<1x8x128xf32> to vector<8x128xf32>
    %944 = vector.shape_cast %940 : vector<8x128xf32> to vector<1x8x128xf32>
    tpu.vector_store %arg20[%941, %c0_300, %c0_301], %944 {strides = array<i32>} : memref<8x8x128xf32, #tpu.memory_space<vmem>>, vector<1x8x128xf32>,
    %c64_i32_302 = arith.constant 64 : i32
    %945 = vector.broadcast %c64_i32_302 : i32 to vector<8x128xi32>
    %946 = arith.cmpi slt, %663, %945 : vector<8x128xi32>
    %cst_303 = arith.constant -1.000000e+30 : f32
    %947 = vector.broadcast %cst_303 : f32 to vector<8x128xf32>
    %948 = arith.select %946, %940, %947 : vector<8x128xi1>, vector<8x128xf32>
    %cst_304 = arith.constant dense<0xFF800000> : vector<8xf32>
    %949 = vector.multi_reduction <maximumf>, %948, %cst_304 [1] : vector<8x128xf32> to vector<8xf32>
    %950 = vector.shape_cast %949 : vector<8xf32> to vector<8x1xf32>
    %951 = vector.broadcast %950 : vector<8x1xf32> to vector<8x128xf32>
    %952 = arith.cmpf oeq, %948, %951 : vector<8x128xf32>
    %cst_305 = arith.constant 1.280000e+02 : f32
    %953 = vector.broadcast %cst_305 : f32 to vector<8x128xf32>
    %954 = arith.select %952, %664, %953 : vector<8x128xi1>, vector<8x128xf32>
    %cst_306 = arith.constant dense<0x7F800000> : vector<8xf32>
    %955 = vector.multi_reduction <minimumf>, %954, %cst_306 [1] : vector<8x128xf32> to vector<8xf32>
    %956 = vector.shape_cast %955 : vector<8xf32> to vector<8x1xf32>
    %957 = vector.broadcast %956 : vector<8x1xf32> to vector<8x64xf32>
    %958 = arith.cmpf oeq, %666, %957 : vector<8x64xf32>
    %959 = arith.extui %958 : vector<8x64xi1> to vector<8x64xi32>
    %960 = arith.sitofp %959 : vector<8x64xi32> to vector<8x64xf32>
    %c0_307 = arith.constant 0 : index
    %c0_308 = arith.constant 0 : index
    %961 = vector.load %arg24[%c0_307, %c0_308] : memref<64x128xf32, #tpu.memory_space<vmem>>, vector<64x128xf32>
    %cst_309 = arith.constant dense<0.000000e+00> : vector<8x128xf32>
    %962 = tpu.matmul %960, %961, %cst_309 {dimension_numbers = #tpu.dot_dimension_numbers<[1], [0], [0], [1], [0, 0, 1, 1], [], []>} : vector<8x64xf32>, vector<64x128xf32>, vector<8x128xf32> -> vector<8x128xf32>
    %963 = arith.index_cast %c3_i32_275 : i32 to index
    %964 = memref.load %arg0[%963] : memref<8xi32, #tpu.memory_space<smem>>
    %c0_i32_310 = arith.constant 0 : i32
    %965 = arith.cmpi sgt, %964, %c0_i32_310 : i32
    %966 = arith.extui %965 : i1 to i32
    %967 = arith.sitofp %966 : i32 to f32
    %c8_i32_311 = arith.constant 8 : i32
    %968 = arith.muli %c3_i32_275, %c8_i32_311 : i32
    %969 = tpu.assume_multiple %968, 8 : i32
    %970 = arith.index_cast %969 : i32 to index
    %c0_312 = arith.constant 0 : index
    %971 = vector.load %arg23[%970, %c0_312] : memref<64x128xf32, #tpu.memory_space<vmem>>, vector<8x128xf32>
    %972 = vector.broadcast %967 : f32 to vector<8x128xf32>
    %973 = arith.mulf %972, %971 : vector<8x128xf32>
    %cst_313 = arith.constant 1.000000e+00 : f32
    %974 = arith.subf %cst_313, %967 : f32
    %975 = vector.broadcast %974 : f32 to vector<8x128xf32>
    %976 = arith.mulf %975, %962 : vector<8x128xf32>
    %977 = arith.addf %973, %976 : vector<8x128xf32>
    %c4_i32_314 = arith.constant 4 : i32
    %978 = vector.broadcast %662 : vector<1x32xf32> to vector<8x32xf32>
    %979 = arith.mulf %935, %978 : vector<8x32xf32>
    %cst_315 = arith.constant dense<0.000000e+00> : vector<8xf32>
    %980 = vector.multi_reduction <add>, %979, %cst_315 [1] : vector<8x32xf32> to vector<8xf32>
    %981 = vector.shape_cast %980 : vector<8xf32> to vector<8x1xf32>
    %982 = tpu.transpose %981, [1, 0] : vector<8x1xf32> -> vector<1x8xf32>
    %983 = vector.broadcast %982 : vector<1x8xf32> to vector<8x8xf32>
    %984 = arith.addf %983, %660 : vector<8x8xf32>
    %985 = vector.broadcast %661 : vector<1x1xf32> to vector<8x8xf32>
    %986 = arith.addf %984, %985 : vector<8x8xf32>
    %cst_316 = arith.constant 0.000000e+00 : f32
    %987 = vector.broadcast %cst_316 : f32 to vector<8x8xf32>
    %988 = arith.maximumf %986, %987 : vector<8x8xf32>
    %cst_317 = arith.constant dense<0xFF800000> : vector<8xf32>
    %989 = vector.multi_reduction <maximumf>, %988, %cst_317 [0] : vector<8x8xf32> to vector<8xf32>
    %990 = vector.shape_cast %989 : vector<8xf32> to vector<1x8xf32>
    %991 = vector.broadcast %990 : vector<1x8xf32> to vector<8x8xf32>
    %992 = arith.subf %988, %991 : vector<8x8xf32>
    %993 = math.exp %992 : vector<8x8xf32>
    %cst_318 = arith.constant dense<0.000000e+00> : vector<8xf32>
    %994 = vector.multi_reduction <add>, %993, %cst_318 [0] : vector<8x8xf32> to vector<8xf32>
    %995 = vector.shape_cast %994 : vector<8xf32> to vector<1x8xf32>
    %996 = tpu.reciprocal %995 {approx = true} : vector<1x8xf32> -> vector<1x8xf32>
    %997 = vector.broadcast %996 : vector<1x8xf32> to vector<8x8xf32>
    %998 = arith.mulf %993, %997 : vector<8x8xf32>
    %999 = vector.shape_cast %998 : vector<8x8xf32> to vector<8x8x1xf32>
    %c0_319 = arith.constant 0 : index
    %c0_320 = arith.constant 0 : index
    %c0_321 = arith.constant 0 : index
    %1000 = vector.load %arg22[%c0_319, %c0_320, %c0_321] : memref<8x8x64xf32, #tpu.memory_space<vmem>>, vector<8x8x64xf32>
    %1001 = vector.broadcast %999 : vector<8x8x1xf32> to vector<8x8x64xf32>
    %1002 = arith.mulf %1001, %1000 : vector<8x8x64xf32>
    %cst_322 = arith.constant dense<0.000000e+00> : vector<8x64xf32>
    %1003 = vector.multi_reduction <add>, %1002, %cst_322 [0] : vector<8x8x64xf32> to vector<8x64xf32>
    %c0_323 = arith.constant 0 : index
    %c0_324 = arith.constant 0 : index
    %1004 = vector.load %arg13[%c0_323, %c0_324] : memref<64x128xf32, #tpu.memory_space<vmem>>, vector<64x128xf32>
    %cst_325 = arith.constant dense<0.000000e+00> : vector<8x128xf32>
    %1005 = tpu.matmul %1003, %1004, %cst_325 {dimension_numbers = #tpu.dot_dimension_numbers<[1], [0], [0], [1], [0, 0, 1, 1], [], []>} : vector<8x64xf32>, vector<64x128xf32>, vector<8x128xf32> -> vector<8x128xf32>
    %1006 = arith.addf %1005, %977 : vector<8x128xf32>
    %c0_326 = arith.constant 0 : index
    %c0_327 = arith.constant 0 : index
    %1007 = vector.load %arg15[%c0_326, %c0_327] : memref<32x128xf32, #tpu.memory_space<vmem>>, vector<32x128xf32>
    %cst_328 = arith.constant dense<0.000000e+00> : vector<8x128xf32>
    %1008 = tpu.matmul %935, %1007, %cst_328 {dimension_numbers = #tpu.dot_dimension_numbers<[1], [0], [0], [1], [0, 0, 1, 1], [], []>} : vector<8x32xf32>, vector<32x128xf32>, vector<8x128xf32> -> vector<8x128xf32>
    %1009 = arith.addf %1006, %1008 : vector<8x128xf32>
    %c0_329 = arith.constant 0 : index
    %c0_330 = arith.constant 0 : index
    %1010 = vector.load %arg16[%c0_329, %c0_330] : memref<1x128xf32, #tpu.memory_space<vmem>>, vector<1x128xf32>
    %1011 = vector.broadcast %1010 : vector<1x128xf32> to vector<8x128xf32>
    %1012 = arith.addf %1009, %1011 : vector<8x128xf32>
    %1013 = vector.extract_strided_slice %1012 {offsets = [0, 0], sizes = [8, 32], strides = [1, 1]} : vector<8x128xf32> to vector<8x32xf32>
    %1014 = arith.negf %1013 : vector<8x32xf32>
    %1015 = math.exp %1014 : vector<8x32xf32>
    %cst_331 = arith.constant 1.000000e+00 : f32
    %1016 = vector.broadcast %cst_331 : f32 to vector<8x32xf32>
    %1017 = arith.addf %1016, %1015 : vector<8x32xf32>
    %1018 = arith.divf %1016, %1017 : vector<8x32xf32>
    %1019 = vector.extract_strided_slice %1012 {offsets = [0, 32], sizes = [8, 32], strides = [1, 1]} : vector<8x128xf32> to vector<8x32xf32>
    %1020 = arith.negf %1019 : vector<8x32xf32>
    %1021 = math.exp %1020 : vector<8x32xf32>
    %cst_332 = arith.constant 1.000000e+00 : f32
    %1022 = vector.broadcast %cst_332 : f32 to vector<8x32xf32>
    %1023 = arith.addf %1022, %1021 : vector<8x32xf32>
    %1024 = arith.divf %1022, %1023 : vector<8x32xf32>
    %1025 = vector.extract_strided_slice %1012 {offsets = [0, 64], sizes = [8, 32], strides = [1, 1]} : vector<8x128xf32> to vector<8x32xf32>
    %1026 = math.tanh %1025 : vector<8x32xf32>
    %1027 = vector.extract_strided_slice %1012 {offsets = [0, 96], sizes = [8, 32], strides = [1, 1]} : vector<8x128xf32> to vector<8x32xf32>
    %1028 = arith.negf %1027 : vector<8x32xf32>
    %1029 = math.exp %1028 : vector<8x32xf32>
    %cst_333 = arith.constant 1.000000e+00 : f32
    %1030 = vector.broadcast %cst_333 : f32 to vector<8x32xf32>
    %1031 = arith.addf %1030, %1029 : vector<8x32xf32>
    %1032 = arith.divf %1030, %1031 : vector<8x32xf32>
    %1033 = arith.mulf %1024, %933 : vector<8x32xf32>
    %1034 = arith.mulf %1018, %1026 : vector<8x32xf32>
    %1035 = arith.addf %1033, %1034 : vector<8x32xf32>
    %1036 = math.tanh %1035 : vector<8x32xf32>
    %1037 = arith.mulf %1032, %1036 : vector<8x32xf32>
    %c0_334 = arith.constant 0 : index
    %c0_335 = arith.constant 0 : index
    %1038 = vector.load %arg17[%c0_334, %c0_335] : memref<32x128xf32, #tpu.memory_space<vmem>>, vector<32x128xf32>
    %cst_336 = arith.constant dense<0.000000e+00> : vector<8x128xf32>
    %1039 = tpu.matmul %1037, %1038, %cst_336 {dimension_numbers = #tpu.dot_dimension_numbers<[1], [0], [0], [1], [0, 0, 1, 1], [], []>} : vector<8x32xf32>, vector<32x128xf32>, vector<8x128xf32> -> vector<8x128xf32>
    %c0_337 = arith.constant 0 : index
    %c0_338 = arith.constant 0 : index
    %1040 = vector.load %arg18[%c0_337, %c0_338] : memref<1x128xf32, #tpu.memory_space<vmem>>, vector<1x128xf32>
    %1041 = vector.broadcast %1040 : vector<1x128xf32> to vector<8x128xf32>
    %1042 = arith.addf %1039, %1041 : vector<8x128xf32>
    %1043 = arith.index_cast %c4_i32_314 : i32 to index
    %c0_339 = arith.constant 0 : index
    %c0_340 = arith.constant 0 : index
    %1044 = vector.load %arg20[%1043, %c0_339, %c0_340] : memref<8x8x128xf32, #tpu.memory_space<vmem>>, vector<1x8x128xf32>
    %1045 = vector.shape_cast %1044 : vector<1x8x128xf32> to vector<8x128xf32>
    %1046 = vector.shape_cast %1042 : vector<8x128xf32> to vector<1x8x128xf32>
    tpu.vector_store %arg20[%1043, %c0_339, %c0_340], %1046 {strides = array<i32>} : memref<8x8x128xf32, #tpu.memory_space<vmem>>, vector<1x8x128xf32>,
    %c64_i32_341 = arith.constant 64 : i32
    %1047 = vector.broadcast %c64_i32_341 : i32 to vector<8x128xi32>
    %1048 = arith.cmpi slt, %663, %1047 : vector<8x128xi32>
    %cst_342 = arith.constant -1.000000e+30 : f32
    %1049 = vector.broadcast %cst_342 : f32 to vector<8x128xf32>
    %1050 = arith.select %1048, %1042, %1049 : vector<8x128xi1>, vector<8x128xf32>
    %cst_343 = arith.constant dense<0xFF800000> : vector<8xf32>
    %1051 = vector.multi_reduction <maximumf>, %1050, %cst_343 [1] : vector<8x128xf32> to vector<8xf32>
    %1052 = vector.shape_cast %1051 : vector<8xf32> to vector<8x1xf32>
    %1053 = vector.broadcast %1052 : vector<8x1xf32> to vector<8x128xf32>
    %1054 = arith.cmpf oeq, %1050, %1053 : vector<8x128xf32>
    %cst_344 = arith.constant 1.280000e+02 : f32
    %1055 = vector.broadcast %cst_344 : f32 to vector<8x128xf32>
    %1056 = arith.select %1054, %664, %1055 : vector<8x128xi1>, vector<8x128xf32>
    %cst_345 = arith.constant dense<0x7F800000> : vector<8xf32>
    %1057 = vector.multi_reduction <minimumf>, %1056, %cst_345 [1] : vector<8x128xf32> to vector<8xf32>
    %1058 = vector.shape_cast %1057 : vector<8xf32> to vector<8x1xf32>
    %1059 = vector.broadcast %1058 : vector<8x1xf32> to vector<8x64xf32>
    %1060 = arith.cmpf oeq, %666, %1059 : vector<8x64xf32>
    %1061 = arith.extui %1060 : vector<8x64xi1> to vector<8x64xi32>
    %1062 = arith.sitofp %1061 : vector<8x64xi32> to vector<8x64xf32>
    %c0_346 = arith.constant 0 : index
    %c0_347 = arith.constant 0 : index
    %1063 = vector.load %arg24[%c0_346, %c0_347] : memref<64x128xf32, #tpu.memory_space<vmem>>, vector<64x128xf32>
    %cst_348 = arith.constant dense<0.000000e+00> : vector<8x128xf32>
    %1064 = tpu.matmul %1062, %1063, %cst_348 {dimension_numbers = #tpu.dot_dimension_numbers<[1], [0], [0], [1], [0, 0, 1, 1], [], []>} : vector<8x64xf32>, vector<64x128xf32>, vector<8x128xf32> -> vector<8x128xf32>
    %1065 = arith.index_cast %c4_i32_314 : i32 to index
    %1066 = memref.load %arg0[%1065] : memref<8xi32, #tpu.memory_space<smem>>
    %c0_i32_349 = arith.constant 0 : i32
    %1067 = arith.cmpi sgt, %1066, %c0_i32_349 : i32
    %1068 = arith.extui %1067 : i1 to i32
    %1069 = arith.sitofp %1068 : i32 to f32
    %c8_i32_350 = arith.constant 8 : i32
    %1070 = arith.muli %c4_i32_314, %c8_i32_350 : i32
    %1071 = tpu.assume_multiple %1070, 8 : i32
    %1072 = arith.index_cast %1071 : i32 to index
    %c0_351 = arith.constant 0 : index
    %1073 = vector.load %arg23[%1072, %c0_351] : memref<64x128xf32, #tpu.memory_space<vmem>>, vector<8x128xf32>
    %1074 = vector.broadcast %1069 : f32 to vector<8x128xf32>
    %1075 = arith.mulf %1074, %1073 : vector<8x128xf32>
    %cst_352 = arith.constant 1.000000e+00 : f32
    %1076 = arith.subf %cst_352, %1069 : f32
    %1077 = vector.broadcast %1076 : f32 to vector<8x128xf32>
    %1078 = arith.mulf %1077, %1064 : vector<8x128xf32>
    %1079 = arith.addf %1075, %1078 : vector<8x128xf32>
    %c5_i32_353 = arith.constant 5 : i32
    %1080 = vector.broadcast %662 : vector<1x32xf32> to vector<8x32xf32>
    %1081 = arith.mulf %1037, %1080 : vector<8x32xf32>
    %cst_354 = arith.constant dense<0.000000e+00> : vector<8xf32>
    %1082 = vector.multi_reduction <add>, %1081, %cst_354 [1] : vector<8x32xf32> to vector<8xf32>
    %1083 = vector.shape_cast %1082 : vector<8xf32> to vector<8x1xf32>
    %1084 = tpu.transpose %1083, [1, 0] : vector<8x1xf32> -> vector<1x8xf32>
    %1085 = vector.broadcast %1084 : vector<1x8xf32> to vector<8x8xf32>
    %1086 = arith.addf %1085, %660 : vector<8x8xf32>
    %1087 = vector.broadcast %661 : vector<1x1xf32> to vector<8x8xf32>
    %1088 = arith.addf %1086, %1087 : vector<8x8xf32>
    %cst_355 = arith.constant 0.000000e+00 : f32
    %1089 = vector.broadcast %cst_355 : f32 to vector<8x8xf32>
    %1090 = arith.maximumf %1088, %1089 : vector<8x8xf32>
    %cst_356 = arith.constant dense<0xFF800000> : vector<8xf32>
    %1091 = vector.multi_reduction <maximumf>, %1090, %cst_356 [0] : vector<8x8xf32> to vector<8xf32>
    %1092 = vector.shape_cast %1091 : vector<8xf32> to vector<1x8xf32>
    %1093 = vector.broadcast %1092 : vector<1x8xf32> to vector<8x8xf32>
    %1094 = arith.subf %1090, %1093 : vector<8x8xf32>
    %1095 = math.exp %1094 : vector<8x8xf32>
    %cst_357 = arith.constant dense<0.000000e+00> : vector<8xf32>
    %1096 = vector.multi_reduction <add>, %1095, %cst_357 [0] : vector<8x8xf32> to vector<8xf32>
    %1097 = vector.shape_cast %1096 : vector<8xf32> to vector<1x8xf32>
    %1098 = tpu.reciprocal %1097 {approx = true} : vector<1x8xf32> -> vector<1x8xf32>
    %1099 = vector.broadcast %1098 : vector<1x8xf32> to vector<8x8xf32>
    %1100 = arith.mulf %1095, %1099 : vector<8x8xf32>
    %1101 = vector.shape_cast %1100 : vector<8x8xf32> to vector<8x8x1xf32>
    %c0_358 = arith.constant 0 : index
    %c0_359 = arith.constant 0 : index
    %c0_360 = arith.constant 0 : index
    %1102 = vector.load %arg22[%c0_358, %c0_359, %c0_360] : memref<8x8x64xf32, #tpu.memory_space<vmem>>, vector<8x8x64xf32>
    %1103 = vector.broadcast %1101 : vector<8x8x1xf32> to vector<8x8x64xf32>
    %1104 = arith.mulf %1103, %1102 : vector<8x8x64xf32>
    %cst_361 = arith.constant dense<0.000000e+00> : vector<8x64xf32>
    %1105 = vector.multi_reduction <add>, %1104, %cst_361 [0] : vector<8x8x64xf32> to vector<8x64xf32>
    %c0_362 = arith.constant 0 : index
    %c0_363 = arith.constant 0 : index
    %1106 = vector.load %arg13[%c0_362, %c0_363] : memref<64x128xf32, #tpu.memory_space<vmem>>, vector<64x128xf32>
    %cst_364 = arith.constant dense<0.000000e+00> : vector<8x128xf32>
    %1107 = tpu.matmul %1105, %1106, %cst_364 {dimension_numbers = #tpu.dot_dimension_numbers<[1], [0], [0], [1], [0, 0, 1, 1], [], []>} : vector<8x64xf32>, vector<64x128xf32>, vector<8x128xf32> -> vector<8x128xf32>
    %1108 = arith.addf %1107, %1079 : vector<8x128xf32>
    %c0_365 = arith.constant 0 : index
    %c0_366 = arith.constant 0 : index
    %1109 = vector.load %arg15[%c0_365, %c0_366] : memref<32x128xf32, #tpu.memory_space<vmem>>, vector<32x128xf32>
    %cst_367 = arith.constant dense<0.000000e+00> : vector<8x128xf32>
    %1110 = tpu.matmul %1037, %1109, %cst_367 {dimension_numbers = #tpu.dot_dimension_numbers<[1], [0], [0], [1], [0, 0, 1, 1], [], []>} : vector<8x32xf32>, vector<32x128xf32>, vector<8x128xf32> -> vector<8x128xf32>
    %1111 = arith.addf %1108, %1110 : vector<8x128xf32>
    %c0_368 = arith.constant 0 : index
    %c0_369 = arith.constant 0 : index
    %1112 = vector.load %arg16[%c0_368, %c0_369] : memref<1x128xf32, #tpu.memory_space<vmem>>, vector<1x128xf32>
    %1113 = vector.broadcast %1112 : vector<1x128xf32> to vector<8x128xf32>
    %1114 = arith.addf %1111, %1113 : vector<8x128xf32>
    %1115 = vector.extract_strided_slice %1114 {offsets = [0, 0], sizes = [8, 32], strides = [1, 1]} : vector<8x128xf32> to vector<8x32xf32>
    %1116 = arith.negf %1115 : vector<8x32xf32>
    %1117 = math.exp %1116 : vector<8x32xf32>
    %cst_370 = arith.constant 1.000000e+00 : f32
    %1118 = vector.broadcast %cst_370 : f32 to vector<8x32xf32>
    %1119 = arith.addf %1118, %1117 : vector<8x32xf32>
    %1120 = arith.divf %1118, %1119 : vector<8x32xf32>
    %1121 = vector.extract_strided_slice %1114 {offsets = [0, 32], sizes = [8, 32], strides = [1, 1]} : vector<8x128xf32> to vector<8x32xf32>
    %1122 = arith.negf %1121 : vector<8x32xf32>
    %1123 = math.exp %1122 : vector<8x32xf32>
    %cst_371 = arith.constant 1.000000e+00 : f32
    %1124 = vector.broadcast %cst_371 : f32 to vector<8x32xf32>
    %1125 = arith.addf %1124, %1123 : vector<8x32xf32>
    %1126 = arith.divf %1124, %1125 : vector<8x32xf32>
    %1127 = vector.extract_strided_slice %1114 {offsets = [0, 64], sizes = [8, 32], strides = [1, 1]} : vector<8x128xf32> to vector<8x32xf32>
    %1128 = math.tanh %1127 : vector<8x32xf32>
    %1129 = vector.extract_strided_slice %1114 {offsets = [0, 96], sizes = [8, 32], strides = [1, 1]} : vector<8x128xf32> to vector<8x32xf32>
    %1130 = arith.negf %1129 : vector<8x32xf32>
    %1131 = math.exp %1130 : vector<8x32xf32>
    %cst_372 = arith.constant 1.000000e+00 : f32
    %1132 = vector.broadcast %cst_372 : f32 to vector<8x32xf32>
    %1133 = arith.addf %1132, %1131 : vector<8x32xf32>
    %1134 = arith.divf %1132, %1133 : vector<8x32xf32>
    %1135 = arith.mulf %1126, %1035 : vector<8x32xf32>
    %1136 = arith.mulf %1120, %1128 : vector<8x32xf32>
    %1137 = arith.addf %1135, %1136 : vector<8x32xf32>
    %1138 = math.tanh %1137 : vector<8x32xf32>
    %1139 = arith.mulf %1134, %1138 : vector<8x32xf32>
    %c0_373 = arith.constant 0 : index
    %c0_374 = arith.constant 0 : index
    %1140 = vector.load %arg17[%c0_373, %c0_374] : memref<32x128xf32, #tpu.memory_space<vmem>>, vector<32x128xf32>
    %cst_375 = arith.constant dense<0.000000e+00> : vector<8x128xf32>
    %1141 = tpu.matmul %1139, %1140, %cst_375 {dimension_numbers = #tpu.dot_dimension_numbers<[1], [0], [0], [1], [0, 0, 1, 1], [], []>} : vector<8x32xf32>, vector<32x128xf32>, vector<8x128xf32> -> vector<8x128xf32>
    %c0_376 = arith.constant 0 : index
    %c0_377 = arith.constant 0 : index
    %1142 = vector.load %arg18[%c0_376, %c0_377] : memref<1x128xf32, #tpu.memory_space<vmem>>, vector<1x128xf32>
    %1143 = vector.broadcast %1142 : vector<1x128xf32> to vector<8x128xf32>
    %1144 = arith.addf %1141, %1143 : vector<8x128xf32>
    %1145 = arith.index_cast %c5_i32_353 : i32 to index
    %c0_378 = arith.constant 0 : index
    %c0_379 = arith.constant 0 : index
    %1146 = vector.load %arg20[%1145, %c0_378, %c0_379] : memref<8x8x128xf32, #tpu.memory_space<vmem>>, vector<1x8x128xf32>
    %1147 = vector.shape_cast %1146 : vector<1x8x128xf32> to vector<8x128xf32>
    %1148 = vector.shape_cast %1144 : vector<8x128xf32> to vector<1x8x128xf32>
    tpu.vector_store %arg20[%1145, %c0_378, %c0_379], %1148 {strides = array<i32>} : memref<8x8x128xf32, #tpu.memory_space<vmem>>, vector<1x8x128xf32>,
    %c64_i32_380 = arith.constant 64 : i32
    %1149 = vector.broadcast %c64_i32_380 : i32 to vector<8x128xi32>
    %1150 = arith.cmpi slt, %663, %1149 : vector<8x128xi32>
    %cst_381 = arith.constant -1.000000e+30 : f32
    %1151 = vector.broadcast %cst_381 : f32 to vector<8x128xf32>
    %1152 = arith.select %1150, %1144, %1151 : vector<8x128xi1>, vector<8x128xf32>
    %cst_382 = arith.constant dense<0xFF800000> : vector<8xf32>
    %1153 = vector.multi_reduction <maximumf>, %1152, %cst_382 [1] : vector<8x128xf32> to vector<8xf32>
    %1154 = vector.shape_cast %1153 : vector<8xf32> to vector<8x1xf32>
    %1155 = vector.broadcast %1154 : vector<8x1xf32> to vector<8x128xf32>
    %1156 = arith.cmpf oeq, %1152, %1155 : vector<8x128xf32>
    %cst_383 = arith.constant 1.280000e+02 : f32
    %1157 = vector.broadcast %cst_383 : f32 to vector<8x128xf32>
    %1158 = arith.select %1156, %664, %1157 : vector<8x128xi1>, vector<8x128xf32>
    %cst_384 = arith.constant dense<0x7F800000> : vector<8xf32>
    %1159 = vector.multi_reduction <minimumf>, %1158, %cst_384 [1] : vector<8x128xf32> to vector<8xf32>
    %1160 = vector.shape_cast %1159 : vector<8xf32> to vector<8x1xf32>
    %1161 = vector.broadcast %1160 : vector<8x1xf32> to vector<8x64xf32>
    %1162 = arith.cmpf oeq, %666, %1161 : vector<8x64xf32>
    %1163 = arith.extui %1162 : vector<8x64xi1> to vector<8x64xi32>
    %1164 = arith.sitofp %1163 : vector<8x64xi32> to vector<8x64xf32>
    %c0_385 = arith.constant 0 : index
    %c0_386 = arith.constant 0 : index
    %1165 = vector.load %arg24[%c0_385, %c0_386] : memref<64x128xf32, #tpu.memory_space<vmem>>, vector<64x128xf32>
    %cst_387 = arith.constant dense<0.000000e+00> : vector<8x128xf32>
    %1166 = tpu.matmul %1164, %1165, %cst_387 {dimension_numbers = #tpu.dot_dimension_numbers<[1], [0], [0], [1], [0, 0, 1, 1], [], []>} : vector<8x64xf32>, vector<64x128xf32>, vector<8x128xf32> -> vector<8x128xf32>
    %1167 = arith.index_cast %c5_i32_353 : i32 to index
    %1168 = memref.load %arg0[%1167] : memref<8xi32, #tpu.memory_space<smem>>
    %c0_i32_388 = arith.constant 0 : i32
    %1169 = arith.cmpi sgt, %1168, %c0_i32_388 : i32
    %1170 = arith.extui %1169 : i1 to i32
    %1171 = arith.sitofp %1170 : i32 to f32
    %c8_i32_389 = arith.constant 8 : i32
    %1172 = arith.muli %c5_i32_353, %c8_i32_389 : i32
    %1173 = tpu.assume_multiple %1172, 8 : i32
    %1174 = arith.index_cast %1173 : i32 to index
    %c0_390 = arith.constant 0 : index
    %1175 = vector.load %arg23[%1174, %c0_390] : memref<64x128xf32, #tpu.memory_space<vmem>>, vector<8x128xf32>
    %1176 = vector.broadcast %1171 : f32 to vector<8x128xf32>
    %1177 = arith.mulf %1176, %1175 : vector<8x128xf32>
    %cst_391 = arith.constant 1.000000e+00 : f32
    %1178 = arith.subf %cst_391, %1171 : f32
    %1179 = vector.broadcast %1178 : f32 to vector<8x128xf32>
    %1180 = arith.mulf %1179, %1166 : vector<8x128xf32>
    %1181 = arith.addf %1177, %1180 : vector<8x128xf32>
    %c6_i32_392 = arith.constant 6 : i32
    %1182 = vector.broadcast %662 : vector<1x32xf32> to vector<8x32xf32>
    %1183 = arith.mulf %1139, %1182 : vector<8x32xf32>
    %cst_393 = arith.constant dense<0.000000e+00> : vector<8xf32>
    %1184 = vector.multi_reduction <add>, %1183, %cst_393 [1] : vector<8x32xf32> to vector<8xf32>
    %1185 = vector.shape_cast %1184 : vector<8xf32> to vector<8x1xf32>
    %1186 = tpu.transpose %1185, [1, 0] : vector<8x1xf32> -> vector<1x8xf32>
    %1187 = vector.broadcast %1186 : vector<1x8xf32> to vector<8x8xf32>
    %1188 = arith.addf %1187, %660 : vector<8x8xf32>
    %1189 = vector.broadcast %661 : vector<1x1xf32> to vector<8x8xf32>
    %1190 = arith.addf %1188, %1189 : vector<8x8xf32>
    %cst_394 = arith.constant 0.000000e+00 : f32
    %1191 = vector.broadcast %cst_394 : f32 to vector<8x8xf32>
    %1192 = arith.maximumf %1190, %1191 : vector<8x8xf32>
    %cst_395 = arith.constant dense<0xFF800000> : vector<8xf32>
    %1193 = vector.multi_reduction <maximumf>, %1192, %cst_395 [0] : vector<8x8xf32> to vector<8xf32>
    %1194 = vector.shape_cast %1193 : vector<8xf32> to vector<1x8xf32>
    %1195 = vector.broadcast %1194 : vector<1x8xf32> to vector<8x8xf32>
    %1196 = arith.subf %1192, %1195 : vector<8x8xf32>
    %1197 = math.exp %1196 : vector<8x8xf32>
    %cst_396 = arith.constant dense<0.000000e+00> : vector<8xf32>
    %1198 = vector.multi_reduction <add>, %1197, %cst_396 [0] : vector<8x8xf32> to vector<8xf32>
    %1199 = vector.shape_cast %1198 : vector<8xf32> to vector<1x8xf32>
    %1200 = tpu.reciprocal %1199 {approx = true} : vector<1x8xf32> -> vector<1x8xf32>
    %1201 = vector.broadcast %1200 : vector<1x8xf32> to vector<8x8xf32>
    %1202 = arith.mulf %1197, %1201 : vector<8x8xf32>
    %1203 = vector.shape_cast %1202 : vector<8x8xf32> to vector<8x8x1xf32>
    %c0_397 = arith.constant 0 : index
    %c0_398 = arith.constant 0 : index
    %c0_399 = arith.constant 0 : index
    %1204 = vector.load %arg22[%c0_397, %c0_398, %c0_399] : memref<8x8x64xf32, #tpu.memory_space<vmem>>, vector<8x8x64xf32>
    %1205 = vector.broadcast %1203 : vector<8x8x1xf32> to vector<8x8x64xf32>
    %1206 = arith.mulf %1205, %1204 : vector<8x8x64xf32>
    %cst_400 = arith.constant dense<0.000000e+00> : vector<8x64xf32>
    %1207 = vector.multi_reduction <add>, %1206, %cst_400 [0] : vector<8x8x64xf32> to vector<8x64xf32>
    %c0_401 = arith.constant 0 : index
    %c0_402 = arith.constant 0 : index
    %1208 = vector.load %arg13[%c0_401, %c0_402] : memref<64x128xf32, #tpu.memory_space<vmem>>, vector<64x128xf32>
    %cst_403 = arith.constant dense<0.000000e+00> : vector<8x128xf32>
    %1209 = tpu.matmul %1207, %1208, %cst_403 {dimension_numbers = #tpu.dot_dimension_numbers<[1], [0], [0], [1], [0, 0, 1, 1], [], []>} : vector<8x64xf32>, vector<64x128xf32>, vector<8x128xf32> -> vector<8x128xf32>
    %1210 = arith.addf %1209, %1181 : vector<8x128xf32>
    %c0_404 = arith.constant 0 : index
    %c0_405 = arith.constant 0 : index
    %1211 = vector.load %arg15[%c0_404, %c0_405] : memref<32x128xf32, #tpu.memory_space<vmem>>, vector<32x128xf32>
    %cst_406 = arith.constant dense<0.000000e+00> : vector<8x128xf32>
    %1212 = tpu.matmul %1139, %1211, %cst_406 {dimension_numbers = #tpu.dot_dimension_numbers<[1], [0], [0], [1], [0, 0, 1, 1], [], []>} : vector<8x32xf32>, vector<32x128xf32>, vector<8x128xf32> -> vector<8x128xf32>
    %1213 = arith.addf %1210, %1212 : vector<8x128xf32>
    %c0_407 = arith.constant 0 : index
    %c0_408 = arith.constant 0 : index
    %1214 = vector.load %arg16[%c0_407, %c0_408] : memref<1x128xf32, #tpu.memory_space<vmem>>, vector<1x128xf32>
    %1215 = vector.broadcast %1214 : vector<1x128xf32> to vector<8x128xf32>
    %1216 = arith.addf %1213, %1215 : vector<8x128xf32>
    %1217 = vector.extract_strided_slice %1216 {offsets = [0, 0], sizes = [8, 32], strides = [1, 1]} : vector<8x128xf32> to vector<8x32xf32>
    %1218 = arith.negf %1217 : vector<8x32xf32>
    %1219 = math.exp %1218 : vector<8x32xf32>
    %cst_409 = arith.constant 1.000000e+00 : f32
    %1220 = vector.broadcast %cst_409 : f32 to vector<8x32xf32>
    %1221 = arith.addf %1220, %1219 : vector<8x32xf32>
    %1222 = arith.divf %1220, %1221 : vector<8x32xf32>
    %1223 = vector.extract_strided_slice %1216 {offsets = [0, 32], sizes = [8, 32], strides = [1, 1]} : vector<8x128xf32> to vector<8x32xf32>
    %1224 = arith.negf %1223 : vector<8x32xf32>
    %1225 = math.exp %1224 : vector<8x32xf32>
    %cst_410 = arith.constant 1.000000e+00 : f32
    %1226 = vector.broadcast %cst_410 : f32 to vector<8x32xf32>
    %1227 = arith.addf %1226, %1225 : vector<8x32xf32>
    %1228 = arith.divf %1226, %1227 : vector<8x32xf32>
    %1229 = vector.extract_strided_slice %1216 {offsets = [0, 64], sizes = [8, 32], strides = [1, 1]} : vector<8x128xf32> to vector<8x32xf32>
    %1230 = math.tanh %1229 : vector<8x32xf32>
    %1231 = vector.extract_strided_slice %1216 {offsets = [0, 96], sizes = [8, 32], strides = [1, 1]} : vector<8x128xf32> to vector<8x32xf32>
    %1232 = arith.negf %1231 : vector<8x32xf32>
    %1233 = math.exp %1232 : vector<8x32xf32>
    %cst_411 = arith.constant 1.000000e+00 : f32
    %1234 = vector.broadcast %cst_411 : f32 to vector<8x32xf32>
    %1235 = arith.addf %1234, %1233 : vector<8x32xf32>
    %1236 = arith.divf %1234, %1235 : vector<8x32xf32>
    %1237 = arith.mulf %1228, %1137 : vector<8x32xf32>
    %1238 = arith.mulf %1222, %1230 : vector<8x32xf32>
    %1239 = arith.addf %1237, %1238 : vector<8x32xf32>
    %1240 = math.tanh %1239 : vector<8x32xf32>
    %1241 = arith.mulf %1236, %1240 : vector<8x32xf32>
    %c0_412 = arith.constant 0 : index
    %c0_413 = arith.constant 0 : index
    %1242 = vector.load %arg17[%c0_412, %c0_413] : memref<32x128xf32, #tpu.memory_space<vmem>>, vector<32x128xf32>
    %cst_414 = arith.constant dense<0.000000e+00> : vector<8x128xf32>
    %1243 = tpu.matmul %1241, %1242, %cst_414 {dimension_numbers = #tpu.dot_dimension_numbers<[1], [0], [0], [1], [0, 0, 1, 1], [], []>} : vector<8x32xf32>, vector<32x128xf32>, vector<8x128xf32> -> vector<8x128xf32>
    %c0_415 = arith.constant 0 : index
    %c0_416 = arith.constant 0 : index
    %1244 = vector.load %arg18[%c0_415, %c0_416] : memref<1x128xf32, #tpu.memory_space<vmem>>, vector<1x128xf32>
    %1245 = vector.broadcast %1244 : vector<1x128xf32> to vector<8x128xf32>
    %1246 = arith.addf %1243, %1245 : vector<8x128xf32>
    %1247 = arith.index_cast %c6_i32_392 : i32 to index
    %c0_417 = arith.constant 0 : index
    %c0_418 = arith.constant 0 : index
    %1248 = vector.load %arg20[%1247, %c0_417, %c0_418] : memref<8x8x128xf32, #tpu.memory_space<vmem>>, vector<1x8x128xf32>
    %1249 = vector.shape_cast %1248 : vector<1x8x128xf32> to vector<8x128xf32>
    %1250 = vector.shape_cast %1246 : vector<8x128xf32> to vector<1x8x128xf32>
    tpu.vector_store %arg20[%1247, %c0_417, %c0_418], %1250 {strides = array<i32>} : memref<8x8x128xf32, #tpu.memory_space<vmem>>, vector<1x8x128xf32>,
    %c64_i32_419 = arith.constant 64 : i32
    %1251 = vector.broadcast %c64_i32_419 : i32 to vector<8x128xi32>
    %1252 = arith.cmpi slt, %663, %1251 : vector<8x128xi32>
    %cst_420 = arith.constant -1.000000e+30 : f32
    %1253 = vector.broadcast %cst_420 : f32 to vector<8x128xf32>
    %1254 = arith.select %1252, %1246, %1253 : vector<8x128xi1>, vector<8x128xf32>
    %cst_421 = arith.constant dense<0xFF800000> : vector<8xf32>
    %1255 = vector.multi_reduction <maximumf>, %1254, %cst_421 [1] : vector<8x128xf32> to vector<8xf32>
    %1256 = vector.shape_cast %1255 : vector<8xf32> to vector<8x1xf32>
    %1257 = vector.broadcast %1256 : vector<8x1xf32> to vector<8x128xf32>
    %1258 = arith.cmpf oeq, %1254, %1257 : vector<8x128xf32>
    %cst_422 = arith.constant 1.280000e+02 : f32
    %1259 = vector.broadcast %cst_422 : f32 to vector<8x128xf32>
    %1260 = arith.select %1258, %664, %1259 : vector<8x128xi1>, vector<8x128xf32>
    %cst_423 = arith.constant dense<0x7F800000> : vector<8xf32>
    %1261 = vector.multi_reduction <minimumf>, %1260, %cst_423 [1] : vector<8x128xf32> to vector<8xf32>
    %1262 = vector.shape_cast %1261 : vector<8xf32> to vector<8x1xf32>
    %1263 = vector.broadcast %1262 : vector<8x1xf32> to vector<8x64xf32>
    %1264 = arith.cmpf oeq, %666, %1263 : vector<8x64xf32>
    %1265 = arith.extui %1264 : vector<8x64xi1> to vector<8x64xi32>
    %1266 = arith.sitofp %1265 : vector<8x64xi32> to vector<8x64xf32>
    %c0_424 = arith.constant 0 : index
    %c0_425 = arith.constant 0 : index
    %1267 = vector.load %arg24[%c0_424, %c0_425] : memref<64x128xf32, #tpu.memory_space<vmem>>, vector<64x128xf32>
    %cst_426 = arith.constant dense<0.000000e+00> : vector<8x128xf32>
    %1268 = tpu.matmul %1266, %1267, %cst_426 {dimension_numbers = #tpu.dot_dimension_numbers<[1], [0], [0], [1], [0, 0, 1, 1], [], []>} : vector<8x64xf32>, vector<64x128xf32>, vector<8x128xf32> -> vector<8x128xf32>
    %1269 = arith.index_cast %c6_i32_392 : i32 to index
    %1270 = memref.load %arg0[%1269] : memref<8xi32, #tpu.memory_space<smem>>
    %c0_i32_427 = arith.constant 0 : i32
    %1271 = arith.cmpi sgt, %1270, %c0_i32_427 : i32
    %1272 = arith.extui %1271 : i1 to i32
    %1273 = arith.sitofp %1272 : i32 to f32
    %c8_i32_428 = arith.constant 8 : i32
    %1274 = arith.muli %c6_i32_392, %c8_i32_428 : i32
    %1275 = tpu.assume_multiple %1274, 8 : i32
    %1276 = arith.index_cast %1275 : i32 to index
    %c0_429 = arith.constant 0 : index
    %1277 = vector.load %arg23[%1276, %c0_429] : memref<64x128xf32, #tpu.memory_space<vmem>>, vector<8x128xf32>
    %1278 = vector.broadcast %1273 : f32 to vector<8x128xf32>
    %1279 = arith.mulf %1278, %1277 : vector<8x128xf32>
    %cst_430 = arith.constant 1.000000e+00 : f32
    %1280 = arith.subf %cst_430, %1273 : f32
    %1281 = vector.broadcast %1280 : f32 to vector<8x128xf32>
    %1282 = arith.mulf %1281, %1268 : vector<8x128xf32>
    %1283 = arith.addf %1279, %1282 : vector<8x128xf32>
    %c7_i32_431 = arith.constant 7 : i32
    %1284 = vector.broadcast %662 : vector<1x32xf32> to vector<8x32xf32>
    %1285 = arith.mulf %1241, %1284 : vector<8x32xf32>
    %cst_432 = arith.constant dense<0.000000e+00> : vector<8xf32>
    %1286 = vector.multi_reduction <add>, %1285, %cst_432 [1] : vector<8x32xf32> to vector<8xf32>
    %1287 = vector.shape_cast %1286 : vector<8xf32> to vector<8x1xf32>
    %1288 = tpu.transpose %1287, [1, 0] : vector<8x1xf32> -> vector<1x8xf32>
    %1289 = vector.broadcast %1288 : vector<1x8xf32> to vector<8x8xf32>
    %1290 = arith.addf %1289, %660 : vector<8x8xf32>
    %1291 = vector.broadcast %661 : vector<1x1xf32> to vector<8x8xf32>
    %1292 = arith.addf %1290, %1291 : vector<8x8xf32>
    %cst_433 = arith.constant 0.000000e+00 : f32
    %1293 = vector.broadcast %cst_433 : f32 to vector<8x8xf32>
    %1294 = arith.maximumf %1292, %1293 : vector<8x8xf32>
    %cst_434 = arith.constant dense<0xFF800000> : vector<8xf32>
    %1295 = vector.multi_reduction <maximumf>, %1294, %cst_434 [0] : vector<8x8xf32> to vector<8xf32>
    %1296 = vector.shape_cast %1295 : vector<8xf32> to vector<1x8xf32>
    %1297 = vector.broadcast %1296 : vector<1x8xf32> to vector<8x8xf32>
    %1298 = arith.subf %1294, %1297 : vector<8x8xf32>
    %1299 = math.exp %1298 : vector<8x8xf32>
    %cst_435 = arith.constant dense<0.000000e+00> : vector<8xf32>
    %1300 = vector.multi_reduction <add>, %1299, %cst_435 [0] : vector<8x8xf32> to vector<8xf32>
    %1301 = vector.shape_cast %1300 : vector<8xf32> to vector<1x8xf32>
    %1302 = tpu.reciprocal %1301 {approx = true} : vector<1x8xf32> -> vector<1x8xf32>
    %1303 = vector.broadcast %1302 : vector<1x8xf32> to vector<8x8xf32>
    %1304 = arith.mulf %1299, %1303 : vector<8x8xf32>
    %1305 = vector.shape_cast %1304 : vector<8x8xf32> to vector<8x8x1xf32>
    %c0_436 = arith.constant 0 : index
    %c0_437 = arith.constant 0 : index
    %c0_438 = arith.constant 0 : index
    %1306 = vector.load %arg22[%c0_436, %c0_437, %c0_438] : memref<8x8x64xf32, #tpu.memory_space<vmem>>, vector<8x8x64xf32>
    %1307 = vector.broadcast %1305 : vector<8x8x1xf32> to vector<8x8x64xf32>
    %1308 = arith.mulf %1307, %1306 : vector<8x8x64xf32>
    %cst_439 = arith.constant dense<0.000000e+00> : vector<8x64xf32>
    %1309 = vector.multi_reduction <add>, %1308, %cst_439 [0] : vector<8x8x64xf32> to vector<8x64xf32>
    %c0_440 = arith.constant 0 : index
    %c0_441 = arith.constant 0 : index
    %1310 = vector.load %arg13[%c0_440, %c0_441] : memref<64x128xf32, #tpu.memory_space<vmem>>, vector<64x128xf32>
    %cst_442 = arith.constant dense<0.000000e+00> : vector<8x128xf32>
    %1311 = tpu.matmul %1309, %1310, %cst_442 {dimension_numbers = #tpu.dot_dimension_numbers<[1], [0], [0], [1], [0, 0, 1, 1], [], []>} : vector<8x64xf32>, vector<64x128xf32>, vector<8x128xf32> -> vector<8x128xf32>
    %1312 = arith.addf %1311, %1283 : vector<8x128xf32>
    %c0_443 = arith.constant 0 : index
    %c0_444 = arith.constant 0 : index
    %1313 = vector.load %arg15[%c0_443, %c0_444] : memref<32x128xf32, #tpu.memory_space<vmem>>, vector<32x128xf32>
    %cst_445 = arith.constant dense<0.000000e+00> : vector<8x128xf32>
    %1314 = tpu.matmul %1241, %1313, %cst_445 {dimension_numbers = #tpu.dot_dimension_numbers<[1], [0], [0], [1], [0, 0, 1, 1], [], []>} : vector<8x32xf32>, vector<32x128xf32>, vector<8x128xf32> -> vector<8x128xf32>
    %1315 = arith.addf %1312, %1314 : vector<8x128xf32>
    %c0_446 = arith.constant 0 : index
    %c0_447 = arith.constant 0 : index
    %1316 = vector.load %arg16[%c0_446, %c0_447] : memref<1x128xf32, #tpu.memory_space<vmem>>, vector<1x128xf32>
    %1317 = vector.broadcast %1316 : vector<1x128xf32> to vector<8x128xf32>
    %1318 = arith.addf %1315, %1317 : vector<8x128xf32>
    %1319 = vector.extract_strided_slice %1318 {offsets = [0, 0], sizes = [8, 32], strides = [1, 1]} : vector<8x128xf32> to vector<8x32xf32>
    %1320 = arith.negf %1319 : vector<8x32xf32>
    %1321 = math.exp %1320 : vector<8x32xf32>
    %cst_448 = arith.constant 1.000000e+00 : f32
    %1322 = vector.broadcast %cst_448 : f32 to vector<8x32xf32>
    %1323 = arith.addf %1322, %1321 : vector<8x32xf32>
    %1324 = arith.divf %1322, %1323 : vector<8x32xf32>
    %1325 = vector.extract_strided_slice %1318 {offsets = [0, 32], sizes = [8, 32], strides = [1, 1]} : vector<8x128xf32> to vector<8x32xf32>
    %1326 = arith.negf %1325 : vector<8x32xf32>
    %1327 = math.exp %1326 : vector<8x32xf32>
    %cst_449 = arith.constant 1.000000e+00 : f32
    %1328 = vector.broadcast %cst_449 : f32 to vector<8x32xf32>
    %1329 = arith.addf %1328, %1327 : vector<8x32xf32>
    %1330 = arith.divf %1328, %1329 : vector<8x32xf32>
    %1331 = vector.extract_strided_slice %1318 {offsets = [0, 64], sizes = [8, 32], strides = [1, 1]} : vector<8x128xf32> to vector<8x32xf32>
    %1332 = math.tanh %1331 : vector<8x32xf32>
    %1333 = vector.extract_strided_slice %1318 {offsets = [0, 96], sizes = [8, 32], strides = [1, 1]} : vector<8x128xf32> to vector<8x32xf32>
    %1334 = arith.negf %1333 : vector<8x32xf32>
    %1335 = math.exp %1334 : vector<8x32xf32>
    %cst_450 = arith.constant 1.000000e+00 : f32
    %1336 = vector.broadcast %cst_450 : f32 to vector<8x32xf32>
    %1337 = arith.addf %1336, %1335 : vector<8x32xf32>
    %1338 = arith.divf %1336, %1337 : vector<8x32xf32>
    %1339 = arith.mulf %1330, %1239 : vector<8x32xf32>
    %1340 = arith.mulf %1324, %1332 : vector<8x32xf32>
    %1341 = arith.addf %1339, %1340 : vector<8x32xf32>
    %1342 = math.tanh %1341 : vector<8x32xf32>
    %1343 = arith.mulf %1338, %1342 : vector<8x32xf32>
    %c0_451 = arith.constant 0 : index
    %c0_452 = arith.constant 0 : index
    %1344 = vector.load %arg17[%c0_451, %c0_452] : memref<32x128xf32, #tpu.memory_space<vmem>>, vector<32x128xf32>
    %cst_453 = arith.constant dense<0.000000e+00> : vector<8x128xf32>
    %1345 = tpu.matmul %1343, %1344, %cst_453 {dimension_numbers = #tpu.dot_dimension_numbers<[1], [0], [0], [1], [0, 0, 1, 1], [], []>} : vector<8x32xf32>, vector<32x128xf32>, vector<8x128xf32> -> vector<8x128xf32>
    %c0_454 = arith.constant 0 : index
    %c0_455 = arith.constant 0 : index
    %1346 = vector.load %arg18[%c0_454, %c0_455] : memref<1x128xf32, #tpu.memory_space<vmem>>, vector<1x128xf32>
    %1347 = vector.broadcast %1346 : vector<1x128xf32> to vector<8x128xf32>
    %1348 = arith.addf %1345, %1347 : vector<8x128xf32>
    %1349 = arith.index_cast %c7_i32_431 : i32 to index
    %c0_456 = arith.constant 0 : index
    %c0_457 = arith.constant 0 : index
    %1350 = vector.load %arg20[%1349, %c0_456, %c0_457] : memref<8x8x128xf32, #tpu.memory_space<vmem>>, vector<1x8x128xf32>
    %1351 = vector.shape_cast %1350 : vector<1x8x128xf32> to vector<8x128xf32>
    %1352 = vector.shape_cast %1348 : vector<8x128xf32> to vector<1x8x128xf32>
    tpu.vector_store %arg20[%1349, %c0_456, %c0_457], %1352 {strides = array<i32>} : memref<8x8x128xf32, #tpu.memory_space<vmem>>, vector<1x8x128xf32>,
    %c64_i32_458 = arith.constant 64 : i32
    %1353 = vector.broadcast %c64_i32_458 : i32 to vector<8x128xi32>
    %1354 = arith.cmpi slt, %663, %1353 : vector<8x128xi32>
    %cst_459 = arith.constant -1.000000e+30 : f32
    %1355 = vector.broadcast %cst_459 : f32 to vector<8x128xf32>
    %1356 = arith.select %1354, %1348, %1355 : vector<8x128xi1>, vector<8x128xf32>
    %cst_460 = arith.constant dense<0xFF800000> : vector<8xf32>
    %1357 = vector.multi_reduction <maximumf>, %1356, %cst_460 [1] : vector<8x128xf32> to vector<8xf32>
    %1358 = vector.shape_cast %1357 : vector<8xf32> to vector<8x1xf32>
    %1359 = vector.broadcast %1358 : vector<8x1xf32> to vector<8x128xf32>
    %1360 = arith.cmpf oeq, %1356, %1359 : vector<8x128xf32>
    %cst_461 = arith.constant 1.280000e+02 : f32
    %1361 = vector.broadcast %cst_461 : f32 to vector<8x128xf32>
    %1362 = arith.select %1360, %664, %1361 : vector<8x128xi1>, vector<8x128xf32>
    %cst_462 = arith.constant dense<0x7F800000> : vector<8xf32>
    %1363 = vector.multi_reduction <minimumf>, %1362, %cst_462 [1] : vector<8x128xf32> to vector<8xf32>
    %1364 = vector.shape_cast %1363 : vector<8xf32> to vector<8x1xf32>
    %1365 = vector.broadcast %1364 : vector<8x1xf32> to vector<8x64xf32>
    %1366 = arith.cmpf oeq, %666, %1365 : vector<8x64xf32>
    %1367 = arith.extui %1366 : vector<8x64xi1> to vector<8x64xi32>
    %1368 = arith.sitofp %1367 : vector<8x64xi32> to vector<8x64xf32>
    %c0_463 = arith.constant 0 : index
    %c0_464 = arith.constant 0 : index
    %1369 = vector.load %arg24[%c0_463, %c0_464] : memref<64x128xf32, #tpu.memory_space<vmem>>, vector<64x128xf32>
    %cst_465 = arith.constant dense<0.000000e+00> : vector<8x128xf32>
    %1370 = tpu.matmul %1368, %1369, %cst_465 {dimension_numbers = #tpu.dot_dimension_numbers<[1], [0], [0], [1], [0, 0, 1, 1], [], []>} : vector<8x64xf32>, vector<64x128xf32>, vector<8x128xf32> -> vector<8x128xf32>
    %1371 = arith.index_cast %c7_i32_431 : i32 to index
    %1372 = memref.load %arg0[%1371] : memref<8xi32, #tpu.memory_space<smem>>
    %c0_i32_466 = arith.constant 0 : i32
    %1373 = arith.cmpi sgt, %1372, %c0_i32_466 : i32
    %1374 = arith.extui %1373 : i1 to i32
    %1375 = arith.sitofp %1374 : i32 to f32
    %c8_i32_467 = arith.constant 8 : i32
    %1376 = arith.muli %c7_i32_431, %c8_i32_467 : i32
    %1377 = tpu.assume_multiple %1376, 8 : i32
    %1378 = arith.index_cast %1377 : i32 to index
    %c0_468 = arith.constant 0 : index
    %1379 = vector.load %arg23[%1378, %c0_468] : memref<64x128xf32, #tpu.memory_space<vmem>>, vector<8x128xf32>
    %1380 = vector.broadcast %1375 : f32 to vector<8x128xf32>
    %1381 = arith.mulf %1380, %1379 : vector<8x128xf32>
    %cst_469 = arith.constant 1.000000e+00 : f32
    %1382 = arith.subf %cst_469, %1375 : f32
    %1383 = vector.broadcast %1382 : f32 to vector<8x128xf32>
    %1384 = arith.mulf %1383, %1370 : vector<8x128xf32>
    %1385 = arith.addf %1381, %1384 : vector<8x128xf32>
    %c7_i32_470 = arith.constant 7 : i32
    return
  }
}

</mosaic_0001>

<llo_original>
// kernel: _forward_device.1
$region0: #{_forward_device.1}
  #allocation0 [shape = 'u32[]', space=smem, size = 0x4, offset = 0x4, fixed_abs, tag = 'smem constant byte address 0x4 - core index']
  #allocation1 [shape = 'u32[144,128]{1,0:T(1,128)}', space=vmem, size = 0x12000, scoped, tag = 'internal scratch']
  #allocation2 [shape = 'f32[64,256]{1,0:T(8,128)}', space=vmem, size = 0x10000, scoped, tag = 'scratch operand']
  #allocation3 [shape = 'f32[8,8,64]{2,1,0:T(8,128)}', space=vmem, size = 0x8000, scoped, tag = 'scratch operand']
  #allocation4 [shape = 'f32[64,128]{1,0:T(8,128)}', space=vmem, size = 0x8000, scoped, tag = 'scratch operand']
  #allocation5 [shape = 'f32[64,128]{1,0:T(8,128)}', space=vmem, size = 0x8000, scoped, tag = 'scratch operand']
  #allocation6 [shape = 'f32[1,1]{1,0:T(1,128)S(1)}', space=vmem, size = 0x200, scoped, tag = 'scoped memory for _forward_device.1']
  %s0 = inlined_call_operand.vmem [shape: s32[8], index: 0, kind: input, shape index: {}]
  %s1 = inlined_call_operand.vmem [shape: f32[64,16], index: 1, kind: input, shape index: {}]
  %s2 = inlined_call_operand.vmem [shape: f32[64,16], index: 2, kind: input, shape index: {}]
  %s3 = inlined_call_operand.vmem [shape: f32[16,256], index: 3, kind: input, shape index: {}]
  %s4 = inlined_call_operand.vmem [shape: f32[32,256], index: 4, kind: input, shape index: {}]
  %s5 = inlined_call_operand.vmem [shape: f32[1,256], index: 5, kind: input, shape index: {}]
  %s6 = inlined_call_operand.vmem [shape: f32[64,32], index: 6, kind: input, shape index: {}]
  %s7 = inlined_call_operand.vmem [shape: f32[1,32], index: 7, kind: input, shape index: {}]
  %s8 = inlined_call_operand.vmem [shape: f32[64,32], index: 8, kind: input, shape index: {}]
  %s9 = inlined_call_operand.vmem [shape: f32[1,32], index: 9, kind: input, shape index: {}]
  %s10 = inlined_call_operand.vmem [shape: f32[1,32], index: 10, kind: input, shape index: {}]
  %s11 = inlined_call_operand.vmem [shape: f32[1,64], index: 11, kind: input, shape index: {}]
  %s12 = inlined_call_operand.<no memory space> [shape: f32[1,1], index: 12, kind: input, shape index: {}]
  %s13 = inlined_call_operand.vmem [shape: f32[64,128], index: 13, kind: input, shape index: {}]
  %s14 = inlined_call_operand.vmem [shape: f32[16,128], index: 14, kind: input, shape index: {}]
  %s15 = inlined_call_operand.vmem [shape: f32[32,128], index: 15, kind: input, shape index: {}]
  %s16 = inlined_call_operand.vmem [shape: f32[1,128], index: 16, kind: input, shape index: {}]
  %s17 = inlined_call_operand.vmem [shape: f32[32,128], index: 17, kind: input, shape index: {}]
  %s18 = inlined_call_operand.vmem [shape: f32[1,128], index: 18, kind: input, shape index: {}]
  %s19 = inlined_call_operand.vmem [shape: f32[64,16], index: 19, kind: input, shape index: {}]
  %s20 = inlined_call_operand.hbm [shape: f32[8,8,128], index: 20, kind: output, shape index: {}]
  %s21 = sld [smem:[#allocation0]]
  $region94: #{_forward_device.1} parent=0
    _
  %s23 = ssub.s32 1, %s21
  %s24 = scalar_select 0, %s23, %s21
  %v25 = vstv %s12
  %26 = vst [vmem:[#allocation6] sm:$0x1] %v25
  $region1: #{_forward_device.1} parent=0
    #allocation7 [shape = 'u8[512]{0}', space=smem, size = 0x200, scoped, tag = 'input window, operand 0, single buffered']
    #allocation8 [shape = 's32[1]{0}', space=sflag, size = 0x4, scoped, tag = 'scoped memory for _forward_device.1']
    #allocation9 [shape = 's32[1]{0}', space=sflag, size = 0x4, scoped, tag = 'scoped memory for _forward_device.1']
    #allocation10 [shape = 'u8[32768]{0}', space=vmem, size = 0x8000, scoped, tag = 'output window, operand 0, single buffered']
    %27 = vsyncpa [#allocation9], 0
    %28 = vsyncpa [#allocation8], 0
    // Predicated region
    $region2: #{_forward_device.1} parent=1 // pred_check
      _
    $region3: #{_forward_device.1} parent=1 // pred_check_branch
      %30 = sbr.rel (0) target = $region5
    $region4: #{_forward_device.1} parent=1 // pred_region
      %s32 = ssub.s32 16, 16
      %33 = vsyncadd [#allocation9], %s32
      %s35 = sshll.u32 %s0, 4
      %s36 = int_to_ptr.vmem [resolvable:$true] %s35
      %38 = dma.vmem_to_smem %s36, 16, [#allocation7], [#allocation9]
    $region5: #{_forward_device.1} parent=1 // pred_fallthru
      _
    // Predicated region
    $region6: #{_forward_device.1} parent=1 // pred_check
      _
    $region7: #{_forward_device.1} parent=1 // pred_check_branch
      %40 = sbr.rel (0) target = $region9
    $region8: #{_forward_device.1} parent=1 // pred_region
      _
    $region9: #{_forward_device.1} parent=1 // pred_fallthru
      _
    // Predicated region
    $region10: #{_forward_device.1} parent=1 // pred_check
      _
    $region11: #{_forward_device.1} parent=1 // pred_check_branch
      %42 = sbr.rel (0) target = $region13
    $region12: #{_forward_device.1} parent=1 // pred_region
      _
    $region13: #{_forward_device.1} parent=1 // pred_fallthru
      _
    // Predicated region
    $region14: #{_forward_device.1} parent=1 // pred_check
      _
    $region15: #{_forward_device.1} parent=1 // pred_check_branch
      %44 = sbr.rel (0) target = $region17
    $region16: #{_forward_device.1} parent=1 // pred_region
      _
    $region17: #{_forward_device.1} parent=1 // pred_fallthru
      _
    // Predicated region
    $region18: #{_forward_device.1} parent=1 // pred_check
      _
    $region19: #{_forward_device.1} parent=1 // pred_check_branch
      %46 = sbr.rel (0) target = $region21
    $region20: #{_forward_device.1} parent=1 // pred_region
      _
    $region21: #{_forward_device.1} parent=1 // pred_fallthru
      _
    // Predicated region
    $region22: #{_forward_device.1} parent=1 // pred_check
      _
    $region23: #{_forward_device.1} parent=1 // pred_check_branch
      %48 = sbr.rel (0) target = $region25
    $region24: #{_forward_device.1} parent=1 // pred_region
      _
    $region25: #{_forward_device.1} parent=1 // pred_fallthru
      _
    // Predicated region
    $region26: #{_forward_device.1} parent=1 // pred_check
      _
    $region27: #{_forward_device.1} parent=1 // pred_check_branch
      %50 = sbr.rel (0) target = $region29
    $region28: #{_forward_device.1} parent=1 // pred_region
      _
    $region29: #{_forward_device.1} parent=1 // pred_fallthru
      _
    // Predicated region
    $region30: #{_forward_device.1} parent=1 // pred_check
      _
    $region31: #{_forward_device.1} parent=1 // pred_check_branch
      %52 = sbr.rel (0) target = $region33
    $region32: #{_forward_device.1} parent=1 // pred_region
      _
    $region33: #{_forward_device.1} parent=1 // pred_fallthru
      _
    // Predicated region
    $region34: #{_forward_device.1} parent=1 // pred_check
      _
    $region35: #{_forward_device.1} parent=1 // pred_check_branch
      %54 = sbr.rel (0) target = $region37
    $region36: #{_forward_device.1} parent=1 // pred_region
      _
    $region37: #{_forward_device.1} parent=1 // pred_fallthru
      _
    // Predicated region
    $region38: #{_forward_device.1} parent=1 // pred_check
      _
    $region39: #{_forward_device.1} parent=1 // pred_check_branch
      %56 = sbr.rel (0) target = $region41
    $region40: #{_forward_device.1} parent=1 // pred_region
      _
    $region41: #{_forward_device.1} parent=1 // pred_fallthru
      _
    // Predicated region
    $region42: #{_forward_device.1} parent=1 // pred_check
      _
    $region43: #{_forward_device.1} parent=1 // pred_check_branch
      %58 = sbr.rel (0) target = $region45
    $region44: #{_forward_device.1} parent=1 // pred_region
      _
    $region45: #{_forward_device.1} parent=1 // pred_fallthru
      _
    // Predicated region
    $region46: #{_forward_device.1} parent=1 // pred_check
      _
    $region47: #{_forward_device.1} parent=1 // pred_check_branch
      %60 = sbr.rel (0) target = $region49
    $region48: #{_forward_device.1} parent=1 // pred_region
      _
    $region49: #{_forward_device.1} parent=1 // pred_fallthru
      _
    // Predicated region
    $region50: #{_forward_device.1} parent=1 // pred_check
      _
    $region51: #{_forward_device.1} parent=1 // pred_check_branch
      %62 = sbr.rel (0) target = $region53
    $region52: #{_forward_device.1} parent=1 // pred_region
      _
    $region53: #{_forward_device.1} parent=1 // pred_fallthru
      _
    // Predicated region
    $region54: #{_forward_device.1} parent=1 // pred_check
      _
    $region55: #{_forward_device.1} parent=1 // pred_check_branch
      %64 = sbr.rel (0) target = $region57
    $region56: #{_forward_device.1} parent=1 // pred_region
      _
    $region57: #{_forward_device.1} parent=1 // pred_fallthru
      _
    // Predicated region
    $region58: #{_forward_device.1} parent=1 // pred_check
      _
    $region59: #{_forward_device.1} parent=1 // pred_check_branch
      %66 = sbr.rel (0) target = $region61
    $region60: #{_forward_device.1} parent=1 // pred_region
      _
    $region61: #{_forward_device.1} parent=1 // pred_fallthru
      _
    // Predicated region
    $region62: #{_forward_device.1} parent=1 // pred_check
      _
    $region63: #{_forward_device.1} parent=1 // pred_check_branch
      %68 = sbr.rel (0) target = $region65
    $region64: #{_forward_device.1} parent=1 // pred_region
      _
    $region65: #{_forward_device.1} parent=1 // pred_fallthru
      _
    // Predicated region
    $region66: #{_forward_device.1} parent=1 // pred_check
      _
    $region67: #{_forward_device.1} parent=1 // pred_check_branch
      %70 = sbr.rel (0) target = $region69
    $region68: #{_forward_device.1} parent=1 // pred_region
      _
    $region69: #{_forward_device.1} parent=1 // pred_fallthru
      _
    // Predicated region
    $region70: #{_forward_device.1} parent=1 // pred_check
      _
    $region71: #{_forward_device.1} parent=1 // pred_check_branch
      %72 = sbr.rel (0) target = $region73
    $region72: #{_forward_device.1} parent=1 // pred_region
      _
    $region73: #{_forward_device.1} parent=1 // pred_fallthru
      _
    // Predicated region
    $region74: #{_forward_device.1} parent=1 // pred_check
      _
    $region75: #{_forward_device.1} parent=1 // pred_check_branch
      %74 = sbr.rel (0) target = $region77
    $region76: #{_forward_device.1} parent=1 // pred_region
      _
    $region77: #{_forward_device.1} parent=1 // pred_fallthru
      _
    // Predicated region
    $region78: #{_forward_device.1} parent=1 // pred_check
      _
    $region79: #{_forward_device.1} parent=1 // pred_check_branch
      %76 = sbr.rel (0) target = $region81
    $region80: #{_forward_device.1} parent=1 // pred_region
      _
    $region81: #{_forward_device.1} parent=1 // pred_fallthru
      _
    // Predicated region
    $region82: #{_forward_device.1} parent=1 // pred_check
      _
    $region83: #{_forward_device.1} parent=1 // pred_check_branch
      %78 = sbr.rel (0) target = $region85
    $region84: #{_forward_device.1} parent=1 // pred_region
      %79 = dma.done [#allocation9], 16
    $region85: #{_forward_device.1} parent=1 // pred_fallthru
      _
    %80 = sfence
    %v81 = vld [vmem:[%s1] sm:$0xff]
    %v82 = vld [vmem:[%s1 + $0x8] sm:$0xff]
    %v83 = vld [vmem:[%s1 + $0x10] sm:$0xff]
    %v84 = vld [vmem:[%s1 + $0x18] sm:$0xff]
    %v85 = vld [vmem:[%s1 + $0x20] sm:$0xff]
    %v86 = vld [vmem:[%s1 + $0x28] sm:$0xff]
    %v87 = vld [vmem:[%s1 + $0x30] sm:$0xff]
    %v88 = vld [vmem:[%s1 + $0x38] sm:$0xff]
    %v89 = vld [vmem:[%s3] sm:$0xff]
    %v90 = vld [vmem:[%s3 + $0x8] sm:$0xff]
    %v91 = vld [vmem:[%s3 + $0x10] sm:$0xff]
    %v92 = vld [vmem:[%s3 + $0x18] sm:$0xff]
    %vm93 = vcmask 130048
    %v95 = vsel %vm93, %v81, 0
    %v98 = vsel %vm93, %v82, 0
    %v101 = vsel %vm93, %v83, 0
    %v104 = vsel %vm93, %v84, 0
    %v107 = vsel %vm93, %v85, 0
    %v110 = vsel %vm93, %v86, 0
    %v113 = vsel %vm93, %v87, 0
    %v116 = vsel %vm93, %v88, 0
    %118 = vmatprep.subr.mxu0 0.0
    %119 = vmatpush1.msra.mxu0 0.0
    %120 = vmatprep.subr.mxu0 0.0
    %121 = vmatpush1.msra.mxu0 0.0
    %122 = vmatprep.subr.mxu0 0.0
    %123 = vmatpush1.msra.mxu0 0.0
    %124 = vmatprep.subr.mxu0 0.0
    %125 = vmatpush1.msra.mxu0 0.0
    %126 = vmatprep.subr.mxu0 0.0
    %127 = vmatpush1.msra.mxu0 0.0
    %128 = vmatprep.subr.mxu0 0.0
    %129 = vmatpush1.msra.mxu0 0.0
    %130 = vmatprep.subr.mxu0 0.0
    %131 = vmatpush1.msra.mxu0 0.0
    %132 = vmatprep.subr.mxu0 0.0
    %133 = vmatpush1.msra.mxu0 0.0
    %134 = vmatprep.subr.mxu0 0.0
    %135 = vmatpush1.msra.mxu0 0.0
    %136 = vmatprep.subr.mxu0 0.0
    %137 = vmatpush1.msra.mxu0 0.0
    %138 = vmatprep.subr.mxu0 0.0
    %139 = vmatpush1.msra.mxu0 0.0
    %140 = vmatprep.subr.mxu0 0.0
    %141 = vmatpush1.msra.mxu0 0.0
    %142 = vmatprep.subr.mxu0 0.0
    %143 = vmatpush1.msra.mxu0 0.0
    %144 = vmatprep.subr.mxu0 0.0
    %145 = vmatpush1.msra.mxu0 0.0
    %146 = vmatprep.subr.mxu0 %v92
    %147 = vmatpush1.msra.mxu0 %v91
    %148 = vmatprep.subr.mxu0 %v90
    %149 = vmatpush1.msra.mxu0 %v89
    %150 = vmatprep.subr.mxu0 0.0
    %151 = vmatpush2.msra.mxu0 0.0
    %152 = vmatprep.subr.mxu0 0.0
    %153 = vmatpush2.msra.mxu0 0.0
    %154 = vmatprep.subr.mxu0 0.0
    %155 = vmatpush2.msra.mxu0 0.0
    %156 = vmatprep.subr.mxu0 0.0
    %157 = vmatpush2.msra.mxu0 0.0
    %158 = vmatprep.subr.mxu0 0.0
    %159 = vmatpush2.msra.mxu0 0.0
    %160 = vmatprep.subr.mxu0 0.0
    %161 = vmatpush2.msra.mxu0 0.0
    %162 = vmatprep.subr.mxu0 0.0
    %163 = vmatpush2.msra.mxu0 0.0
    %164 = vmatprep.subr.mxu0 0.0
    %165 = vmatpush2.msra.mxu0 0.0
    %166 = vmatprep.subr.mxu0 0.0
    %167 = vmatpush2.msra.mxu0 0.0
    %168 = vmatprep.subr.mxu0 0.0
    %169 = vmatpush2.msra.mxu0 0.0
    %170 = vmatprep.subr.mxu0 0.0
    %171 = vmatpush2.msra.mxu0 0.0
    %172 = vmatprep.subr.mxu0 0.0
    %173 = vmatpush2.msra.mxu0 0.0
    %174 = vmatprep.subr.mxu0 0.0
    %175 = vmatpush2.msra.mxu0 0.0
    %176 = vmatprep.subr.mxu0 0.0
    %177 = vmatpush2.msra.mxu0 0.0
    %178 = vmatprep.subr.mxu0 0.0
    %179 = vmatpush2.msra.mxu0 0.0
    %180 = vmatprep.subr.mxu0 0.0
    %181 = vmatpush2.msra.mxu0 0.0
    %182 = vmatprep.mubr.f32.mxu0 0.0
    %183 = vmatmul.mubr.f32.gmra.mxu0 %v95
    %v184 = vpop.f32.mrf.mxu0
    %v185 = vadd.f32 0.0, %v184
    %v186 = vpop.f32.mrf.mxu0
    %v187 = vadd.f32 0.0, %v186
    %188 = vmatprep.mubr.f32.mxu0 0.0
    %189 = vmatmul.mubr.f32.gmra.mxu0 %v98
    %v190 = vpop.f32.mrf.mxu0
    %v191 = vadd.f32 0.0, %v190
    %v192 = vpop.f32.mrf.mxu0
    %v193 = vadd.f32 0.0, %v192
    %194 = vmatprep.mubr.f32.mxu0 0.0
    %195 = vmatmul.mubr.f32.gmra.mxu0 %v101
    %v196 = vpop.f32.mrf.mxu0
    %v197 = vadd.f32 0.0, %v196
    %v198 = vpop.f32.mrf.mxu0
    %v199 = vadd.f32 0.0, %v198
    %200 = vmatprep.mubr.f32.mxu0 0.0
    %201 = vmatmul.mubr.f32.gmra.mxu0 %v104
    %v202 = vpop.f32.mrf.mxu0
    %v203 = vadd.f32 0.0, %v202
    %v204 = vpop.f32.mrf.mxu0
    %v205 = vadd.f32 0.0, %v204
    %206 = vmatprep.mubr.f32.mxu0 0.0
    %207 = vmatmul.mubr.f32.gmra.mxu0 %v107
    %v208 = vpop.f32.mrf.mxu0
    %v209 = vadd.f32 0.0, %v208
    %v210 = vpop.f32.mrf.mxu0
    %v211 = vadd.f32 0.0, %v210
    %212 = vmatprep.mubr.f32.mxu0 0.0
    %213 = vmatmul.mubr.f32.gmra.mxu0 %v110
    %v214 = vpop.f32.mrf.mxu0
    %v215 = vadd.f32 0.0, %v214
    %v216 = vpop.f32.mrf.mxu0
    %v217 = vadd.f32 0.0, %v216
    %218 = vmatprep.mubr.f32.mxu0 0.0
    %219 = vmatmul.mubr.f32.gmra.mxu0 %v113
    %v220 = vpop.f32.mrf.mxu0
    %v221 = vadd.f32 0.0, %v220
    %v222 = vpop.f32.mrf.mxu0
    %v223 = vadd.f32 0.0, %v222
    %224 = vmatprep.mubr.f32.mxu0 0.0
    %225 = vmatmul.mubr.f32.gmra.mxu0 %v116
    %v226 = vpop.f32.mrf.mxu0
    %v227 = vadd.f32 0.0, %v226
    %v228 = vpop.f32.mrf.mxu0
    %v229 = vadd.f32 0.0, %v228
    %230 = vdwg.mxu0
    %231 = vst [vmem:[#allocation2] sm:$0xff] %v185
    %232 = vst [vmem:[#allocation2 + $0x8] sm:$0xff] %v187
    %233 = vst [vmem:[#allocation2 + $0x10] sm:$0xff] %v191
    %234 = vst [vmem:[#allocation2 + $0x18] sm:$0xff] %v193
    %235 = vst [vmem:[#allocation2 + $0x20] sm:$0xff] %v197
    %236 = vst [vmem:[#allocation2 + $0x28] sm:$0xff] %v199
    %237 = vst [vmem:[#allocation2 + $0x30] sm:$0xff] %v203
    %238 = vst [vmem:[#allocation2 + $0x38] sm:$0xff] %v205
    %239 = vst [vmem:[#allocation2 + $0x40] sm:$0xff] %v209
    %240 = vst [vmem:[#allocation2 + $0x48] sm:$0xff] %v211
    %241 = vst [vmem:[#allocation2 + $0x50] sm:$0xff] %v215
    %242 = vst [vmem:[#allocation2 + $0x58] sm:$0xff] %v217
    %243 = vst [vmem:[#allocation2 + $0x60] sm:$0xff] %v221
    %244 = vst [vmem:[#allocation2 + $0x68] sm:$0xff] %v223
    %245 = vst [vmem:[#allocation2 + $0x70] sm:$0xff] %v227
    %246 = vst [vmem:[#allocation2 + $0x78] sm:$0xff] %v229
    %v247 = vld [vmem:[%s5] sm:$0x1]
    %v248 = vld [vmem:[%s5 + $0x1] sm:$0x1]
    %s249 = smul.u32 0, 2
    %s250 = smul.addr %s249, 8
    %s251 = scalar_lea.vmem [#allocation2], %s250
    %v252 = vld [vmem:[%s251] sm:$0xff]
    %s253 = smul.u32 7, 2
    %s254 = smul.addr %s253, 8
    %s255 = scalar_lea.vmem [#allocation2], %s254
    %v256 = vld [vmem:[%s255 + $0x8] sm:$0xff]
    %v257 = vld [vmem:[%s4] sm:$0xff]
    %v258 = vld [vmem:[%s4 + $0x8] sm:$0xff]
    %v259 = vld [vmem:[%s4 + $0x10] sm:$0xff]
    %v260 = vld [vmem:[%s4 + $0x18] sm:$0xff]
    %v261 = vld [vmem:[%s4 + $0x20] sm:$0xff]
    %v262 = vld [vmem:[%s4 + $0x28] sm:$0xff]
    %v263 = vld [vmem:[%s4 + $0x30] sm:$0xff]
    %v264 = vld [vmem:[%s4 + $0x38] sm:$0xff]
    %vm265 = vcmask 261120
    %v267 = vsel %vm265, 0.0, 0
    %269 = vmatprep.subr.mxu0 0.0
    %270 = vmatpush1.msra.mxu0 0.0
    %271 = vmatprep.subr.mxu0 0.0
    %272 = vmatpush1.msra.mxu0 0.0
    %273 = vmatprep.subr.mxu0 0.0
    %274 = vmatpush1.msra.mxu0 0.0
    %275 = vmatprep.subr.mxu0 0.0
    %276 = vmatpush1.msra.mxu0 0.0
    %277 = vmatprep.subr.mxu0 0.0
    %278 = vmatpush1.msra.mxu0 0.0
    %279 = vmatprep.subr.mxu0 0.0
    %280 = vmatpush1.msra.mxu0 0.0
    %281 = vmatprep.subr.mxu0 0.0
    %282 = vmatpush1.msra.mxu0 0.0
    %283 = vmatprep.subr.mxu0 0.0
    %284 = vmatpush1.msra.mxu0 0.0
    %285 = vmatprep.subr.mxu0 0.0
    %286 = vmatpush1.msra.mxu0 0.0
    %287 = vmatprep.subr.mxu0 0.0
    %288 = vmatpush1.msra.mxu0 0.0
    %289 = vmatprep.subr.mxu0 0.0
    %290 = vmatpush1.msra.mxu0 0.0
    %291 = vmatprep.subr.mxu0 0.0
    %292 = vmatpush1.msra.mxu0 0.0
    %293 = vmatprep.subr.mxu0 %v264
    %294 = vmatpush1.msra.mxu0 %v263
    %295 = vmatprep.subr.mxu0 %v262
    %296 = vmatpush1.msra.mxu0 %v261
    %297 = vmatprep.subr.mxu0 %v260
    %298 = vmatpush1.msra.mxu0 %v259
    %299 = vmatprep.subr.mxu0 %v258
    %300 = vmatpush1.msra.mxu0 %v257
    %301 = vmatprep.subr.mxu0 0.0
    %302 = vmatpush2.msra.mxu0 0.0
    %303 = vmatprep.subr.mxu0 0.0
    %304 = vmatpush2.msra.mxu0 0.0
    %305 = vmatprep.subr.mxu0 0.0
    %306 = vmatpush2.msra.mxu0 0.0
    %307 = vmatprep.subr.mxu0 0.0
    %308 = vmatpush2.msra.mxu0 0.0
    %309 = vmatprep.subr.mxu0 0.0
    %310 = vmatpush2.msra.mxu0 0.0
    %311 = vmatprep.subr.mxu0 0.0
    %312 = vmatpush2.msra.mxu0 0.0
    %313 = vmatprep.subr.mxu0 0.0
    %314 = vmatpush2.msra.mxu0 0.0
    %315 = vmatprep.subr.mxu0 0.0
    %316 = vmatpush2.msra.mxu0 0.0
    %317 = vmatprep.subr.mxu0 0.0
    %318 = vmatpush2.msra.mxu0 0.0
    %319 = vmatprep.subr.mxu0 0.0
    %320 = vmatpush2.msra.mxu0 0.0
    %321 = vmatprep.subr.mxu0 0.0
    %322 = vmatpush2.msra.mxu0 0.0
    %323 = vmatprep.subr.mxu0 0.0
    %324 = vmatpush2.msra.mxu0 0.0
    %325 = vmatprep.subr.mxu0 0.0
    %326 = vmatpush2.msra.mxu0 0.0
    %327 = vmatprep.subr.mxu0 0.0
    %328 = vmatpush2.msra.mxu0 0.0
    %329 = vmatprep.subr.mxu0 0.0
    %330 = vmatpush2.msra.mxu0 0.0
    %331 = vmatprep.subr.mxu0 0.0
    %332 = vmatpush2.msra.mxu0 0.0
    %333 = vmatprep.mubr.f32.mxu0 0.0
    %334 = vmatmul.mubr.f32.gmra.mxu0 %v267
    %v335 = vpop.f32.mrf.mxu0
    %v336 = vadd.f32 0.0, %v335
    %v337 = vpop.f32.mrf.mxu0
    %338 = vmatprep.mubr.f32.mxu0 0.0
    %339 = vmatmul.mubr.f32.gmra.mxu0 %v267
    %v340 = vpop.f32.mrf.mxu0
    %v341 = vpop.f32.mrf.mxu0
    %v342 = vadd.f32 0.0, %v341
    %343 = vdwg.mxu0
    %v344 = vadd.f32 %v252, %v336
    %v346 = vlaneseq
    %v347 = vshrl.u32 %v346, 7
    %v348 = vsub.s32 0, %v347
    %v349 = vrot.slane %v247, %v348
    %v351 = vadd.f32 %v344, %v349
    %v352 = vxor.u32 %v351, 2147483648
    %v353 = vmul.f32 %v352, 1.442695
    %v354 = vpow.pop %v353
    %v355 = vadd.f32 %v354, 1.0
    %v356 = vrcp.pop %v355
    %v357 = vmul.f32 1.0, %v356
    %v358 = vtanh.pop %v351
    %v359 = vmul.f32 %v357, 0.0
    %361 = vrot.lane.b32.xlu0 %v358, 64
    %v362 = vpop.permute.xlu0 %361
    %v364 = vmul.f32 %v357, %v362
    %366 = vrot.lane.b32.xlu0 %v364, 32
    %v367 = vpop.permute.xlu0 %366
    %v369 = vadd.f32 %v359, %v367
    %v370 = vtanh.pop %v369
    %372 = vrot.lane.b32.xlu0 %v370, 64
    %v373 = vpop.permute.xlu0 %372
    %v375 = vmul.f32 %v357, %v373
    %v376 = vadd.f32 %v256, %v342
    %v378 = vlaneseq
    %v379 = vshrl.u32 %v378, 7
    %v380 = vsub.s32 0, %v379
    %v381 = vrot.slane %v248, %v380
    %v383 = vadd.f32 %v376, %v381
    %v384 = vxor.u32 %v383, 2147483648
    %v385 = vmul.f32 %v384, 1.442695
    %v386 = vpow.pop %v385
    %v387 = vadd.f32 %v386, 1.0
    %v388 = vrcp.pop %v387
    %v389 = vmul.f32 1.0, %v388
    %v390 = vtanh.pop %v383
    %v391 = vmul.f32 %v389, 0.0
    %393 = vrot.lane.b32.xlu0 %v390, 64
    %v394 = vpop.permute.xlu0 %393
    %v396 = vmul.f32 %v389, %v394
    %398 = vrot.lane.b32.xlu0 %v396, 32
    %v399 = vpop.permute.xlu0 %398
    %v401 = vadd.f32 %v391, %v399
    %v402 = vtanh.pop %v401
    %404 = vrot.lane.b32.xlu0 %v402, 64
    %v405 = vpop.permute.xlu0 %404
    %v407 = vmul.f32 %v389, %v405
    %409 = vrot.lane.b32.xlu0 %v375, 32
    %v410 = vpop.permute.xlu0 %409
    %412 = vst.msk [vmem:[#allocation3] sm:$0xff] %vm265, %v410
    %414 = vrot.lane.b32.xlu0 %v407, 64
    %v415 = vpop.permute.xlu0 %414
    %s417 = scalar_lea.vmem [#allocation3], 56
    %vm418 = vcmask 523520
    %419 = vst.msk [vmem:[%s417] sm:$0xff] %vm418, %v415
    %s420 = smul.u32 1, 2
    %s421 = smul.addr %s420, 8
    %s422 = scalar_lea.vmem [#allocation2], %s421
    %v423 = vld [vmem:[%s422] sm:$0xff]
    %s424 = smul.u32 6, 2
    %s425 = smul.addr %s424, 8
    %s426 = scalar_lea.vmem [#allocation2], %s425
    %v427 = vld [vmem:[%s426 + $0x8] sm:$0xff]
    %v428 = vld [vmem:[%s4] sm:$0xff]
    %v429 = vld [vmem:[%s4 + $0x8] sm:$0xff]
    %v430 = vld [vmem:[%s4 + $0x10] sm:$0xff]
    %v431 = vld [vmem:[%s4 + $0x18] sm:$0xff]
    %v432 = vld [vmem:[%s4 + $0x20] sm:$0xff]
    %v433 = vld [vmem:[%s4 + $0x28] sm:$0xff]
    %v434 = vld [vmem:[%s4 + $0x30] sm:$0xff]
    %v435 = vld [vmem:[%s4 + $0x38] sm:$0xff]
    %436 = vrot.lane.b32.xlu0 %v407, 32
    %v437 = vpop.permute.xlu0 %436
    %v438 = vsel %vm265, %v410, 0
    %v440 = vsel %vm265, %v437, 0
    %442 = vmatprep.subr.mxu0 0.0
    %443 = vmatpush1.msra.mxu0 0.0
    %444 = vmatprep.subr.mxu0 0.0
    %445 = vmatpush1.msra.mxu0 0.0
    %446 = vmatprep.subr.mxu0 0.0
    %447 = vmatpush1.msra.mxu0 0.0
    %448 = vmatprep.subr.mxu0 0.0
    %449 = vmatpush1.msra.mxu0 0.0
    %450 = vmatprep.subr.mxu0 0.0
    %451 = vmatpush1.msra.mxu0 0.0
    %452 = vmatprep.subr.mxu0 0.0
    %453 = vmatpush1.msra.mxu0 0.0
    %454 = vmatprep.subr.mxu0 0.0
    %455 = vmatpush1.msra.mxu0 0.0
    %456 = vmatprep.subr.mxu0 0.0
    %457 = vmatpush1.msra.mxu0 0.0
    %458 = vmatprep.subr.mxu0 0.0
    %459 = vmatpush1.msra.mxu0 0.0
    %460 = vmatprep.subr.mxu0 0.0
    %461 = vmatpush1.msra.mxu0 0.0
    %462 = vmatprep.subr.mxu0 0.0
    %463 = vmatpush1.msra.mxu0 0.0
    %464 = vmatprep.subr.mxu0 0.0
    %465 = vmatpush1.msra.mxu0 0.0
    %466 = vmatprep.subr.mxu0 %v435
    %467 = vmatpush1.msra.mxu0 %v434
    %468 = vmatprep.subr.mxu0 %v433
    %469 = vmatpush1.msra.mxu0 %v432
    %470 = vmatprep.subr.mxu0 %v431
    %471 = vmatpush1.msra.mxu0 %v430
    %472 = vmatprep.subr.mxu0 %v429
    %473 = vmatpush1.msra.mxu0 %v428
    %474 = vmatprep.subr.mxu0 0.0
    %475 = vmatpush2.msra.mxu0 0.0
    %476 = vmatprep.subr.mxu0 0.0
    %477 = vmatpush2.msra.mxu0 0.0
    %478 = vmatprep.subr.mxu0 0.0
    %479 = vmatpush2.msra.mxu0 0.0
    %480 = vmatprep.subr.mxu0 0.0
    %481 = vmatpush2.msra.mxu0 0.0
    %482 = vmatprep.subr.mxu0 0.0
    %483 = vmatpush2.msra.mxu0 0.0
    %484 = vmatprep.subr.mxu0 0.0
    %485 = vmatpush2.msra.mxu0 0.0
    %486 = vmatprep.subr.mxu0 0.0
    %487 = vmatpush2.msra.mxu0 0.0
    %488 = vmatprep.subr.mxu0 0.0
    %489 = vmatpush2.msra.mxu0 0.0
    %490 = vmatprep.subr.mxu0 0.0
    %491 = vmatpush2.msra.mxu0 0.0
    %492 = vmatprep.subr.mxu0 0.0
    %493 = vmatpush2.msra.mxu0 0.0
    %494 = vmatprep.subr.mxu0 0.0
    %495 = vmatpush2.msra.mxu0 0.0
    %496 = vmatprep.subr.mxu0 0.0
    %497 = vmatpush2.msra.mxu0 0.0
    %498 = vmatprep.subr.mxu0 0.0
    %499 = vmatpush2.msra.mxu0 0.0
    %500 = vmatprep.subr.mxu0 0.0
    %501 = vmatpush2.msra.mxu0 0.0
    %502 = vmatprep.subr.mxu0 0.0
    %503 = vmatpush2.msra.mxu0 0.0
    %504 = vmatprep.subr.mxu0 0.0
    %505 = vmatpush2.msra.mxu0 0.0
    %506 = vmatprep.mubr.f32.mxu0 0.0
    %507 = vmatmul.mubr.f32.gmra.mxu0 %v438
    %v508 = vpop.f32.mrf.mxu0
    %v509 = vadd.f32 0.0, %v508
    %v510 = vpop.f32.mrf.mxu0
    %511 = vmatprep.mubr.f32.mxu0 0.0
    %512 = vmatmul.mubr.f32.gmra.mxu0 %v440
    %v513 = vpop.f32.mrf.mxu0
    %v514 = vpop.f32.mrf.mxu0
    %v515 = vadd.f32 0.0, %v514
    %516 = vdwg.mxu0
    %v517 = vadd.f32 %v423, %v509
    %v518 = vadd.f32 %v517, %v349
    %v519 = vxor.u32 %v518, 2147483648
    %v520 = vmul.f32 %v519, 1.442695
    %v521 = vpow.pop %v520
    %v522 = vadd.f32 %v521, 1.0
    %v523 = vrcp.pop %v522
    %v524 = vmul.f32 1.0, %v523
    %v525 = vtanh.pop %v518
    %v526 = vmul.f32 %v524, %v369
    %528 = vrot.lane.b32.xlu0 %v525, 64
    %v529 = vpop.permute.xlu0 %528
    %v531 = vmul.f32 %v524, %v529
    %533 = vrot.lane.b32.xlu0 %v531, 32
    %v534 = vpop.permute.xlu0 %533
    %v536 = vadd.f32 %v526, %v534
    %v537 = vtanh.pop %v536
    %539 = vrot.lane.b32.xlu0 %v537, 64
    %v540 = vpop.permute.xlu0 %539
    %v542 = vmul.f32 %v524, %v540
    %v543 = vadd.f32 %v427, %v515
    %v544 = vadd.f32 %v543, %v381
    %v545 = vxor.u32 %v544, 2147483648
    %v546 = vmul.f32 %v545, 1.442695
    %v547 = vpow.pop %v546
    %v548 = vadd.f32 %v547, 1.0
    %v549 = vrcp.pop %v548
    %v550 = vmul.f32 1.0, %v549
    %v551 = vtanh.pop %v544
    %v552 = vmul.f32 %v550, %v401
    %554 = vrot.lane.b32.xlu0 %v551, 64
    %v555 = vpop.permute.xlu0 %554
    %v557 = vmul.f32 %v550, %v555
    %559 = vrot.lane.b32.xlu0 %v557, 32
    %v560 = vpop.permute.xlu0 %559
    %v562 = vadd.f32 %v552, %v560
    %v563 = vtanh.pop %v562
    %565 = vrot.lane.b32.xlu0 %v563, 64
    %v566 = vpop.permute.xlu0 %565
    %v568 = vmul.f32 %v550, %v566
    %570 = vrot.lane.b32.xlu0 %v542, 32
    %v571 = vpop.permute.xlu0 %570
    %s573 = scalar_lea.vmem [#allocation3], 8
    %574 = vst.msk [vmem:[%s573] sm:$0xff] %vm265, %v571
    %576 = vrot.lane.b32.xlu0 %v568, 64
    %v577 = vpop.permute.xlu0 %576
    %s579 = scalar_lea.vmem [#allocation3], 48
    %580 = vst.msk [vmem:[%s579] sm:$0xff] %vm418, %v577
    %s581 = smul.u32 2, 2
    %s582 = smul.addr %s581, 8
    %s583 = scalar_lea.vmem [#allocation2], %s582
    %v584 = vld [vmem:[%s583] sm:$0xff]
    %s585 = smul.u32 5, 2
    %s586 = smul.addr %s585, 8
    %s587 = scalar_lea.vmem [#allocation2], %s586
    %v588 = vld [vmem:[%s587 + $0x8] sm:$0xff]
    %v589 = vld [vmem:[%s4] sm:$0xff]
    %v590 = vld [vmem:[%s4 + $0x8] sm:$0xff]
    %v591 = vld [vmem:[%s4 + $0x10] sm:$0xff]
    %v592 = vld [vmem:[%s4 + $0x18] sm:$0xff]
    %v593 = vld [vmem:[%s4 + $0x20] sm:$0xff]
    %v594 = vld [vmem:[%s4 + $0x28] sm:$0xff]
    %v595 = vld [vmem:[%s4 + $0x30] sm:$0xff]
    %v596 = vld [vmem:[%s4 + $0x38] sm:$0xff]
    %597 = vrot.lane.b32.xlu0 %v568, 32
    %v598 = vpop.permute.xlu0 %597
    %v599 = vsel %vm265, %v571, 0
    %v601 = vsel %vm265, %v598, 0
    %603 = vmatprep.subr.mxu0 0.0
    %604 = vmatpush1.msra.mxu0 0.0
    %605 = vmatprep.subr.mxu0 0.0
    %606 = vmatpush1.msra.mxu0 0.0
    %607 = vmatprep.subr.mxu0 0.0
    %608 = vmatpush1.msra.mxu0 0.0
    %609 = vmatprep.subr.mxu0 0.0
    %610 = vmatpush1.msra.mxu0 0.0
    %611 = vmatprep.subr.mxu0 0.0
    %612 = vmatpush1.msra.mxu0 0.0
    %613 = vmatprep.subr.mxu0 0.0
    %614 = vmatpush1.msra.mxu0 0.0
    %615 = vmatprep.subr.mxu0 0.0
    %616 = vmatpush1.msra.mxu0 0.0
    %617 = vmatprep.subr.mxu0 0.0
    %618 = vmatpush1.msra.mxu0 0.0
    %619 = vmatprep.subr.mxu0 0.0
    %620 = vmatpush1.msra.mxu0 0.0
    %621 = vmatprep.subr.mxu0 0.0
    %622 = vmatpush1.msra.mxu0 0.0
    %623 = vmatprep.subr.mxu0 0.0
    %624 = vmatpush1.msra.mxu0 0.0
    %625 = vmatprep.subr.mxu0 0.0
    %626 = vmatpush1.msra.mxu0 0.0
    %627 = vmatprep.subr.mxu0 %v596
    %628 = vmatpush1.msra.mxu0 %v595
    %629 = vmatprep.subr.mxu0 %v594
    %630 = vmatpush1.msra.mxu0 %v593
    %631 = vmatprep.subr.mxu0 %v592
    %632 = vmatpush1.msra.mxu0 %v591
    %633 = vmatprep.subr.mxu0 %v590
    %634 = vmatpush1.msra.mxu0 %v589
    %635 = vmatprep.subr.mxu0 0.0
    %636 = vmatpush2.msra.mxu0 0.0
    %637 = vmatprep.subr.mxu0 0.0
    %638 = vmatpush2.msra.mxu0 0.0
    %639 = vmatprep.subr.mxu0 0.0
    %640 = vmatpush2.msra.mxu0 0.0
    %641 = vmatprep.subr.mxu0 0.0
    %642 = vmatpush2.msra.mxu0 0.0
    %643 = vmatprep.subr.mxu0 0.0
    %644 = vmatpush2.msra.mxu0 0.0
    %645 = vmatprep.subr.mxu0 0.0
    %646 = vmatpush2.msra.mxu0 0.0
    %647 = vmatprep.subr.mxu0 0.0
    %648 = vmatpush2.msra.mxu0 0.0
    %649 = vmatprep.subr.mxu0 0.0
    %650 = vmatpush2.msra.mxu0 0.0
    %651 = vmatprep.subr.mxu0 0.0
    %652 = vmatpush2.msra.mxu0 0.0
    %653 = vmatprep.subr.mxu0 0.0
    %654 = vmatpush2.msra.mxu0 0.0
    %655 = vmatprep.subr.mxu0 0.0
    %656 = vmatpush2.msra.mxu0 0.0
    %657 = vmatprep.subr.mxu0 0.0
    %658 = vmatpush2.msra.mxu0 0.0
    %659 = vmatprep.subr.mxu0 0.0
    %660 = vmatpush2.msra.mxu0 0.0
    %661 = vmatprep.subr.mxu0 0.0
    %662 = vmatpush2.msra.mxu0 0.0
    %663 = vmatprep.subr.mxu0 0.0
    %664 = vmatpush2.msra.mxu0 0.0
    %665 = vmatprep.subr.mxu0 0.0
    %666 = vmatpush2.msra.mxu0 0.0
    %667 = vmatprep.mubr.f32.mxu0 0.0
    %668 = vmatmul.mubr.f32.gmra.mxu0 %v599
    %v669 = vpop.f32.mrf.mxu0
    %v670 = vadd.f32 0.0, %v669
    %v671 = vpop.f32.mrf.mxu0
    %672 = vmatprep.mubr.f32.mxu0 0.0
    %673 = vmatmul.mubr.f32.gmra.mxu0 %v601
    %v674 = vpop.f32.mrf.mxu0
    %v675 = vpop.f32.mrf.mxu0
    %v676 = vadd.f32 0.0, %v675
    %677 = vdwg.mxu0
    %v678 = vadd.f32 %v584, %v670
    %v679 = vadd.f32 %v678, %v349
    %v680 = vxor.u32 %v679, 2147483648
    %v681 = vmul.f32 %v680, 1.442695
    %v682 = vpow.pop %v681
    %v683 = vadd.f32 %v682, 1.0
    %v684 = vrcp.pop %v683
    %v685 = vmul.f32 1.0, %v684
    %v686 = vtanh.pop %v679
    %v687 = vmul.f32 %v685, %v536
    %689 = vrot.lane.b32.xlu0 %v686, 64
    %v690 = vpop.permute.xlu0 %689
    %v692 = vmul.f32 %v685, %v690
    %694 = vrot.lane.b32.xlu0 %v692, 32
    %v695 = vpop.permute.xlu0 %694
    %v697 = vadd.f32 %v687, %v695
    %v698 = vtanh.pop %v697
    %700 = vrot.lane.b32.xlu0 %v698, 64
    %v701 = vpop.permute.xlu0 %700
    %v703 = vmul.f32 %v685, %v701
    %v704 = vadd.f32 %v588, %v676
    %v705 = vadd.f32 %v704, %v381
    %v706 = vxor.u32 %v705, 2147483648
    %v707 = vmul.f32 %v706, 1.442695
    %v708 = vpow.pop %v707
    %v709 = vadd.f32 %v708, 1.0
    %v710 = vrcp.pop %v709
    %v711 = vmul.f32 1.0, %v710
    %v712 = vtanh.pop %v705
    %v713 = vmul.f32 %v711, %v562
    %715 = vrot.lane.b32.xlu0 %v712, 64
    %v716 = vpop.permute.xlu0 %715
    %v718 = vmul.f32 %v711, %v716
    %720 = vrot.lane.b32.xlu0 %v718, 32
    %v721 = vpop.permute.xlu0 %720
    %v723 = vadd.f32 %v713, %v721
    %v724 = vtanh.pop %v723
    %726 = vrot.lane.b32.xlu0 %v724, 64
    %v727 = vpop.permute.xlu0 %726
    %v729 = vmul.f32 %v711, %v727
    %731 = vrot.lane.b32.xlu0 %v703, 32
    %v732 = vpop.permute.xlu0 %731
    %s734 = scalar_lea.vmem [#allocation3], 16
    %735 = vst.msk [vmem:[%s734] sm:$0xff] %vm265, %v732
    %737 = vrot.lane.b32.xlu0 %v729, 64
    %v738 = vpop.permute.xlu0 %737
    %s740 = scalar_lea.vmem [#allocation3], 40
    %741 = vst.msk [vmem:[%s740] sm:$0xff] %vm418, %v738
    %s742 = smul.u32 3, 2
    %s743 = smul.addr %s742, 8
    %s744 = scalar_lea.vmem [#allocation2], %s743
    %v745 = vld [vmem:[%s744] sm:$0xff]
    %s746 = smul.u32 4, 2
    %s747 = smul.addr %s746, 8
    %s748 = scalar_lea.vmem [#allocation2], %s747
    %v749 = vld [vmem:[%s748 + $0x8] sm:$0xff]
    %v750 = vld [vmem:[%s4] sm:$0xff]
    %v751 = vld [vmem:[%s4 + $0x8] sm:$0xff]
    %v752 = vld [vmem:[%s4 + $0x10] sm:$0xff]
    %v753 = vld [vmem:[%s4 + $0x18] sm:$0xff]
    %v754 = vld [vmem:[%s4 + $0x20] sm:$0xff]
    %v755 = vld [vmem:[%s4 + $0x28] sm:$0xff]
    %v756 = vld [vmem:[%s4 + $0x30] sm:$0xff]
    %v757 = vld [vmem:[%s4 + $0x38] sm:$0xff]
    %758 = vrot.lane.b32.xlu0 %v729, 32
    %v759 = vpop.permute.xlu0 %758
    %v760 = vsel %vm265, %v732, 0
    %v762 = vsel %vm265, %v759, 0
    %764 = vmatprep.subr.mxu0 0.0
    %765 = vmatpush1.msra.mxu0 0.0
    %766 = vmatprep.subr.mxu0 0.0
    %767 = vmatpush1.msra.mxu0 0.0
    %768 = vmatprep.subr.mxu0 0.0
    %769 = vmatpush1.msra.mxu0 0.0
    %770 = vmatprep.subr.mxu0 0.0
    %771 = vmatpush1.msra.mxu0 0.0
    %772 = vmatprep.subr.mxu0 0.0
    %773 = vmatpush1.msra.mxu0 0.0
    %774 = vmatprep.subr.mxu0 0.0
    %775 = vmatpush1.msra.mxu0 0.0
    %776 = vmatprep.subr.mxu0 0.0
    %777 = vmatpush1.msra.mxu0 0.0
    %778 = vmatprep.subr.mxu0 0.0
    %779 = vmatpush1.msra.mxu0 0.0
    %780 = vmatprep.subr.mxu0 0.0
    %781 = vmatpush1.msra.mxu0 0.0
    %782 = vmatprep.subr.mxu0 0.0
    %783 = vmatpush1.msra.mxu0 0.0
    %784 = vmatprep.subr.mxu0 0.0
    %785 = vmatpush1.msra.mxu0 0.0
    %786 = vmatprep.subr.mxu0 0.0
    %787 = vmatpush1.msra.mxu0 0.0
    %788 = vmatprep.subr.mxu0 %v757
    %789 = vmatpush1.msra.mxu0 %v756
    %790 = vmatprep.subr.mxu0 %v755
    %791 = vmatpush1.msra.mxu0 %v754
    %792 = vmatprep.subr.mxu0 %v753
    %793 = vmatpush1.msra.mxu0 %v752
    %794 = vmatprep.subr.mxu0 %v751
    %795 = vmatpush1.msra.mxu0 %v750
    %796 = vmatprep.subr.mxu0 0.0
    %797 = vmatpush2.msra.mxu0 0.0
    %798 = vmatprep.subr.mxu0 0.0
    %799 = vmatpush2.msra.mxu0 0.0
    %800 = vmatprep.subr.mxu0 0.0
    %801 = vmatpush2.msra.mxu0 0.0
    %802 = vmatprep.subr.mxu0 0.0
    %803 = vmatpush2.msra.mxu0 0.0
    %804 = vmatprep.subr.mxu0 0.0
    %805 = vmatpush2.msra.mxu0 0.0
    %806 = vmatprep.subr.mxu0 0.0
    %807 = vmatpush2.msra.mxu0 0.0
    %808 = vmatprep.subr.mxu0 0.0
    %809 = vmatpush2.msra.mxu0 0.0
    %810 = vmatprep.subr.mxu0 0.0
    %811 = vmatpush2.msra.mxu0 0.0
    %812 = vmatprep.subr.mxu0 0.0
    %813 = vmatpush2.msra.mxu0 0.0
    %814 = vmatprep.subr.mxu0 0.0
    %815 = vmatpush2.msra.mxu0 0.0
    %816 = vmatprep.subr.mxu0 0.0
    %817 = vmatpush2.msra.mxu0 0.0
    %818 = vmatprep.subr.mxu0 0.0
    %819 = vmatpush2.msra.mxu0 0.0
    %820 = vmatprep.subr.mxu0 0.0
    %821 = vmatpush2.msra.mxu0 0.0
    %822 = vmatprep.subr.mxu0 0.0
    %823 = vmatpush2.msra.mxu0 0.0
    %824 = vmatprep.subr.mxu0 0.0
    %825 = vmatpush2.msra.mxu0 0.0
    %826 = vmatprep.subr.mxu0 0.0
    %827 = vmatpush2.msra.mxu0 0.0
    %828 = vmatprep.mubr.f32.mxu0 0.0
    %829 = vmatmul.mubr.f32.gmra.mxu0 %v760
    %v830 = vpop.f32.mrf.mxu0
    %v831 = vadd.f32 0.0, %v830
    %v832 = vpop.f32.mrf.mxu0
    %833 = vmatprep.mubr.f32.mxu0 0.0
    %834 = vmatmul.mubr.f32.gmra.mxu0 %v762
    %v835 = vpop.f32.mrf.mxu0
    %v836 = vpop.f32.mrf.mxu0
    %v837 = vadd.f32 0.0, %v836
    %838 = vdwg.mxu0
    %v839 = vadd.f32 %v745, %v831
    %v840 = vadd.f32 %v839, %v349
    %v841 = vxor.u32 %v840, 2147483648
    %v842 = vmul.f32 %v841, 1.442695
    %v843 = vpow.pop %v842
    %v844 = vadd.f32 %v843, 1.0
    %v845 = vrcp.pop %v844
    %v846 = vmul.f32 1.0, %v845
    %v847 = vtanh.pop %v840
    %v848 = vmul.f32 %v846, %v697
    %850 = vrot.lane.b32.xlu0 %v847, 64
    %v851 = vpop.permute.xlu0 %850
    %v853 = vmul.f32 %v846, %v851
    %855 = vrot.lane.b32.xlu0 %v853, 32
    %v856 = vpop.permute.xlu0 %855
    %v858 = vadd.f32 %v848, %v856
    %v859 = vtanh.pop %v858
    %861 = vrot.lane.b32.xlu0 %v859, 64
    %v862 = vpop.permute.xlu0 %861
    %v864 = vmul.f32 %v846, %v862
    %v865 = vadd.f32 %v749, %v837
    %v866 = vadd.f32 %v865, %v381
    %v867 = vxor.u32 %v866, 2147483648
    %v868 = vmul.f32 %v867, 1.442695
    %v869 = vpow.pop %v868
    %v870 = vadd.f32 %v869, 1.0
    %v871 = vrcp.pop %v870
    %v872 = vmul.f32 1.0, %v871
    %v873 = vtanh.pop %v866
    %v874 = vmul.f32 %v872, %v723
    %876 = vrot.lane.b32.xlu0 %v873, 64
    %v877 = vpop.permute.xlu0 %876
    %v879 = vmul.f32 %v872, %v877
    %881 = vrot.lane.b32.xlu0 %v879, 32
    %v882 = vpop.permute.xlu0 %881
    %v884 = vadd.f32 %v874, %v882
    %v885 = vtanh.pop %v884
    %887 = vrot.lane.b32.xlu0 %v885, 64
    %v888 = vpop.permute.xlu0 %887
    %v890 = vmul.f32 %v872, %v888
    %892 = vrot.lane.b32.xlu0 %v864, 32
    %v893 = vpop.permute.xlu0 %892
    %s895 = scalar_lea.vmem [#allocation3], 24
    %896 = vst.msk [vmem:[%s895] sm:$0xff] %vm265, %v893
    %898 = vrot.lane.b32.xlu0 %v890, 64
    %v899 = vpop.permute.xlu0 %898
    %s901 = scalar_lea.vmem [#allocation3], 32
    %902 = vst.msk [vmem:[%s901] sm:$0xff] %vm418, %v899
    %v903 = vld [vmem:[%s748] sm:$0xff]
    %v904 = vld [vmem:[%s744 + $0x8] sm:$0xff]
    %v905 = vld [vmem:[%s4] sm:$0xff]
    %v906 = vld [vmem:[%s4 + $0x8] sm:$0xff]
    %v907 = vld [vmem:[%s4 + $0x10] sm:$0xff]
    %v908 = vld [vmem:[%s4 + $0x18] sm:$0xff]
    %v909 = vld [vmem:[%s4 + $0x20] sm:$0xff]
    %v910 = vld [vmem:[%s4 + $0x28] sm:$0xff]
    %v911 = vld [vmem:[%s4 + $0x30] sm:$0xff]
    %v912 = vld [vmem:[%s4 + $0x38] sm:$0xff]
    %913 = vrot.lane.b32.xlu0 %v890, 32
    %v914 = vpop.permute.xlu0 %913
    %v915 = vsel %vm265, %v893, 0
    %v917 = vsel %vm265, %v914, 0
    %919 = vmatprep.subr.mxu0 0.0
    %920 = vmatpush1.msra.mxu0 0.0
    %921 = vmatprep.subr.mxu0 0.0
    %922 = vmatpush1.msra.mxu0 0.0
    %923 = vmatprep.subr.mxu0 0.0
    %924 = vmatpush1.msra.mxu0 0.0
    %925 = vmatprep.subr.mxu0 0.0
    %926 = vmatpush1.msra.mxu0 0.0
    %927 = vmatprep.subr.mxu0 0.0
    %928 = vmatpush1.msra.mxu0 0.0
    %929 = vmatprep.subr.mxu0 0.0
    %930 = vmatpush1.msra.mxu0 0.0
    %931 = vmatprep.subr.mxu0 0.0
    %932 = vmatpush1.msra.mxu0 0.0
    %933 = vmatprep.subr.mxu0 0.0
    %934 = vmatpush1.msra.mxu0 0.0
    %935 = vmatprep.subr.mxu0 0.0
    %936 = vmatpush1.msra.mxu0 0.0
    %937 = vmatprep.subr.mxu0 0.0
    %938 = vmatpush1.msra.mxu0 0.0
    %939 = vmatprep.subr.mxu0 0.0
    %940 = vmatpush1.msra.mxu0 0.0
    %941 = vmatprep.subr.mxu0 0.0
    %942 = vmatpush1.msra.mxu0 0.0
    %943 = vmatprep.subr.mxu0 %v912
    %944 = vmatpush1.msra.mxu0 %v911
    %945 = vmatprep.subr.mxu0 %v910
    %946 = vmatpush1.msra.mxu0 %v909
    %947 = vmatprep.subr.mxu0 %v908
    %948 = vmatpush1.msra.mxu0 %v907
    %949 = vmatprep.subr.mxu0 %v906
    %950 = vmatpush1.msra.mxu0 %v905
    %951 = vmatprep.subr.mxu0 0.0
    %952 = vmatpush2.msra.mxu0 0.0
    %953 = vmatprep.subr.mxu0 0.0
    %954 = vmatpush2.msra.mxu0 0.0
    %955 = vmatprep.subr.mxu0 0.0
    %956 = vmatpush2.msra.mxu0 0.0
    %957 = vmatprep.subr.mxu0 0.0
    %958 = vmatpush2.msra.mxu0 0.0
    %959 = vmatprep.subr.mxu0 0.0
    %960 = vmatpush2.msra.mxu0 0.0
    %961 = vmatprep.subr.mxu0 0.0
    %962 = vmatpush2.msra.mxu0 0.0
    %963 = vmatprep.subr.mxu0 0.0
    %964 = vmatpush2.msra.mxu0 0.0
    %965 = vmatprep.subr.mxu0 0.0
    %966 = vmatpush2.msra.mxu0 0.0
    %967 = vmatprep.subr.mxu0 0.0
    %968 = vmatpush2.msra.mxu0 0.0
    %969 = vmatprep.subr.mxu0 0.0
    %970 = vmatpush2.msra.mxu0 0.0
    %971 = vmatprep.subr.mxu0 0.0
    %972 = vmatpush2.msra.mxu0 0.0
    %973 = vmatprep.subr.mxu0 0.0
    %974 = vmatpush2.msra.mxu0 0.0
    %975 = vmatprep.subr.mxu0 0.0
    %976 = vmatpush2.msra.mxu0 0.0
    %977 = vmatprep.subr.mxu0 0.0
    %978 = vmatpush2.msra.mxu0 0.0
    %979 = vmatprep.subr.mxu0 0.0
    %980 = vmatpush2.msra.mxu0 0.0
    %981 = vmatprep.subr.mxu0 0.0
    %982 = vmatpush2.msra.mxu0 0.0
    %983 = vmatprep.mubr.f32.mxu0 0.0
    %984 = vmatmul.mubr.f32.gmra.mxu0 %v915
    %v985 = vpop.f32.mrf.mxu0
    %v986 = vadd.f32 0.0, %v985
    %v987 = vpop.f32.mrf.mxu0
    %988 = vmatprep.mubr.f32.mxu0 0.0
    %989 = vmatmul.mubr.f32.gmra.mxu0 %v917
    %v990 = vpop.f32.mrf.mxu0
    %v991 = vpop.f32.mrf.mxu0
    %v992 = vadd.f32 0.0, %v991
    %993 = vdwg.mxu0
    %v994 = vadd.f32 %v903, %v986
    %v995 = vadd.f32 %v994, %v349
    %v996 = vxor.u32 %v995, 2147483648
    %v997 = vmul.f32 %v996, 1.442695
    %v998 = vpow.pop %v997
    %v999 = vadd.f32 %v998, 1.0
    %v1000 = vrcp.pop %v999
    %v1001 = vmul.f32 1.0, %v1000
    %v1002 = vtanh.pop %v995
    %v1003 = vmul.f32 %v1001, %v858
    %1005 = vrot.lane.b32.xlu0 %v1002, 64
    %v1006 = vpop.permute.xlu0 %1005
    %v1008 = vmul.f32 %v1001, %v1006
    %1010 = vrot.lane.b32.xlu0 %v1008, 32
    %v1011 = vpop.permute.xlu0 %1010
    %v1013 = vadd.f32 %v1003, %v1011
    %v1014 = vtanh.pop %v1013
    %1016 = vrot.lane.b32.xlu0 %v1014, 64
    %v1017 = vpop.permute.xlu0 %1016
    %v1019 = vmul.f32 %v1001, %v1017
    %v1020 = vadd.f32 %v904, %v992
    %v1021 = vadd.f32 %v1020, %v381
    %v1022 = vxor.u32 %v1021, 2147483648
    %v1023 = vmul.f32 %v1022, 1.442695
    %v1024 = vpow.pop %v1023
    %v1025 = vadd.f32 %v1024, 1.0
    %v1026 = vrcp.pop %v1025
    %v1027 = vmul.f32 1.0, %v1026
    %v1028 = vtanh.pop %v1021
    %v1029 = vmul.f32 %v1027, %v884
    %1031 = vrot.lane.b32.xlu0 %v1028, 64
    %v1032 = vpop.permute.xlu0 %1031
    %v1034 = vmul.f32 %v1027, %v1032
    %1036 = vrot.lane.b32.xlu0 %v1034, 32
    %v1037 = vpop.permute.xlu0 %1036
    %v1039 = vadd.f32 %v1029, %v1037
    %v1040 = vtanh.pop %v1039
    %1042 = vrot.lane.b32.xlu0 %v1040, 64
    %v1043 = vpop.permute.xlu0 %1042
    %v1045 = vmul.f32 %v1027, %v1043
    %1047 = vrot.lane.b32.xlu0 %v1019, 32
    %v1048 = vpop.permute.xlu0 %1047
    %1050 = vst.msk [vmem:[%s901] sm:$0xff] %vm265, %v1048
    %1052 = vrot.lane.b32.xlu0 %v1045, 64
    %v1053 = vpop.permute.xlu0 %1052
    %1055 = vst.msk [vmem:[%s895] sm:$0xff] %vm418, %v1053
    %v1056 = vld [vmem:[%s587] sm:$0xff]
    %v1057 = vld [vmem:[%s583 + $0x8] sm:$0xff]
    %v1058 = vld [vmem:[%s4] sm:$0xff]
    %v1059 = vld [vmem:[%s4 + $0x8] sm:$0xff]
    %v1060 = vld [vmem:[%s4 + $0x10] sm:$0xff]
    %v1061 = vld [vmem:[%s4 + $0x18] sm:$0xff]
    %v1062 = vld [vmem:[%s4 + $0x20] sm:$0xff]
    %v1063 = vld [vmem:[%s4 + $0x28] sm:$0xff]
    %v1064 = vld [vmem:[%s4 + $0x30] sm:$0xff]
    %v1065 = vld [vmem:[%s4 + $0x38] sm:$0xff]
    %1066 = vrot.lane.b32.xlu0 %v1045, 32
    %v1067 = vpop.permute.xlu0 %1066
    %v1068 = vsel %vm265, %v1048, 0
    %v1070 = vsel %vm265, %v1067, 0
    %1072 = vmatprep.subr.mxu0 0.0
    %1073 = vmatpush1.msra.mxu0 0.0
    %1074 = vmatprep.subr.mxu0 0.0
    %1075 = vmatpush1.msra.mxu0 0.0
    %1076 = vmatprep.subr.mxu0 0.0
    %1077 = vmatpush1.msra.mxu0 0.0
    %1078 = vmatprep.subr.mxu0 0.0
    %1079 = vmatpush1.msra.mxu0 0.0
    %1080 = vmatprep.subr.mxu0 0.0
    %1081 = vmatpush1.msra.mxu0 0.0
    %1082 = vmatprep.subr.mxu0 0.0
    %1083 = vmatpush1.msra.mxu0 0.0
    %1084 = vmatprep.subr.mxu0 0.0
    %1085 = vmatpush1.msra.mxu0 0.0
    %1086 = vmatprep.subr.mxu0 0.0
    %1087 = vmatpush1.msra.mxu0 0.0
    %1088 = vmatprep.subr.mxu0 0.0
    %1089 = vmatpush1.msra.mxu0 0.0
    %1090 = vmatprep.subr.mxu0 0.0
    %1091 = vmatpush1.msra.mxu0 0.0
    %1092 = vmatprep.subr.mxu0 0.0
    %1093 = vmatpush1.msra.mxu0 0.0
    %1094 = vmatprep.subr.mxu0 0.0
    %1095 = vmatpush1.msra.mxu0 0.0
    %1096 = vmatprep.subr.mxu0 %v1065
    %1097 = vmatpush1.msra.mxu0 %v1064
    %1098 = vmatprep.subr.mxu0 %v1063
    %1099 = vmatpush1.msra.mxu0 %v1062
    %1100 = vmatprep.subr.mxu0 %v1061
    %1101 = vmatpush1.msra.mxu0 %v1060
    %1102 = vmatprep.subr.mxu0 %v1059
    %1103 = vmatpush1.msra.mxu0 %v1058
    %1104 = vmatprep.subr.mxu0 0.0
    %1105 = vmatpush2.msra.mxu0 0.0
    %1106 = vmatprep.subr.mxu0 0.0
    %1107 = vmatpush2.msra.mxu0 0.0
    %1108 = vmatprep.subr.mxu0 0.0
    %1109 = vmatpush2.msra.mxu0 0.0
    %1110 = vmatprep.subr.mxu0 0.0
    %1111 = vmatpush2.msra.mxu0 0.0
    %1112 = vmatprep.subr.mxu0 0.0
    %1113 = vmatpush2.msra.mxu0 0.0
    %1114 = vmatprep.subr.mxu0 0.0
    %1115 = vmatpush2.msra.mxu0 0.0
    %1116 = vmatprep.subr.mxu0 0.0
    %1117 = vmatpush2.msra.mxu0 0.0
    %1118 = vmatprep.subr.mxu0 0.0
    %1119 = vmatpush2.msra.mxu0 0.0
    %1120 = vmatprep.subr.mxu0 0.0
    %1121 = vmatpush2.msra.mxu0 0.0
    %1122 = vmatprep.subr.mxu0 0.0
    %1123 = vmatpush2.msra.mxu0 0.0
    %1124 = vmatprep.subr.mxu0 0.0
    %1125 = vmatpush2.msra.mxu0 0.0
    %1126 = vmatprep.subr.mxu0 0.0
    %1127 = vmatpush2.msra.mxu0 0.0
    %1128 = vmatprep.subr.mxu0 0.0
    %1129 = vmatpush2.msra.mxu0 0.0
    %1130 = vmatprep.subr.mxu0 0.0
    %1131 = vmatpush2.msra.mxu0 0.0
    %1132 = vmatprep.subr.mxu0 0.0
    %1133 = vmatpush2.msra.mxu0 0.0
    %1134 = vmatprep.subr.mxu0 0.0
    %1135 = vmatpush2.msra.mxu0 0.0
    %1136 = vmatprep.mubr.f32.mxu0 0.0
    %1137 = vmatmul.mubr.f32.gmra.mxu0 %v1068
    %v1138 = vpop.f32.mrf.mxu0
    %v1139 = vadd.f32 0.0, %v1138
    %v1140 = vpop.f32.mrf.mxu0
    %1141 = vmatprep.mubr.f32.mxu0 0.0
    %1142 = vmatmul.mubr.f32.gmra.mxu0 %v1070
    %v1143 = vpop.f32.mrf.mxu0
    %v1144 = vpop.f32.mrf.mxu0
    %v1145 = vadd.f32 0.0, %v1144
    %1146 = vdwg.mxu0
    %v1147 = vadd.f32 %v1056, %v1139
    %v1148 = vadd.f32 %v1147, %v349
    %v1149 = vxor.u32 %v1148, 2147483648
    %v1150 = vmul.f32 %v1149, 1.442695
    %v1151 = vpow.pop %v1150
    %v1152 = vadd.f32 %v1151, 1.0
    %v1153 = vrcp.pop %v1152
    %v1154 = vmul.f32 1.0, %v1153
    %v1155 = vtanh.pop %v1148
    %v1156 = vmul.f32 %v1154, %v1013
    %1158 = vrot.lane.b32.xlu0 %v1155, 64
    %v1159 = vpop.permute.xlu0 %1158
    %v1161 = vmul.f32 %v1154, %v1159
    %1163 = vrot.lane.b32.xlu0 %v1161, 32
    %v1164 = vpop.permute.xlu0 %1163
    %v1166 = vadd.f32 %v1156, %v1164
    %v1167 = vtanh.pop %v1166
    %1169 = vrot.lane.b32.xlu0 %v1167, 64
    %v1170 = vpop.permute.xlu0 %1169
    %v1172 = vmul.f32 %v1154, %v1170
    %v1173 = vadd.f32 %v1057, %v1145
    %v1174 = vadd.f32 %v1173, %v381
    %v1175 = vxor.u32 %v1174, 2147483648
    %v1176 = vmul.f32 %v1175, 1.442695
    %v1177 = vpow.pop %v1176
    %v1178 = vadd.f32 %v1177, 1.0
    %v1179 = vrcp.pop %v1178
    %v1180 = vmul.f32 1.0, %v1179
    %v1181 = vtanh.pop %v1174
    %v1182 = vmul.f32 %v1180, %v1039
    %1184 = vrot.lane.b32.xlu0 %v1181, 64
    %v1185 = vpop.permute.xlu0 %1184
    %v1187 = vmul.f32 %v1180, %v1185
    %1189 = vrot.lane.b32.xlu0 %v1187, 32
    %v1190 = vpop.permute.xlu0 %1189
    %v1192 = vadd.f32 %v1182, %v1190
    %v1193 = vtanh.pop %v1192
    %1195 = vrot.lane.b32.xlu0 %v1193, 64
    %v1196 = vpop.permute.xlu0 %1195
    %v1198 = vmul.f32 %v1180, %v1196
    %1200 = vrot.lane.b32.xlu0 %v1172, 32
    %v1201 = vpop.permute.xlu0 %1200
    %1203 = vst.msk [vmem:[%s740] sm:$0xff] %vm265, %v1201
    %1205 = vrot.lane.b32.xlu0 %v1198, 64
    %v1206 = vpop.permute.xlu0 %1205
    %1208 = vst.msk [vmem:[%s734] sm:$0xff] %vm418, %v1206
    %v1209 = vld [vmem:[%s426] sm:$0xff]
    %v1210 = vld [vmem:[%s422 + $0x8] sm:$0xff]
    %v1211 = vld [vmem:[%s4] sm:$0xff]
    %v1212 = vld [vmem:[%s4 + $0x8] sm:$0xff]
    %v1213 = vld [vmem:[%s4 + $0x10] sm:$0xff]
    %v1214 = vld [vmem:[%s4 + $0x18] sm:$0xff]
    %v1215 = vld [vmem:[%s4 + $0x20] sm:$0xff]
    %v1216 = vld [vmem:[%s4 + $0x28] sm:$0xff]
    %v1217 = vld [vmem:[%s4 + $0x30] sm:$0xff]
    %v1218 = vld [vmem:[%s4 + $0x38] sm:$0xff]
    %1219 = vrot.lane.b32.xlu0 %v1198, 32
    %v1220 = vpop.permute.xlu0 %1219
    %v1221 = vsel %vm265, %v1201, 0
    %v1223 = vsel %vm265, %v1220, 0
    %1225 = vmatprep.subr.mxu0 0.0
    %1226 = vmatpush1.msra.mxu0 0.0
    %1227 = vmatprep.subr.mxu0 0.0
    %1228 = vmatpush1.msra.mxu0 0.0
    %1229 = vmatprep.subr.mxu0 0.0
    %1230 = vmatpush1.msra.mxu0 0.0
    %1231 = vmatprep.subr.mxu0 0.0
    %1232 = vmatpush1.msra.mxu0 0.0
    %1233 = vmatprep.subr.mxu0 0.0
    %1234 = vmatpush1.msra.mxu0 0.0
    %1235 = vmatprep.subr.mxu0 0.0
    %1236 = vmatpush1.msra.mxu0 0.0
    %1237 = vmatprep.subr.mxu0 0.0
    %1238 = vmatpush1.msra.mxu0 0.0
    %1239 = vmatprep.subr.mxu0 0.0
    %1240 = vmatpush1.msra.mxu0 0.0
    %1241 = vmatprep.subr.mxu0 0.0
    %1242 = vmatpush1.msra.mxu0 0.0
    %1243 = vmatprep.subr.mxu0 0.0
    %1244 = vmatpush1.msra.mxu0 0.0
    %1245 = vmatprep.subr.mxu0 0.0
    %1246 = vmatpush1.msra.mxu0 0.0
    %1247 = vmatprep.subr.mxu0 0.0
    %1248 = vmatpush1.msra.mxu0 0.0
    %1249 = vmatprep.subr.mxu0 %v1218
    %1250 = vmatpush1.msra.mxu0 %v1217
    %1251 = vmatprep.subr.mxu0 %v1216
    %1252 = vmatpush1.msra.mxu0 %v1215
    %1253 = vmatprep.subr.mxu0 %v1214
    %1254 = vmatpush1.msra.mxu0 %v1213
    %1255 = vmatprep.subr.mxu0 %v1212
    %1256 = vmatpush1.msra.mxu0 %v1211
    %1257 = vmatprep.subr.mxu0 0.0
    %1258 = vmatpush2.msra.mxu0 0.0
    %1259 = vmatprep.subr.mxu0 0.0
    %1260 = vmatpush2.msra.mxu0 0.0
    %1261 = vmatprep.subr.mxu0 0.0
    %1262 = vmatpush2.msra.mxu0 0.0
    %1263 = vmatprep.subr.mxu0 0.0
    %1264 = vmatpush2.msra.mxu0 0.0
    %1265 = vmatprep.subr.mxu0 0.0
    %1266 = vmatpush2.msra.mxu0 0.0
    %1267 = vmatprep.subr.mxu0 0.0
    %1268 = vmatpush2.msra.mxu0 0.0
    %1269 = vmatprep.subr.mxu0 0.0
    %1270 = vmatpush2.msra.mxu0 0.0
    %1271 = vmatprep.subr.mxu0 0.0
    %1272 = vmatpush2.msra.mxu0 0.0
    %1273 = vmatprep.subr.mxu0 0.0
    %1274 = vmatpush2.msra.mxu0 0.0
    %1275 = vmatprep.subr.mxu0 0.0
    %1276 = vmatpush2.msra.mxu0 0.0
    %1277 = vmatprep.subr.mxu0 0.0
    %1278 = vmatpush2.msra.mxu0 0.0
    %1279 = vmatprep.subr.mxu0 0.0
    %1280 = vmatpush2.msra.mxu0 0.0
    %1281 = vmatprep.subr.mxu0 0.0
    %1282 = vmatpush2.msra.mxu0 0.0
    %1283 = vmatprep.subr.mxu0 0.0
    %1284 = vmatpush2.msra.mxu0 0.0
    %1285 = vmatprep.subr.mxu0 0.0
    %1286 = vmatpush2.msra.mxu0 0.0
    %1287 = vmatprep.subr.mxu0 0.0
    %1288 = vmatpush2.msra.mxu0 0.0
    %1289 = vmatprep.mubr.f32.mxu0 0.0
    %1290 = vmatmul.mubr.f32.gmra.mxu0 %v1221
    %v1291 = vpop.f32.mrf.mxu0
    %v1292 = vadd.f32 0.0, %v1291
    %v1293 = vpop.f32.mrf.mxu0
    %1294 = vmatprep.mubr.f32.mxu0 0.0
    %1295 = vmatmul.mubr.f32.gmra.mxu0 %v1223
    %v1296 = vpop.f32.mrf.mxu0
    %v1297 = vpop.f32.mrf.mxu0
    %v1298 = vadd.f32 0.0, %v1297
    %1299 = vdwg.mxu0
    %v1300 = vadd.f32 %v1209, %v1292
    %v1301 = vadd.f32 %v1300, %v349
    %v1302 = vxor.u32 %v1301, 2147483648
    %v1303 = vmul.f32 %v1302, 1.442695
    %v1304 = vpow.pop %v1303
    %v1305 = vadd.f32 %v1304, 1.0
    %v1306 = vrcp.pop %v1305
    %v1307 = vmul.f32 1.0, %v1306
    %v1308 = vtanh.pop %v1301
    %v1309 = vmul.f32 %v1307, %v1166
    %1311 = vrot.lane.b32.xlu0 %v1308, 64
    %v1312 = vpop.permute.xlu0 %1311
    %v1314 = vmul.f32 %v1307, %v1312
    %1316 = vrot.lane.b32.xlu0 %v1314, 32
    %v1317 = vpop.permute.xlu0 %1316
    %v1319 = vadd.f32 %v1309, %v1317
    %v1320 = vtanh.pop %v1319
    %1322 = vrot.lane.b32.xlu0 %v1320, 64
    %v1323 = vpop.permute.xlu0 %1322
    %v1325 = vmul.f32 %v1307, %v1323
    %v1326 = vadd.f32 %v1210, %v1298
    %v1327 = vadd.f32 %v1326, %v381
    %v1328 = vxor.u32 %v1327, 2147483648
    %v1329 = vmul.f32 %v1328, 1.442695
    %v1330 = vpow.pop %v1329
    %v1331 = vadd.f32 %v1330, 1.0
    %v1332 = vrcp.pop %v1331
    %v1333 = vmul.f32 1.0, %v1332
    %v1334 = vtanh.pop %v1327
    %v1335 = vmul.f32 %v1333, %v1192
    %1337 = vrot.lane.b32.xlu0 %v1334, 64
    %v1338 = vpop.permute.xlu0 %1337
    %v1340 = vmul.f32 %v1333, %v1338
    %1342 = vrot.lane.b32.xlu0 %v1340, 32
    %v1343 = vpop.permute.xlu0 %1342
    %v1345 = vadd.f32 %v1335, %v1343
    %v1346 = vtanh.pop %v1345
    %1348 = vrot.lane.b32.xlu0 %v1346, 64
    %v1349 = vpop.permute.xlu0 %1348
    %v1351 = vmul.f32 %v1333, %v1349
    %1353 = vrot.lane.b32.xlu0 %v1325, 32
    %v1354 = vpop.permute.xlu0 %1353
    %1356 = vst.msk [vmem:[%s579] sm:$0xff] %vm265, %v1354
    %1358 = vrot.lane.b32.xlu0 %v1351, 64
    %v1359 = vpop.permute.xlu0 %1358
    %1361 = vst.msk [vmem:[%s573] sm:$0xff] %vm418, %v1359
    %v1362 = vld [vmem:[%s255] sm:$0xff]
    %v1363 = vld [vmem:[%s251 + $0x8] sm:$0xff]
    %v1364 = vld [vmem:[%s4] sm:$0xff]
    %v1365 = vld [vmem:[%s4 + $0x8] sm:$0xff]
    %v1366 = vld [vmem:[%s4 + $0x10] sm:$0xff]
    %v1367 = vld [vmem:[%s4 + $0x18] sm:$0xff]
    %v1368 = vld [vmem:[%s4 + $0x20] sm:$0xff]
    %v1369 = vld [vmem:[%s4 + $0x28] sm:$0xff]
    %v1370 = vld [vmem:[%s4 + $0x30] sm:$0xff]
    %v1371 = vld [vmem:[%s4 + $0x38] sm:$0xff]
    %1372 = vrot.lane.b32.xlu0 %v1351, 32
    %v1373 = vpop.permute.xlu0 %1372
    %v1374 = vsel %vm265, %v1354, 0
    %v1376 = vsel %vm265, %v1373, 0
    %1378 = vmatprep.subr.mxu0 0.0
    %1379 = vmatpush1.msra.mxu0 0.0
    %1380 = vmatprep.subr.mxu0 0.0
    %1381 = vmatpush1.msra.mxu0 0.0
    %1382 = vmatprep.subr.mxu0 0.0
    %1383 = vmatpush1.msra.mxu0 0.0
    %1384 = vmatprep.subr.mxu0 0.0
    %1385 = vmatpush1.msra.mxu0 0.0
    %1386 = vmatprep.subr.mxu0 0.0
    %1387 = vmatpush1.msra.mxu0 0.0
    %1388 = vmatprep.subr.mxu0 0.0
    %1389 = vmatpush1.msra.mxu0 0.0
    %1390 = vmatprep.subr.mxu0 0.0
    %1391 = vmatpush1.msra.mxu0 0.0
    %1392 = vmatprep.subr.mxu0 0.0
    %1393 = vmatpush1.msra.mxu0 0.0
    %1394 = vmatprep.subr.mxu0 0.0
    %1395 = vmatpush1.msra.mxu0 0.0
    %1396 = vmatprep.subr.mxu0 0.0
    %1397 = vmatpush1.msra.mxu0 0.0
    %1398 = vmatprep.subr.mxu0 0.0
    %1399 = vmatpush1.msra.mxu0 0.0
    %1400 = vmatprep.subr.mxu0 0.0
    %1401 = vmatpush1.msra.mxu0 0.0
    %1402 = vmatprep.subr.mxu0 %v1371
    %1403 = vmatpush1.msra.mxu0 %v1370
    %1404 = vmatprep.subr.mxu0 %v1369
    %1405 = vmatpush1.msra.mxu0 %v1368
    %1406 = vmatprep.subr.mxu0 %v1367
    %1407 = vmatpush1.msra.mxu0 %v1366
    %1408 = vmatprep.subr.mxu0 %v1365
    %1409 = vmatpush1.msra.mxu0 %v1364
    %1410 = vmatprep.subr.mxu0 0.0
    %1411 = vmatpush2.msra.mxu0 0.0
    %1412 = vmatprep.subr.mxu0 0.0
    %1413 = vmatpush2.msra.mxu0 0.0
    %1414 = vmatprep.subr.mxu0 0.0
    %1415 = vmatpush2.msra.mxu0 0.0
    %1416 = vmatprep.subr.mxu0 0.0
    %1417 = vmatpush2.msra.mxu0 0.0
    %1418 = vmatprep.subr.mxu0 0.0
    %1419 = vmatpush2.msra.mxu0 0.0
    %1420 = vmatprep.subr.mxu0 0.0
    %1421 = vmatpush2.msra.mxu0 0.0
    %1422 = vmatprep.subr.mxu0 0.0
    %1423 = vmatpush2.msra.mxu0 0.0
    %1424 = vmatprep.subr.mxu0 0.0
    %1425 = vmatpush2.msra.mxu0 0.0
    %1426 = vmatprep.subr.mxu0 0.0
    %1427 = vmatpush2.msra.mxu0 0.0
    %1428 = vmatprep.subr.mxu0 0.0
    %1429 = vmatpush2.msra.mxu0 0.0
    %1430 = vmatprep.subr.mxu0 0.0
    %1431 = vmatpush2.msra.mxu0 0.0
    %1432 = vmatprep.subr.mxu0 0.0
    %1433 = vmatpush2.msra.mxu0 0.0
    %1434 = vmatprep.subr.mxu0 0.0
    %1435 = vmatpush2.msra.mxu0 0.0
    %1436 = vmatprep.subr.mxu0 0.0
    %1437 = vmatpush2.msra.mxu0 0.0
    %1438 = vmatprep.subr.mxu0 0.0
    %1439 = vmatpush2.msra.mxu0 0.0
    %1440 = vmatprep.subr.mxu0 0.0
    %1441 = vmatpush2.msra.mxu0 0.0
    %1442 = vmatprep.mubr.f32.mxu0 0.0
    %1443 = vmatmul.mubr.f32.gmra.mxu0 %v1374
    %v1444 = vpop.f32.mrf.mxu0
    %v1445 = vadd.f32 0.0, %v1444
    %v1446 = vpop.f32.mrf.mxu0
    %1447 = vmatprep.mubr.f32.mxu0 0.0
    %1448 = vmatmul.mubr.f32.gmra.mxu0 %v1376
    %v1449 = vpop.f32.mrf.mxu0
    %v1450 = vpop.f32.mrf.mxu0
    %v1451 = vadd.f32 0.0, %v1450
    %1452 = vdwg.mxu0
    %v1453 = vadd.f32 %v1362, %v1445
    %v1454 = vadd.f32 %v1453, %v349
    %v1455 = vxor.u32 %v1454, 2147483648
    %v1456 = vmul.f32 %v1455, 1.442695
    %v1457 = vpow.pop %v1456
    %v1458 = vadd.f32 %v1457, 1.0
    %v1459 = vrcp.pop %v1458
    %v1460 = vmul.f32 1.0, %v1459
    %v1461 = vtanh.pop %v1454
    %v1462 = vmul.f32 %v1460, %v1319
    %1464 = vrot.lane.b32.xlu0 %v1461, 64
    %v1465 = vpop.permute.xlu0 %1464
    %v1467 = vmul.f32 %v1460, %v1465
    %1469 = vrot.lane.b32.xlu0 %v1467, 32
    %v1470 = vpop.permute.xlu0 %1469
    %v1472 = vadd.f32 %v1462, %v1470
    %v1473 = vtanh.pop %v1472
    %1475 = vrot.lane.b32.xlu0 %v1473, 64
    %v1476 = vpop.permute.xlu0 %1475
    %v1478 = vmul.f32 %v1460, %v1476
    %v1479 = vadd.f32 %v1363, %v1451
    %v1480 = vadd.f32 %v1479, %v381
    %v1481 = vxor.u32 %v1480, 2147483648
    %v1482 = vmul.f32 %v1481, 1.442695
    %v1483 = vpow.pop %v1482
    %v1484 = vadd.f32 %v1483, 1.0
    %v1485 = vrcp.pop %v1484
    %v1486 = vmul.f32 1.0, %v1485
    %v1487 = vtanh.pop %v1480
    %v1488 = vmul.f32 %v1486, %v1345
    %1490 = vrot.lane.b32.xlu0 %v1487, 64
    %v1491 = vpop.permute.xlu0 %1490
    %v1493 = vmul.f32 %v1486, %v1491
    %1495 = vrot.lane.b32.xlu0 %v1493, 32
    %v1496 = vpop.permute.xlu0 %1495
    %v1498 = vadd.f32 %v1488, %v1496
    %v1499 = vtanh.pop %v1498
    %1501 = vrot.lane.b32.xlu0 %v1499, 64
    %v1502 = vpop.permute.xlu0 %1501
    %v1504 = vmul.f32 %v1486, %v1502
    %1506 = vrot.lane.b32.xlu0 %v1478, 32
    %v1507 = vpop.permute.xlu0 %1506
    %1509 = vst.msk [vmem:[%s417] sm:$0xff] %vm265, %v1507
    %1511 = vrot.lane.b32.xlu0 %v1504, 64
    %v1512 = vpop.permute.xlu0 %1511
    %1514 = vst.msk [vmem:[#allocation3] sm:$0xff] %vm418, %v1512
    %v1515 = vld [vmem:[%s6] sm:$0xff]
    %v1516 = vld [vmem:[%s6 + $0x8] sm:$0xff]
    %v1517 = vld [vmem:[%s6 + $0x10] sm:$0xff]
    %v1518 = vld [vmem:[%s6 + $0x18] sm:$0xff]
    %v1519 = vld [vmem:[%s6 + $0x20] sm:$0xff]
    %v1520 = vld [vmem:[%s6 + $0x28] sm:$0xff]
    %v1521 = vld [vmem:[%s6 + $0x30] sm:$0xff]
    %v1522 = vld [vmem:[%s6 + $0x38] sm:$0xff]
    %1523 = vrot.lane.b32.xlu0 %v1504, 32
    %v1524 = vpop.permute.xlu0 %1523
    %v1525 = vsel %vm265, %v1524, 0
    %1527 = vmatprep.subr.mxu0 0.0
    %1528 = vmatpush1.msra.mxu0 0.0
    %1529 = vmatprep.subr.mxu0 0.0
    %1530 = vmatpush1.msra.mxu0 0.0
    %1531 = vmatprep.subr.mxu0 0.0
    %1532 = vmatpush1.msra.mxu0 0.0
    %1533 = vmatprep.subr.mxu0 0.0
    %1534 = vmatpush1.msra.mxu0 0.0
    %1535 = vmatprep.subr.mxu0 0.0
    %1536 = vmatpush1.msra.mxu0 0.0
    %1537 = vmatprep.subr.mxu0 0.0
    %1538 = vmatpush1.msra.mxu0 0.0
    %1539 = vmatprep.subr.mxu0 0.0
    %1540 = vmatpush1.msra.mxu0 0.0
    %1541 = vmatprep.subr.mxu0 0.0
    %1542 = vmatpush1.msra.mxu0 0.0
    %1543 = vmatprep.subr.mxu0 0.0
    %1544 = vmatpush1.msra.mxu0 0.0
    %1545 = vmatprep.subr.mxu0 0.0
    %1546 = vmatpush1.msra.mxu0 0.0
    %1547 = vmatprep.subr.mxu0 0.0
    %1548 = vmatpush1.msra.mxu0 0.0
    %1549 = vmatprep.subr.mxu0 0.0
    %1550 = vmatpush1.msra.mxu0 0.0
    %1551 = vmatprep.subr.mxu0 0.0
    %1552 = vmatpush1.msra.mxu0 %v1522
    %1553 = vmatprep.subr.mxu0 0.0
    %1554 = vmatpush1.msra.mxu0 %v1521
    %1555 = vmatprep.subr.mxu0 0.0
    %1556 = vmatpush1.msra.mxu0 %v1520
    %1557 = vmatprep.subr.mxu0 0.0
    %1558 = vmatpush1.msra.mxu0 %v1519
    %1559 = vmatprep.subr.mxu0 0.0
    %1560 = vmatpush2.msra.mxu0 0.0
    %1561 = vmatprep.subr.mxu0 0.0
    %1562 = vmatpush2.msra.mxu0 0.0
    %1563 = vmatprep.subr.mxu0 0.0
    %1564 = vmatpush2.msra.mxu0 0.0
    %1565 = vmatprep.subr.mxu0 0.0
    %1566 = vmatpush2.msra.mxu0 0.0
    %1567 = vmatprep.subr.mxu0 0.0
    %1568 = vmatpush2.msra.mxu0 0.0
    %1569 = vmatprep.subr.mxu0 0.0
    %1570 = vmatpush2.msra.mxu0 0.0
    %1571 = vmatprep.subr.mxu0 0.0
    %1572 = vmatpush2.msra.mxu0 0.0
    %1573 = vmatprep.subr.mxu0 0.0
    %1574 = vmatpush2.msra.mxu0 0.0
    %1575 = vmatprep.subr.mxu0 0.0
    %1576 = vmatpush2.msra.mxu0 0.0
    %1577 = vmatprep.subr.mxu0 0.0
    %1578 = vmatpush2.msra.mxu0 0.0
    %1579 = vmatprep.subr.mxu0 0.0
    %1580 = vmatpush2.msra.mxu0 0.0
    %1581 = vmatprep.subr.mxu0 0.0
    %1582 = vmatpush2.msra.mxu0 0.0
    %1583 = vmatprep.subr.mxu0 0.0
    %1584 = vmatpush2.msra.mxu0 0.0
    %1585 = vmatprep.subr.mxu0 0.0
    %1586 = vmatpush2.msra.mxu0 0.0
    %1587 = vmatprep.subr.mxu0 0.0
    %1588 = vmatpush2.msra.mxu0 0.0
    %1589 = vmatprep.subr.mxu0 0.0
    %1590 = vmatpush2.msra.mxu0 0.0
    %1591 = vmatprep.mubr.f32.mxu0 0.0
    %1592 = vmatmul.mubr.f32.gmra.mxu0 %v1525
    %v1593 = vpop.f32.mrf.mxu0
    %v1594 = vadd.f32 0.0, %v1593
    %v1595 = vpop.f32.mrf.mxu0
    %1596 = vdwg.mxu0
    %v1597 = vsel %vm265, %v1507, 0
    %1599 = vmatprep.subr.mxu0 0.0
    %1600 = vmatpush1.msra.mxu0 0.0
    %1601 = vmatprep.subr.mxu0 0.0
    %1602 = vmatpush1.msra.mxu0 0.0
    %1603 = vmatprep.subr.mxu0 0.0
    %1604 = vmatpush1.msra.mxu0 0.0
    %1605 = vmatprep.subr.mxu0 0.0
    %1606 = vmatpush1.msra.mxu0 0.0
    %1607 = vmatprep.subr.mxu0 0.0
    %1608 = vmatpush1.msra.mxu0 0.0
    %1609 = vmatprep.subr.mxu0 0.0
    %1610 = vmatpush1.msra.mxu0 0.0
    %1611 = vmatprep.subr.mxu0 0.0
    %1612 = vmatpush1.msra.mxu0 0.0
    %1613 = vmatprep.subr.mxu0 0.0
    %1614 = vmatpush1.msra.mxu0 0.0
    %1615 = vmatprep.subr.mxu0 0.0
    %1616 = vmatpush1.msra.mxu0 0.0
    %1617 = vmatprep.subr.mxu0 0.0
    %1618 = vmatpush1.msra.mxu0 0.0
    %1619 = vmatprep.subr.mxu0 0.0
    %1620 = vmatpush1.msra.mxu0 0.0
    %1621 = vmatprep.subr.mxu0 0.0
    %1622 = vmatpush1.msra.mxu0 0.0
    %1623 = vmatprep.subr.mxu0 0.0
    %1624 = vmatpush1.msra.mxu0 %v1518
    %1625 = vmatprep.subr.mxu0 0.0
    %1626 = vmatpush1.msra.mxu0 %v1517
    %1627 = vmatprep.subr.mxu0 0.0
    %1628 = vmatpush1.msra.mxu0 %v1516
    %1629 = vmatprep.subr.mxu0 0.0
    %1630 = vmatpush1.msra.mxu0 %v1515
    %1631 = vmatprep.subr.mxu0 0.0
    %1632 = vmatpush2.msra.mxu0 0.0
    %1633 = vmatprep.subr.mxu0 0.0
    %1634 = vmatpush2.msra.mxu0 0.0
    %1635 = vmatprep.subr.mxu0 0.0
    %1636 = vmatpush2.msra.mxu0 0.0
    %1637 = vmatprep.subr.mxu0 0.0
    %1638 = vmatpush2.msra.mxu0 0.0
    %1639 = vmatprep.subr.mxu0 0.0
    %1640 = vmatpush2.msra.mxu0 0.0
    %1641 = vmatprep.subr.mxu0 0.0
    %1642 = vmatpush2.msra.mxu0 0.0
    %1643 = vmatprep.subr.mxu0 0.0
    %1644 = vmatpush2.msra.mxu0 0.0
    %1645 = vmatprep.subr.mxu0 0.0
    %1646 = vmatpush2.msra.mxu0 0.0
    %1647 = vmatprep.subr.mxu0 0.0
    %1648 = vmatpush2.msra.mxu0 0.0
    %1649 = vmatprep.subr.mxu0 0.0
    %1650 = vmatpush2.msra.mxu0 0.0
    %1651 = vmatprep.subr.mxu0 0.0
    %1652 = vmatpush2.msra.mxu0 0.0
    %1653 = vmatprep.subr.mxu0 0.0
    %1654 = vmatpush2.msra.mxu0 0.0
    %1655 = vmatprep.subr.mxu0 0.0
    %1656 = vmatpush2.msra.mxu0 0.0
    %1657 = vmatprep.subr.mxu0 0.0
    %1658 = vmatpush2.msra.mxu0 0.0
    %1659 = vmatprep.subr.mxu0 0.0
    %1660 = vmatpush2.msra.mxu0 0.0
    %1661 = vmatprep.subr.mxu0 0.0
    %1662 = vmatpush2.msra.mxu0 0.0
    %1663 = vmatprep.mubr.f32.mxu0 0.0
    %1664 = vmatmul.mubr.f32.gmra.mxu0 %v1597
    %v1665 = vpop.f32.mrf.mxu0
    %v1666 = vadd.f32 %v1594, %v1665
    %v1667 = vpop.f32.mrf.mxu0
    %1668 = vdwg.mxu0
    %v1669 = vld [vmem:[%s7] sm:$0x1]
    %v1671 = vlaneseq
    %v1672 = vshrl.u32 %v1671, 7
    %v1673 = vsub.s32 0, %v1672
    %v1674 = vrot.slane %v1669, %v1673
    %v1676 = vadd.f32 %v1666, %v1674
    %v1677 = vld [vmem:[%s8] sm:$0xff]
    %v1678 = vld [vmem:[%s8 + $0x8] sm:$0xff]
    %v1679 = vld [vmem:[%s8 + $0x10] sm:$0xff]
    %v1680 = vld [vmem:[%s8 + $0x18] sm:$0xff]
    %v1681 = vld [vmem:[%s8 + $0x20] sm:$0xff]
    %v1682 = vld [vmem:[%s8 + $0x28] sm:$0xff]
    %v1683 = vld [vmem:[%s8 + $0x30] sm:$0xff]
    %v1684 = vld [vmem:[%s8 + $0x38] sm:$0xff]
    %1686 = vrot.lane.b32.xlu0 %v1498, 96
    %v1687 = vpop.permute.xlu0 %1686
    %v1688 = vsel %vm265, %v1687, 0
    %1690 = vmatprep.subr.mxu0 0.0
    %1691 = vmatpush1.msra.mxu0 0.0
    %1692 = vmatprep.subr.mxu0 0.0
    %1693 = vmatpush1.msra.mxu0 0.0
    %1694 = vmatprep.subr.mxu0 0.0
    %1695 = vmatpush1.msra.mxu0 0.0
    %1696 = vmatprep.subr.mxu0 0.0
    %1697 = vmatpush1.msra.mxu0 0.0
    %1698 = vmatprep.subr.mxu0 0.0
    %1699 = vmatpush1.msra.mxu0 0.0
    %1700 = vmatprep.subr.mxu0 0.0
    %1701 = vmatpush1.msra.mxu0 0.0
    %1702 = vmatprep.subr.mxu0 0.0
    %1703 = vmatpush1.msra.mxu0 0.0
    %1704 = vmatprep.subr.mxu0 0.0
    %1705 = vmatpush1.msra.mxu0 0.0
    %1706 = vmatprep.subr.mxu0 0.0
    %1707 = vmatpush1.msra.mxu0 0.0
    %1708 = vmatprep.subr.mxu0 0.0
    %1709 = vmatpush1.msra.mxu0 0.0
    %1710 = vmatprep.subr.mxu0 0.0
    %1711 = vmatpush1.msra.mxu0 0.0
    %1712 = vmatprep.subr.mxu0 0.0
    %1713 = vmatpush1.msra.mxu0 0.0
    %1714 = vmatprep.subr.mxu0 0.0
    %1715 = vmatpush1.msra.mxu0 %v1684
    %1716 = vmatprep.subr.mxu0 0.0
    %1717 = vmatpush1.msra.mxu0 %v1683
    %1718 = vmatprep.subr.mxu0 0.0
    %1719 = vmatpush1.msra.mxu0 %v1682
    %1720 = vmatprep.subr.mxu0 0.0
    %1721 = vmatpush1.msra.mxu0 %v1681
    %1722 = vmatprep.subr.mxu0 0.0
    %1723 = vmatpush2.msra.mxu0 0.0
    %1724 = vmatprep.subr.mxu0 0.0
    %1725 = vmatpush2.msra.mxu0 0.0
    %1726 = vmatprep.subr.mxu0 0.0
    %1727 = vmatpush2.msra.mxu0 0.0
    %1728 = vmatprep.subr.mxu0 0.0
    %1729 = vmatpush2.msra.mxu0 0.0
    %1730 = vmatprep.subr.mxu0 0.0
    %1731 = vmatpush2.msra.mxu0 0.0
    %1732 = vmatprep.subr.mxu0 0.0
    %1733 = vmatpush2.msra.mxu0 0.0
    %1734 = vmatprep.subr.mxu0 0.0
    %1735 = vmatpush2.msra.mxu0 0.0
    %1736 = vmatprep.subr.mxu0 0.0
    %1737 = vmatpush2.msra.mxu0 0.0
    %1738 = vmatprep.subr.mxu0 0.0
    %1739 = vmatpush2.msra.mxu0 0.0
    %1740 = vmatprep.subr.mxu0 0.0
    %1741 = vmatpush2.msra.mxu0 0.0
    %1742 = vmatprep.subr.mxu0 0.0
    %1743 = vmatpush2.msra.mxu0 0.0
    %1744 = vmatprep.subr.mxu0 0.0
    %1745 = vmatpush2.msra.mxu0 0.0
    %1746 = vmatprep.subr.mxu0 0.0
    %1747 = vmatpush2.msra.mxu0 0.0
    %1748 = vmatprep.subr.mxu0 0.0
    %1749 = vmatpush2.msra.mxu0 0.0
    %1750 = vmatprep.subr.mxu0 0.0
    %1751 = vmatpush2.msra.mxu0 0.0
    %1752 = vmatprep.subr.mxu0 0.0
    %1753 = vmatpush2.msra.mxu0 0.0
    %1754 = vmatprep.mubr.f32.mxu0 0.0
    %1755 = vmatmul.mubr.f32.gmra.mxu0 %v1688
    %v1756 = vpop.f32.mrf.mxu0
    %v1757 = vadd.f32 0.0, %v1756
    %v1758 = vpop.f32.mrf.mxu0
    %1759 = vdwg.mxu0
    %1761 = vrot.lane.b32.xlu0 %v1472, 96
    %v1762 = vpop.permute.xlu0 %1761
    %v1763 = vsel %vm265, %v1762, 0
    %1765 = vmatprep.subr.mxu0 0.0
    %1766 = vmatpush1.msra.mxu0 0.0
    %1767 = vmatprep.subr.mxu0 0.0
    %1768 = vmatpush1.msra.mxu0 0.0
    %1769 = vmatprep.subr.mxu0 0.0
    %1770 = vmatpush1.msra.mxu0 0.0
    %1771 = vmatprep.subr.mxu0 0.0
    %1772 = vmatpush1.msra.mxu0 0.0
    %1773 = vmatprep.subr.mxu0 0.0
    %1774 = vmatpush1.msra.mxu0 0.0
    %1775 = vmatprep.subr.mxu0 0.0
    %1776 = vmatpush1.msra.mxu0 0.0
    %1777 = vmatprep.subr.mxu0 0.0
    %1778 = vmatpush1.msra.mxu0 0.0
    %1779 = vmatprep.subr.mxu0 0.0
    %1780 = vmatpush1.msra.mxu0 0.0
    %1781 = vmatprep.subr.mxu0 0.0
    %1782 = vmatpush1.msra.mxu0 0.0
    %1783 = vmatprep.subr.mxu0 0.0
    %1784 = vmatpush1.msra.mxu0 0.0
    %1785 = vmatprep.subr.mxu0 0.0
    %1786 = vmatpush1.msra.mxu0 0.0
    %1787 = vmatprep.subr.mxu0 0.0
    %1788 = vmatpush1.msra.mxu0 0.0
    %1789 = vmatprep.subr.mxu0 0.0
    %1790 = vmatpush1.msra.mxu0 %v1680
    %1791 = vmatprep.subr.mxu0 0.0
    %1792 = vmatpush1.msra.mxu0 %v1679
    %1793 = vmatprep.subr.mxu0 0.0
    %1794 = vmatpush1.msra.mxu0 %v1678
    %1795 = vmatprep.subr.mxu0 0.0
    %1796 = vmatpush1.msra.mxu0 %v1677
    %1797 = vmatprep.subr.mxu0 0.0
    %1798 = vmatpush2.msra.mxu0 0.0
    %1799 = vmatprep.subr.mxu0 0.0
    %1800 = vmatpush2.msra.mxu0 0.0
    %1801 = vmatprep.subr.mxu0 0.0
    %1802 = vmatpush2.msra.mxu0 0.0
    %1803 = vmatprep.subr.mxu0 0.0
    %1804 = vmatpush2.msra.mxu0 0.0
    %1805 = vmatprep.subr.mxu0 0.0
    %1806 = vmatpush2.msra.mxu0 0.0
    %1807 = vmatprep.subr.mxu0 0.0
    %1808 = vmatpush2.msra.mxu0 0.0
    %1809 = vmatprep.subr.mxu0 0.0
    %1810 = vmatpush2.msra.mxu0 0.0
    %1811 = vmatprep.subr.mxu0 0.0
    %1812 = vmatpush2.msra.mxu0 0.0
    %1813 = vmatprep.subr.mxu0 0.0
    %1814 = vmatpush2.msra.mxu0 0.0
    %1815 = vmatprep.subr.mxu0 0.0
    %1816 = vmatpush2.msra.mxu0 0.0
    %1817 = vmatprep.subr.mxu0 0.0
    %1818 = vmatpush2.msra.mxu0 0.0
    %1819 = vmatprep.subr.mxu0 0.0
    %1820 = vmatpush2.msra.mxu0 0.0
    %1821 = vmatprep.subr.mxu0 0.0
    %1822 = vmatpush2.msra.mxu0 0.0
    %1823 = vmatprep.subr.mxu0 0.0
    %1824 = vmatpush2.msra.mxu0 0.0
    %1825 = vmatprep.subr.mxu0 0.0
    %1826 = vmatpush2.msra.mxu0 0.0
    %1827 = vmatprep.subr.mxu0 0.0
    %1828 = vmatpush2.msra.mxu0 0.0
    %1829 = vmatprep.mubr.f32.mxu0 0.0
    %1830 = vmatmul.mubr.f32.gmra.mxu0 %v1763
    %v1831 = vpop.f32.mrf.mxu0
    %v1832 = vadd.f32 %v1757, %v1831
    %v1833 = vpop.f32.mrf.mxu0
    %1834 = vdwg.mxu0
    %v1835 = vld [vmem:[%s9] sm:$0x1]
    %v1837 = vlaneseq
    %v1838 = vshrl.u32 %v1837, 7
    %v1839 = vsub.s32 0, %v1838
    %v1840 = vrot.slane %v1835, %v1839
    %v1842 = vadd.f32 %v1832, %v1840
    %v1843 = vld [vmem:[%s2] sm:$0xff]
    %v1844 = vld [vmem:[%s2 + $0x8] sm:$0xff]
    %v1845 = vld [vmem:[%s2 + $0x10] sm:$0xff]
    %v1846 = vld [vmem:[%s2 + $0x18] sm:$0xff]
    %v1847 = vld [vmem:[%s2 + $0x20] sm:$0xff]
    %v1848 = vld [vmem:[%s2 + $0x28] sm:$0xff]
    %v1849 = vld [vmem:[%s2 + $0x30] sm:$0xff]
    %v1850 = vld [vmem:[%s2 + $0x38] sm:$0xff]
    %v1851 = vld [vmem:[%s14] sm:$0xff]
    %v1852 = vld [vmem:[%s14 + $0x8] sm:$0xff]
    %v1854 = vsel %vm93, %v1843, 0
    %v1857 = vsel %vm93, %v1844, 0
    %v1860 = vsel %vm93, %v1845, 0
    %v1863 = vsel %vm93, %v1846, 0
    %v1866 = vsel %vm93, %v1847, 0
    %v1869 = vsel %vm93, %v1848, 0
    %v1872 = vsel %vm93, %v1849, 0
    %v1875 = vsel %vm93, %v1850, 0
    %1877 = vmatprep.subr.mxu0 0.0
    %1878 = vmatpush1.msra.mxu0 0.0
    %1879 = vmatprep.subr.mxu0 0.0
    %1880 = vmatpush1.msra.mxu0 0.0
    %1881 = vmatprep.subr.mxu0 0.0
    %1882 = vmatpush1.msra.mxu0 0.0
    %1883 = vmatprep.subr.mxu0 0.0
    %1884 = vmatpush1.msra.mxu0 0.0
    %1885 = vmatprep.subr.mxu0 0.0
    %1886 = vmatpush1.msra.mxu0 0.0
    %1887 = vmatprep.subr.mxu0 0.0
    %1888 = vmatpush1.msra.mxu0 0.0
    %1889 = vmatprep.subr.mxu0 0.0
    %1890 = vmatpush1.msra.mxu0 0.0
    %1891 = vmatprep.subr.mxu0 0.0
    %1892 = vmatpush1.msra.mxu0 0.0
    %1893 = vmatprep.subr.mxu0 0.0
    %1894 = vmatpush1.msra.mxu0 0.0
    %1895 = vmatprep.subr.mxu0 0.0
    %1896 = vmatpush1.msra.mxu0 0.0
    %1897 = vmatprep.subr.mxu0 0.0
    %1898 = vmatpush1.msra.mxu0 0.0
    %1899 = vmatprep.subr.mxu0 0.0
    %1900 = vmatpush1.msra.mxu0 0.0
    %1901 = vmatprep.subr.mxu0 0.0
    %1902 = vmatpush1.msra.mxu0 0.0
    %1903 = vmatprep.subr.mxu0 0.0
    %1904 = vmatpush1.msra.mxu0 0.0
    %1905 = vmatprep.subr.mxu0 0.0
    %1906 = vmatpush1.msra.mxu0 %v1852
    %1907 = vmatprep.subr.mxu0 0.0
    %1908 = vmatpush1.msra.mxu0 %v1851
    %1909 = vmatprep.subr.mxu0 0.0
    %1910 = vmatpush2.msra.mxu0 0.0
    %1911 = vmatprep.subr.mxu0 0.0
    %1912 = vmatpush2.msra.mxu0 0.0
    %1913 = vmatprep.subr.mxu0 0.0
    %1914 = vmatpush2.msra.mxu0 0.0
    %1915 = vmatprep.subr.mxu0 0.0
    %1916 = vmatpush2.msra.mxu0 0.0
    %1917 = vmatprep.subr.mxu0 0.0
    %1918 = vmatpush2.msra.mxu0 0.0
    %1919 = vmatprep.subr.mxu0 0.0
    %1920 = vmatpush2.msra.mxu0 0.0
    %1921 = vmatprep.subr.mxu0 0.0
    %1922 = vmatpush2.msra.mxu0 0.0
    %1923 = vmatprep.subr.mxu0 0.0
    %1924 = vmatpush2.msra.mxu0 0.0
    %1925 = vmatprep.subr.mxu0 0.0
    %1926 = vmatpush2.msra.mxu0 0.0
    %1927 = vmatprep.subr.mxu0 0.0
    %1928 = vmatpush2.msra.mxu0 0.0
    %1929 = vmatprep.subr.mxu0 0.0
    %1930 = vmatpush2.msra.mxu0 0.0
    %1931 = vmatprep.subr.mxu0 0.0
    %1932 = vmatpush2.msra.mxu0 0.0
    %1933 = vmatprep.subr.mxu0 0.0
    %1934 = vmatpush2.msra.mxu0 0.0
    %1935 = vmatprep.subr.mxu0 0.0
    %1936 = vmatpush2.msra.mxu0 0.0
    %1937 = vmatprep.subr.mxu0 0.0
    %1938 = vmatpush2.msra.mxu0 0.0
    %1939 = vmatprep.subr.mxu0 0.0
    %1940 = vmatpush2.msra.mxu0 0.0
    %1941 = vmatprep.mubr.f32.mxu0 0.0
    %1942 = vmatmul.mubr.f32.gmra.mxu0 %v1854
    %v1943 = vpop.f32.mrf.mxu0
    %v1944 = vadd.f32 0.0, %v1943
    %v1945 = vpop.f32.mrf.mxu0
    %1946 = vmatprep.mubr.f32.mxu0 0.0
    %1947 = vmatmul.mubr.f32.gmra.mxu0 %v1857
    %v1948 = vpop.f32.mrf.mxu0
    %v1949 = vadd.f32 0.0, %v1948
    %v1950 = vpop.f32.mrf.mxu0
    %1951 = vmatprep.mubr.f32.mxu0 0.0
    %1952 = vmatmul.mubr.f32.gmra.mxu0 %v1860
    %v1953 = vpop.f32.mrf.mxu0
    %v1954 = vadd.f32 0.0, %v1953
    %v1955 = vpop.f32.mrf.mxu0
    %1956 = vmatprep.mubr.f32.mxu0 0.0
    %1957 = vmatmul.mubr.f32.gmra.mxu0 %v1863
    %v1958 = vpop.f32.mrf.mxu0
    %v1959 = vadd.f32 0.0, %v1958
    %v1960 = vpop.f32.mrf.mxu0
    %1961 = vmatprep.mubr.f32.mxu0 0.0
    %1962 = vmatmul.mubr.f32.gmra.mxu0 %v1866
    %v1963 = vpop.f32.mrf.mxu0
    %v1964 = vadd.f32 0.0, %v1963
    %v1965 = vpop.f32.mrf.mxu0
    %1966 = vmatprep.mubr.f32.mxu0 0.0
    %1967 = vmatmul.mubr.f32.gmra.mxu0 %v1869
    %v1968 = vpop.f32.mrf.mxu0
    %v1969 = vadd.f32 0.0, %v1968
    %v1970 = vpop.f32.mrf.mxu0
    %1971 = vmatprep.mubr.f32.mxu0 0.0
    %1972 = vmatmul.mubr.f32.gmra.mxu0 %v1872
    %v1973 = vpop.f32.mrf.mxu0
    %v1974 = vadd.f32 0.0, %v1973
    %v1975 = vpop.f32.mrf.mxu0
    %1976 = vmatprep.mubr.f32.mxu0 0.0
    %1977 = vmatmul.mubr.f32.gmra.mxu0 %v1875
    %v1978 = vpop.f32.mrf.mxu0
    %v1979 = vadd.f32 0.0, %v1978
    %v1980 = vpop.f32.mrf.mxu0
    %1981 = vdwg.mxu0
    %1982 = vst [vmem:[#allocation4] sm:$0xff] %v1944
    %1983 = vst [vmem:[#allocation4 + $0x8] sm:$0xff] %v1949
    %1984 = vst [vmem:[#allocation4 + $0x10] sm:$0xff] %v1954
    %1985 = vst [vmem:[#allocation4 + $0x18] sm:$0xff] %v1959
    %1986 = vst [vmem:[#allocation4 + $0x20] sm:$0xff] %v1964
    %1987 = vst [vmem:[#allocation4 + $0x28] sm:$0xff] %v1969
    %1988 = vst [vmem:[#allocation4 + $0x30] sm:$0xff] %v1974
    %1989 = vst [vmem:[#allocation4 + $0x38] sm:$0xff] %v1979
    %v1990 = vld [vmem:[%s19] sm:$0xff]
    %v1991 = vld [vmem:[%s19 + $0x8] sm:$0xff]
    %v1992 = vld [vmem:[%s19 + $0x10] sm:$0xff]
    %v1993 = vld [vmem:[%s19 + $0x18] sm:$0xff]
    %v1994 = vld [vmem:[%s19 + $0x20] sm:$0xff]
    %v1995 = vld [vmem:[%s19 + $0x28] sm:$0xff]
    %v1996 = vld [vmem:[%s19 + $0x30] sm:$0xff]
    %v1997 = vld [vmem:[%s19 + $0x38] sm:$0xff]
    %v1998 = vld [vmem:[%s14] sm:$0xff]
    %v1999 = vld [vmem:[%s14 + $0x8] sm:$0xff]
    %v2001 = vsel %vm93, %v1990, 0
    %v2004 = vsel %vm93, %v1991, 0
    %v2007 = vsel %vm93, %v1992, 0
    %v2010 = vsel %vm93, %v1993, 0
    %v2013 = vsel %vm93, %v1994, 0
    %v2016 = vsel %vm93, %v1995, 0
    %v2019 = vsel %vm93, %v1996, 0
    %v2022 = vsel %vm93, %v1997, 0
    %2024 = vmatprep.subr.mxu0 0.0
    %2025 = vmatpush1.msra.mxu0 0.0
    %2026 = vmatprep.subr.mxu0 0.0
    %2027 = vmatpush1.msra.mxu0 0.0
    %2028 = vmatprep.subr.mxu0 0.0
    %2029 = vmatpush1.msra.mxu0 0.0
    %2030 = vmatprep.subr.mxu0 0.0
    %2031 = vmatpush1.msra.mxu0 0.0
    %2032 = vmatprep.subr.mxu0 0.0
    %2033 = vmatpush1.msra.mxu0 0.0
    %2034 = vmatprep.subr.mxu0 0.0
    %2035 = vmatpush1.msra.mxu0 0.0
    %2036 = vmatprep.subr.mxu0 0.0
    %2037 = vmatpush1.msra.mxu0 0.0
    %2038 = vmatprep.subr.mxu0 0.0
    %2039 = vmatpush1.msra.mxu0 0.0
    %2040 = vmatprep.subr.mxu0 0.0
    %2041 = vmatpush1.msra.mxu0 0.0
    %2042 = vmatprep.subr.mxu0 0.0
    %2043 = vmatpush1.msra.mxu0 0.0
    %2044 = vmatprep.subr.mxu0 0.0
    %2045 = vmatpush1.msra.mxu0 0.0
    %2046 = vmatprep.subr.mxu0 0.0
    %2047 = vmatpush1.msra.mxu0 0.0
    %2048 = vmatprep.subr.mxu0 0.0
    %2049 = vmatpush1.msra.mxu0 0.0
    %2050 = vmatprep.subr.mxu0 0.0
    %2051 = vmatpush1.msra.mxu0 0.0
    %2052 = vmatprep.subr.mxu0 0.0
    %2053 = vmatpush1.msra.mxu0 %v1999
    %2054 = vmatprep.subr.mxu0 0.0
    %2055 = vmatpush1.msra.mxu0 %v1998
    %2056 = vmatprep.subr.mxu0 0.0
    %2057 = vmatpush2.msra.mxu0 0.0
    %2058 = vmatprep.subr.mxu0 0.0
    %2059 = vmatpush2.msra.mxu0 0.0
    %2060 = vmatprep.subr.mxu0 0.0
    %2061 = vmatpush2.msra.mxu0 0.0
    %2062 = vmatprep.subr.mxu0 0.0
    %2063 = vmatpush2.msra.mxu0 0.0
    %2064 = vmatprep.subr.mxu0 0.0
    %2065 = vmatpush2.msra.mxu0 0.0
    %2066 = vmatprep.subr.mxu0 0.0
    %2067 = vmatpush2.msra.mxu0 0.0
    %2068 = vmatprep.subr.mxu0 0.0
    %2069 = vmatpush2.msra.mxu0 0.0
    %2070 = vmatprep.subr.mxu0 0.0
    %2071 = vmatpush2.msra.mxu0 0.0
    %2072 = vmatprep.subr.mxu0 0.0
    %2073 = vmatpush2.msra.mxu0 0.0
    %2074 = vmatprep.subr.mxu0 0.0
    %2075 = vmatpush2.msra.mxu0 0.0
    %2076 = vmatprep.subr.mxu0 0.0
    %2077 = vmatpush2.msra.mxu0 0.0
    %2078 = vmatprep.subr.mxu0 0.0
    %2079 = vmatpush2.msra.mxu0 0.0
    %2080 = vmatprep.subr.mxu0 0.0
    %2081 = vmatpush2.msra.mxu0 0.0
    %2082 = vmatprep.subr.mxu0 0.0
    %2083 = vmatpush2.msra.mxu0 0.0
    %2084 = vmatprep.subr.mxu0 0.0
    %2085 = vmatpush2.msra.mxu0 0.0
    %2086 = vmatprep.subr.mxu0 0.0
    %2087 = vmatpush2.msra.mxu0 0.0
    %2088 = vmatprep.mubr.f32.mxu0 0.0
    %2089 = vmatmul.mubr.f32.gmra.mxu0 %v2001
    %v2090 = vpop.f32.mrf.mxu0
    %v2091 = vadd.f32 0.0, %v2090
    %v2092 = vpop.f32.mrf.mxu0
    %2093 = vmatprep.mubr.f32.mxu0 0.0
    %2094 = vmatmul.mubr.f32.gmra.mxu0 %v2004
    %v2095 = vpop.f32.mrf.mxu0
    %v2096 = vadd.f32 0.0, %v2095
    %v2097 = vpop.f32.mrf.mxu0
    %2098 = vmatprep.mubr.f32.mxu0 0.0
    %2099 = vmatmul.mubr.f32.gmra.mxu0 %v2007
    %v2100 = vpop.f32.mrf.mxu0
    %v2101 = vadd.f32 0.0, %v2100
    %v2102 = vpop.f32.mrf.mxu0
    %2103 = vmatprep.mubr.f32.mxu0 0.0
    %2104 = vmatmul.mubr.f32.gmra.mxu0 %v2010
    %v2105 = vpop.f32.mrf.mxu0
    %v2106 = vadd.f32 0.0, %v2105
    %v2107 = vpop.f32.mrf.mxu0
    %2108 = vmatprep.mubr.f32.mxu0 0.0
    %2109 = vmatmul.mubr.f32.gmra.mxu0 %v2013
    %v2110 = vpop.f32.mrf.mxu0
    %v2111 = vadd.f32 0.0, %v2110
    %v2112 = vpop.f32.mrf.mxu0
    %2113 = vmatprep.mubr.f32.mxu0 0.0
    %2114 = vmatmul.mubr.f32.gmra.mxu0 %v2016
    %v2115 = vpop.f32.mrf.mxu0
    %v2116 = vadd.f32 0.0, %v2115
    %v2117 = vpop.f32.mrf.mxu0
    %2118 = vmatprep.mubr.f32.mxu0 0.0
    %2119 = vmatmul.mubr.f32.gmra.mxu0 %v2019
    %v2120 = vpop.f32.mrf.mxu0
    %v2121 = vadd.f32 0.0, %v2120
    %v2122 = vpop.f32.mrf.mxu0
    %2123 = vmatprep.mubr.f32.mxu0 0.0
    %2124 = vmatmul.mubr.f32.gmra.mxu0 %v2022
    %v2125 = vpop.f32.mrf.mxu0
    %v2126 = vadd.f32 0.0, %v2125
    %v2127 = vpop.f32.mrf.mxu0
    %2128 = vdwg.mxu0
    %2129 = vst [vmem:[#allocation5] sm:$0xff] %v2091
    %2130 = vst [vmem:[#allocation5 + $0x8] sm:$0xff] %v2096
    %2131 = vst [vmem:[#allocation5 + $0x10] sm:$0xff] %v2101
    %2132 = vst [vmem:[#allocation5 + $0x18] sm:$0xff] %v2106
    %2133 = vst [vmem:[#allocation5 + $0x20] sm:$0xff] %v2111
    %2134 = vst [vmem:[#allocation5 + $0x28] sm:$0xff] %v2116
    %2135 = vst [vmem:[#allocation5 + $0x30] sm:$0xff] %v2121
    %2136 = vst [vmem:[#allocation5 + $0x38] sm:$0xff] %v2126
    %v2137 = vld [vmem:[#allocation3] sm:$0xff]
    %v2138 = vld [vmem:[#allocation3 + $0x8] sm:$0xff]
    %v2139 = vld [vmem:[#allocation3 + $0x10] sm:$0xff]
    %v2140 = vld [vmem:[#allocation3 + $0x18] sm:$0xff]
    %v2141 = vld [vmem:[#allocation3 + $0x20] sm:$0xff]
    %v2142 = vld [vmem:[#allocation3 + $0x28] sm:$0xff]
    %v2143 = vld [vmem:[#allocation3 + $0x30] sm:$0xff]
    %v2144 = vld [vmem:[#allocation3 + $0x38] sm:$0xff]
    %v2145 = vld [vmem:[%s11] sm:$0x1]
    %v2147 = vlaneseq
    %v2148 = vshrl.u32 %v2147, 7
    %v2149 = vsub.s32 0, %v2148
    %v2150 = vrot.slane %v2145, %v2149
    %v2152 = vmul.f32 %v2137, %v2150
    %v2153 = vmul.f32 %v2138, %v2150
    %v2154 = vmul.f32 %v2139, %v2150
    %v2155 = vmul.f32 %v2140, %v2150
    %v2156 = vmul.f32 %v2141, %v2150
    %v2157 = vmul.f32 %v2142, %v2150
    %v2158 = vmul.f32 %v2143, %v2150
    %v2159 = vmul.f32 %v2144, %v2150
    %vm2160 = vcmask 523264
    %v2161 = vsel %vm2160, %v2152, 0.0
    %2162 = vadd.xlane.f32.xlu0 %v2161
    %v2163 = vpop.xlane.xlu0 %2162
    %v2164 = vsel %vm2160, %v2153, 0.0
    %2165 = vadd.xlane.f32.xlu0 %v2164
    %v2166 = vpop.xlane.xlu0 %2165
    %v2167 = vsel %vm2160, %v2154, 0.0
    %2168 = vadd.xlane.f32.xlu0 %v2167
    %v2169 = vpop.xlane.xlu0 %2168
    %v2170 = vsel %vm2160, %v2155, 0.0
    %2171 = vadd.xlane.f32.xlu0 %v2170
    %v2172 = vpop.xlane.xlu0 %2171
    %v2173 = vsel %vm2160, %v2156, 0.0
    %2174 = vadd.xlane.f32.xlu0 %v2173
    %v2175 = vpop.xlane.xlu0 %2174
    %v2176 = vsel %vm2160, %v2157, 0.0
    %2177 = vadd.xlane.f32.xlu0 %v2176
    %v2178 = vpop.xlane.xlu0 %2177
    %v2179 = vsel %vm2160, %v2158, 0.0
    %2180 = vadd.xlane.f32.xlu0 %v2179
    %v2181 = vpop.xlane.xlu0 %2180
    %v2182 = vsel %vm2160, %v2159, 0.0
    %2183 = vadd.xlane.f32.xlu0 %v2182
    %v2184 = vpop.xlane.xlu0 %2183
    %v2185 = vld [vmem:[#allocation6] sm:$0x1]
    %v2186 = vld [vmem:[%s10] sm:$0x1]
    %v2187 = vlaneseq
    %v2188 = vand.u32 %v2187, 127
    %v2189 = vcvt.s32.f32 %v2188
    %2190 = vst [vmem:[#allocation10] sm:$0xff] 0.0
    %v2191 = vld [vmem:[#allocation4] sm:$0xff]
    %v2193 = vlaneseq
    %v2194 = vshrl.u32 %v2193, 7
    %v2195 = vsub.s32 0, %v2194
    %v2196 = vrot.slane %v2186, %v2195
    %v2198 = vmul.f32 %v1676, %v2196
    %v2199 = vsel %vm265, %v2198, 0.0
    %2200 = vadd.xlane.f32.xlu0 %v2199
    %v2201 = vpop.xlane.xlu0 %2200
    %2202 = vxpose.xlu0.b32.start [1/16] %v2201, 128
    %2203 = vxpose.xlu0.b32.cont [2/16] 0.0, 128
    %2204 = vxpose.xlu0.b32.cont [3/16] 0.0, 128
    %2205 = vxpose.xlu0.b32.cont [4/16] 0.0, 128
    %2206 = vxpose.xlu0.b32.cont [5/16] 0.0, 128
    %2207 = vxpose.xlu0.b32.cont [6/16] 0.0, 128
    %2208 = vxpose.xlu0.b32.cont [7/16] 0.0, 128
    %2209 = vxpose.xlu0.b32.cont [8/16] 0.0, 128
    %2210 = vxpose.xlu0.b32.cont [9/16] 0.0, 128
    %2211 = vxpose.xlu0.b32.cont [10/16] 0.0, 128
    %2212 = vxpose.xlu0.b32.cont [11/16] 0.0, 128
    %2213 = vxpose.xlu0.b32.cont [12/16] 0.0, 128
    %2214 = vxpose.xlu0.b32.cont [13/16] 0.0, 128
    %2215 = vxpose.xlu0.b32.cont [14/16] 0.0, 128
    %2216 = vxpose.xlu0.b32.cont [15/16] 0.0, 128
    %2217 = vxpose.xlu0.b32.end [16/16] 0.0, 128
    %v2218 = vpop.trf.xlu0
    %v2219 = vpop.trf.xlu0
    %v2220 = vpop.trf.xlu0
    %v2221 = vpop.trf.xlu0
    %v2222 = vpop.trf.xlu0
    %v2223 = vpop.trf.xlu0
    %v2224 = vpop.trf.xlu0
    %v2225 = vpop.trf.xlu0
    %v2226 = vpop.trf.xlu0
    %v2227 = vpop.trf.xlu0
    %v2228 = vpop.trf.xlu0
    %v2229 = vpop.trf.xlu0
    %v2230 = vpop.trf.xlu0
    %v2231 = vpop.trf.xlu0
    %v2232 = vpop.trf.xlu0
    %v2233 = vpop.trf.xlu0
    %v2234 = vlaneseq
    %v2235 = vshrl.u32 %v2234, 7
    %v2236 = vsub.s32 0, %v2235
    %v2237 = vrot.slane %v2218, %v2236
    %v2246 = vlaneseq
    %v2247 = vshrl.u32 %v2246, 7
    %v2248 = vsub.s32 %v2188, %v2247
    %v2249 = vrot.slane %v2163, %v2248
    %v2250 = vlaneseq
    %v2251 = vshrl.u32 %v2250, 7
    %v2252 = vsub.s32 %v2188, %v2251
    %v2253 = vrot.slane %v2166, %v2252
    %v2254 = vlaneseq
    %v2255 = vshrl.u32 %v2254, 7
    %v2256 = vsub.s32 %v2188, %v2255
    %v2257 = vrot.slane %v2169, %v2256
    %v2258 = vlaneseq
    %v2259 = vshrl.u32 %v2258, 7
    %v2260 = vsub.s32 %v2188, %v2259
    %v2261 = vrot.slane %v2172, %v2260
    %v2262 = vlaneseq
    %v2263 = vshrl.u32 %v2262, 7
    %v2264 = vsub.s32 %v2188, %v2263
    %v2265 = vrot.slane %v2175, %v2264
    %v2266 = vlaneseq
    %v2267 = vshrl.u32 %v2266, 7
    %v2268 = vsub.s32 %v2188, %v2267
    %v2269 = vrot.slane %v2178, %v2268
    %v2270 = vlaneseq
    %v2271 = vshrl.u32 %v2270, 7
    %v2272 = vsub.s32 %v2188, %v2271
    %v2273 = vrot.slane %v2181, %v2272
    %v2274 = vlaneseq
    %v2275 = vshrl.u32 %v2274, 7
    %v2276 = vsub.s32 %v2188, %v2275
    %v2277 = vrot.slane %v2184, %v2276
    %vm2278 = vcmask 1041409
    %v2279 = vsel %vm2278, %v2253, %v2249
    %vm2280 = vcmask 1042434
    %v2281 = vsel %vm2280, %v2257, %v2279
    %vm2282 = vcmask 1043459
    %v2283 = vsel %vm2282, %v2261, %v2281
    %vm2284 = vcmask 1044484
    %v2285 = vsel %vm2284, %v2265, %v2283
    %vm2286 = vcmask 1045509
    %v2287 = vsel %vm2286, %v2269, %v2285
    %vm2288 = vcmask 1046534
    %v2289 = vsel %vm2288, %v2273, %v2287
    %vm2290 = vcmask 1047559
    %v2291 = vsel %vm2290, %v2277, %v2289
    %v2293 = vadd.f32 %v2237, %v2291
    %v2295 = vlaneseq
    %v2296 = vshrl.u32 %v2295, 7
    %v2297 = vsub.s32 0, %v2296
    %v2298 = vrot.slane %v2185, %v2297
    %2299 = vset.pattern.permute.xlu0 0
    %2300 = vperm.xlu0 %2299, %v2298
    %v2301 = vpop.permute.xlu0 %2300
    %v2303 = vadd.f32 %v2293, %v2301
    %v2304 = vmax.f32 %v2303, 0.0
    %vm2305 = vcmask 64512
    %v2306 = vsel %vm2305, %v2304, -inf
    %v2307 = vrot.slane %v2306, 4
    %v2308 = vmax.f32 %v2306, %v2307
    %v2309 = vrot.slane %v2308, 2
    %v2310 = vmax.f32 %v2308, %v2309
    %v2311 = vrot.slane %v2310, 1
    %v2312 = vmax.f32 %v2310, %v2311
    %v2313 = vsub.f32 %v2304, %v2312
    %v2314 = vmul.f32 %v2313, 1.442695
    %v2315 = vpow.pop %v2314
    %v2316 = vsel %vm2305, %v2315, 0.0
    %v2317 = vrot.slane %v2316, 4
    %v2318 = vadd.f32 %v2316, %v2317
    %v2319 = vrot.slane %v2318, 2
    %v2320 = vadd.f32 %v2318, %v2319
    %v2321 = vrot.slane %v2320, 1
    %v2322 = vadd.f32 %v2320, %v2321
    %v2323 = vrcp.pop %v2322
    %v2324 = vmul.f32 %v2315, %v2323
    %v2325 = vlaneseq
    %v2326 = vshrl.u32 %v2325, 7
    %v2327 = vsub.s32 0, %v2326
    %v2328 = vrot.slane %v2324, %v2327
    %2330 = vbcast.lane.b32.xlu0 %v2328, 256
    %v2331 = vpop.permute.xlu0 %2330
    %v2332 = vlaneseq
    %v2333 = vshrl.u32 %v2332, 7
    %v2334 = vsub.s32 1, %v2333
    %v2335 = vrot.slane %v2324, %v2334
    %2337 = vbcast.lane.b32.xlu0 %v2335, 256
    %v2338 = vpop.permute.xlu0 %2337
    %v2339 = vlaneseq
    %v2340 = vshrl.u32 %v2339, 7
    %v2341 = vsub.s32 2, %v2340
    %v2342 = vrot.slane %v2324, %v2341
    %2344 = vbcast.lane.b32.xlu0 %v2342, 256
    %v2345 = vpop.permute.xlu0 %2344
    %v2346 = vlaneseq
    %v2347 = vshrl.u32 %v2346, 7
    %v2348 = vsub.s32 3, %v2347
    %v2349 = vrot.slane %v2324, %v2348
    %2351 = vbcast.lane.b32.xlu0 %v2349, 256
    %v2352 = vpop.permute.xlu0 %2351
    %v2353 = vlaneseq
    %v2354 = vshrl.u32 %v2353, 7
    %v2355 = vsub.s32 4, %v2354
    %v2356 = vrot.slane %v2324, %v2355
    %2358 = vbcast.lane.b32.xlu0 %v2356, 256
    %v2359 = vpop.permute.xlu0 %2358
    %v2360 = vlaneseq
    %v2361 = vshrl.u32 %v2360, 7
    %v2362 = vsub.s32 5, %v2361
    %v2363 = vrot.slane %v2324, %v2362
    %2365 = vbcast.lane.b32.xlu0 %v2363, 256
    %v2366 = vpop.permute.xlu0 %2365
    %v2367 = vlaneseq
    %v2368 = vshrl.u32 %v2367, 7
    %v2369 = vsub.s32 6, %v2368
    %v2370 = vrot.slane %v2324, %v2369
    %2372 = vbcast.lane.b32.xlu0 %v2370, 256
    %v2373 = vpop.permute.xlu0 %2372
    %v2374 = vlaneseq
    %v2375 = vshrl.u32 %v2374, 7
    %v2376 = vsub.s32 7, %v2375
    %v2377 = vrot.slane %v2324, %v2376
    %2379 = vbcast.lane.b32.xlu0 %v2377, 256
    %v2380 = vpop.permute.xlu0 %2379
    %v2381 = vld [vmem:[#allocation3] sm:$0xff]
    %v2382 = vld [vmem:[#allocation3 + $0x8] sm:$0xff]
    %v2383 = vld [vmem:[#allocation3 + $0x10] sm:$0xff]
    %v2384 = vld [vmem:[#allocation3 + $0x18] sm:$0xff]
    %v2385 = vld [vmem:[#allocation3 + $0x20] sm:$0xff]
    %v2386 = vld [vmem:[#allocation3 + $0x28] sm:$0xff]
    %v2387 = vld [vmem:[#allocation3 + $0x30] sm:$0xff]
    %v2388 = vld [vmem:[#allocation3 + $0x38] sm:$0xff]
    %v2389 = vmul.f32 %v2331, %v2381
    %v2390 = vmul.f32 %v2338, %v2382
    %v2391 = vmul.f32 %v2345, %v2383
    %v2392 = vmul.f32 %v2352, %v2384
    %v2393 = vmul.f32 %v2359, %v2385
    %v2394 = vmul.f32 %v2366, %v2386
    %v2395 = vmul.f32 %v2373, %v2387
    %v2396 = vmul.f32 %v2380, %v2388
    %v2397 = vsel %vm2160, %v2389, 0.0
    %v2398 = vsel %vm2160, %v2390, 0.0
    %v2399 = vadd.f32 %v2397, %v2398
    %v2400 = vsel %vm2160, %v2391, 0.0
    %v2401 = vadd.f32 %v2399, %v2400
    %v2402 = vsel %vm2160, %v2392, 0.0
    %v2403 = vadd.f32 %v2401, %v2402
    %v2404 = vsel %vm2160, %v2393, 0.0
    %v2405 = vadd.f32 %v2403, %v2404
    %v2406 = vsel %vm2160, %v2394, 0.0
    %v2407 = vadd.f32 %v2405, %v2406
    %v2408 = vsel %vm2160, %v2395, 0.0
    %v2409 = vadd.f32 %v2407, %v2408
    %v2410 = vsel %vm2160, %v2396, 0.0
    %v2411 = vadd.f32 %v2409, %v2410
    %v2412 = vld [vmem:[%s13] sm:$0xff]
    %v2413 = vld [vmem:[%s13 + $0x8] sm:$0xff]
    %v2414 = vld [vmem:[%s13 + $0x10] sm:$0xff]
    %v2415 = vld [vmem:[%s13 + $0x18] sm:$0xff]
    %v2416 = vld [vmem:[%s13 + $0x20] sm:$0xff]
    %v2417 = vld [vmem:[%s13 + $0x28] sm:$0xff]
    %v2418 = vld [vmem:[%s13 + $0x30] sm:$0xff]
    %v2419 = vld [vmem:[%s13 + $0x38] sm:$0xff]
    %v2421 = vsel %vm2160, %v2411, 0
    %2423 = vmatprep.subr.mxu0 0.0
    %2424 = vmatpush1.msra.mxu0 0.0
    %2425 = vmatprep.subr.mxu0 0.0
    %2426 = vmatpush1.msra.mxu0 0.0
    %2427 = vmatprep.subr.mxu0 0.0
    %2428 = vmatpush1.msra.mxu0 0.0
    %2429 = vmatprep.subr.mxu0 0.0
    %2430 = vmatpush1.msra.mxu0 0.0
    %2431 = vmatprep.subr.mxu0 0.0
    %2432 = vmatpush1.msra.mxu0 0.0
    %2433 = vmatprep.subr.mxu0 0.0
    %2434 = vmatpush1.msra.mxu0 0.0
    %2435 = vmatprep.subr.mxu0 0.0
    %2436 = vmatpush1.msra.mxu0 0.0
    %2437 = vmatprep.subr.mxu0 0.0
    %2438 = vmatpush1.msra.mxu0 0.0
    %2439 = vmatprep.subr.mxu0 0.0
    %2440 = vmatpush1.msra.mxu0 %v2419
    %2441 = vmatprep.subr.mxu0 0.0
    %2442 = vmatpush1.msra.mxu0 %v2418
    %2443 = vmatprep.subr.mxu0 0.0
    %2444 = vmatpush1.msra.mxu0 %v2417
    %2445 = vmatprep.subr.mxu0 0.0
    %2446 = vmatpush1.msra.mxu0 %v2416
    %2447 = vmatprep.subr.mxu0 0.0
    %2448 = vmatpush1.msra.mxu0 %v2415
    %2449 = vmatprep.subr.mxu0 0.0
    %2450 = vmatpush1.msra.mxu0 %v2414
    %2451 = vmatprep.subr.mxu0 0.0
    %2452 = vmatpush1.msra.mxu0 %v2413
    %2453 = vmatprep.subr.mxu0 0.0
    %2454 = vmatpush1.msra.mxu0 %v2412
    %2455 = vmatprep.subr.mxu0 0.0
    %2456 = vmatpush2.msra.mxu0 0.0
    %2457 = vmatprep.subr.mxu0 0.0
    %2458 = vmatpush2.msra.mxu0 0.0
    %2459 = vmatprep.subr.mxu0 0.0
    %2460 = vmatpush2.msra.mxu0 0.0
    %2461 = vmatprep.subr.mxu0 0.0
    %2462 = vmatpush2.msra.mxu0 0.0
    %2463 = vmatprep.subr.mxu0 0.0
    %2464 = vmatpush2.msra.mxu0 0.0
    %2465 = vmatprep.subr.mxu0 0.0
    %2466 = vmatpush2.msra.mxu0 0.0
    %2467 = vmatprep.subr.mxu0 0.0
    %2468 = vmatpush2.msra.mxu0 0.0
    %2469 = vmatprep.subr.mxu0 0.0
    %2470 = vmatpush2.msra.mxu0 0.0
    %2471 = vmatprep.subr.mxu0 0.0
    %2472 = vmatpush2.msra.mxu0 0.0
    %2473 = vmatprep.subr.mxu0 0.0
    %2474 = vmatpush2.msra.mxu0 0.0
    %2475 = vmatprep.subr.mxu0 0.0
    %2476 = vmatpush2.msra.mxu0 0.0
    %2477 = vmatprep.subr.mxu0 0.0
    %2478 = vmatpush2.msra.mxu0 0.0
    %2479 = vmatprep.subr.mxu0 0.0
    %2480 = vmatpush2.msra.mxu0 0.0
    %2481 = vmatprep.subr.mxu0 0.0
    %2482 = vmatpush2.msra.mxu0 0.0
    %2483 = vmatprep.subr.mxu0 0.0
    %2484 = vmatpush2.msra.mxu0 0.0
    %2485 = vmatprep.subr.mxu0 0.0
    %2486 = vmatpush2.msra.mxu0 0.0
    %2487 = vmatprep.mubr.f32.mxu0 0.0
    %2488 = vmatmul.mubr.f32.gmra.mxu0 %v2421
    %v2489 = vpop.f32.mrf.mxu0
    %v2490 = vadd.f32 %v2191, %v2489
    %v2491 = vpop.f32.mrf.mxu0
    %2492 = vdwg.mxu0
    %v2493 = vld [vmem:[%s15] sm:$0xff]
    %v2494 = vld [vmem:[%s15 + $0x8] sm:$0xff]
    %v2495 = vld [vmem:[%s15 + $0x10] sm:$0xff]
    %v2496 = vld [vmem:[%s15 + $0x18] sm:$0xff]
    %v2498 = vsel %vm265, %v1676, 0
    %2500 = vmatprep.subr.mxu0 0.0
    %2501 = vmatpush1.msra.mxu0 0.0
    %2502 = vmatprep.subr.mxu0 0.0
    %2503 = vmatpush1.msra.mxu0 0.0
    %2504 = vmatprep.subr.mxu0 0.0
    %2505 = vmatpush1.msra.mxu0 0.0
    %2506 = vmatprep.subr.mxu0 0.0
    %2507 = vmatpush1.msra.mxu0 0.0
    %2508 = vmatprep.subr.mxu0 0.0
    %2509 = vmatpush1.msra.mxu0 0.0
    %2510 = vmatprep.subr.mxu0 0.0
    %2511 = vmatpush1.msra.mxu0 0.0
    %2512 = vmatprep.subr.mxu0 0.0
    %2513 = vmatpush1.msra.mxu0 0.0
    %2514 = vmatprep.subr.mxu0 0.0
    %2515 = vmatpush1.msra.mxu0 0.0
    %2516 = vmatprep.subr.mxu0 0.0
    %2517 = vmatpush1.msra.mxu0 0.0
    %2518 = vmatprep.subr.mxu0 0.0
    %2519 = vmatpush1.msra.mxu0 0.0
    %2520 = vmatprep.subr.mxu0 0.0
    %2521 = vmatpush1.msra.mxu0 0.0
    %2522 = vmatprep.subr.mxu0 0.0
    %2523 = vmatpush1.msra.mxu0 0.0
    %2524 = vmatprep.subr.mxu0 0.0
    %2525 = vmatpush1.msra.mxu0 %v2496
    %2526 = vmatprep.subr.mxu0 0.0
    %2527 = vmatpush1.msra.mxu0 %v2495
    %2528 = vmatprep.subr.mxu0 0.0
    %2529 = vmatpush1.msra.mxu0 %v2494
    %2530 = vmatprep.subr.mxu0 0.0
    %2531 = vmatpush1.msra.mxu0 %v2493
    %2532 = vmatprep.subr.mxu0 0.0
    %2533 = vmatpush2.msra.mxu0 0.0
    %2534 = vmatprep.subr.mxu0 0.0
    %2535 = vmatpush2.msra.mxu0 0.0
    %2536 = vmatprep.subr.mxu0 0.0
    %2537 = vmatpush2.msra.mxu0 0.0
    %2538 = vmatprep.subr.mxu0 0.0
    %2539 = vmatpush2.msra.mxu0 0.0
    %2540 = vmatprep.subr.mxu0 0.0
    %2541 = vmatpush2.msra.mxu0 0.0
    %2542 = vmatprep.subr.mxu0 0.0
    %2543 = vmatpush2.msra.mxu0 0.0
    %2544 = vmatprep.subr.mxu0 0.0
    %2545 = vmatpush2.msra.mxu0 0.0
    %2546 = vmatprep.subr.mxu0 0.0
    %2547 = vmatpush2.msra.mxu0 0.0
    %2548 = vmatprep.subr.mxu0 0.0
    %2549 = vmatpush2.msra.mxu0 0.0
    %2550 = vmatprep.subr.mxu0 0.0
    %2551 = vmatpush2.msra.mxu0 0.0
    %2552 = vmatprep.subr.mxu0 0.0
    %2553 = vmatpush2.msra.mxu0 0.0
    %2554 = vmatprep.subr.mxu0 0.0
    %2555 = vmatpush2.msra.mxu0 0.0
    %2556 = vmatprep.subr.mxu0 0.0
    %2557 = vmatpush2.msra.mxu0 0.0
    %2558 = vmatprep.subr.mxu0 0.0
    %2559 = vmatpush2.msra.mxu0 0.0
    %2560 = vmatprep.subr.mxu0 0.0
    %2561 = vmatpush2.msra.mxu0 0.0
    %2562 = vmatprep.subr.mxu0 0.0
    %2563 = vmatpush2.msra.mxu0 0.0
    %2564 = vmatprep.mubr.f32.mxu0 0.0
    %2565 = vmatmul.mubr.f32.gmra.mxu0 %v2498
    %v2566 = vpop.f32.mrf.mxu0
    %v2567 = vadd.f32 0.0, %v2566
    %v2568 = vpop.f32.mrf.mxu0
    %2569 = vdwg.mxu0
    %v2570 = vadd.f32 %v2490, %v2567
    %v2571 = vld [vmem:[%s16] sm:$0x1]
    %v2573 = vlaneseq
    %v2574 = vshrl.u32 %v2573, 7
    %v2575 = vsub.s32 0, %v2574
    %v2576 = vrot.slane %v2571, %v2575
    %v2578 = vadd.f32 %v2570, %v2576
    %v2579 = vxor.u32 %v2578, 2147483648
    %v2580 = vmul.f32 %v2579, 1.442695
    %v2581 = vpow.pop %v2580
    %v2582 = vadd.f32 %v2581, 1.0
    %v2583 = vrcp.pop %v2582
    %v2584 = vmul.f32 1.0, %v2583
    %v2585 = vtanh.pop %v2578
    %2587 = vrot.lane.b32.xlu0 %v1842, 32
    %v2588 = vpop.permute.xlu0 %2587
    %v2590 = vmul.f32 %v2584, %v2588
    %2592 = vrot.lane.b32.xlu0 %v2585, 64
    %v2593 = vpop.permute.xlu0 %2592
    %v2595 = vmul.f32 %v2584, %v2593
    %2597 = vrot.lane.b32.xlu0 %v2595, 32
    %v2598 = vpop.permute.xlu0 %2597
    %v2600 = vadd.f32 %v2590, %v2598
    %v2601 = vtanh.pop %v2600
    %2603 = vrot.lane.b32.xlu0 %v2601, 64
    %v2604 = vpop.permute.xlu0 %2603
    %v2606 = vmul.f32 %v2584, %v2604
    %v2607 = vld [vmem:[%s17] sm:$0xff]
    %v2608 = vld [vmem:[%s17 + $0x8] sm:$0xff]
    %v2609 = vld [vmem:[%s17 + $0x10] sm:$0xff]
    %v2610 = vld [vmem:[%s17 + $0x18] sm:$0xff]
    %v2611 = vld [vmem:[%s18] sm:$0x1]
    %v2613 = vlaneseq
    %v2614 = vshrl.u32 %v2613, 7
    %v2615 = vsub.s32 0, %v2614
    %v2616 = vrot.slane %v2611, %v2615
    %2619 = vrot.lane.b32.xlu0 %v2606, 32
    %v2620 = vpop.permute.xlu0 %2619
    %v2621 = vsel %vm265, %v2620, 0
    %2623 = vmatprep.subr.mxu0 0.0
    %2624 = vmatpush1.msra.mxu0 0.0
    %2625 = vmatprep.subr.mxu0 0.0
    %2626 = vmatpush1.msra.mxu0 0.0
    %2627 = vmatprep.subr.mxu0 0.0
    %2628 = vmatpush1.msra.mxu0 0.0
    %2629 = vmatprep.subr.mxu0 0.0
    %2630 = vmatpush1.msra.mxu0 0.0
    %2631 = vmatprep.subr.mxu0 0.0
    %2632 = vmatpush1.msra.mxu0 0.0
    %2633 = vmatprep.subr.mxu0 0.0
    %2634 = vmatpush1.msra.mxu0 0.0
    %2635 = vmatprep.subr.mxu0 0.0
    %2636 = vmatpush1.msra.mxu0 0.0
    %2637 = vmatprep.subr.mxu0 0.0
    %2638 = vmatpush1.msra.mxu0 0.0
    %2639 = vmatprep.subr.mxu0 0.0
    %2640 = vmatpush1.msra.mxu0 0.0
    %2641 = vmatprep.subr.mxu0 0.0
    %2642 = vmatpush1.msra.mxu0 0.0
    %2643 = vmatprep.subr.mxu0 0.0
    %2644 = vmatpush1.msra.mxu0 0.0
    %2645 = vmatprep.subr.mxu0 0.0
    %2646 = vmatpush1.msra.mxu0 0.0
    %2647 = vmatprep.subr.mxu0 0.0
    %2648 = vmatpush1.msra.mxu0 %v2610
    %2649 = vmatprep.subr.mxu0 0.0
    %2650 = vmatpush1.msra.mxu0 %v2609
    %2651 = vmatprep.subr.mxu0 0.0
    %2652 = vmatpush1.msra.mxu0 %v2608
    %2653 = vmatprep.subr.mxu0 0.0
    %2654 = vmatpush1.msra.mxu0 %v2607
    %2655 = vmatprep.subr.mxu0 0.0
    %2656 = vmatpush2.msra.mxu0 0.0
    %2657 = vmatprep.subr.mxu0 0.0
    %2658 = vmatpush2.msra.mxu0 0.0
    %2659 = vmatprep.subr.mxu0 0.0
    %2660 = vmatpush2.msra.mxu0 0.0
    %2661 = vmatprep.subr.mxu0 0.0
    %2662 = vmatpush2.msra.mxu0 0.0
    %2663 = vmatprep.subr.mxu0 0.0
    %2664 = vmatpush2.msra.mxu0 0.0
    %2665 = vmatprep.subr.mxu0 0.0
    %2666 = vmatpush2.msra.mxu0 0.0
    %2667 = vmatprep.subr.mxu0 0.0
    %2668 = vmatpush2.msra.mxu0 0.0
    %2669 = vmatprep.subr.mxu0 0.0
    %2670 = vmatpush2.msra.mxu0 0.0
    %2671 = vmatprep.subr.mxu0 0.0
    %2672 = vmatpush2.msra.mxu0 0.0
    %2673 = vmatprep.subr.mxu0 0.0
    %2674 = vmatpush2.msra.mxu0 0.0
    %2675 = vmatprep.subr.mxu0 0.0
    %2676 = vmatpush2.msra.mxu0 0.0
    %2677 = vmatprep.subr.mxu0 0.0
    %2678 = vmatpush2.msra.mxu0 0.0
    %2679 = vmatprep.subr.mxu0 0.0
    %2680 = vmatpush2.msra.mxu0 0.0
    %2681 = vmatprep.subr.mxu0 0.0
    %2682 = vmatpush2.msra.mxu0 0.0
    %2683 = vmatprep.subr.mxu0 0.0
    %2684 = vmatpush2.msra.mxu0 0.0
    %2685 = vmatprep.subr.mxu0 0.0
    %2686 = vmatpush2.msra.mxu0 0.0
    %2687 = vmatprep.mubr.f32.mxu0 0.0
    %2688 = vmatmul.mubr.f32.gmra.mxu0 %v2621
    %v2689 = vpop.f32.mrf.mxu0
    %v2690 = vadd.f32 %v2616, %v2689
    %v2691 = vpop.f32.mrf.mxu0
    %2692 = vdwg.mxu0
    %s2693 = scalar_lea.vmem [#allocation10], 8
    %2694 = vst [vmem:[%s2693] sm:$0xff] %v2690
    %vm2695 = vcmp.lt.s32.totalorder %v2188, 64
    %v2696 = vsel %vm2695, %v2690, -1e+30
    %2697 = vmax.xlane.f32.xlu0 %v2696
    %v2698 = vpop.xlane.xlu0 %2697
    %vm2699 = vcmp.eq.f32.partialorder %v2696, %v2698
    %v2700 = vsel %vm2699, %v2189, 128.0
    %2701 = vmin.xlane.f32.xlu0 %v2700
    %v2702 = vpop.xlane.xlu0 %2701
    %vm2703 = vcmp.eq.f32.partialorder %v2189, %v2702
    %v2704 = vsel %vm2703, 1, 0
    %v2705 = vcvt.s32.f32 %v2704
    %v2706 = vld [vmem:[#allocation5] sm:$0xff]
    %v2707 = vld [vmem:[#allocation5 + $0x8] sm:$0xff]
    %v2708 = vld [vmem:[#allocation5 + $0x10] sm:$0xff]
    %v2709 = vld [vmem:[#allocation5 + $0x18] sm:$0xff]
    %v2710 = vld [vmem:[#allocation5 + $0x20] sm:$0xff]
    %v2711 = vld [vmem:[#allocation5 + $0x28] sm:$0xff]
    %v2712 = vld [vmem:[#allocation5 + $0x30] sm:$0xff]
    %v2713 = vld [vmem:[#allocation5 + $0x38] sm:$0xff]
    %v2715 = vsel %vm2160, %v2705, 0
    %2717 = vmatprep.subr.mxu0 0.0
    %2718 = vmatpush1.msra.mxu0 0.0
    %2719 = vmatprep.subr.mxu0 0.0
    %2720 = vmatpush1.msra.mxu0 0.0
    %2721 = vmatprep.subr.mxu0 0.0
    %2722 = vmatpush1.msra.mxu0 0.0
    %2723 = vmatprep.subr.mxu0 0.0
    %2724 = vmatpush1.msra.mxu0 0.0
    %2725 = vmatprep.subr.mxu0 0.0
    %2726 = vmatpush1.msra.mxu0 0.0
    %2727 = vmatprep.subr.mxu0 0.0
    %2728 = vmatpush1.msra.mxu0 0.0
    %2729 = vmatprep.subr.mxu0 0.0
    %2730 = vmatpush1.msra.mxu0 0.0
    %2731 = vmatprep.subr.mxu0 0.0
    %2732 = vmatpush1.msra.mxu0 0.0
    %2733 = vmatprep.subr.mxu0 0.0
    %2734 = vmatpush1.msra.mxu0 %v2713
    %2735 = vmatprep.subr.mxu0 0.0
    %2736 = vmatpush1.msra.mxu0 %v2712
    %2737 = vmatprep.subr.mxu0 0.0
    %2738 = vmatpush1.msra.mxu0 %v2711
    %2739 = vmatprep.subr.mxu0 0.0
    %2740 = vmatpush1.msra.mxu0 %v2710
    %2741 = vmatprep.subr.mxu0 0.0
    %2742 = vmatpush1.msra.mxu0 %v2709
    %2743 = vmatprep.subr.mxu0 0.0
    %2744 = vmatpush1.msra.mxu0 %v2708
    %2745 = vmatprep.subr.mxu0 0.0
    %2746 = vmatpush1.msra.mxu0 %v2707
    %2747 = vmatprep.subr.mxu0 0.0
    %2748 = vmatpush1.msra.mxu0 %v2706
    %2749 = vmatprep.subr.mxu0 0.0
    %2750 = vmatpush2.msra.mxu0 0.0
    %2751 = vmatprep.subr.mxu0 0.0
    %2752 = vmatpush2.msra.mxu0 0.0
    %2753 = vmatprep.subr.mxu0 0.0
    %2754 = vmatpush2.msra.mxu0 0.0
    %2755 = vmatprep.subr.mxu0 0.0
    %2756 = vmatpush2.msra.mxu0 0.0
    %2757 = vmatprep.subr.mxu0 0.0
    %2758 = vmatpush2.msra.mxu0 0.0
    %2759 = vmatprep.subr.mxu0 0.0
    %2760 = vmatpush2.msra.mxu0 0.0
    %2761 = vmatprep.subr.mxu0 0.0
    %2762 = vmatpush2.msra.mxu0 0.0
    %2763 = vmatprep.subr.mxu0 0.0
    %2764 = vmatpush2.msra.mxu0 0.0
    %2765 = vmatprep.subr.mxu0 0.0
    %2766 = vmatpush2.msra.mxu0 0.0
    %2767 = vmatprep.subr.mxu0 0.0
    %2768 = vmatpush2.msra.mxu0 0.0
    %2769 = vmatprep.subr.mxu0 0.0
    %2770 = vmatpush2.msra.mxu0 0.0
    %2771 = vmatprep.subr.mxu0 0.0
    %2772 = vmatpush2.msra.mxu0 0.0
    %2773 = vmatprep.subr.mxu0 0.0
    %2774 = vmatpush2.msra.mxu0 0.0
    %2775 = vmatprep.subr.mxu0 0.0
    %2776 = vmatpush2.msra.mxu0 0.0
    %2777 = vmatprep.subr.mxu0 0.0
    %2778 = vmatpush2.msra.mxu0 0.0
    %2779 = vmatprep.subr.mxu0 0.0
    %2780 = vmatpush2.msra.mxu0 0.0
    %2781 = vmatprep.mubr.f32.mxu0 0.0
    %2782 = vmatmul.mubr.f32.gmra.mxu0 %v2715
    %v2783 = vpop.f32.mrf.mxu0
    %v2784 = vadd.f32 0.0, %v2783
    %v2785 = vpop.f32.mrf.mxu0
    %2786 = vdwg.mxu0
    %s2787 = sld [smem:[#allocation7 + $0x1]]
    %p2788 = scmp.gt.s32.totalorder %s2787, 0
    %s2789 = scalar_select %p2788, 1, 0
    %s2790 = scvt.s32.f32 %s2789
    %s2791 = scalar_lea.vmem [#allocation4], 8
    %v2792 = vld [vmem:[%s2791] sm:$0xff]
    %v2793 = vstv %s2790
    %v2794 = vmul.f32 %v2793, %v2792
    %s2795 = ssub.f32 1.0, %s2790
    %v2796 = vstv %s2795
    %v2797 = vmul.f32 %v2796, %v2784
    %v2798 = vadd.f32 %v2794, %v2797
    %2799 = vrot.lane.b32.xlu0 %v2196, 96
    %v2800 = vpop.permute.xlu0 %2799
    %v2802 = vmul.f32 %v2606, %v2800
    %2804 = vrot.lane.b32.xlu0 %v2802, 32
    %v2805 = vpop.permute.xlu0 %2804
    %v2807 = vsel %vm265, %v2805, 0.0
    %2808 = vadd.xlane.f32.xlu0 %v2807
    %v2809 = vpop.xlane.xlu0 %2808
    %2810 = vxpose.xlu0.b32.start [1/16] %v2809, 128
    %2811 = vxpose.xlu0.b32.cont [2/16] 0.0, 128
    %2812 = vxpose.xlu0.b32.cont [3/16] 0.0, 128
    %2813 = vxpose.xlu0.b32.cont [4/16] 0.0, 128
    %2814 = vxpose.xlu0.b32.cont [5/16] 0.0, 128
    %2815 = vxpose.xlu0.b32.cont [6/16] 0.0, 128
    %2816 = vxpose.xlu0.b32.cont [7/16] 0.0, 128
    %2817 = vxpose.xlu0.b32.cont [8/16] 0.0, 128
    %2818 = vxpose.xlu0.b32.cont [9/16] 0.0, 128
    %2819 = vxpose.xlu0.b32.cont [10/16] 0.0, 128
    %2820 = vxpose.xlu0.b32.cont [11/16] 0.0, 128
    %2821 = vxpose.xlu0.b32.cont [12/16] 0.0, 128
    %2822 = vxpose.xlu0.b32.cont [13/16] 0.0, 128
    %2823 = vxpose.xlu0.b32.cont [14/16] 0.0, 128
    %2824 = vxpose.xlu0.b32.cont [15/16] 0.0, 128
    %2825 = vxpose.xlu0.b32.end [16/16] 0.0, 128
    %v2826 = vpop.trf.xlu0
    %v2827 = vpop.trf.xlu0
    %v2828 = vpop.trf.xlu0
    %v2829 = vpop.trf.xlu0
    %v2830 = vpop.trf.xlu0
    %v2831 = vpop.trf.xlu0
    %v2832 = vpop.trf.xlu0
    %v2833 = vpop.trf.xlu0
    %v2834 = vpop.trf.xlu0
    %v2835 = vpop.trf.xlu0
    %v2836 = vpop.trf.xlu0
    %v2837 = vpop.trf.xlu0
    %v2838 = vpop.trf.xlu0
    %v2839 = vpop.trf.xlu0
    %v2840 = vpop.trf.xlu0
    %v2841 = vpop.trf.xlu0
    %v2842 = vlaneseq
    %v2843 = vshrl.u32 %v2842, 7
    %v2844 = vsub.s32 0, %v2843
    %v2845 = vrot.slane %v2826, %v2844
    %v2846 = vadd.f32 %v2845, %v2291
    %v2847 = vadd.f32 %v2846, %v2301
    %v2848 = vmax.f32 %v2847, 0.0
    %v2849 = vsel %vm2305, %v2848, -inf
    %v2850 = vrot.slane %v2849, 4
    %v2851 = vmax.f32 %v2849, %v2850
    %v2852 = vrot.slane %v2851, 2
    %v2853 = vmax.f32 %v2851, %v2852
    %v2854 = vrot.slane %v2853, 1
    %v2855 = vmax.f32 %v2853, %v2854
    %v2856 = vsub.f32 %v2848, %v2855
    %v2857 = vmul.f32 %v2856, 1.442695
    %v2858 = vpow.pop %v2857
    %v2859 = vsel %vm2305, %v2858, 0.0
    %v2860 = vrot.slane %v2859, 4
    %v2861 = vadd.f32 %v2859, %v2860
    %v2862 = vrot.slane %v2861, 2
    %v2863 = vadd.f32 %v2861, %v2862
    %v2864 = vrot.slane %v2863, 1
    %v2865 = vadd.f32 %v2863, %v2864
    %v2866 = vrcp.pop %v2865
    %v2867 = vmul.f32 %v2858, %v2866
    %v2868 = vlaneseq
    %v2869 = vshrl.u32 %v2868, 7
    %v2870 = vsub.s32 0, %v2869
    %v2871 = vrot.slane %v2867, %v2870
    %2873 = vbcast.lane.b32.xlu0 %v2871, 256
    %v2874 = vpop.permute.xlu0 %2873
    %v2875 = vlaneseq
    %v2876 = vshrl.u32 %v2875, 7
    %v2877 = vsub.s32 1, %v2876
    %v2878 = vrot.slane %v2867, %v2877
    %2880 = vbcast.lane.b32.xlu0 %v2878, 256
    %v2881 = vpop.permute.xlu0 %2880
    %v2882 = vlaneseq
    %v2883 = vshrl.u32 %v2882, 7
    %v2884 = vsub.s32 2, %v2883
    %v2885 = vrot.slane %v2867, %v2884
    %2887 = vbcast.lane.b32.xlu0 %v2885, 256
    %v2888 = vpop.permute.xlu0 %2887
    %v2889 = vlaneseq
    %v2890 = vshrl.u32 %v2889, 7
    %v2891 = vsub.s32 3, %v2890
    %v2892 = vrot.slane %v2867, %v2891
    %2894 = vbcast.lane.b32.xlu0 %v2892, 256
    %v2895 = vpop.permute.xlu0 %2894
    %v2896 = vlaneseq
    %v2897 = vshrl.u32 %v2896, 7
    %v2898 = vsub.s32 4, %v2897
    %v2899 = vrot.slane %v2867, %v2898
    %2901 = vbcast.lane.b32.xlu0 %v2899, 256
    %v2902 = vpop.permute.xlu0 %2901
    %v2903 = vlaneseq
    %v2904 = vshrl.u32 %v2903, 7
    %v2905 = vsub.s32 5, %v2904
    %v2906 = vrot.slane %v2867, %v2905
    %2908 = vbcast.lane.b32.xlu0 %v2906, 256
    %v2909 = vpop.permute.xlu0 %2908
    %v2910 = vlaneseq
    %v2911 = vshrl.u32 %v2910, 7
    %v2912 = vsub.s32 6, %v2911
    %v2913 = vrot.slane %v2867, %v2912
    %2915 = vbcast.lane.b32.xlu0 %v2913, 256
    %v2916 = vpop.permute.xlu0 %2915
    %v2917 = vlaneseq
    %v2918 = vshrl.u32 %v2917, 7
    %v2919 = vsub.s32 7, %v2918
    %v2920 = vrot.slane %v2867, %v2919
    %2922 = vbcast.lane.b32.xlu0 %v2920, 256
    %v2923 = vpop.permute.xlu0 %2922
    %v2924 = vld [vmem:[#allocation3] sm:$0xff]
    %v2925 = vld [vmem:[#allocation3 + $0x8] sm:$0xff]
    %v2926 = vld [vmem:[#allocation3 + $0x10] sm:$0xff]
    %v2927 = vld [vmem:[#allocation3 + $0x18] sm:$0xff]
    %v2928 = vld [vmem:[#allocation3 + $0x20] sm:$0xff]
    %v2929 = vld [vmem:[#allocation3 + $0x28] sm:$0xff]
    %v2930 = vld [vmem:[#allocation3 + $0x30] sm:$0xff]
    %v2931 = vld [vmem:[#allocation3 + $0x38] sm:$0xff]
    %v2932 = vmul.f32 %v2874, %v2924
    %v2933 = vmul.f32 %v2881, %v2925
    %v2934 = vmul.f32 %v2888, %v2926
    %v2935 = vmul.f32 %v2895, %v2927
    %v2936 = vmul.f32 %v2902, %v2928
    %v2937 = vmul.f32 %v2909, %v2929
    %v2938 = vmul.f32 %v2916, %v2930
    %v2939 = vmul.f32 %v2923, %v2931
    %v2940 = vsel %vm2160, %v2932, 0.0
    %v2941 = vsel %vm2160, %v2933, 0.0
    %v2942 = vadd.f32 %v2940, %v2941
    %v2943 = vsel %vm2160, %v2934, 0.0
    %v2944 = vadd.f32 %v2942, %v2943
    %v2945 = vsel %vm2160, %v2935, 0.0
    %v2946 = vadd.f32 %v2944, %v2945
    %v2947 = vsel %vm2160, %v2936, 0.0
    %v2948 = vadd.f32 %v2946, %v2947
    %v2949 = vsel %vm2160, %v2937, 0.0
    %v2950 = vadd.f32 %v2948, %v2949
    %v2951 = vsel %vm2160, %v2938, 0.0
    %v2952 = vadd.f32 %v2950, %v2951
    %v2953 = vsel %vm2160, %v2939, 0.0
    %v2954 = vadd.f32 %v2952, %v2953
    %v2955 = vld [vmem:[%s13] sm:$0xff]
    %v2956 = vld [vmem:[%s13 + $0x8] sm:$0xff]
    %v2957 = vld [vmem:[%s13 + $0x10] sm:$0xff]
    %v2958 = vld [vmem:[%s13 + $0x18] sm:$0xff]
    %v2959 = vld [vmem:[%s13 + $0x20] sm:$0xff]
    %v2960 = vld [vmem:[%s13 + $0x28] sm:$0xff]
    %v2961 = vld [vmem:[%s13 + $0x30] sm:$0xff]
    %v2962 = vld [vmem:[%s13 + $0x38] sm:$0xff]
    %v2964 = vsel %vm2160, %v2954, 0
    %2966 = vmatprep.subr.mxu0 0.0
    %2967 = vmatpush1.msra.mxu0 0.0
    %2968 = vmatprep.subr.mxu0 0.0
    %2969 = vmatpush1.msra.mxu0 0.0
    %2970 = vmatprep.subr.mxu0 0.0
    %2971 = vmatpush1.msra.mxu0 0.0
    %2972 = vmatprep.subr.mxu0 0.0
    %2973 = vmatpush1.msra.mxu0 0.0
    %2974 = vmatprep.subr.mxu0 0.0
    %2975 = vmatpush1.msra.mxu0 0.0
    %2976 = vmatprep.subr.mxu0 0.0
    %2977 = vmatpush1.msra.mxu0 0.0
    %2978 = vmatprep.subr.mxu0 0.0
    %2979 = vmatpush1.msra.mxu0 0.0
    %2980 = vmatprep.subr.mxu0 0.0
    %2981 = vmatpush1.msra.mxu0 0.0
    %2982 = vmatprep.subr.mxu0 0.0
    %2983 = vmatpush1.msra.mxu0 %v2962
    %2984 = vmatprep.subr.mxu0 0.0
    %2985 = vmatpush1.msra.mxu0 %v2961
    %2986 = vmatprep.subr.mxu0 0.0
    %2987 = vmatpush1.msra.mxu0 %v2960
    %2988 = vmatprep.subr.mxu0 0.0
    %2989 = vmatpush1.msra.mxu0 %v2959
    %2990 = vmatprep.subr.mxu0 0.0
    %2991 = vmatpush1.msra.mxu0 %v2958
    %2992 = vmatprep.subr.mxu0 0.0
    %2993 = vmatpush1.msra.mxu0 %v2957
    %2994 = vmatprep.subr.mxu0 0.0
    %2995 = vmatpush1.msra.mxu0 %v2956
    %2996 = vmatprep.subr.mxu0 0.0
    %2997 = vmatpush1.msra.mxu0 %v2955
    %2998 = vmatprep.subr.mxu0 0.0
    %2999 = vmatpush2.msra.mxu0 0.0
    %3000 = vmatprep.subr.mxu0 0.0
    %3001 = vmatpush2.msra.mxu0 0.0
    %3002 = vmatprep.subr.mxu0 0.0
    %3003 = vmatpush2.msra.mxu0 0.0
    %3004 = vmatprep.subr.mxu0 0.0
    %3005 = vmatpush2.msra.mxu0 0.0
    %3006 = vmatprep.subr.mxu0 0.0
    %3007 = vmatpush2.msra.mxu0 0.0
    %3008 = vmatprep.subr.mxu0 0.0
    %3009 = vmatpush2.msra.mxu0 0.0
    %3010 = vmatprep.subr.mxu0 0.0
    %3011 = vmatpush2.msra.mxu0 0.0
    %3012 = vmatprep.subr.mxu0 0.0
    %3013 = vmatpush2.msra.mxu0 0.0
    %3014 = vmatprep.subr.mxu0 0.0
    %3015 = vmatpush2.msra.mxu0 0.0
    %3016 = vmatprep.subr.mxu0 0.0
    %3017 = vmatpush2.msra.mxu0 0.0
    %3018 = vmatprep.subr.mxu0 0.0
    %3019 = vmatpush2.msra.mxu0 0.0
    %3020 = vmatprep.subr.mxu0 0.0
    %3021 = vmatpush2.msra.mxu0 0.0
    %3022 = vmatprep.subr.mxu0 0.0
    %3023 = vmatpush2.msra.mxu0 0.0
    %3024 = vmatprep.subr.mxu0 0.0
    %3025 = vmatpush2.msra.mxu0 0.0
    %3026 = vmatprep.subr.mxu0 0.0
    %3027 = vmatpush2.msra.mxu0 0.0
    %3028 = vmatprep.subr.mxu0 0.0
    %3029 = vmatpush2.msra.mxu0 0.0
    %3030 = vmatprep.mubr.f32.mxu0 0.0
    %3031 = vmatmul.mubr.f32.gmra.mxu0 %v2964
    %v3032 = vpop.f32.mrf.mxu0
    %v3033 = vadd.f32 %v2798, %v3032
    %v3034 = vpop.f32.mrf.mxu0
    %3035 = vdwg.mxu0
    %v3036 = vld [vmem:[%s15] sm:$0xff]
    %v3037 = vld [vmem:[%s15 + $0x8] sm:$0xff]
    %v3038 = vld [vmem:[%s15 + $0x10] sm:$0xff]
    %v3039 = vld [vmem:[%s15 + $0x18] sm:$0xff]
    %3040 = vmatprep.subr.mxu0 0.0
    %3041 = vmatpush1.msra.mxu0 0.0
    %3042 = vmatprep.subr.mxu0 0.0
    %3043 = vmatpush1.msra.mxu0 0.0
    %3044 = vmatprep.subr.mxu0 0.0
    %3045 = vmatpush1.msra.mxu0 0.0
    %3046 = vmatprep.subr.mxu0 0.0
    %3047 = vmatpush1.msra.mxu0 0.0
    %3048 = vmatprep.subr.mxu0 0.0
    %3049 = vmatpush1.msra.mxu0 0.0
    %3050 = vmatprep.subr.mxu0 0.0
    %3051 = vmatpush1.msra.mxu0 0.0
    %3052 = vmatprep.subr.mxu0 0.0
    %3053 = vmatpush1.msra.mxu0 0.0
    %3054 = vmatprep.subr.mxu0 0.0
    %3055 = vmatpush1.msra.mxu0 0.0
    %3056 = vmatprep.subr.mxu0 0.0
    %3057 = vmatpush1.msra.mxu0 0.0
    %3058 = vmatprep.subr.mxu0 0.0
    %3059 = vmatpush1.msra.mxu0 0.0
    %3060 = vmatprep.subr.mxu0 0.0
    %3061 = vmatpush1.msra.mxu0 0.0
    %3062 = vmatprep.subr.mxu0 0.0
    %3063 = vmatpush1.msra.mxu0 0.0
    %3064 = vmatprep.subr.mxu0 0.0
    %3065 = vmatpush1.msra.mxu0 %v3039
    %3066 = vmatprep.subr.mxu0 0.0
    %3067 = vmatpush1.msra.mxu0 %v3038
    %3068 = vmatprep.subr.mxu0 0.0
    %3069 = vmatpush1.msra.mxu0 %v3037
    %3070 = vmatprep.subr.mxu0 0.0
    %3071 = vmatpush1.msra.mxu0 %v3036
    %3072 = vmatprep.subr.mxu0 0.0
    %3073 = vmatpush2.msra.mxu0 0.0
    %3074 = vmatprep.subr.mxu0 0.0
    %3075 = vmatpush2.msra.mxu0 0.0
    %3076 = vmatprep.subr.mxu0 0.0
    %3077 = vmatpush2.msra.mxu0 0.0
    %3078 = vmatprep.subr.mxu0 0.0
    %3079 = vmatpush2.msra.mxu0 0.0
    %3080 = vmatprep.subr.mxu0 0.0
    %3081 = vmatpush2.msra.mxu0 0.0
    %3082 = vmatprep.subr.mxu0 0.0
    %3083 = vmatpush2.msra.mxu0 0.0
    %3084 = vmatprep.subr.mxu0 0.0
    %3085 = vmatpush2.msra.mxu0 0.0
    %3086 = vmatprep.subr.mxu0 0.0
    %3087 = vmatpush2.msra.mxu0 0.0
    %3088 = vmatprep.subr.mxu0 0.0
    %3089 = vmatpush2.msra.mxu0 0.0
    %3090 = vmatprep.subr.mxu0 0.0
    %3091 = vmatpush2.msra.mxu0 0.0
    %3092 = vmatprep.subr.mxu0 0.0
    %3093 = vmatpush2.msra.mxu0 0.0
    %3094 = vmatprep.subr.mxu0 0.0
    %3095 = vmatpush2.msra.mxu0 0.0
    %3096 = vmatprep.subr.mxu0 0.0
    %3097 = vmatpush2.msra.mxu0 0.0
    %3098 = vmatprep.subr.mxu0 0.0
    %3099 = vmatpush2.msra.mxu0 0.0
    %3100 = vmatprep.subr.mxu0 0.0
    %3101 = vmatpush2.msra.mxu0 0.0
    %3102 = vmatprep.subr.mxu0 0.0
    %3103 = vmatpush2.msra.mxu0 0.0
    %3104 = vmatprep.mubr.f32.mxu0 0.0
    %3105 = vmatmul.mubr.f32.gmra.mxu0 %v2621
    %v3106 = vpop.f32.mrf.mxu0
    %v3107 = vadd.f32 0.0, %v3106
    %v3108 = vpop.f32.mrf.mxu0
    %3109 = vdwg.mxu0
    %v3110 = vadd.f32 %v3033, %v3107
    %v3111 = vld [vmem:[%s16] sm:$0x1]
    %v3113 = vlaneseq
    %v3114 = vshrl.u32 %v3113, 7
    %v3115 = vsub.s32 0, %v3114
    %v3116 = vrot.slane %v3111, %v3115
    %v3118 = vadd.f32 %v3110, %v3116
    %v3119 = vxor.u32 %v3118, 2147483648
    %v3120 = vmul.f32 %v3119, 1.442695
    %v3121 = vpow.pop %v3120
    %v3122 = vadd.f32 %v3121, 1.0
    %v3123 = vrcp.pop %v3122
    %v3124 = vmul.f32 1.0, %v3123
    %v3125 = vtanh.pop %v3118
    %v3126 = vmul.f32 %v3124, %v2600
    %3128 = vrot.lane.b32.xlu0 %v3125, 64
    %v3129 = vpop.permute.xlu0 %3128
    %v3131 = vmul.f32 %v3124, %v3129
    %3133 = vrot.lane.b32.xlu0 %v3131, 32
    %v3134 = vpop.permute.xlu0 %3133
    %v3136 = vadd.f32 %v3126, %v3134
    %v3137 = vtanh.pop %v3136
    %3139 = vrot.lane.b32.xlu0 %v3137, 64
    %v3140 = vpop.permute.xlu0 %3139
    %v3142 = vmul.f32 %v3124, %v3140
    %v3143 = vld [vmem:[%s17] sm:$0xff]
    %v3144 = vld [vmem:[%s17 + $0x8] sm:$0xff]
    %v3145 = vld [vmem:[%s17 + $0x10] sm:$0xff]
    %v3146 = vld [vmem:[%s17 + $0x18] sm:$0xff]
    %v3147 = vld [vmem:[%s18] sm:$0x1]
    %v3149 = vlaneseq
    %v3150 = vshrl.u32 %v3149, 7
    %v3151 = vsub.s32 0, %v3150
    %v3152 = vrot.slane %v3147, %v3151
    %3155 = vrot.lane.b32.xlu0 %v3142, 32
    %v3156 = vpop.permute.xlu0 %3155
    %v3157 = vsel %vm265, %v3156, 0
    %3159 = vmatprep.subr.mxu0 0.0
    %3160 = vmatpush1.msra.mxu0 0.0
    %3161 = vmatprep.subr.mxu0 0.0
    %3162 = vmatpush1.msra.mxu0 0.0
    %3163 = vmatprep.subr.mxu0 0.0
    %3164 = vmatpush1.msra.mxu0 0.0
    %3165 = vmatprep.subr.mxu0 0.0
    %3166 = vmatpush1.msra.mxu0 0.0
    %3167 = vmatprep.subr.mxu0 0.0
    %3168 = vmatpush1.msra.mxu0 0.0
    %3169 = vmatprep.subr.mxu0 0.0
    %3170 = vmatpush1.msra.mxu0 0.0
    %3171 = vmatprep.subr.mxu0 0.0
    %3172 = vmatpush1.msra.mxu0 0.0
    %3173 = vmatprep.subr.mxu0 0.0
    %3174 = vmatpush1.msra.mxu0 0.0
    %3175 = vmatprep.subr.mxu0 0.0
    %3176 = vmatpush1.msra.mxu0 0.0
    %3177 = vmatprep.subr.mxu0 0.0
    %3178 = vmatpush1.msra.mxu0 0.0
    %3179 = vmatprep.subr.mxu0 0.0
    %3180 = vmatpush1.msra.mxu0 0.0
    %3181 = vmatprep.subr.mxu0 0.0
    %3182 = vmatpush1.msra.mxu0 0.0
    %3183 = vmatprep.subr.mxu0 0.0
    %3184 = vmatpush1.msra.mxu0 %v3146
    %3185 = vmatprep.subr.mxu0 0.0
    %3186 = vmatpush1.msra.mxu0 %v3145
    %3187 = vmatprep.subr.mxu0 0.0
    %3188 = vmatpush1.msra.mxu0 %v3144
    %3189 = vmatprep.subr.mxu0 0.0
    %3190 = vmatpush1.msra.mxu0 %v3143
    %3191 = vmatprep.subr.mxu0 0.0
    %3192 = vmatpush2.msra.mxu0 0.0
    %3193 = vmatprep.subr.mxu0 0.0
    %3194 = vmatpush2.msra.mxu0 0.0
    %3195 = vmatprep.subr.mxu0 0.0
    %3196 = vmatpush2.msra.mxu0 0.0
    %3197 = vmatprep.subr.mxu0 0.0
    %3198 = vmatpush2.msra.mxu0 0.0
    %3199 = vmatprep.subr.mxu0 0.0
    %3200 = vmatpush2.msra.mxu0 0.0
    %3201 = vmatprep.subr.mxu0 0.0
    %3202 = vmatpush2.msra.mxu0 0.0
    %3203 = vmatprep.subr.mxu0 0.0
    %3204 = vmatpush2.msra.mxu0 0.0
    %3205 = vmatprep.subr.mxu0 0.0
    %3206 = vmatpush2.msra.mxu0 0.0
    %3207 = vmatprep.subr.mxu0 0.0
    %3208 = vmatpush2.msra.mxu0 0.0
    %3209 = vmatprep.subr.mxu0 0.0
    %3210 = vmatpush2.msra.mxu0 0.0
    %3211 = vmatprep.subr.mxu0 0.0
    %3212 = vmatpush2.msra.mxu0 0.0
    %3213 = vmatprep.subr.mxu0 0.0
    %3214 = vmatpush2.msra.mxu0 0.0
    %3215 = vmatprep.subr.mxu0 0.0
    %3216 = vmatpush2.msra.mxu0 0.0
    %3217 = vmatprep.subr.mxu0 0.0
    %3218 = vmatpush2.msra.mxu0 0.0
    %3219 = vmatprep.subr.mxu0 0.0
    %3220 = vmatpush2.msra.mxu0 0.0
    %3221 = vmatprep.subr.mxu0 0.0
    %3222 = vmatpush2.msra.mxu0 0.0
    %3223 = vmatprep.mubr.f32.mxu0 0.0
    %3224 = vmatmul.mubr.f32.gmra.mxu0 %v3157
    %v3225 = vpop.f32.mrf.mxu0
    %v3226 = vadd.f32 %v3152, %v3225
    %v3227 = vpop.f32.mrf.mxu0
    %3228 = vdwg.mxu0
    %s3229 = scalar_lea.vmem [#allocation10], 16
    %3230 = vst [vmem:[%s3229] sm:$0xff] %v3226
    %v3231 = vsel %vm2695, %v3226, -1e+30
    %3232 = vmax.xlane.f32.xlu0 %v3231
    %v3233 = vpop.xlane.xlu0 %3232
    %vm3234 = vcmp.eq.f32.partialorder %v3231, %v3233
    %v3235 = vsel %vm3234, %v2189, 128.0
    %3236 = vmin.xlane.f32.xlu0 %v3235
    %v3237 = vpop.xlane.xlu0 %3236
    %vm3238 = vcmp.eq.f32.partialorder %v2189, %v3237
    %v3239 = vsel %vm3238, 1, 0
    %v3240 = vcvt.s32.f32 %v3239
    %v3241 = vld [vmem:[#allocation5] sm:$0xff]
    %v3242 = vld [vmem:[#allocation5 + $0x8] sm:$0xff]
    %v3243 = vld [vmem:[#allocation5 + $0x10] sm:$0xff]
    %v3244 = vld [vmem:[#allocation5 + $0x18] sm:$0xff]
    %v3245 = vld [vmem:[#allocation5 + $0x20] sm:$0xff]
    %v3246 = vld [vmem:[#allocation5 + $0x28] sm:$0xff]
    %v3247 = vld [vmem:[#allocation5 + $0x30] sm:$0xff]
    %v3248 = vld [vmem:[#allocation5 + $0x38] sm:$0xff]
    %v3250 = vsel %vm2160, %v3240, 0
    %3252 = vmatprep.subr.mxu0 0.0
    %3253 = vmatpush1.msra.mxu0 0.0
    %3254 = vmatprep.subr.mxu0 0.0
    %3255 = vmatpush1.msra.mxu0 0.0
    %3256 = vmatprep.subr.mxu0 0.0
    %3257 = vmatpush1.msra.mxu0 0.0
    %3258 = vmatprep.subr.mxu0 0.0
    %3259 = vmatpush1.msra.mxu0 0.0
    %3260 = vmatprep.subr.mxu0 0.0
    %3261 = vmatpush1.msra.mxu0 0.0
    %3262 = vmatprep.subr.mxu0 0.0
    %3263 = vmatpush1.msra.mxu0 0.0
    %3264 = vmatprep.subr.mxu0 0.0
    %3265 = vmatpush1.msra.mxu0 0.0
    %3266 = vmatprep.subr.mxu0 0.0
    %3267 = vmatpush1.msra.mxu0 0.0
    %3268 = vmatprep.subr.mxu0 0.0
    %3269 = vmatpush1.msra.mxu0 %v3248
    %3270 = vmatprep.subr.mxu0 0.0
    %3271 = vmatpush1.msra.mxu0 %v3247
    %3272 = vmatprep.subr.mxu0 0.0
    %3273 = vmatpush1.msra.mxu0 %v3246
    %3274 = vmatprep.subr.mxu0 0.0
    %3275 = vmatpush1.msra.mxu0 %v3245
    %3276 = vmatprep.subr.mxu0 0.0
    %3277 = vmatpush1.msra.mxu0 %v3244
    %3278 = vmatprep.subr.mxu0 0.0
    %3279 = vmatpush1.msra.mxu0 %v3243
    %3280 = vmatprep.subr.mxu0 0.0
    %3281 = vmatpush1.msra.mxu0 %v3242
    %3282 = vmatprep.subr.mxu0 0.0
    %3283 = vmatpush1.msra.mxu0 %v3241
    %3284 = vmatprep.subr.mxu0 0.0
    %3285 = vmatpush2.msra.mxu0 0.0
    %3286 = vmatprep.subr.mxu0 0.0
    %3287 = vmatpush2.msra.mxu0 0.0
    %3288 = vmatprep.subr.mxu0 0.0
    %3289 = vmatpush2.msra.mxu0 0.0
    %3290 = vmatprep.subr.mxu0 0.0
    %3291 = vmatpush2.msra.mxu0 0.0
    %3292 = vmatprep.subr.mxu0 0.0
    %3293 = vmatpush2.msra.mxu0 0.0
    %3294 = vmatprep.subr.mxu0 0.0
    %3295 = vmatpush2.msra.mxu0 0.0
    %3296 = vmatprep.subr.mxu0 0.0
    %3297 = vmatpush2.msra.mxu0 0.0
    %3298 = vmatprep.subr.mxu0 0.0
    %3299 = vmatpush2.msra.mxu0 0.0
    %3300 = vmatprep.subr.mxu0 0.0
    %3301 = vmatpush2.msra.mxu0 0.0
    %3302 = vmatprep.subr.mxu0 0.0
    %3303 = vmatpush2.msra.mxu0 0.0
    %3304 = vmatprep.subr.mxu0 0.0
    %3305 = vmatpush2.msra.mxu0 0.0
    %3306 = vmatprep.subr.mxu0 0.0
    %3307 = vmatpush2.msra.mxu0 0.0
    %3308 = vmatprep.subr.mxu0 0.0
    %3309 = vmatpush2.msra.mxu0 0.0
    %3310 = vmatprep.subr.mxu0 0.0
    %3311 = vmatpush2.msra.mxu0 0.0
    %3312 = vmatprep.subr.mxu0 0.0
    %3313 = vmatpush2.msra.mxu0 0.0
    %3314 = vmatprep.subr.mxu0 0.0
    %3315 = vmatpush2.msra.mxu0 0.0
    %3316 = vmatprep.mubr.f32.mxu0 0.0
    %3317 = vmatmul.mubr.f32.gmra.mxu0 %v3250
    %v3318 = vpop.f32.mrf.mxu0
    %v3319 = vadd.f32 0.0, %v3318
    %v3320 = vpop.f32.mrf.mxu0
    %3321 = vdwg.mxu0
    %s3322 = sld [smem:[#allocation7 + $0x2]]
    %p3323 = scmp.gt.s32.totalorder %s3322, 0
    %s3324 = scalar_select %p3323, 1, 0
    %s3325 = scvt.s32.f32 %s3324
    %s3326 = scalar_lea.vmem [#allocation4], 16
    %v3327 = vld [vmem:[%s3326] sm:$0xff]
    %v3328 = vstv %s3325
    %v3329 = vmul.f32 %v3328, %v3327
    %s3330 = ssub.f32 1.0, %s3325
    %v3331 = vstv %s3330
    %v3332 = vmul.f32 %v3331, %v3319
    %v3333 = vadd.f32 %v3329, %v3332
    %v3334 = vmul.f32 %v3142, %v2800
    %3336 = vrot.lane.b32.xlu0 %v3334, 32
    %v3337 = vpop.permute.xlu0 %3336
    %v3339 = vsel %vm265, %v3337, 0.0
    %3340 = vadd.xlane.f32.xlu0 %v3339
    %v3341 = vpop.xlane.xlu0 %3340
    %3342 = vxpose.xlu0.b32.start [1/16] %v3341, 128
    %3343 = vxpose.xlu0.b32.cont [2/16] 0.0, 128
    %3344 = vxpose.xlu0.b32.cont [3/16] 0.0, 128
    %3345 = vxpose.xlu0.b32.cont [4/16] 0.0, 128
    %3346 = vxpose.xlu0.b32.cont [5/16] 0.0, 128
    %3347 = vxpose.xlu0.b32.cont [6/16] 0.0, 128
    %3348 = vxpose.xlu0.b32.cont [7/16] 0.0, 128
    %3349 = vxpose.xlu0.b32.cont [8/16] 0.0, 128
    %3350 = vxpose.xlu0.b32.cont [9/16] 0.0, 128
    %3351 = vxpose.xlu0.b32.cont [10/16] 0.0, 128
    %3352 = vxpose.xlu0.b32.cont [11/16] 0.0, 128
    %3353 = vxpose.xlu0.b32.cont [12/16] 0.0, 128
    %3354 = vxpose.xlu0.b32.cont [13/16] 0.0, 128
    %3355 = vxpose.xlu0.b32.cont [14/16] 0.0, 128
    %3356 = vxpose.xlu0.b32.cont [15/16] 0.0, 128
    %3357 = vxpose.xlu0.b32.end [16/16] 0.0, 128
    %v3358 = vpop.trf.xlu0
    %v3359 = vpop.trf.xlu0
    %v3360 = vpop.trf.xlu0
    %v3361 = vpop.trf.xlu0
    %v3362 = vpop.trf.xlu0
    %v3363 = vpop.trf.xlu0
    %v3364 = vpop.trf.xlu0
    %v3365 = vpop.trf.xlu0
    %v3366 = vpop.trf.xlu0
    %v3367 = vpop.trf.xlu0
    %v3368 = vpop.trf.xlu0
    %v3369 = vpop.trf.xlu0
    %v3370 = vpop.trf.xlu0
    %v3371 = vpop.trf.xlu0
    %v3372 = vpop.trf.xlu0
    %v3373 = vpop.trf.xlu0
    %v3374 = vlaneseq
    %v3375 = vshrl.u32 %v3374, 7
    %v3376 = vsub.s32 0, %v3375
    %v3377 = vrot.slane %v3358, %v3376
    %v3378 = vadd.f32 %v3377, %v2291
    %v3379 = vadd.f32 %v3378, %v2301
    %v3380 = vmax.f32 %v3379, 0.0
    %v3381 = vsel %vm2305, %v3380, -inf
    %v3382 = vrot.slane %v3381, 4
    %v3383 = vmax.f32 %v3381, %v3382
    %v3384 = vrot.slane %v3383, 2
    %v3385 = vmax.f32 %v3383, %v3384
    %v3386 = vrot.slane %v3385, 1
    %v3387 = vmax.f32 %v3385, %v3386
    %v3388 = vsub.f32 %v3380, %v3387
    %v3389 = vmul.f32 %v3388, 1.442695
    %v3390 = vpow.pop %v3389
    %v3391 = vsel %vm2305, %v3390, 0.0
    %v3392 = vrot.slane %v3391, 4
    %v3393 = vadd.f32 %v3391, %v3392
    %v3394 = vrot.slane %v3393, 2
    %v3395 = vadd.f32 %v3393, %v3394
    %v3396 = vrot.slane %v3395, 1
    %v3397 = vadd.f32 %v3395, %v3396
    %v3398 = vrcp.pop %v3397
    %v3399 = vmul.f32 %v3390, %v3398
    %v3400 = vlaneseq
    %v3401 = vshrl.u32 %v3400, 7
    %v3402 = vsub.s32 0, %v3401
    %v3403 = vrot.slane %v3399, %v3402
    %3405 = vbcast.lane.b32.xlu0 %v3403, 256
    %v3406 = vpop.permute.xlu0 %3405
    %v3407 = vlaneseq
    %v3408 = vshrl.u32 %v3407, 7
    %v3409 = vsub.s32 1, %v3408
    %v3410 = vrot.slane %v3399, %v3409
    %3412 = vbcast.lane.b32.xlu0 %v3410, 256
    %v3413 = vpop.permute.xlu0 %3412
    %v3414 = vlaneseq
    %v3415 = vshrl.u32 %v3414, 7
    %v3416 = vsub.s32 2, %v3415
    %v3417 = vrot.slane %v3399, %v3416
    %3419 = vbcast.lane.b32.xlu0 %v3417, 256
    %v3420 = vpop.permute.xlu0 %3419
    %v3421 = vlaneseq
    %v3422 = vshrl.u32 %v3421, 7
    %v3423 = vsub.s32 3, %v3422
    %v3424 = vrot.slane %v3399, %v3423
    %3426 = vbcast.lane.b32.xlu0 %v3424, 256
    %v3427 = vpop.permute.xlu0 %3426
    %v3428 = vlaneseq
    %v3429 = vshrl.u32 %v3428, 7
    %v3430 = vsub.s32 4, %v3429
    %v3431 = vrot.slane %v3399, %v3430
    %3433 = vbcast.lane.b32.xlu0 %v3431, 256
    %v3434 = vpop.permute.xlu0 %3433
    %v3435 = vlaneseq
    %v3436 = vshrl.u32 %v3435, 7
    %v3437 = vsub.s32 5, %v3436
    %v3438 = vrot.slane %v3399, %v3437
    %3440 = vbcast.lane.b32.xlu0 %v3438, 256
    %v3441 = vpop.permute.xlu0 %3440
    %v3442 = vlaneseq
    %v3443 = vshrl.u32 %v3442, 7
    %v3444 = vsub.s32 6, %v3443
    %v3445 = vrot.slane %v3399, %v3444
    %3447 = vbcast.lane.b32.xlu0 %v3445, 256
    %v3448 = vpop.permute.xlu0 %3447
    %v3449 = vlaneseq
    %v3450 = vshrl.u32 %v3449, 7
    %v3451 = vsub.s32 7, %v3450
    %v3452 = vrot.slane %v3399, %v3451
    %3454 = vbcast.lane.b32.xlu0 %v3452, 256
    %v3455 = vpop.permute.xlu0 %3454
    %v3456 = vld [vmem:[#allocation3] sm:$0xff]
    %v3457 = vld [vmem:[#allocation3 + $0x8] sm:$0xff]
    %v3458 = vld [vmem:[#allocation3 + $0x10] sm:$0xff]
    %v3459 = vld [vmem:[#allocation3 + $0x18] sm:$0xff]
    %v3460 = vld [vmem:[#allocation3 + $0x20] sm:$0xff]
    %v3461 = vld [vmem:[#allocation3 + $0x28] sm:$0xff]
    %v3462 = vld [vmem:[#allocation3 + $0x30] sm:$0xff]
    %v3463 = vld [vmem:[#allocation3 + $0x38] sm:$0xff]
    %v3464 = vmul.f32 %v3406, %v3456
    %v3465 = vmul.f32 %v3413, %v3457
    %v3466 = vmul.f32 %v3420, %v3458
    %v3467 = vmul.f32 %v3427, %v3459
    %v3468 = vmul.f32 %v3434, %v3460
    %v3469 = vmul.f32 %v3441, %v3461
    %v3470 = vmul.f32 %v3448, %v3462
    %v3471 = vmul.f32 %v3455, %v3463
    %v3472 = vsel %vm2160, %v3464, 0.0
    %v3473 = vsel %vm2160, %v3465, 0.0
    %v3474 = vadd.f32 %v3472, %v3473
    %v3475 = vsel %vm2160, %v3466, 0.0
    %v3476 = vadd.f32 %v3474, %v3475
    %v3477 = vsel %vm2160, %v3467, 0.0
    %v3478 = vadd.f32 %v3476, %v3477
    %v3479 = vsel %vm2160, %v3468, 0.0
    %v3480 = vadd.f32 %v3478, %v3479
    %v3481 = vsel %vm2160, %v3469, 0.0
    %v3482 = vadd.f32 %v3480, %v3481
    %v3483 = vsel %vm2160, %v3470, 0.0
    %v3484 = vadd.f32 %v3482, %v3483
    %v3485 = vsel %vm2160, %v3471, 0.0
    %v3486 = vadd.f32 %v3484, %v3485
    %v3487 = vld [vmem:[%s13] sm:$0xff]
    %v3488 = vld [vmem:[%s13 + $0x8] sm:$0xff]
    %v3489 = vld [vmem:[%s13 + $0x10] sm:$0xff]
    %v3490 = vld [vmem:[%s13 + $0x18] sm:$0xff]
    %v3491 = vld [vmem:[%s13 + $0x20] sm:$0xff]
    %v3492 = vld [vmem:[%s13 + $0x28] sm:$0xff]
    %v3493 = vld [vmem:[%s13 + $0x30] sm:$0xff]
    %v3494 = vld [vmem:[%s13 + $0x38] sm:$0xff]
    %v3496 = vsel %vm2160, %v3486, 0
    %3498 = vmatprep.subr.mxu0 0.0
    %3499 = vmatpush1.msra.mxu0 0.0
    %3500 = vmatprep.subr.mxu0 0.0
    %3501 = vmatpush1.msra.mxu0 0.0
    %3502 = vmatprep.subr.mxu0 0.0
    %3503 = vmatpush1.msra.mxu0 0.0
    %3504 = vmatprep.subr.mxu0 0.0
    %3505 = vmatpush1.msra.mxu0 0.0
    %3506 = vmatprep.subr.mxu0 0.0
    %3507 = vmatpush1.msra.mxu0 0.0
    %3508 = vmatprep.subr.mxu0 0.0
    %3509 = vmatpush1.msra.mxu0 0.0
    %3510 = vmatprep.subr.mxu0 0.0
    %3511 = vmatpush1.msra.mxu0 0.0
    %3512 = vmatprep.subr.mxu0 0.0
    %3513 = vmatpush1.msra.mxu0 0.0
    %3514 = vmatprep.subr.mxu0 0.0
    %3515 = vmatpush1.msra.mxu0 %v3494
    %3516 = vmatprep.subr.mxu0 0.0
    %3517 = vmatpush1.msra.mxu0 %v3493
    %3518 = vmatprep.subr.mxu0 0.0
    %3519 = vmatpush1.msra.mxu0 %v3492
    %3520 = vmatprep.subr.mxu0 0.0
    %3521 = vmatpush1.msra.mxu0 %v3491
    %3522 = vmatprep.subr.mxu0 0.0
    %3523 = vmatpush1.msra.mxu0 %v3490
    %3524 = vmatprep.subr.mxu0 0.0
    %3525 = vmatpush1.msra.mxu0 %v3489
    %3526 = vmatprep.subr.mxu0 0.0
    %3527 = vmatpush1.msra.mxu0 %v3488
    %3528 = vmatprep.subr.mxu0 0.0
    %3529 = vmatpush1.msra.mxu0 %v3487
    %3530 = vmatprep.subr.mxu0 0.0
    %3531 = vmatpush2.msra.mxu0 0.0
    %3532 = vmatprep.subr.mxu0 0.0
    %3533 = vmatpush2.msra.mxu0 0.0
    %3534 = vmatprep.subr.mxu0 0.0
    %3535 = vmatpush2.msra.mxu0 0.0
    %3536 = vmatprep.subr.mxu0 0.0
    %3537 = vmatpush2.msra.mxu0 0.0
    %3538 = vmatprep.subr.mxu0 0.0
    %3539 = vmatpush2.msra.mxu0 0.0
    %3540 = vmatprep.subr.mxu0 0.0
    %3541 = vmatpush2.msra.mxu0 0.0
    %3542 = vmatprep.subr.mxu0 0.0
    %3543 = vmatpush2.msra.mxu0 0.0
    %3544 = vmatprep.subr.mxu0 0.0
    %3545 = vmatpush2.msra.mxu0 0.0
    %3546 = vmatprep.subr.mxu0 0.0
    %3547 = vmatpush2.msra.mxu0 0.0
    %3548 = vmatprep.subr.mxu0 0.0
    %3549 = vmatpush2.msra.mxu0 0.0
    %3550 = vmatprep.subr.mxu0 0.0
    %3551 = vmatpush2.msra.mxu0 0.0
    %3552 = vmatprep.subr.mxu0 0.0
    %3553 = vmatpush2.msra.mxu0 0.0
    %3554 = vmatprep.subr.mxu0 0.0
    %3555 = vmatpush2.msra.mxu0 0.0
    %3556 = vmatprep.subr.mxu0 0.0
    %3557 = vmatpush2.msra.mxu0 0.0
    %3558 = vmatprep.subr.mxu0 0.0
    %3559 = vmatpush2.msra.mxu0 0.0
    %3560 = vmatprep.subr.mxu0 0.0
    %3561 = vmatpush2.msra.mxu0 0.0
    %3562 = vmatprep.mubr.f32.mxu0 0.0
    %3563 = vmatmul.mubr.f32.gmra.mxu0 %v3496
    %v3564 = vpop.f32.mrf.mxu0
    %v3565 = vadd.f32 %v3333, %v3564
    %v3566 = vpop.f32.mrf.mxu0
    %3567 = vdwg.mxu0
    %v3568 = vld [vmem:[%s15] sm:$0xff]
    %v3569 = vld [vmem:[%s15 + $0x8] sm:$0xff]
    %v3570 = vld [vmem:[%s15 + $0x10] sm:$0xff]
    %v3571 = vld [vmem:[%s15 + $0x18] sm:$0xff]
    %3572 = vmatprep.subr.mxu0 0.0
    %3573 = vmatpush1.msra.mxu0 0.0
    %3574 = vmatprep.subr.mxu0 0.0
    %3575 = vmatpush1.msra.mxu0 0.0
    %3576 = vmatprep.subr.mxu0 0.0
    %3577 = vmatpush1.msra.mxu0 0.0
    %3578 = vmatprep.subr.mxu0 0.0
    %3579 = vmatpush1.msra.mxu0 0.0
    %3580 = vmatprep.subr.mxu0 0.0
    %3581 = vmatpush1.msra.mxu0 0.0
    %3582 = vmatprep.subr.mxu0 0.0
    %3583 = vmatpush1.msra.mxu0 0.0
    %3584 = vmatprep.subr.mxu0 0.0
    %3585 = vmatpush1.msra.mxu0 0.0
    %3586 = vmatprep.subr.mxu0 0.0
    %3587 = vmatpush1.msra.mxu0 0.0
    %3588 = vmatprep.subr.mxu0 0.0
    %3589 = vmatpush1.msra.mxu0 0.0
    %3590 = vmatprep.subr.mxu0 0.0
    %3591 = vmatpush1.msra.mxu0 0.0
    %3592 = vmatprep.subr.mxu0 0.0
    %3593 = vmatpush1.msra.mxu0 0.0
    %3594 = vmatprep.subr.mxu0 0.0
    %3595 = vmatpush1.msra.mxu0 0.0
    %3596 = vmatprep.subr.mxu0 0.0
    %3597 = vmatpush1.msra.mxu0 %v3571
    %3598 = vmatprep.subr.mxu0 0.0
    %3599 = vmatpush1.msra.mxu0 %v3570
    %3600 = vmatprep.subr.mxu0 0.0
    %3601 = vmatpush1.msra.mxu0 %v3569
    %3602 = vmatprep.subr.mxu0 0.0
    %3603 = vmatpush1.msra.mxu0 %v3568
    %3604 = vmatprep.subr.mxu0 0.0
    %3605 = vmatpush2.msra.mxu0 0.0
    %3606 = vmatprep.subr.mxu0 0.0
    %3607 = vmatpush2.msra.mxu0 0.0
    %3608 = vmatprep.subr.mxu0 0.0
    %3609 = vmatpush2.msra.mxu0 0.0
    %3610 = vmatprep.subr.mxu0 0.0
    %3611 = vmatpush2.msra.mxu0 0.0
    %3612 = vmatprep.subr.mxu0 0.0
    %3613 = vmatpush2.msra.mxu0 0.0
    %3614 = vmatprep.subr.mxu0 0.0
    %3615 = vmatpush2.msra.mxu0 0.0
    %3616 = vmatprep.subr.mxu0 0.0
    %3617 = vmatpush2.msra.mxu0 0.0
    %3618 = vmatprep.subr.mxu0 0.0
    %3619 = vmatpush2.msra.mxu0 0.0
    %3620 = vmatprep.subr.mxu0 0.0
    %3621 = vmatpush2.msra.mxu0 0.0
    %3622 = vmatprep.subr.mxu0 0.0
    %3623 = vmatpush2.msra.mxu0 0.0
    %3624 = vmatprep.subr.mxu0 0.0
    %3625 = vmatpush2.msra.mxu0 0.0
    %3626 = vmatprep.subr.mxu0 0.0
    %3627 = vmatpush2.msra.mxu0 0.0
    %3628 = vmatprep.subr.mxu0 0.0
    %3629 = vmatpush2.msra.mxu0 0.0
    %3630 = vmatprep.subr.mxu0 0.0
    %3631 = vmatpush2.msra.mxu0 0.0
    %3632 = vmatprep.subr.mxu0 0.0
    %3633 = vmatpush2.msra.mxu0 0.0
    %3634 = vmatprep.subr.mxu0 0.0
    %3635 = vmatpush2.msra.mxu0 0.0
    %3636 = vmatprep.mubr.f32.mxu0 0.0
    %3637 = vmatmul.mubr.f32.gmra.mxu0 %v3157
    %v3638 = vpop.f32.mrf.mxu0
    %v3639 = vadd.f32 0.0, %v3638
    %v3640 = vpop.f32.mrf.mxu0
    %3641 = vdwg.mxu0
    %v3642 = vadd.f32 %v3565, %v3639
    %v3643 = vld [vmem:[%s16] sm:$0x1]
    %v3645 = vlaneseq
    %v3646 = vshrl.u32 %v3645, 7
    %v3647 = vsub.s32 0, %v3646
    %v3648 = vrot.slane %v3643, %v3647
    %v3650 = vadd.f32 %v3642, %v3648
    %v3651 = vxor.u32 %v3650, 2147483648
    %v3652 = vmul.f32 %v3651, 1.442695
    %v3653 = vpow.pop %v3652
    %v3654 = vadd.f32 %v3653, 1.0
    %v3655 = vrcp.pop %v3654
    %v3656 = vmul.f32 1.0, %v3655
    %v3657 = vtanh.pop %v3650
    %v3658 = vmul.f32 %v3656, %v3136
    %3660 = vrot.lane.b32.xlu0 %v3657, 64
    %v3661 = vpop.permute.xlu0 %3660
    %v3663 = vmul.f32 %v3656, %v3661
    %3665 = vrot.lane.b32.xlu0 %v3663, 32
    %v3666 = vpop.permute.xlu0 %3665
    %v3668 = vadd.f32 %v3658, %v3666
    %v3669 = vtanh.pop %v3668
    %3671 = vrot.lane.b32.xlu0 %v3669, 64
    %v3672 = vpop.permute.xlu0 %3671
    %v3674 = vmul.f32 %v3656, %v3672
    %v3675 = vld [vmem:[%s17] sm:$0xff]
    %v3676 = vld [vmem:[%s17 + $0x8] sm:$0xff]
    %v3677 = vld [vmem:[%s17 + $0x10] sm:$0xff]
    %v3678 = vld [vmem:[%s17 + $0x18] sm:$0xff]
    %v3679 = vld [vmem:[%s18] sm:$0x1]
    %v3681 = vlaneseq
    %v3682 = vshrl.u32 %v3681, 7
    %v3683 = vsub.s32 0, %v3682
    %v3684 = vrot.slane %v3679, %v3683
    %3687 = vrot.lane.b32.xlu0 %v3674, 32
    %v3688 = vpop.permute.xlu0 %3687
    %v3689 = vsel %vm265, %v3688, 0
    %3691 = vmatprep.subr.mxu0 0.0
    %3692 = vmatpush1.msra.mxu0 0.0
    %3693 = vmatprep.subr.mxu0 0.0
    %3694 = vmatpush1.msra.mxu0 0.0
    %3695 = vmatprep.subr.mxu0 0.0
    %3696 = vmatpush1.msra.mxu0 0.0
    %3697 = vmatprep.subr.mxu0 0.0
    %3698 = vmatpush1.msra.mxu0 0.0
    %3699 = vmatprep.subr.mxu0 0.0
    %3700 = vmatpush1.msra.mxu0 0.0
    %3701 = vmatprep.subr.mxu0 0.0
    %3702 = vmatpush1.msra.mxu0 0.0
    %3703 = vmatprep.subr.mxu0 0.0
    %3704 = vmatpush1.msra.mxu0 0.0
    %3705 = vmatprep.subr.mxu0 0.0
    %3706 = vmatpush1.msra.mxu0 0.0
    %3707 = vmatprep.subr.mxu0 0.0
    %3708 = vmatpush1.msra.mxu0 0.0
    %3709 = vmatprep.subr.mxu0 0.0
    %3710 = vmatpush1.msra.mxu0 0.0
    %3711 = vmatprep.subr.mxu0 0.0
    %3712 = vmatpush1.msra.mxu0 0.0
    %3713 = vmatprep.subr.mxu0 0.0
    %3714 = vmatpush1.msra.mxu0 0.0
    %3715 = vmatprep.subr.mxu0 0.0
    %3716 = vmatpush1.msra.mxu0 %v3678
    %3717 = vmatprep.subr.mxu0 0.0
    %3718 = vmatpush1.msra.mxu0 %v3677
    %3719 = vmatprep.subr.mxu0 0.0
    %3720 = vmatpush1.msra.mxu0 %v3676
    %3721 = vmatprep.subr.mxu0 0.0
    %3722 = vmatpush1.msra.mxu0 %v3675
    %3723 = vmatprep.subr.mxu0 0.0
    %3724 = vmatpush2.msra.mxu0 0.0
    %3725 = vmatprep.subr.mxu0 0.0
    %3726 = vmatpush2.msra.mxu0 0.0
    %3727 = vmatprep.subr.mxu0 0.0
    %3728 = vmatpush2.msra.mxu0 0.0
    %3729 = vmatprep.subr.mxu0 0.0
    %3730 = vmatpush2.msra.mxu0 0.0
    %3731 = vmatprep.subr.mxu0 0.0
    %3732 = vmatpush2.msra.mxu0 0.0
    %3733 = vmatprep.subr.mxu0 0.0
    %3734 = vmatpush2.msra.mxu0 0.0
    %3735 = vmatprep.subr.mxu0 0.0
    %3736 = vmatpush2.msra.mxu0 0.0
    %3737 = vmatprep.subr.mxu0 0.0
    %3738 = vmatpush2.msra.mxu0 0.0
    %3739 = vmatprep.subr.mxu0 0.0
    %3740 = vmatpush2.msra.mxu0 0.0
    %3741 = vmatprep.subr.mxu0 0.0
    %3742 = vmatpush2.msra.mxu0 0.0
    %3743 = vmatprep.subr.mxu0 0.0
    %3744 = vmatpush2.msra.mxu0 0.0
    %3745 = vmatprep.subr.mxu0 0.0
    %3746 = vmatpush2.msra.mxu0 0.0
    %3747 = vmatprep.subr.mxu0 0.0
    %3748 = vmatpush2.msra.mxu0 0.0
    %3749 = vmatprep.subr.mxu0 0.0
    %3750 = vmatpush2.msra.mxu0 0.0
    %3751 = vmatprep.subr.mxu0 0.0
    %3752 = vmatpush2.msra.mxu0 0.0
    %3753 = vmatprep.subr.mxu0 0.0
    %3754 = vmatpush2.msra.mxu0 0.0
    %3755 = vmatprep.mubr.f32.mxu0 0.0
    %3756 = vmatmul.mubr.f32.gmra.mxu0 %v3689
    %v3757 = vpop.f32.mrf.mxu0
    %v3758 = vadd.f32 %v3684, %v3757
    %v3759 = vpop.f32.mrf.mxu0
    %3760 = vdwg.mxu0
    %s3761 = scalar_lea.vmem [#allocation10], 24
    %3762 = vst [vmem:[%s3761] sm:$0xff] %v3758
    %v3763 = vsel %vm2695, %v3758, -1e+30
    %3764 = vmax.xlane.f32.xlu0 %v3763
    %v3765 = vpop.xlane.xlu0 %3764
    %vm3766 = vcmp.eq.f32.partialorder %v3763, %v3765
    %v3767 = vsel %vm3766, %v2189, 128.0
    %3768 = vmin.xlane.f32.xlu0 %v3767
    %v3769 = vpop.xlane.xlu0 %3768
    %vm3770 = vcmp.eq.f32.partialorder %v2189, %v3769
    %v3771 = vsel %vm3770, 1, 0
    %v3772 = vcvt.s32.f32 %v3771
    %v3773 = vld [vmem:[#allocation5] sm:$0xff]
    %v3774 = vld [vmem:[#allocation5 + $0x8] sm:$0xff]
    %v3775 = vld [vmem:[#allocation5 + $0x10] sm:$0xff]
    %v3776 = vld [vmem:[#allocation5 + $0x18] sm:$0xff]
    %v3777 = vld [vmem:[#allocation5 + $0x20] sm:$0xff]
    %v3778 = vld [vmem:[#allocation5 + $0x28] sm:$0xff]
    %v3779 = vld [vmem:[#allocation5 + $0x30] sm:$0xff]
    %v3780 = vld [vmem:[#allocation5 + $0x38] sm:$0xff]
    %v3782 = vsel %vm2160, %v3772, 0
    %3784 = vmatprep.subr.mxu0 0.0
    %3785 = vmatpush1.msra.mxu0 0.0
    %3786 = vmatprep.subr.mxu0 0.0
    %3787 = vmatpush1.msra.mxu0 0.0
    %3788 = vmatprep.subr.mxu0 0.0
    %3789 = vmatpush1.msra.mxu0 0.0
    %3790 = vmatprep.subr.mxu0 0.0
    %3791 = vmatpush1.msra.mxu0 0.0
    %3792 = vmatprep.subr.mxu0 0.0
    %3793 = vmatpush1.msra.mxu0 0.0
    %3794 = vmatprep.subr.mxu0 0.0
    %3795 = vmatpush1.msra.mxu0 0.0
    %3796 = vmatprep.subr.mxu0 0.0
    %3797 = vmatpush1.msra.mxu0 0.0
    %3798 = vmatprep.subr.mxu0 0.0
    %3799 = vmatpush1.msra.mxu0 0.0
    %3800 = vmatprep.subr.mxu0 0.0
    %3801 = vmatpush1.msra.mxu0 %v3780
    %3802 = vmatprep.subr.mxu0 0.0
    %3803 = vmatpush1.msra.mxu0 %v3779
    %3804 = vmatprep.subr.mxu0 0.0
    %3805 = vmatpush1.msra.mxu0 %v3778
    %3806 = vmatprep.subr.mxu0 0.0
    %3807 = vmatpush1.msra.mxu0 %v3777
    %3808 = vmatprep.subr.mxu0 0.0
    %3809 = vmatpush1.msra.mxu0 %v3776
    %3810 = vmatprep.subr.mxu0 0.0
    %3811 = vmatpush1.msra.mxu0 %v3775
    %3812 = vmatprep.subr.mxu0 0.0
    %3813 = vmatpush1.msra.mxu0 %v3774
    %3814 = vmatprep.subr.mxu0 0.0
    %3815 = vmatpush1.msra.mxu0 %v3773
    %3816 = vmatprep.subr.mxu0 0.0
    %3817 = vmatpush2.msra.mxu0 0.0
    %3818 = vmatprep.subr.mxu0 0.0
    %3819 = vmatpush2.msra.mxu0 0.0
    %3820 = vmatprep.subr.mxu0 0.0
    %3821 = vmatpush2.msra.mxu0 0.0
    %3822 = vmatprep.subr.mxu0 0.0
    %3823 = vmatpush2.msra.mxu0 0.0
    %3824 = vmatprep.subr.mxu0 0.0
    %3825 = vmatpush2.msra.mxu0 0.0
    %3826 = vmatprep.subr.mxu0 0.0
    %3827 = vmatpush2.msra.mxu0 0.0
    %3828 = vmatprep.subr.mxu0 0.0
    %3829 = vmatpush2.msra.mxu0 0.0
    %3830 = vmatprep.subr.mxu0 0.0
    %3831 = vmatpush2.msra.mxu0 0.0
    %3832 = vmatprep.subr.mxu0 0.0
    %3833 = vmatpush2.msra.mxu0 0.0
    %3834 = vmatprep.subr.mxu0 0.0
    %3835 = vmatpush2.msra.mxu0 0.0
    %3836 = vmatprep.subr.mxu0 0.0
    %3837 = vmatpush2.msra.mxu0 0.0
    %3838 = vmatprep.subr.mxu0 0.0
    %3839 = vmatpush2.msra.mxu0 0.0
    %3840 = vmatprep.subr.mxu0 0.0
    %3841 = vmatpush2.msra.mxu0 0.0
    %3842 = vmatprep.subr.mxu0 0.0
    %3843 = vmatpush2.msra.mxu0 0.0
    %3844 = vmatprep.subr.mxu0 0.0
    %3845 = vmatpush2.msra.mxu0 0.0
    %3846 = vmatprep.subr.mxu0 0.0
    %3847 = vmatpush2.msra.mxu0 0.0
    %3848 = vmatprep.mubr.f32.mxu0 0.0
    %3849 = vmatmul.mubr.f32.gmra.mxu0 %v3782
    %v3850 = vpop.f32.mrf.mxu0
    %v3851 = vadd.f32 0.0, %v3850
    %v3852 = vpop.f32.mrf.mxu0
    %3853 = vdwg.mxu0
    %s3854 = sld [smem:[#allocation7 + $0x3]]
    %p3855 = scmp.gt.s32.totalorder %s3854, 0
    %s3856 = scalar_select %p3855, 1, 0
    %s3857 = scvt.s32.f32 %s3856
    %s3858 = scalar_lea.vmem [#allocation4], 24
    %v3859 = vld [vmem:[%s3858] sm:$0xff]
    %v3860 = vstv %s3857
    %v3861 = vmul.f32 %v3860, %v3859
    %s3862 = ssub.f32 1.0, %s3857
    %v3863 = vstv %s3862
    %v3864 = vmul.f32 %v3863, %v3851
    %v3865 = vadd.f32 %v3861, %v3864
    %v3866 = vmul.f32 %v3674, %v2800
    %3868 = vrot.lane.b32.xlu0 %v3866, 32
    %v3869 = vpop.permute.xlu0 %3868
    %v3871 = vsel %vm265, %v3869, 0.0
    %3872 = vadd.xlane.f32.xlu0 %v3871
    %v3873 = vpop.xlane.xlu0 %3872
    %3874 = vxpose.xlu0.b32.start [1/16] %v3873, 128
    %3875 = vxpose.xlu0.b32.cont [2/16] 0.0, 128
    %3876 = vxpose.xlu0.b32.cont [3/16] 0.0, 128
    %3877 = vxpose.xlu0.b32.cont [4/16] 0.0, 128
    %3878 = vxpose.xlu0.b32.cont [5/16] 0.0, 128
    %3879 = vxpose.xlu0.b32.cont [6/16] 0.0, 128
    %3880 = vxpose.xlu0.b32.cont [7/16] 0.0, 128
    %3881 = vxpose.xlu0.b32.cont [8/16] 0.0, 128
    %3882 = vxpose.xlu0.b32.cont [9/16] 0.0, 128
    %3883 = vxpose.xlu0.b32.cont [10/16] 0.0, 128
    %3884 = vxpose.xlu0.b32.cont [11/16] 0.0, 128
    %3885 = vxpose.xlu0.b32.cont [12/16] 0.0, 128
    %3886 = vxpose.xlu0.b32.cont [13/16] 0.0, 128
    %3887 = vxpose.xlu0.b32.cont [14/16] 0.0, 128
    %3888 = vxpose.xlu0.b32.cont [15/16] 0.0, 128
    %3889 = vxpose.xlu0.b32.end [16/16] 0.0, 128
    %v3890 = vpop.trf.xlu0
    %v3891 = vpop.trf.xlu0
    %v3892 = vpop.trf.xlu0
    %v3893 = vpop.trf.xlu0
    %v3894 = vpop.trf.xlu0
    %v3895 = vpop.trf.xlu0
    %v3896 = vpop.trf.xlu0
    %v3897 = vpop.trf.xlu0
    %v3898 = vpop.trf.xlu0
    %v3899 = vpop.trf.xlu0
    %v3900 = vpop.trf.xlu0
    %v3901 = vpop.trf.xlu0
    %v3902 = vpop.trf.xlu0
    %v3903 = vpop.trf.xlu0
    %v3904 = vpop.trf.xlu0
    %v3905 = vpop.trf.xlu0
    %v3906 = vlaneseq
    %v3907 = vshrl.u32 %v3906, 7
    %v3908 = vsub.s32 0, %v3907
    %v3909 = vrot.slane %v3890, %v3908
    %v3910 = vadd.f32 %v3909, %v2291
    %v3911 = vadd.f32 %v3910, %v2301
    %v3912 = vmax.f32 %v3911, 0.0
    %v3913 = vsel %vm2305, %v3912, -inf
    %v3914 = vrot.slane %v3913, 4
    %v3915 = vmax.f32 %v3913, %v3914
    %v3916 = vrot.slane %v3915, 2
    %v3917 = vmax.f32 %v3915, %v3916
    %v3918 = vrot.slane %v3917, 1
    %v3919 = vmax.f32 %v3917, %v3918
    %v3920 = vsub.f32 %v3912, %v3919
    %v3921 = vmul.f32 %v3920, 1.442695
    %v3922 = vpow.pop %v3921
    %v3923 = vsel %vm2305, %v3922, 0.0
    %v3924 = vrot.slane %v3923, 4
    %v3925 = vadd.f32 %v3923, %v3924
    %v3926 = vrot.slane %v3925, 2
    %v3927 = vadd.f32 %v3925, %v3926
    %v3928 = vrot.slane %v3927, 1
    %v3929 = vadd.f32 %v3927, %v3928
    %v3930 = vrcp.pop %v3929
    %v3931 = vmul.f32 %v3922, %v3930
    %v3932 = vlaneseq
    %v3933 = vshrl.u32 %v3932, 7
    %v3934 = vsub.s32 0, %v3933
    %v3935 = vrot.slane %v3931, %v3934
    %3937 = vbcast.lane.b32.xlu0 %v3935, 256
    %v3938 = vpop.permute.xlu0 %3937
    %v3939 = vlaneseq
    %v3940 = vshrl.u32 %v3939, 7
    %v3941 = vsub.s32 1, %v3940
    %v3942 = vrot.slane %v3931, %v3941
    %3944 = vbcast.lane.b32.xlu0 %v3942, 256
    %v3945 = vpop.permute.xlu0 %3944
    %v3946 = vlaneseq
    %v3947 = vshrl.u32 %v3946, 7
    %v3948 = vsub.s32 2, %v3947
    %v3949 = vrot.slane %v3931, %v3948
    %3951 = vbcast.lane.b32.xlu0 %v3949, 256
    %v3952 = vpop.permute.xlu0 %3951
    %v3953 = vlaneseq
    %v3954 = vshrl.u32 %v3953, 7
    %v3955 = vsub.s32 3, %v3954
    %v3956 = vrot.slane %v3931, %v3955
    %3958 = vbcast.lane.b32.xlu0 %v3956, 256
    %v3959 = vpop.permute.xlu0 %3958
    %v3960 = vlaneseq
    %v3961 = vshrl.u32 %v3960, 7
    %v3962 = vsub.s32 4, %v3961
    %v3963 = vrot.slane %v3931, %v3962
    %3965 = vbcast.lane.b32.xlu0 %v3963, 256
    %v3966 = vpop.permute.xlu0 %3965
    %v3967 = vlaneseq
    %v3968 = vshrl.u32 %v3967, 7
    %v3969 = vsub.s32 5, %v3968
    %v3970 = vrot.slane %v3931, %v3969
    %3972 = vbcast.lane.b32.xlu0 %v3970, 256
    %v3973 = vpop.permute.xlu0 %3972
    %v3974 = vlaneseq
    %v3975 = vshrl.u32 %v3974, 7
    %v3976 = vsub.s32 6, %v3975
    %v3977 = vrot.slane %v3931, %v3976
    %3979 = vbcast.lane.b32.xlu0 %v3977, 256
    %v3980 = vpop.permute.xlu0 %3979
    %v3981 = vlaneseq
    %v3982 = vshrl.u32 %v3981, 7
    %v3983 = vsub.s32 7, %v3982
    %v3984 = vrot.slane %v3931, %v3983
    %3986 = vbcast.lane.b32.xlu0 %v3984, 256
    %v3987 = vpop.permute.xlu0 %3986
    %v3988 = vld [vmem:[#allocation3] sm:$0xff]
    %v3989 = vld [vmem:[#allocation3 + $0x8] sm:$0xff]
    %v3990 = vld [vmem:[#allocation3 + $0x10] sm:$0xff]
    %v3991 = vld [vmem:[#allocation3 + $0x18] sm:$0xff]
    %v3992 = vld [vmem:[#allocation3 + $0x20] sm:$0xff]
    %v3993 = vld [vmem:[#allocation3 + $0x28] sm:$0xff]
    %v3994 = vld [vmem:[#allocation3 + $0x30] sm:$0xff]
    %v3995 = vld [vmem:[#allocation3 + $0x38] sm:$0xff]
    %v3996 = vmul.f32 %v3938, %v3988
    %v3997 = vmul.f32 %v3945, %v3989
    %v3998 = vmul.f32 %v3952, %v3990
    %v3999 = vmul.f32 %v3959, %v3991
    %v4000 = vmul.f32 %v3966, %v3992
    %v4001 = vmul.f32 %v3973, %v3993
    %v4002 = vmul.f32 %v3980, %v3994
    %v4003 = vmul.f32 %v3987, %v3995
    %v4004 = vsel %vm2160, %v3996, 0.0
    %v4005 = vsel %vm2160, %v3997, 0.0
    %v4006 = vadd.f32 %v4004, %v4005
    %v4007 = vsel %vm2160, %v3998, 0.0
    %v4008 = vadd.f32 %v4006, %v4007
    %v4009 = vsel %vm2160, %v3999, 0.0
    %v4010 = vadd.f32 %v4008, %v4009
    %v4011 = vsel %vm2160, %v4000, 0.0
    %v4012 = vadd.f32 %v4010, %v4011
    %v4013 = vsel %vm2160, %v4001, 0.0
    %v4014 = vadd.f32 %v4012, %v4013
    %v4015 = vsel %vm2160, %v4002, 0.0
    %v4016 = vadd.f32 %v4014, %v4015
    %v4017 = vsel %vm2160, %v4003, 0.0
    %v4018 = vadd.f32 %v4016, %v4017
    %v4019 = vld [vmem:[%s13] sm:$0xff]
    %v4020 = vld [vmem:[%s13 + $0x8] sm:$0xff]
    %v4021 = vld [vmem:[%s13 + $0x10] sm:$0xff]
    %v4022 = vld [vmem:[%s13 + $0x18] sm:$0xff]
    %v4023 = vld [vmem:[%s13 + $0x20] sm:$0xff]
    %v4024 = vld [vmem:[%s13 + $0x28] sm:$0xff]
    %v4025 = vld [vmem:[%s13 + $0x30] sm:$0xff]
    %v4026 = vld [vmem:[%s13 + $0x38] sm:$0xff]
    %v4028 = vsel %vm2160, %v4018, 0
    %4030 = vmatprep.subr.mxu0 0.0
    %4031 = vmatpush1.msra.mxu0 0.0
    %4032 = vmatprep.subr.mxu0 0.0
    %4033 = vmatpush1.msra.mxu0 0.0
    %4034 = vmatprep.subr.mxu0 0.0
    %4035 = vmatpush1.msra.mxu0 0.0
    %4036 = vmatprep.subr.mxu0 0.0
    %4037 = vmatpush1.msra.mxu0 0.0
    %4038 = vmatprep.subr.mxu0 0.0
    %4039 = vmatpush1.msra.mxu0 0.0
    %4040 = vmatprep.subr.mxu0 0.0
    %4041 = vmatpush1.msra.mxu0 0.0
    %4042 = vmatprep.subr.mxu0 0.0
    %4043 = vmatpush1.msra.mxu0 0.0
    %4044 = vmatprep.subr.mxu0 0.0
    %4045 = vmatpush1.msra.mxu0 0.0
    %4046 = vmatprep.subr.mxu0 0.0
    %4047 = vmatpush1.msra.mxu0 %v4026
    %4048 = vmatprep.subr.mxu0 0.0
    %4049 = vmatpush1.msra.mxu0 %v4025
    %4050 = vmatprep.subr.mxu0 0.0
    %4051 = vmatpush1.msra.mxu0 %v4024
    %4052 = vmatprep.subr.mxu0 0.0
    %4053 = vmatpush1.msra.mxu0 %v4023
    %4054 = vmatprep.subr.mxu0 0.0
    %4055 = vmatpush1.msra.mxu0 %v4022
    %4056 = vmatprep.subr.mxu0 0.0
    %4057 = vmatpush1.msra.mxu0 %v4021
    %4058 = vmatprep.subr.mxu0 0.0
    %4059 = vmatpush1.msra.mxu0 %v4020
    %4060 = vmatprep.subr.mxu0 0.0
    %4061 = vmatpush1.msra.mxu0 %v4019
    %4062 = vmatprep.subr.mxu0 0.0
    %4063 = vmatpush2.msra.mxu0 0.0
    %4064 = vmatprep.subr.mxu0 0.0
    %4065 = vmatpush2.msra.mxu0 0.0
    %4066 = vmatprep.subr.mxu0 0.0
    %4067 = vmatpush2.msra.mxu0 0.0
    %4068 = vmatprep.subr.mxu0 0.0
    %4069 = vmatpush2.msra.mxu0 0.0
    %4070 = vmatprep.subr.mxu0 0.0
    %4071 = vmatpush2.msra.mxu0 0.0
    %4072 = vmatprep.subr.mxu0 0.0
    %4073 = vmatpush2.msra.mxu0 0.0
    %4074 = vmatprep.subr.mxu0 0.0
    %4075 = vmatpush2.msra.mxu0 0.0
    %4076 = vmatprep.subr.mxu0 0.0
    %4077 = vmatpush2.msra.mxu0 0.0
    %4078 = vmatprep.subr.mxu0 0.0
    %4079 = vmatpush2.msra.mxu0 0.0
    %4080 = vmatprep.subr.mxu0 0.0
    %4081 = vmatpush2.msra.mxu0 0.0
    %4082 = vmatprep.subr.mxu0 0.0
    %4083 = vmatpush2.msra.mxu0 0.0
    %4084 = vmatprep.subr.mxu0 0.0
    %4085 = vmatpush2.msra.mxu0 0.0
    %4086 = vmatprep.subr.mxu0 0.0
    %4087 = vmatpush2.msra.mxu0 0.0
    %4088 = vmatprep.subr.mxu0 0.0
    %4089 = vmatpush2.msra.mxu0 0.0
    %4090 = vmatprep.subr.mxu0 0.0
    %4091 = vmatpush2.msra.mxu0 0.0
    %4092 = vmatprep.subr.mxu0 0.0
    %4093 = vmatpush2.msra.mxu0 0.0
    %4094 = vmatprep.mubr.f32.mxu0 0.0
    %4095 = vmatmul.mubr.f32.gmra.mxu0 %v4028
    %v4096 = vpop.f32.mrf.mxu0
    %v4097 = vadd.f32 %v3865, %v4096
    %v4098 = vpop.f32.mrf.mxu0
    %4099 = vdwg.mxu0
    %v4100 = vld [vmem:[%s15] sm:$0xff]
    %v4101 = vld [vmem:[%s15 + $0x8] sm:$0xff]
    %v4102 = vld [vmem:[%s15 + $0x10] sm:$0xff]
    %v4103 = vld [vmem:[%s15 + $0x18] sm:$0xff]
    %4104 = vmatprep.subr.mxu0 0.0
    %4105 = vmatpush1.msra.mxu0 0.0
    %4106 = vmatprep.subr.mxu0 0.0
    %4107 = vmatpush1.msra.mxu0 0.0
    %4108 = vmatprep.subr.mxu0 0.0
    %4109 = vmatpush1.msra.mxu0 0.0
    %4110 = vmatprep.subr.mxu0 0.0
    %4111 = vmatpush1.msra.mxu0 0.0
    %4112 = vmatprep.subr.mxu0 0.0
    %4113 = vmatpush1.msra.mxu0 0.0
    %4114 = vmatprep.subr.mxu0 0.0
    %4115 = vmatpush1.msra.mxu0 0.0
    %4116 = vmatprep.subr.mxu0 0.0
    %4117 = vmatpush1.msra.mxu0 0.0
    %4118 = vmatprep.subr.mxu0 0.0
    %4119 = vmatpush1.msra.mxu0 0.0
    %4120 = vmatprep.subr.mxu0 0.0
    %4121 = vmatpush1.msra.mxu0 0.0
    %4122 = vmatprep.subr.mxu0 0.0
    %4123 = vmatpush1.msra.mxu0 0.0
    %4124 = vmatprep.subr.mxu0 0.0
    %4125 = vmatpush1.msra.mxu0 0.0
    %4126 = vmatprep.subr.mxu0 0.0
    %4127 = vmatpush1.msra.mxu0 0.0
    %4128 = vmatprep.subr.mxu0 0.0
    %4129 = vmatpush1.msra.mxu0 %v4103
    %4130 = vmatprep.subr.mxu0 0.0
    %4131 = vmatpush1.msra.mxu0 %v4102
    %4132 = vmatprep.subr.mxu0 0.0
    %4133 = vmatpush1.msra.mxu0 %v4101
    %4134 = vmatprep.subr.mxu0 0.0
    %4135 = vmatpush1.msra.mxu0 %v4100
    %4136 = vmatprep.subr.mxu0 0.0
    %4137 = vmatpush2.msra.mxu0 0.0
    %4138 = vmatprep.subr.mxu0 0.0
    %4139 = vmatpush2.msra.mxu0 0.0
    %4140 = vmatprep.subr.mxu0 0.0
    %4141 = vmatpush2.msra.mxu0 0.0
    %4142 = vmatprep.subr.mxu0 0.0
    %4143 = vmatpush2.msra.mxu0 0.0
    %4144 = vmatprep.subr.mxu0 0.0
    %4145 = vmatpush2.msra.mxu0 0.0
    %4146 = vmatprep.subr.mxu0 0.0
    %4147 = vmatpush2.msra.mxu0 0.0
    %4148 = vmatprep.subr.mxu0 0.0
    %4149 = vmatpush2.msra.mxu0 0.0
    %4150 = vmatprep.subr.mxu0 0.0
    %4151 = vmatpush2.msra.mxu0 0.0
    %4152 = vmatprep.subr.mxu0 0.0
    %4153 = vmatpush2.msra.mxu0 0.0
    %4154 = vmatprep.subr.mxu0 0.0
    %4155 = vmatpush2.msra.mxu0 0.0
    %4156 = vmatprep.subr.mxu0 0.0
    %4157 = vmatpush2.msra.mxu0 0.0
    %4158 = vmatprep.subr.mxu0 0.0
    %4159 = vmatpush2.msra.mxu0 0.0
    %4160 = vmatprep.subr.mxu0 0.0
    %4161 = vmatpush2.msra.mxu0 0.0
    %4162 = vmatprep.subr.mxu0 0.0
    %4163 = vmatpush2.msra.mxu0 0.0
    %4164 = vmatprep.subr.mxu0 0.0
    %4165 = vmatpush2.msra.mxu0 0.0
    %4166 = vmatprep.subr.mxu0 0.0
    %4167 = vmatpush2.msra.mxu0 0.0
    %4168 = vmatprep.mubr.f32.mxu0 0.0
    %4169 = vmatmul.mubr.f32.gmra.mxu0 %v3689
    %v4170 = vpop.f32.mrf.mxu0
    %v4171 = vadd.f32 0.0, %v4170
    %v4172 = vpop.f32.mrf.mxu0
    %4173 = vdwg.mxu0
    %v4174 = vadd.f32 %v4097, %v4171
    %v4175 = vld [vmem:[%s16] sm:$0x1]
    %v4177 = vlaneseq
    %v4178 = vshrl.u32 %v4177, 7
    %v4179 = vsub.s32 0, %v4178
    %v4180 = vrot.slane %v4175, %v4179
    %v4182 = vadd.f32 %v4174, %v4180
    %v4183 = vxor.u32 %v4182, 2147483648
    %v4184 = vmul.f32 %v4183, 1.442695
    %v4185 = vpow.pop %v4184
    %v4186 = vadd.f32 %v4185, 1.0
    %v4187 = vrcp.pop %v4186
    %v4188 = vmul.f32 1.0, %v4187
    %v4189 = vtanh.pop %v4182
    %v4190 = vmul.f32 %v4188, %v3668
    %4192 = vrot.lane.b32.xlu0 %v4189, 64
    %v4193 = vpop.permute.xlu0 %4192
    %v4195 = vmul.f32 %v4188, %v4193
    %4197 = vrot.lane.b32.xlu0 %v4195, 32
    %v4198 = vpop.permute.xlu0 %4197
    %v4200 = vadd.f32 %v4190, %v4198
    %v4201 = vtanh.pop %v4200
    %4203 = vrot.lane.b32.xlu0 %v4201, 64
    %v4204 = vpop.permute.xlu0 %4203
    %v4206 = vmul.f32 %v4188, %v4204
    %v4207 = vld [vmem:[%s17] sm:$0xff]
    %v4208 = vld [vmem:[%s17 + $0x8] sm:$0xff]
    %v4209 = vld [vmem:[%s17 + $0x10] sm:$0xff]
    %v4210 = vld [vmem:[%s17 + $0x18] sm:$0xff]
    %v4211 = vld [vmem:[%s18] sm:$0x1]
    %v4213 = vlaneseq
    %v4214 = vshrl.u32 %v4213, 7
    %v4215 = vsub.s32 0, %v4214
    %v4216 = vrot.slane %v4211, %v4215
    %4219 = vrot.lane.b32.xlu0 %v4206, 32
    %v4220 = vpop.permute.xlu0 %4219
    %v4221 = vsel %vm265, %v4220, 0
    %4223 = vmatprep.subr.mxu0 0.0
    %4224 = vmatpush1.msra.mxu0 0.0
    %4225 = vmatprep.subr.mxu0 0.0
    %4226 = vmatpush1.msra.mxu0 0.0
    %4227 = vmatprep.subr.mxu0 0.0
    %4228 = vmatpush1.msra.mxu0 0.0
    %4229 = vmatprep.subr.mxu0 0.0
    %4230 = vmatpush1.msra.mxu0 0.0
    %4231 = vmatprep.subr.mxu0 0.0
    %4232 = vmatpush1.msra.mxu0 0.0
    %4233 = vmatprep.subr.mxu0 0.0
    %4234 = vmatpush1.msra.mxu0 0.0
    %4235 = vmatprep.subr.mxu0 0.0
    %4236 = vmatpush1.msra.mxu0 0.0
    %4237 = vmatprep.subr.mxu0 0.0
    %4238 = vmatpush1.msra.mxu0 0.0
    %4239 = vmatprep.subr.mxu0 0.0
    %4240 = vmatpush1.msra.mxu0 0.0
    %4241 = vmatprep.subr.mxu0 0.0
    %4242 = vmatpush1.msra.mxu0 0.0
    %4243 = vmatprep.subr.mxu0 0.0
    %4244 = vmatpush1.msra.mxu0 0.0
    %4245 = vmatprep.subr.mxu0 0.0
    %4246 = vmatpush1.msra.mxu0 0.0
    %4247 = vmatprep.subr.mxu0 0.0
    %4248 = vmatpush1.msra.mxu0 %v4210
    %4249 = vmatprep.subr.mxu0 0.0
    %4250 = vmatpush1.msra.mxu0 %v4209
    %4251 = vmatprep.subr.mxu0 0.0
    %4252 = vmatpush1.msra.mxu0 %v4208
    %4253 = vmatprep.subr.mxu0 0.0
    %4254 = vmatpush1.msra.mxu0 %v4207
    %4255 = vmatprep.subr.mxu0 0.0
    %4256 = vmatpush2.msra.mxu0 0.0
    %4257 = vmatprep.subr.mxu0 0.0
    %4258 = vmatpush2.msra.mxu0 0.0
    %4259 = vmatprep.subr.mxu0 0.0
    %4260 = vmatpush2.msra.mxu0 0.0
    %4261 = vmatprep.subr.mxu0 0.0
    %4262 = vmatpush2.msra.mxu0 0.0
    %4263 = vmatprep.subr.mxu0 0.0
    %4264 = vmatpush2.msra.mxu0 0.0
    %4265 = vmatprep.subr.mxu0 0.0
    %4266 = vmatpush2.msra.mxu0 0.0
    %4267 = vmatprep.subr.mxu0 0.0
    %4268 = vmatpush2.msra.mxu0 0.0
    %4269 = vmatprep.subr.mxu0 0.0
    %4270 = vmatpush2.msra.mxu0 0.0
    %4271 = vmatprep.subr.mxu0 0.0
    %4272 = vmatpush2.msra.mxu0 0.0
    %4273 = vmatprep.subr.mxu0 0.0
    %4274 = vmatpush2.msra.mxu0 0.0
    %4275 = vmatprep.subr.mxu0 0.0
    %4276 = vmatpush2.msra.mxu0 0.0
    %4277 = vmatprep.subr.mxu0 0.0
    %4278 = vmatpush2.msra.mxu0 0.0
    %4279 = vmatprep.subr.mxu0 0.0
    %4280 = vmatpush2.msra.mxu0 0.0
    %4281 = vmatprep.subr.mxu0 0.0
    %4282 = vmatpush2.msra.mxu0 0.0
    %4283 = vmatprep.subr.mxu0 0.0
    %4284 = vmatpush2.msra.mxu0 0.0
    %4285 = vmatprep.subr.mxu0 0.0
    %4286 = vmatpush2.msra.mxu0 0.0
    %4287 = vmatprep.mubr.f32.mxu0 0.0
    %4288 = vmatmul.mubr.f32.gmra.mxu0 %v4221
    %v4289 = vpop.f32.mrf.mxu0
    %v4290 = vadd.f32 %v4216, %v4289
    %v4291 = vpop.f32.mrf.mxu0
    %4292 = vdwg.mxu0
    %s4293 = scalar_lea.vmem [#allocation10], 32
    %4294 = vst [vmem:[%s4293] sm:$0xff] %v4290
    %v4295 = vsel %vm2695, %v4290, -1e+30
    %4296 = vmax.xlane.f32.xlu0 %v4295
    %v4297 = vpop.xlane.xlu0 %4296
    %vm4298 = vcmp.eq.f32.partialorder %v4295, %v4297
    %v4299 = vsel %vm4298, %v2189, 128.0
    %4300 = vmin.xlane.f32.xlu0 %v4299
    %v4301 = vpop.xlane.xlu0 %4300
    %vm4302 = vcmp.eq.f32.partialorder %v2189, %v4301
    %v4303 = vsel %vm4302, 1, 0
    %v4304 = vcvt.s32.f32 %v4303
    %v4305 = vld [vmem:[#allocation5] sm:$0xff]
    %v4306 = vld [vmem:[#allocation5 + $0x8] sm:$0xff]
    %v4307 = vld [vmem:[#allocation5 + $0x10] sm:$0xff]
    %v4308 = vld [vmem:[#allocation5 + $0x18] sm:$0xff]
    %v4309 = vld [vmem:[#allocation5 + $0x20] sm:$0xff]
    %v4310 = vld [vmem:[#allocation5 + $0x28] sm:$0xff]
    %v4311 = vld [vmem:[#allocation5 + $0x30] sm:$0xff]
    %v4312 = vld [vmem:[#allocation5 + $0x38] sm:$0xff]
    %v4314 = vsel %vm2160, %v4304, 0
    %4316 = vmatprep.subr.mxu0 0.0
    %4317 = vmatpush1.msra.mxu0 0.0
    %4318 = vmatprep.subr.mxu0 0.0
    %4319 = vmatpush1.msra.mxu0 0.0
    %4320 = vmatprep.subr.mxu0 0.0
    %4321 = vmatpush1.msra.mxu0 0.0
    %4322 = vmatprep.subr.mxu0 0.0
    %4323 = vmatpush1.msra.mxu0 0.0
    %4324 = vmatprep.subr.mxu0 0.0
    %4325 = vmatpush1.msra.mxu0 0.0
    %4326 = vmatprep.subr.mxu0 0.0
    %4327 = vmatpush1.msra.mxu0 0.0
    %4328 = vmatprep.subr.mxu0 0.0
    %4329 = vmatpush1.msra.mxu0 0.0
    %4330 = vmatprep.subr.mxu0 0.0
    %4331 = vmatpush1.msra.mxu0 0.0
    %4332 = vmatprep.subr.mxu0 0.0
    %4333 = vmatpush1.msra.mxu0 %v4312
    %4334 = vmatprep.subr.mxu0 0.0
    %4335 = vmatpush1.msra.mxu0 %v4311
    %4336 = vmatprep.subr.mxu0 0.0
    %4337 = vmatpush1.msra.mxu0 %v4310
    %4338 = vmatprep.subr.mxu0 0.0
    %4339 = vmatpush1.msra.mxu0 %v4309
    %4340 = vmatprep.subr.mxu0 0.0
    %4341 = vmatpush1.msra.mxu0 %v4308
    %4342 = vmatprep.subr.mxu0 0.0
    %4343 = vmatpush1.msra.mxu0 %v4307
    %4344 = vmatprep.subr.mxu0 0.0
    %4345 = vmatpush1.msra.mxu0 %v4306
    %4346 = vmatprep.subr.mxu0 0.0
    %4347 = vmatpush1.msra.mxu0 %v4305
    %4348 = vmatprep.subr.mxu0 0.0
    %4349 = vmatpush2.msra.mxu0 0.0
    %4350 = vmatprep.subr.mxu0 0.0
    %4351 = vmatpush2.msra.mxu0 0.0
    %4352 = vmatprep.subr.mxu0 0.0
    %4353 = vmatpush2.msra.mxu0 0.0
    %4354 = vmatprep.subr.mxu0 0.0
    %4355 = vmatpush2.msra.mxu0 0.0
    %4356 = vmatprep.subr.mxu0 0.0
    %4357 = vmatpush2.msra.mxu0 0.0
    %4358 = vmatprep.subr.mxu0 0.0
    %4359 = vmatpush2.msra.mxu0 0.0
    %4360 = vmatprep.subr.mxu0 0.0
    %4361 = vmatpush2.msra.mxu0 0.0
    %4362 = vmatprep.subr.mxu0 0.0
    %4363 = vmatpush2.msra.mxu0 0.0
    %4364 = vmatprep.subr.mxu0 0.0
    %4365 = vmatpush2.msra.mxu0 0.0
    %4366 = vmatprep.subr.mxu0 0.0
    %4367 = vmatpush2.msra.mxu0 0.0
    %4368 = vmatprep.subr.mxu0 0.0
    %4369 = vmatpush2.msra.mxu0 0.0
    %4370 = vmatprep.subr.mxu0 0.0
    %4371 = vmatpush2.msra.mxu0 0.0
    %4372 = vmatprep.subr.mxu0 0.0
    %4373 = vmatpush2.msra.mxu0 0.0
    %4374 = vmatprep.subr.mxu0 0.0
    %4375 = vmatpush2.msra.mxu0 0.0
    %4376 = vmatprep.subr.mxu0 0.0
    %4377 = vmatpush2.msra.mxu0 0.0
    %4378 = vmatprep.subr.mxu0 0.0
    %4379 = vmatpush2.msra.mxu0 0.0
    %4380 = vmatprep.mubr.f32.mxu0 0.0
    %4381 = vmatmul.mubr.f32.gmra.mxu0 %v4314
    %v4382 = vpop.f32.mrf.mxu0
    %v4383 = vadd.f32 0.0, %v4382
    %v4384 = vpop.f32.mrf.mxu0
    %4385 = vdwg.mxu0
    %s4386 = sld [smem:[#allocation7 + $0x4]]
    %p4387 = scmp.gt.s32.totalorder %s4386, 0
    %s4388 = scalar_select %p4387, 1, 0
    %s4389 = scvt.s32.f32 %s4388
    %s4390 = scalar_lea.vmem [#allocation4], 32
    %v4391 = vld [vmem:[%s4390] sm:$0xff]
    %v4392 = vstv %s4389
    %v4393 = vmul.f32 %v4392, %v4391
    %s4394 = ssub.f32 1.0, %s4389
    %v4395 = vstv %s4394
    %v4396 = vmul.f32 %v4395, %v4383
    %v4397 = vadd.f32 %v4393, %v4396
    %v4398 = vmul.f32 %v4206, %v2800
    %4400 = vrot.lane.b32.xlu0 %v4398, 32
    %v4401 = vpop.permute.xlu0 %4400
    %v4403 = vsel %vm265, %v4401, 0.0
    %4404 = vadd.xlane.f32.xlu0 %v4403
    %v4405 = vpop.xlane.xlu0 %4404
    %4406 = vxpose.xlu0.b32.start [1/16] %v4405, 128
    %4407 = vxpose.xlu0.b32.cont [2/16] 0.0, 128
    %4408 = vxpose.xlu0.b32.cont [3/16] 0.0, 128
    %4409 = vxpose.xlu0.b32.cont [4/16] 0.0, 128
    %4410 = vxpose.xlu0.b32.cont [5/16] 0.0, 128
    %4411 = vxpose.xlu0.b32.cont [6/16] 0.0, 128
    %4412 = vxpose.xlu0.b32.cont [7/16] 0.0, 128
    %4413 = vxpose.xlu0.b32.cont [8/16] 0.0, 128
    %4414 = vxpose.xlu0.b32.cont [9/16] 0.0, 128
    %4415 = vxpose.xlu0.b32.cont [10/16] 0.0, 128
    %4416 = vxpose.xlu0.b32.cont [11/16] 0.0, 128
    %4417 = vxpose.xlu0.b32.cont [12/16] 0.0, 128
    %4418 = vxpose.xlu0.b32.cont [13/16] 0.0, 128
    %4419 = vxpose.xlu0.b32.cont [14/16] 0.0, 128
    %4420 = vxpose.xlu0.b32.cont [15/16] 0.0, 128
    %4421 = vxpose.xlu0.b32.end [16/16] 0.0, 128
    %v4422 = vpop.trf.xlu0
    %v4423 = vpop.trf.xlu0
    %v4424 = vpop.trf.xlu0
    %v4425 = vpop.trf.xlu0
    %v4426 = vpop.trf.xlu0
    %v4427 = vpop.trf.xlu0
    %v4428 = vpop.trf.xlu0
    %v4429 = vpop.trf.xlu0
    %v4430 = vpop.trf.xlu0
    %v4431 = vpop.trf.xlu0
    %v4432 = vpop.trf.xlu0
    %v4433 = vpop.trf.xlu0
    %v4434 = vpop.trf.xlu0
    %v4435 = vpop.trf.xlu0
    %v4436 = vpop.trf.xlu0
    %v4437 = vpop.trf.xlu0
    %v4438 = vlaneseq
    %v4439 = vshrl.u32 %v4438, 7
    %v4440 = vsub.s32 0, %v4439
    %v4441 = vrot.slane %v4422, %v4440
    %v4442 = vadd.f32 %v4441, %v2291
    %v4443 = vadd.f32 %v4442, %v2301
    %v4444 = vmax.f32 %v4443, 0.0
    %v4445 = vsel %vm2305, %v4444, -inf
    %v4446 = vrot.slane %v4445, 4
    %v4447 = vmax.f32 %v4445, %v4446
    %v4448 = vrot.slane %v4447, 2
    %v4449 = vmax.f32 %v4447, %v4448
    %v4450 = vrot.slane %v4449, 1
    %v4451 = vmax.f32 %v4449, %v4450
    %v4452 = vsub.f32 %v4444, %v4451
    %v4453 = vmul.f32 %v4452, 1.442695
    %v4454 = vpow.pop %v4453
    %v4455 = vsel %vm2305, %v4454, 0.0
    %v4456 = vrot.slane %v4455, 4
    %v4457 = vadd.f32 %v4455, %v4456
    %v4458 = vrot.slane %v4457, 2
    %v4459 = vadd.f32 %v4457, %v4458
    %v4460 = vrot.slane %v4459, 1
    %v4461 = vadd.f32 %v4459, %v4460
    %v4462 = vrcp.pop %v4461
    %v4463 = vmul.f32 %v4454, %v4462
    %v4464 = vlaneseq
    %v4465 = vshrl.u32 %v4464, 7
    %v4466 = vsub.s32 0, %v4465
    %v4467 = vrot.slane %v4463, %v4466
    %4469 = vbcast.lane.b32.xlu0 %v4467, 256
    %v4470 = vpop.permute.xlu0 %4469
    %v4471 = vlaneseq
    %v4472 = vshrl.u32 %v4471, 7
    %v4473 = vsub.s32 1, %v4472
    %v4474 = vrot.slane %v4463, %v4473
    %4476 = vbcast.lane.b32.xlu0 %v4474, 256
    %v4477 = vpop.permute.xlu0 %4476
    %v4478 = vlaneseq
    %v4479 = vshrl.u32 %v4478, 7
    %v4480 = vsub.s32 2, %v4479
    %v4481 = vrot.slane %v4463, %v4480
    %4483 = vbcast.lane.b32.xlu0 %v4481, 256
    %v4484 = vpop.permute.xlu0 %4483
    %v4485 = vlaneseq
    %v4486 = vshrl.u32 %v4485, 7
    %v4487 = vsub.s32 3, %v4486
    %v4488 = vrot.slane %v4463, %v4487
    %4490 = vbcast.lane.b32.xlu0 %v4488, 256
    %v4491 = vpop.permute.xlu0 %4490
    %v4492 = vlaneseq
    %v4493 = vshrl.u32 %v4492, 7
    %v4494 = vsub.s32 4, %v4493
    %v4495 = vrot.slane %v4463, %v4494
    %4497 = vbcast.lane.b32.xlu0 %v4495, 256
    %v4498 = vpop.permute.xlu0 %4497
    %v4499 = vlaneseq
    %v4500 = vshrl.u32 %v4499, 7
    %v4501 = vsub.s32 5, %v4500
    %v4502 = vrot.slane %v4463, %v4501
    %4504 = vbcast.lane.b32.xlu0 %v4502, 256
    %v4505 = vpop.permute.xlu0 %4504
    %v4506 = vlaneseq
    %v4507 = vshrl.u32 %v4506, 7
    %v4508 = vsub.s32 6, %v4507
    %v4509 = vrot.slane %v4463, %v4508
    %4511 = vbcast.lane.b32.xlu0 %v4509, 256
    %v4512 = vpop.permute.xlu0 %4511
    %v4513 = vlaneseq
    %v4514 = vshrl.u32 %v4513, 7
    %v4515 = vsub.s32 7, %v4514
    %v4516 = vrot.slane %v4463, %v4515
    %4518 = vbcast.lane.b32.xlu0 %v4516, 256
    %v4519 = vpop.permute.xlu0 %4518
    %v4520 = vld [vmem:[#allocation3] sm:$0xff]
    %v4521 = vld [vmem:[#allocation3 + $0x8] sm:$0xff]
    %v4522 = vld [vmem:[#allocation3 + $0x10] sm:$0xff]
    %v4523 = vld [vmem:[#allocation3 + $0x18] sm:$0xff]
    %v4524 = vld [vmem:[#allocation3 + $0x20] sm:$0xff]
    %v4525 = vld [vmem:[#allocation3 + $0x28] sm:$0xff]
    %v4526 = vld [vmem:[#allocation3 + $0x30] sm:$0xff]
    %v4527 = vld [vmem:[#allocation3 + $0x38] sm:$0xff]
    %v4528 = vmul.f32 %v4470, %v4520
    %v4529 = vmul.f32 %v4477, %v4521
    %v4530 = vmul.f32 %v4484, %v4522
    %v4531 = vmul.f32 %v4491, %v4523
    %v4532 = vmul.f32 %v4498, %v4524
    %v4533 = vmul.f32 %v4505, %v4525
    %v4534 = vmul.f32 %v4512, %v4526
    %v4535 = vmul.f32 %v4519, %v4527
    %v4536 = vsel %vm2160, %v4528, 0.0
    %v4537 = vsel %vm2160, %v4529, 0.0
    %v4538 = vadd.f32 %v4536, %v4537
    %v4539 = vsel %vm2160, %v4530, 0.0
    %v4540 = vadd.f32 %v4538, %v4539
    %v4541 = vsel %vm2160, %v4531, 0.0
    %v4542 = vadd.f32 %v4540, %v4541
    %v4543 = vsel %vm2160, %v4532, 0.0
    %v4544 = vadd.f32 %v4542, %v4543
    %v4545 = vsel %vm2160, %v4533, 0.0
    %v4546 = vadd.f32 %v4544, %v4545
    %v4547 = vsel %vm2160, %v4534, 0.0
    %v4548 = vadd.f32 %v4546, %v4547
    %v4549 = vsel %vm2160, %v4535, 0.0
    %v4550 = vadd.f32 %v4548, %v4549
    %v4551 = vld [vmem:[%s13] sm:$0xff]
    %v4552 = vld [vmem:[%s13 + $0x8] sm:$0xff]
    %v4553 = vld [vmem:[%s13 + $0x10] sm:$0xff]
    %v4554 = vld [vmem:[%s13 + $0x18] sm:$0xff]
    %v4555 = vld [vmem:[%s13 + $0x20] sm:$0xff]
    %v4556 = vld [vmem:[%s13 + $0x28] sm:$0xff]
    %v4557 = vld [vmem:[%s13 + $0x30] sm:$0xff]
    %v4558 = vld [vmem:[%s13 + $0x38] sm:$0xff]
    %v4560 = vsel %vm2160, %v4550, 0
    %4562 = vmatprep.subr.mxu0 0.0
    %4563 = vmatpush1.msra.mxu0 0.0
    %4564 = vmatprep.subr.mxu0 0.0
    %4565 = vmatpush1.msra.mxu0 0.0
    %4566 = vmatprep.subr.mxu0 0.0
    %4567 = vmatpush1.msra.mxu0 0.0
    %4568 = vmatprep.subr.mxu0 0.0
    %4569 = vmatpush1.msra.mxu0 0.0
    %4570 = vmatprep.subr.mxu0 0.0
    %4571 = vmatpush1.msra.mxu0 0.0
    %4572 = vmatprep.subr.mxu0 0.0
    %4573 = vmatpush1.msra.mxu0 0.0
    %4574 = vmatprep.subr.mxu0 0.0
    %4575 = vmatpush1.msra.mxu0 0.0
    %4576 = vmatprep.subr.mxu0 0.0
    %4577 = vmatpush1.msra.mxu0 0.0
    %4578 = vmatprep.subr.mxu0 0.0
    %4579 = vmatpush1.msra.mxu0 %v4558
    %4580 = vmatprep.subr.mxu0 0.0
    %4581 = vmatpush1.msra.mxu0 %v4557
    %4582 = vmatprep.subr.mxu0 0.0
    %4583 = vmatpush1.msra.mxu0 %v4556
    %4584 = vmatprep.subr.mxu0 0.0
    %4585 = vmatpush1.msra.mxu0 %v4555
    %4586 = vmatprep.subr.mxu0 0.0
    %4587 = vmatpush1.msra.mxu0 %v4554
    %4588 = vmatprep.subr.mxu0 0.0
    %4589 = vmatpush1.msra.mxu0 %v4553
    %4590 = vmatprep.subr.mxu0 0.0
    %4591 = vmatpush1.msra.mxu0 %v4552
    %4592 = vmatprep.subr.mxu0 0.0
    %4593 = vmatpush1.msra.mxu0 %v4551
    %4594 = vmatprep.subr.mxu0 0.0
    %4595 = vmatpush2.msra.mxu0 0.0
    %4596 = vmatprep.subr.mxu0 0.0
    %4597 = vmatpush2.msra.mxu0 0.0
    %4598 = vmatprep.subr.mxu0 0.0
    %4599 = vmatpush2.msra.mxu0 0.0
    %4600 = vmatprep.subr.mxu0 0.0
    %4601 = vmatpush2.msra.mxu0 0.0
    %4602 = vmatprep.subr.mxu0 0.0
    %4603 = vmatpush2.msra.mxu0 0.0
    %4604 = vmatprep.subr.mxu0 0.0
    %4605 = vmatpush2.msra.mxu0 0.0
    %4606 = vmatprep.subr.mxu0 0.0
    %4607 = vmatpush2.msra.mxu0 0.0
    %4608 = vmatprep.subr.mxu0 0.0
    %4609 = vmatpush2.msra.mxu0 0.0
    %4610 = vmatprep.subr.mxu0 0.0
    %4611 = vmatpush2.msra.mxu0 0.0
    %4612 = vmatprep.subr.mxu0 0.0
    %4613 = vmatpush2.msra.mxu0 0.0
    %4614 = vmatprep.subr.mxu0 0.0
    %4615 = vmatpush2.msra.mxu0 0.0
    %4616 = vmatprep.subr.mxu0 0.0
    %4617 = vmatpush2.msra.mxu0 0.0
    %4618 = vmatprep.subr.mxu0 0.0
    %4619 = vmatpush2.msra.mxu0 0.0
    %4620 = vmatprep.subr.mxu0 0.0
    %4621 = vmatpush2.msra.mxu0 0.0
    %4622 = vmatprep.subr.mxu0 0.0
    %4623 = vmatpush2.msra.mxu0 0.0
    %4624 = vmatprep.subr.mxu0 0.0
    %4625 = vmatpush2.msra.mxu0 0.0
    %4626 = vmatprep.mubr.f32.mxu0 0.0
    %4627 = vmatmul.mubr.f32.gmra.mxu0 %v4560
    %v4628 = vpop.f32.mrf.mxu0
    %v4629 = vadd.f32 %v4397, %v4628
    %v4630 = vpop.f32.mrf.mxu0
    %4631 = vdwg.mxu0
    %v4632 = vld [vmem:[%s15] sm:$0xff]
    %v4633 = vld [vmem:[%s15 + $0x8] sm:$0xff]
    %v4634 = vld [vmem:[%s15 + $0x10] sm:$0xff]
    %v4635 = vld [vmem:[%s15 + $0x18] sm:$0xff]
    %4636 = vmatprep.subr.mxu0 0.0
    %4637 = vmatpush1.msra.mxu0 0.0
    %4638 = vmatprep.subr.mxu0 0.0
    %4639 = vmatpush1.msra.mxu0 0.0
    %4640 = vmatprep.subr.mxu0 0.0
    %4641 = vmatpush1.msra.mxu0 0.0
    %4642 = vmatprep.subr.mxu0 0.0
    %4643 = vmatpush1.msra.mxu0 0.0
    %4644 = vmatprep.subr.mxu0 0.0
    %4645 = vmatpush1.msra.mxu0 0.0
    %4646 = vmatprep.subr.mxu0 0.0
    %4647 = vmatpush1.msra.mxu0 0.0
    %4648 = vmatprep.subr.mxu0 0.0
    %4649 = vmatpush1.msra.mxu0 0.0
    %4650 = vmatprep.subr.mxu0 0.0
    %4651 = vmatpush1.msra.mxu0 0.0
    %4652 = vmatprep.subr.mxu0 0.0
    %4653 = vmatpush1.msra.mxu0 0.0
    %4654 = vmatprep.subr.mxu0 0.0
    %4655 = vmatpush1.msra.mxu0 0.0
    %4656 = vmatprep.subr.mxu0 0.0
    %4657 = vmatpush1.msra.mxu0 0.0
    %4658 = vmatprep.subr.mxu0 0.0
    %4659 = vmatpush1.msra.mxu0 0.0
    %4660 = vmatprep.subr.mxu0 0.0
    %4661 = vmatpush1.msra.mxu0 %v4635
    %4662 = vmatprep.subr.mxu0 0.0
    %4663 = vmatpush1.msra.mxu0 %v4634
    %4664 = vmatprep.subr.mxu0 0.0
    %4665 = vmatpush1.msra.mxu0 %v4633
    %4666 = vmatprep.subr.mxu0 0.0
    %4667 = vmatpush1.msra.mxu0 %v4632
    %4668 = vmatprep.subr.mxu0 0.0
    %4669 = vmatpush2.msra.mxu0 0.0
    %4670 = vmatprep.subr.mxu0 0.0
    %4671 = vmatpush2.msra.mxu0 0.0
    %4672 = vmatprep.subr.mxu0 0.0
    %4673 = vmatpush2.msra.mxu0 0.0
    %4674 = vmatprep.subr.mxu0 0.0
    %4675 = vmatpush2.msra.mxu0 0.0
    %4676 = vmatprep.subr.mxu0 0.0
    %4677 = vmatpush2.msra.mxu0 0.0
    %4678 = vmatprep.subr.mxu0 0.0
    %4679 = vmatpush2.msra.mxu0 0.0
    %4680 = vmatprep.subr.mxu0 0.0
    %4681 = vmatpush2.msra.mxu0 0.0
    %4682 = vmatprep.subr.mxu0 0.0
    %4683 = vmatpush2.msra.mxu0 0.0
    %4684 = vmatprep.subr.mxu0 0.0
    %4685 = vmatpush2.msra.mxu0 0.0
    %4686 = vmatprep.subr.mxu0 0.0
    %4687 = vmatpush2.msra.mxu0 0.0
    %4688 = vmatprep.subr.mxu0 0.0
    %4689 = vmatpush2.msra.mxu0 0.0
    %4690 = vmatprep.subr.mxu0 0.0
    %4691 = vmatpush2.msra.mxu0 0.0
    %4692 = vmatprep.subr.mxu0 0.0
    %4693 = vmatpush2.msra.mxu0 0.0
    %4694 = vmatprep.subr.mxu0 0.0
    %4695 = vmatpush2.msra.mxu0 0.0
    %4696 = vmatprep.subr.mxu0 0.0
    %4697 = vmatpush2.msra.mxu0 0.0
    %4698 = vmatprep.subr.mxu0 0.0
    %4699 = vmatpush2.msra.mxu0 0.0
    %4700 = vmatprep.mubr.f32.mxu0 0.0
    %4701 = vmatmul.mubr.f32.gmra.mxu0 %v4221
    %v4702 = vpop.f32.mrf.mxu0
    %v4703 = vadd.f32 0.0, %v4702
    %v4704 = vpop.f32.mrf.mxu0
    %4705 = vdwg.mxu0
    %v4706 = vadd.f32 %v4629, %v4703
    %v4707 = vld [vmem:[%s16] sm:$0x1]
    %v4709 = vlaneseq
    %v4710 = vshrl.u32 %v4709, 7
    %v4711 = vsub.s32 0, %v4710
    %v4712 = vrot.slane %v4707, %v4711
    %v4714 = vadd.f32 %v4706, %v4712
    %v4715 = vxor.u32 %v4714, 2147483648
    %v4716 = vmul.f32 %v4715, 1.442695
    %v4717 = vpow.pop %v4716
    %v4718 = vadd.f32 %v4717, 1.0
    %v4719 = vrcp.pop %v4718
    %v4720 = vmul.f32 1.0, %v4719
    %v4721 = vtanh.pop %v4714
    %v4722 = vmul.f32 %v4720, %v4200
    %4724 = vrot.lane.b32.xlu0 %v4721, 64
    %v4725 = vpop.permute.xlu0 %4724
    %v4727 = vmul.f32 %v4720, %v4725
    %4729 = vrot.lane.b32.xlu0 %v4727, 32
    %v4730 = vpop.permute.xlu0 %4729
    %v4732 = vadd.f32 %v4722, %v4730
    %v4733 = vtanh.pop %v4732
    %4735 = vrot.lane.b32.xlu0 %v4733, 64
    %v4736 = vpop.permute.xlu0 %4735
    %v4738 = vmul.f32 %v4720, %v4736
    %v4739 = vld [vmem:[%s17] sm:$0xff]
    %v4740 = vld [vmem:[%s17 + $0x8] sm:$0xff]
    %v4741 = vld [vmem:[%s17 + $0x10] sm:$0xff]
    %v4742 = vld [vmem:[%s17 + $0x18] sm:$0xff]
    %v4743 = vld [vmem:[%s18] sm:$0x1]
    %v4745 = vlaneseq
    %v4746 = vshrl.u32 %v4745, 7
    %v4747 = vsub.s32 0, %v4746
    %v4748 = vrot.slane %v4743, %v4747
    %4751 = vrot.lane.b32.xlu0 %v4738, 32
    %v4752 = vpop.permute.xlu0 %4751
    %v4753 = vsel %vm265, %v4752, 0
    %4755 = vmatprep.subr.mxu0 0.0
    %4756 = vmatpush1.msra.mxu0 0.0
    %4757 = vmatprep.subr.mxu0 0.0
    %4758 = vmatpush1.msra.mxu0 0.0
    %4759 = vmatprep.subr.mxu0 0.0
    %4760 = vmatpush1.msra.mxu0 0.0
    %4761 = vmatprep.subr.mxu0 0.0
    %4762 = vmatpush1.msra.mxu0 0.0
    %4763 = vmatprep.subr.mxu0 0.0
    %4764 = vmatpush1.msra.mxu0 0.0
    %4765 = vmatprep.subr.mxu0 0.0
    %4766 = vmatpush1.msra.mxu0 0.0
    %4767 = vmatprep.subr.mxu0 0.0
    %4768 = vmatpush1.msra.mxu0 0.0
    %4769 = vmatprep.subr.mxu0 0.0
    %4770 = vmatpush1.msra.mxu0 0.0
    %4771 = vmatprep.subr.mxu0 0.0
    %4772 = vmatpush1.msra.mxu0 0.0
    %4773 = vmatprep.subr.mxu0 0.0
    %4774 = vmatpush1.msra.mxu0 0.0
    %4775 = vmatprep.subr.mxu0 0.0
    %4776 = vmatpush1.msra.mxu0 0.0
    %4777 = vmatprep.subr.mxu0 0.0
    %4778 = vmatpush1.msra.mxu0 0.0
    %4779 = vmatprep.subr.mxu0 0.0
    %4780 = vmatpush1.msra.mxu0 %v4742
    %4781 = vmatprep.subr.mxu0 0.0
    %4782 = vmatpush1.msra.mxu0 %v4741
    %4783 = vmatprep.subr.mxu0 0.0
    %4784 = vmatpush1.msra.mxu0 %v4740
    %4785 = vmatprep.subr.mxu0 0.0
    %4786 = vmatpush1.msra.mxu0 %v4739
    %4787 = vmatprep.subr.mxu0 0.0
    %4788 = vmatpush2.msra.mxu0 0.0
    %4789 = vmatprep.subr.mxu0 0.0
    %4790 = vmatpush2.msra.mxu0 0.0
    %4791 = vmatprep.subr.mxu0 0.0
    %4792 = vmatpush2.msra.mxu0 0.0
    %4793 = vmatprep.subr.mxu0 0.0
    %4794 = vmatpush2.msra.mxu0 0.0
    %4795 = vmatprep.subr.mxu0 0.0
    %4796 = vmatpush2.msra.mxu0 0.0
    %4797 = vmatprep.subr.mxu0 0.0
    %4798 = vmatpush2.msra.mxu0 0.0
    %4799 = vmatprep.subr.mxu0 0.0
    %4800 = vmatpush2.msra.mxu0 0.0
    %4801 = vmatprep.subr.mxu0 0.0
    %4802 = vmatpush2.msra.mxu0 0.0
    %4803 = vmatprep.subr.mxu0 0.0
    %4804 = vmatpush2.msra.mxu0 0.0
    %4805 = vmatprep.subr.mxu0 0.0
    %4806 = vmatpush2.msra.mxu0 0.0
    %4807 = vmatprep.subr.mxu0 0.0
    %4808 = vmatpush2.msra.mxu0 0.0
    %4809 = vmatprep.subr.mxu0 0.0
    %4810 = vmatpush2.msra.mxu0 0.0
    %4811 = vmatprep.subr.mxu0 0.0
    %4812 = vmatpush2.msra.mxu0 0.0
    %4813 = vmatprep.subr.mxu0 0.0
    %4814 = vmatpush2.msra.mxu0 0.0
    %4815 = vmatprep.subr.mxu0 0.0
    %4816 = vmatpush2.msra.mxu0 0.0
    %4817 = vmatprep.subr.mxu0 0.0
    %4818 = vmatpush2.msra.mxu0 0.0
    %4819 = vmatprep.mubr.f32.mxu0 0.0
    %4820 = vmatmul.mubr.f32.gmra.mxu0 %v4753
    %v4821 = vpop.f32.mrf.mxu0
    %v4822 = vadd.f32 %v4748, %v4821
    %v4823 = vpop.f32.mrf.mxu0
    %4824 = vdwg.mxu0
    %s4825 = scalar_lea.vmem [#allocation10], 40
    %4826 = vst [vmem:[%s4825] sm:$0xff] %v4822
    %v4827 = vsel %vm2695, %v4822, -1e+30
    %4828 = vmax.xlane.f32.xlu0 %v4827
    %v4829 = vpop.xlane.xlu0 %4828
    %vm4830 = vcmp.eq.f32.partialorder %v4827, %v4829
    %v4831 = vsel %vm4830, %v2189, 128.0
    %4832 = vmin.xlane.f32.xlu0 %v4831
    %v4833 = vpop.xlane.xlu0 %4832
    %vm4834 = vcmp.eq.f32.partialorder %v2189, %v4833
    %v4835 = vsel %vm4834, 1, 0
    %v4836 = vcvt.s32.f32 %v4835
    %v4837 = vld [vmem:[#allocation5] sm:$0xff]
    %v4838 = vld [vmem:[#allocation5 + $0x8] sm:$0xff]
    %v4839 = vld [vmem:[#allocation5 + $0x10] sm:$0xff]
    %v4840 = vld [vmem:[#allocation5 + $0x18] sm:$0xff]
    %v4841 = vld [vmem:[#allocation5 + $0x20] sm:$0xff]
    %v4842 = vld [vmem:[#allocation5 + $0x28] sm:$0xff]
    %v4843 = vld [vmem:[#allocation5 + $0x30] sm:$0xff]
    %v4844 = vld [vmem:[#allocation5 + $0x38] sm:$0xff]
    %v4846 = vsel %vm2160, %v4836, 0
    %4848 = vmatprep.subr.mxu0 0.0
    %4849 = vmatpush1.msra.mxu0 0.0
    %4850 = vmatprep.subr.mxu0 0.0
    %4851 = vmatpush1.msra.mxu0 0.0
    %4852 = vmatprep.subr.mxu0 0.0
    %4853 = vmatpush1.msra.mxu0 0.0
    %4854 = vmatprep.subr.mxu0 0.0
    %4855 = vmatpush1.msra.mxu0 0.0
    %4856 = vmatprep.subr.mxu0 0.0
    %4857 = vmatpush1.msra.mxu0 0.0
    %4858 = vmatprep.subr.mxu0 0.0
    %4859 = vmatpush1.msra.mxu0 0.0
    %4860 = vmatprep.subr.mxu0 0.0
    %4861 = vmatpush1.msra.mxu0 0.0
    %4862 = vmatprep.subr.mxu0 0.0
    %4863 = vmatpush1.msra.mxu0 0.0
    %4864 = vmatprep.subr.mxu0 0.0
    %4865 = vmatpush1.msra.mxu0 %v4844
    %4866 = vmatprep.subr.mxu0 0.0
    %4867 = vmatpush1.msra.mxu0 %v4843
    %4868 = vmatprep.subr.mxu0 0.0
    %4869 = vmatpush1.msra.mxu0 %v4842
    %4870 = vmatprep.subr.mxu0 0.0
    %4871 = vmatpush1.msra.mxu0 %v4841
    %4872 = vmatprep.subr.mxu0 0.0
    %4873 = vmatpush1.msra.mxu0 %v4840
    %4874 = vmatprep.subr.mxu0 0.0
    %4875 = vmatpush1.msra.mxu0 %v4839
    %4876 = vmatprep.subr.mxu0 0.0
    %4877 = vmatpush1.msra.mxu0 %v4838
    %4878 = vmatprep.subr.mxu0 0.0
    %4879 = vmatpush1.msra.mxu0 %v4837
    %4880 = vmatprep.subr.mxu0 0.0
    %4881 = vmatpush2.msra.mxu0 0.0
    %4882 = vmatprep.subr.mxu0 0.0
    %4883 = vmatpush2.msra.mxu0 0.0
    %4884 = vmatprep.subr.mxu0 0.0
    %4885 = vmatpush2.msra.mxu0 0.0
    %4886 = vmatprep.subr.mxu0 0.0
    %4887 = vmatpush2.msra.mxu0 0.0
    %4888 = vmatprep.subr.mxu0 0.0
    %4889 = vmatpush2.msra.mxu0 0.0
    %4890 = vmatprep.subr.mxu0 0.0
    %4891 = vmatpush2.msra.mxu0 0.0
    %4892 = vmatprep.subr.mxu0 0.0
    %4893 = vmatpush2.msra.mxu0 0.0
    %4894 = vmatprep.subr.mxu0 0.0
    %4895 = vmatpush2.msra.mxu0 0.0
    %4896 = vmatprep.subr.mxu0 0.0
    %4897 = vmatpush2.msra.mxu0 0.0
    %4898 = vmatprep.subr.mxu0 0.0
    %4899 = vmatpush2.msra.mxu0 0.0
    %4900 = vmatprep.subr.mxu0 0.0
    %4901 = vmatpush2.msra.mxu0 0.0
    %4902 = vmatprep.subr.mxu0 0.0
    %4903 = vmatpush2.msra.mxu0 0.0
    %4904 = vmatprep.subr.mxu0 0.0
    %4905 = vmatpush2.msra.mxu0 0.0
    %4906 = vmatprep.subr.mxu0 0.0
    %4907 = vmatpush2.msra.mxu0 0.0
    %4908 = vmatprep.subr.mxu0 0.0
    %4909 = vmatpush2.msra.mxu0 0.0
    %4910 = vmatprep.subr.mxu0 0.0
    %4911 = vmatpush2.msra.mxu0 0.0
    %4912 = vmatprep.mubr.f32.mxu0 0.0
    %4913 = vmatmul.mubr.f32.gmra.mxu0 %v4846
    %v4914 = vpop.f32.mrf.mxu0
    %v4915 = vadd.f32 0.0, %v4914
    %v4916 = vpop.f32.mrf.mxu0
    %4917 = vdwg.mxu0
    %s4918 = sld [smem:[#allocation7 + $0x5]]
    %p4919 = scmp.gt.s32.totalorder %s4918, 0
    %s4920 = scalar_select %p4919, 1, 0
    %s4921 = scvt.s32.f32 %s4920
    %s4922 = scalar_lea.vmem [#allocation4], 40
    %v4923 = vld [vmem:[%s4922] sm:$0xff]
    %v4924 = vstv %s4921
    %v4925 = vmul.f32 %v4924, %v4923
    %s4926 = ssub.f32 1.0, %s4921
    %v4927 = vstv %s4926
    %v4928 = vmul.f32 %v4927, %v4915
    %v4929 = vadd.f32 %v4925, %v4928
    %v4930 = vmul.f32 %v4738, %v2800
    %4932 = vrot.lane.b32.xlu0 %v4930, 32
    %v4933 = vpop.permute.xlu0 %4932
    %v4935 = vsel %vm265, %v4933, 0.0
    %4936 = vadd.xlane.f32.xlu0 %v4935
    %v4937 = vpop.xlane.xlu0 %4936
    %4938 = vxpose.xlu0.b32.start [1/16] %v4937, 128
    %4939 = vxpose.xlu0.b32.cont [2/16] 0.0, 128
    %4940 = vxpose.xlu0.b32.cont [3/16] 0.0, 128
    %4941 = vxpose.xlu0.b32.cont [4/16] 0.0, 128
    %4942 = vxpose.xlu0.b32.cont [5/16] 0.0, 128
    %4943 = vxpose.xlu0.b32.cont [6/16] 0.0, 128
    %4944 = vxpose.xlu0.b32.cont [7/16] 0.0, 128
    %4945 = vxpose.xlu0.b32.cont [8/16] 0.0, 128
    %4946 = vxpose.xlu0.b32.cont [9/16] 0.0, 128
    %4947 = vxpose.xlu0.b32.cont [10/16] 0.0, 128
    %4948 = vxpose.xlu0.b32.cont [11/16] 0.0, 128
    %4949 = vxpose.xlu0.b32.cont [12/16] 0.0, 128
    %4950 = vxpose.xlu0.b32.cont [13/16] 0.0, 128
    %4951 = vxpose.xlu0.b32.cont [14/16] 0.0, 128
    %4952 = vxpose.xlu0.b32.cont [15/16] 0.0, 128
    %4953 = vxpose.xlu0.b32.end [16/16] 0.0, 128
    %v4954 = vpop.trf.xlu0
    %v4955 = vpop.trf.xlu0
    %v4956 = vpop.trf.xlu0
    %v4957 = vpop.trf.xlu0
    %v4958 = vpop.trf.xlu0
    %v4959 = vpop.trf.xlu0
    %v4960 = vpop.trf.xlu0
    %v4961 = vpop.trf.xlu0
    %v4962 = vpop.trf.xlu0
    %v4963 = vpop.trf.xlu0
    %v4964 = vpop.trf.xlu0
    %v4965 = vpop.trf.xlu0
    %v4966 = vpop.trf.xlu0
    %v4967 = vpop.trf.xlu0
    %v4968 = vpop.trf.xlu0
    %v4969 = vpop.trf.xlu0
    %v4970 = vlaneseq
    %v4971 = vshrl.u32 %v4970, 7
    %v4972 = vsub.s32 0, %v4971
    %v4973 = vrot.slane %v4954, %v4972
    %v4974 = vadd.f32 %v4973, %v2291
    %v4975 = vadd.f32 %v4974, %v2301
    %v4976 = vmax.f32 %v4975, 0.0
    %v4977 = vsel %vm2305, %v4976, -inf
    %v4978 = vrot.slane %v4977, 4
    %v4979 = vmax.f32 %v4977, %v4978
    %v4980 = vrot.slane %v4979, 2
    %v4981 = vmax.f32 %v4979, %v4980
    %v4982 = vrot.slane %v4981, 1
    %v4983 = vmax.f32 %v4981, %v4982
    %v4984 = vsub.f32 %v4976, %v4983
    %v4985 = vmul.f32 %v4984, 1.442695
    %v4986 = vpow.pop %v4985
    %v4987 = vsel %vm2305, %v4986, 0.0
    %v4988 = vrot.slane %v4987, 4
    %v4989 = vadd.f32 %v4987, %v4988
    %v4990 = vrot.slane %v4989, 2
    %v4991 = vadd.f32 %v4989, %v4990
    %v4992 = vrot.slane %v4991, 1
    %v4993 = vadd.f32 %v4991, %v4992
    %v4994 = vrcp.pop %v4993
    %v4995 = vmul.f32 %v4986, %v4994
    %v4996 = vlaneseq
    %v4997 = vshrl.u32 %v4996, 7
    %v4998 = vsub.s32 0, %v4997
    %v4999 = vrot.slane %v4995, %v4998
    %5001 = vbcast.lane.b32.xlu0 %v4999, 256
    %v5002 = vpop.permute.xlu0 %5001
    %v5003 = vlaneseq
    %v5004 = vshrl.u32 %v5003, 7
    %v5005 = vsub.s32 1, %v5004
    %v5006 = vrot.slane %v4995, %v5005
    %5008 = vbcast.lane.b32.xlu0 %v5006, 256
    %v5009 = vpop.permute.xlu0 %5008
    %v5010 = vlaneseq
    %v5011 = vshrl.u32 %v5010, 7
    %v5012 = vsub.s32 2, %v5011
    %v5013 = vrot.slane %v4995, %v5012
    %5015 = vbcast.lane.b32.xlu0 %v5013, 256
    %v5016 = vpop.permute.xlu0 %5015
    %v5017 = vlaneseq
    %v5018 = vshrl.u32 %v5017, 7
    %v5019 = vsub.s32 3, %v5018
    %v5020 = vrot.slane %v4995, %v5019
    %5022 = vbcast.lane.b32.xlu0 %v5020, 256
    %v5023 = vpop.permute.xlu0 %5022
    %v5024 = vlaneseq
    %v5025 = vshrl.u32 %v5024, 7
    %v5026 = vsub.s32 4, %v5025
    %v5027 = vrot.slane %v4995, %v5026
    %5029 = vbcast.lane.b32.xlu0 %v5027, 256
    %v5030 = vpop.permute.xlu0 %5029
    %v5031 = vlaneseq
    %v5032 = vshrl.u32 %v5031, 7
    %v5033 = vsub.s32 5, %v5032
    %v5034 = vrot.slane %v4995, %v5033
    %5036 = vbcast.lane.b32.xlu0 %v5034, 256
    %v5037 = vpop.permute.xlu0 %5036
    %v5038 = vlaneseq
    %v5039 = vshrl.u32 %v5038, 7
    %v5040 = vsub.s32 6, %v5039
    %v5041 = vrot.slane %v4995, %v5040
    %5043 = vbcast.lane.b32.xlu0 %v5041, 256
    %v5044 = vpop.permute.xlu0 %5043
    %v5045 = vlaneseq
    %v5046 = vshrl.u32 %v5045, 7
    %v5047 = vsub.s32 7, %v5046
    %v5048 = vrot.slane %v4995, %v5047
    %5050 = vbcast.lane.b32.xlu0 %v5048, 256
    %v5051 = vpop.permute.xlu0 %5050
    %v5052 = vld [vmem:[#allocation3] sm:$0xff]
    %v5053 = vld [vmem:[#allocation3 + $0x8] sm:$0xff]
    %v5054 = vld [vmem:[#allocation3 + $0x10] sm:$0xff]
    %v5055 = vld [vmem:[#allocation3 + $0x18] sm:$0xff]
    %v5056 = vld [vmem:[#allocation3 + $0x20] sm:$0xff]
    %v5057 = vld [vmem:[#allocation3 + $0x28] sm:$0xff]
    %v5058 = vld [vmem:[#allocation3 + $0x30] sm:$0xff]
    %v5059 = vld [vmem:[#allocation3 + $0x38] sm:$0xff]
    %v5060 = vmul.f32 %v5002, %v5052
    %v5061 = vmul.f32 %v5009, %v5053
    %v5062 = vmul.f32 %v5016, %v5054
    %v5063 = vmul.f32 %v5023, %v5055
    %v5064 = vmul.f32 %v5030, %v5056
    %v5065 = vmul.f32 %v5037, %v5057
    %v5066 = vmul.f32 %v5044, %v5058
    %v5067 = vmul.f32 %v5051, %v5059
    %v5068 = vsel %vm2160, %v5060, 0.0
    %v5069 = vsel %vm2160, %v5061, 0.0
    %v5070 = vadd.f32 %v5068, %v5069
    %v5071 = vsel %vm2160, %v5062, 0.0
    %v5072 = vadd.f32 %v5070, %v5071
    %v5073 = vsel %vm2160, %v5063, 0.0
    %v5074 = vadd.f32 %v5072, %v5073
    %v5075 = vsel %vm2160, %v5064, 0.0
    %v5076 = vadd.f32 %v5074, %v5075
    %v5077 = vsel %vm2160, %v5065, 0.0
    %v5078 = vadd.f32 %v5076, %v5077
    %v5079 = vsel %vm2160, %v5066, 0.0
    %v5080 = vadd.f32 %v5078, %v5079
    %v5081 = vsel %vm2160, %v5067, 0.0
    %v5082 = vadd.f32 %v5080, %v5081
    %v5083 = vld [vmem:[%s13] sm:$0xff]
    %v5084 = vld [vmem:[%s13 + $0x8] sm:$0xff]
    %v5085 = vld [vmem:[%s13 + $0x10] sm:$0xff]
    %v5086 = vld [vmem:[%s13 + $0x18] sm:$0xff]
    %v5087 = vld [vmem:[%s13 + $0x20] sm:$0xff]
    %v5088 = vld [vmem:[%s13 + $0x28] sm:$0xff]
    %v5089 = vld [vmem:[%s13 + $0x30] sm:$0xff]
    %v5090 = vld [vmem:[%s13 + $0x38] sm:$0xff]
    %v5092 = vsel %vm2160, %v5082, 0
    %5094 = vmatprep.subr.mxu0 0.0
    %5095 = vmatpush1.msra.mxu0 0.0
    %5096 = vmatprep.subr.mxu0 0.0
    %5097 = vmatpush1.msra.mxu0 0.0
    %5098 = vmatprep.subr.mxu0 0.0
    %5099 = vmatpush1.msra.mxu0 0.0
    %5100 = vmatprep.subr.mxu0 0.0
    %5101 = vmatpush1.msra.mxu0 0.0
    %5102 = vmatprep.subr.mxu0 0.0
    %5103 = vmatpush1.msra.mxu0 0.0
    %5104 = vmatprep.subr.mxu0 0.0
    %5105 = vmatpush1.msra.mxu0 0.0
    %5106 = vmatprep.subr.mxu0 0.0
    %5107 = vmatpush1.msra.mxu0 0.0
    %5108 = vmatprep.subr.mxu0 0.0
    %5109 = vmatpush1.msra.mxu0 0.0
    %5110 = vmatprep.subr.mxu0 0.0
    %5111 = vmatpush1.msra.mxu0 %v5090
    %5112 = vmatprep.subr.mxu0 0.0
    %5113 = vmatpush1.msra.mxu0 %v5089
    %5114 = vmatprep.subr.mxu0 0.0
    %5115 = vmatpush1.msra.mxu0 %v5088
    %5116 = vmatprep.subr.mxu0 0.0
    %5117 = vmatpush1.msra.mxu0 %v5087
    %5118 = vmatprep.subr.mxu0 0.0
    %5119 = vmatpush1.msra.mxu0 %v5086
    %5120 = vmatprep.subr.mxu0 0.0
    %5121 = vmatpush1.msra.mxu0 %v5085
    %5122 = vmatprep.subr.mxu0 0.0
    %5123 = vmatpush1.msra.mxu0 %v5084
    %5124 = vmatprep.subr.mxu0 0.0
    %5125 = vmatpush1.msra.mxu0 %v5083
    %5126 = vmatprep.subr.mxu0 0.0
    %5127 = vmatpush2.msra.mxu0 0.0
    %5128 = vmatprep.subr.mxu0 0.0
    %5129 = vmatpush2.msra.mxu0 0.0
    %5130 = vmatprep.subr.mxu0 0.0
    %5131 = vmatpush2.msra.mxu0 0.0
    %5132 = vmatprep.subr.mxu0 0.0
    %5133 = vmatpush2.msra.mxu0 0.0
    %5134 = vmatprep.subr.mxu0 0.0
    %5135 = vmatpush2.msra.mxu0 0.0
    %5136 = vmatprep.subr.mxu0 0.0
    %5137 = vmatpush2.msra.mxu0 0.0
    %5138 = vmatprep.subr.mxu0 0.0
    %5139 = vmatpush2.msra.mxu0 0.0
    %5140 = vmatprep.subr.mxu0 0.0
    %5141 = vmatpush2.msra.mxu0 0.0
    %5142 = vmatprep.subr.mxu0 0.0
    %5143 = vmatpush2.msra.mxu0 0.0
    %5144 = vmatprep.subr.mxu0 0.0
    %5145 = vmatpush2.msra.mxu0 0.0
    %5146 = vmatprep.subr.mxu0 0.0
    %5147 = vmatpush2.msra.mxu0 0.0
    %5148 = vmatprep.subr.mxu0 0.0
    %5149 = vmatpush2.msra.mxu0 0.0
    %5150 = vmatprep.subr.mxu0 0.0
    %5151 = vmatpush2.msra.mxu0 0.0
    %5152 = vmatprep.subr.mxu0 0.0
    %5153 = vmatpush2.msra.mxu0 0.0
    %5154 = vmatprep.subr.mxu0 0.0
    %5155 = vmatpush2.msra.mxu0 0.0
    %5156 = vmatprep.subr.mxu0 0.0
    %5157 = vmatpush2.msra.mxu0 0.0
    %5158 = vmatprep.mubr.f32.mxu0 0.0
    %5159 = vmatmul.mubr.f32.gmra.mxu0 %v5092
    %v5160 = vpop.f32.mrf.mxu0
    %v5161 = vadd.f32 %v4929, %v5160
    %v5162 = vpop.f32.mrf.mxu0
    %5163 = vdwg.mxu0
    %v5164 = vld [vmem:[%s15] sm:$0xff]
    %v5165 = vld [vmem:[%s15 + $0x8] sm:$0xff]
    %v5166 = vld [vmem:[%s15 + $0x10] sm:$0xff]
    %v5167 = vld [vmem:[%s15 + $0x18] sm:$0xff]
    %5168 = vmatprep.subr.mxu0 0.0
    %5169 = vmatpush1.msra.mxu0 0.0
    %5170 = vmatprep.subr.mxu0 0.0
    %5171 = vmatpush1.msra.mxu0 0.0
    %5172 = vmatprep.subr.mxu0 0.0
    %5173 = vmatpush1.msra.mxu0 0.0
    %5174 = vmatprep.subr.mxu0 0.0
    %5175 = vmatpush1.msra.mxu0 0.0
    %5176 = vmatprep.subr.mxu0 0.0
    %5177 = vmatpush1.msra.mxu0 0.0
    %5178 = vmatprep.subr.mxu0 0.0
    %5179 = vmatpush1.msra.mxu0 0.0
    %5180 = vmatprep.subr.mxu0 0.0
    %5181 = vmatpush1.msra.mxu0 0.0
    %5182 = vmatprep.subr.mxu0 0.0
    %5183 = vmatpush1.msra.mxu0 0.0
    %5184 = vmatprep.subr.mxu0 0.0
    %5185 = vmatpush1.msra.mxu0 0.0
    %5186 = vmatprep.subr.mxu0 0.0
    %5187 = vmatpush1.msra.mxu0 0.0
    %5188 = vmatprep.subr.mxu0 0.0
    %5189 = vmatpush1.msra.mxu0 0.0
    %5190 = vmatprep.subr.mxu0 0.0
    %5191 = vmatpush1.msra.mxu0 0.0
    %5192 = vmatprep.subr.mxu0 0.0
    %5193 = vmatpush1.msra.mxu0 %v5167
    %5194 = vmatprep.subr.mxu0 0.0
    %5195 = vmatpush1.msra.mxu0 %v5166
    %5196 = vmatprep.subr.mxu0 0.0
    %5197 = vmatpush1.msra.mxu0 %v5165
    %5198 = vmatprep.subr.mxu0 0.0
    %5199 = vmatpush1.msra.mxu0 %v5164
    %5200 = vmatprep.subr.mxu0 0.0
    %5201 = vmatpush2.msra.mxu0 0.0
    %5202 = vmatprep.subr.mxu0 0.0
    %5203 = vmatpush2.msra.mxu0 0.0
    %5204 = vmatprep.subr.mxu0 0.0
    %5205 = vmatpush2.msra.mxu0 0.0
    %5206 = vmatprep.subr.mxu0 0.0
    %5207 = vmatpush2.msra.mxu0 0.0
    %5208 = vmatprep.subr.mxu0 0.0
    %5209 = vmatpush2.msra.mxu0 0.0
    %5210 = vmatprep.subr.mxu0 0.0
    %5211 = vmatpush2.msra.mxu0 0.0
    %5212 = vmatprep.subr.mxu0 0.0
    %5213 = vmatpush2.msra.mxu0 0.0
    %5214 = vmatprep.subr.mxu0 0.0
    %5215 = vmatpush2.msra.mxu0 0.0
    %5216 = vmatprep.subr.mxu0 0.0
    %5217 = vmatpush2.msra.mxu0 0.0
    %5218 = vmatprep.subr.mxu0 0.0
    %5219 = vmatpush2.msra.mxu0 0.0
    %5220 = vmatprep.subr.mxu0 0.0
    %5221 = vmatpush2.msra.mxu0 0.0
    %5222 = vmatprep.subr.mxu0 0.0
    %5223 = vmatpush2.msra.mxu0 0.0
    %5224 = vmatprep.subr.mxu0 0.0
    %5225 = vmatpush2.msra.mxu0 0.0
    %5226 = vmatprep.subr.mxu0 0.0
    %5227 = vmatpush2.msra.mxu0 0.0
    %5228 = vmatprep.subr.mxu0 0.0
    %5229 = vmatpush2.msra.mxu0 0.0
    %5230 = vmatprep.subr.mxu0 0.0
    %5231 = vmatpush2.msra.mxu0 0.0
    %5232 = vmatprep.mubr.f32.mxu0 0.0
    %5233 = vmatmul.mubr.f32.gmra.mxu0 %v4753
    %v5234 = vpop.f32.mrf.mxu0
    %v5235 = vadd.f32 0.0, %v5234
    %v5236 = vpop.f32.mrf.mxu0
    %5237 = vdwg.mxu0
    %v5238 = vadd.f32 %v5161, %v5235
    %v5239 = vld [vmem:[%s16] sm:$0x1]
    %v5241 = vlaneseq
    %v5242 = vshrl.u32 %v5241, 7
    %v5243 = vsub.s32 0, %v5242
    %v5244 = vrot.slane %v5239, %v5243
    %v5246 = vadd.f32 %v5238, %v5244
    %v5247 = vxor.u32 %v5246, 2147483648
    %v5248 = vmul.f32 %v5247, 1.442695
    %v5249 = vpow.pop %v5248
    %v5250 = vadd.f32 %v5249, 1.0
    %v5251 = vrcp.pop %v5250
    %v5252 = vmul.f32 1.0, %v5251
    %v5253 = vtanh.pop %v5246
    %v5254 = vmul.f32 %v5252, %v4732
    %5256 = vrot.lane.b32.xlu0 %v5253, 64
    %v5257 = vpop.permute.xlu0 %5256
    %v5259 = vmul.f32 %v5252, %v5257
    %5261 = vrot.lane.b32.xlu0 %v5259, 32
    %v5262 = vpop.permute.xlu0 %5261
    %v5264 = vadd.f32 %v5254, %v5262
    %v5265 = vtanh.pop %v5264
    %5267 = vrot.lane.b32.xlu0 %v5265, 64
    %v5268 = vpop.permute.xlu0 %5267
    %v5270 = vmul.f32 %v5252, %v5268
    %v5271 = vld [vmem:[%s17] sm:$0xff]
    %v5272 = vld [vmem:[%s17 + $0x8] sm:$0xff]
    %v5273 = vld [vmem:[%s17 + $0x10] sm:$0xff]
    %v5274 = vld [vmem:[%s17 + $0x18] sm:$0xff]
    %v5275 = vld [vmem:[%s18] sm:$0x1]
    %v5277 = vlaneseq
    %v5278 = vshrl.u32 %v5277, 7
    %v5279 = vsub.s32 0, %v5278
    %v5280 = vrot.slane %v5275, %v5279
    %5283 = vrot.lane.b32.xlu0 %v5270, 32
    %v5284 = vpop.permute.xlu0 %5283
    %v5285 = vsel %vm265, %v5284, 0
    %5287 = vmatprep.subr.mxu0 0.0
    %5288 = vmatpush1.msra.mxu0 0.0
    %5289 = vmatprep.subr.mxu0 0.0
    %5290 = vmatpush1.msra.mxu0 0.0
    %5291 = vmatprep.subr.mxu0 0.0
    %5292 = vmatpush1.msra.mxu0 0.0
    %5293 = vmatprep.subr.mxu0 0.0
    %5294 = vmatpush1.msra.mxu0 0.0
    %5295 = vmatprep.subr.mxu0 0.0
    %5296 = vmatpush1.msra.mxu0 0.0
    %5297 = vmatprep.subr.mxu0 0.0
    %5298 = vmatpush1.msra.mxu0 0.0
    %5299 = vmatprep.subr.mxu0 0.0
    %5300 = vmatpush1.msra.mxu0 0.0
    %5301 = vmatprep.subr.mxu0 0.0
    %5302 = vmatpush1.msra.mxu0 0.0
    %5303 = vmatprep.subr.mxu0 0.0
    %5304 = vmatpush1.msra.mxu0 0.0
    %5305 = vmatprep.subr.mxu0 0.0
    %5306 = vmatpush1.msra.mxu0 0.0
    %5307 = vmatprep.subr.mxu0 0.0
    %5308 = vmatpush1.msra.mxu0 0.0
    %5309 = vmatprep.subr.mxu0 0.0
    %5310 = vmatpush1.msra.mxu0 0.0
    %5311 = vmatprep.subr.mxu0 0.0
    %5312 = vmatpush1.msra.mxu0 %v5274
    %5313 = vmatprep.subr.mxu0 0.0
    %5314 = vmatpush1.msra.mxu0 %v5273
    %5315 = vmatprep.subr.mxu0 0.0
    %5316 = vmatpush1.msra.mxu0 %v5272
    %5317 = vmatprep.subr.mxu0 0.0
    %5318 = vmatpush1.msra.mxu0 %v5271
    %5319 = vmatprep.subr.mxu0 0.0
    %5320 = vmatpush2.msra.mxu0 0.0
    %5321 = vmatprep.subr.mxu0 0.0
    %5322 = vmatpush2.msra.mxu0 0.0
    %5323 = vmatprep.subr.mxu0 0.0
    %5324 = vmatpush2.msra.mxu0 0.0
    %5325 = vmatprep.subr.mxu0 0.0
    %5326 = vmatpush2.msra.mxu0 0.0
    %5327 = vmatprep.subr.mxu0 0.0
    %5328 = vmatpush2.msra.mxu0 0.0
    %5329 = vmatprep.subr.mxu0 0.0
    %5330 = vmatpush2.msra.mxu0 0.0
    %5331 = vmatprep.subr.mxu0 0.0
    %5332 = vmatpush2.msra.mxu0 0.0
    %5333 = vmatprep.subr.mxu0 0.0
    %5334 = vmatpush2.msra.mxu0 0.0
    %5335 = vmatprep.subr.mxu0 0.0
    %5336 = vmatpush2.msra.mxu0 0.0
    %5337 = vmatprep.subr.mxu0 0.0
    %5338 = vmatpush2.msra.mxu0 0.0
    %5339 = vmatprep.subr.mxu0 0.0
    %5340 = vmatpush2.msra.mxu0 0.0
    %5341 = vmatprep.subr.mxu0 0.0
    %5342 = vmatpush2.msra.mxu0 0.0
    %5343 = vmatprep.subr.mxu0 0.0
    %5344 = vmatpush2.msra.mxu0 0.0
    %5345 = vmatprep.subr.mxu0 0.0
    %5346 = vmatpush2.msra.mxu0 0.0
    %5347 = vmatprep.subr.mxu0 0.0
    %5348 = vmatpush2.msra.mxu0 0.0
    %5349 = vmatprep.subr.mxu0 0.0
    %5350 = vmatpush2.msra.mxu0 0.0
    %5351 = vmatprep.mubr.f32.mxu0 0.0
    %5352 = vmatmul.mubr.f32.gmra.mxu0 %v5285
    %v5353 = vpop.f32.mrf.mxu0
    %v5354 = vadd.f32 %v5280, %v5353
    %v5355 = vpop.f32.mrf.mxu0
    %5356 = vdwg.mxu0
    %s5357 = scalar_lea.vmem [#allocation10], 48
    %5358 = vst [vmem:[%s5357] sm:$0xff] %v5354
    %v5359 = vsel %vm2695, %v5354, -1e+30
    %5360 = vmax.xlane.f32.xlu0 %v5359
    %v5361 = vpop.xlane.xlu0 %5360
    %vm5362 = vcmp.eq.f32.partialorder %v5359, %v5361
    %v5363 = vsel %vm5362, %v2189, 128.0
    %5364 = vmin.xlane.f32.xlu0 %v5363
    %v5365 = vpop.xlane.xlu0 %5364
    %vm5366 = vcmp.eq.f32.partialorder %v2189, %v5365
    %v5367 = vsel %vm5366, 1, 0
    %v5368 = vcvt.s32.f32 %v5367
    %v5369 = vld [vmem:[#allocation5] sm:$0xff]
    %v5370 = vld [vmem:[#allocation5 + $0x8] sm:$0xff]
    %v5371 = vld [vmem:[#allocation5 + $0x10] sm:$0xff]
    %v5372 = vld [vmem:[#allocation5 + $0x18] sm:$0xff]
    %v5373 = vld [vmem:[#allocation5 + $0x20] sm:$0xff]
    %v5374 = vld [vmem:[#allocation5 + $0x28] sm:$0xff]
    %v5375 = vld [vmem:[#allocation5 + $0x30] sm:$0xff]
    %v5376 = vld [vmem:[#allocation5 + $0x38] sm:$0xff]
    %v5378 = vsel %vm2160, %v5368, 0
    %5380 = vmatprep.subr.mxu0 0.0
    %5381 = vmatpush1.msra.mxu0 0.0
    %5382 = vmatprep.subr.mxu0 0.0
    %5383 = vmatpush1.msra.mxu0 0.0
    %5384 = vmatprep.subr.mxu0 0.0
    %5385 = vmatpush1.msra.mxu0 0.0
    %5386 = vmatprep.subr.mxu0 0.0
    %5387 = vmatpush1.msra.mxu0 0.0
    %5388 = vmatprep.subr.mxu0 0.0
    %5389 = vmatpush1.msra.mxu0 0.0
    %5390 = vmatprep.subr.mxu0 0.0
    %5391 = vmatpush1.msra.mxu0 0.0
    %5392 = vmatprep.subr.mxu0 0.0
    %5393 = vmatpush1.msra.mxu0 0.0
    %5394 = vmatprep.subr.mxu0 0.0
    %5395 = vmatpush1.msra.mxu0 0.0
    %5396 = vmatprep.subr.mxu0 0.0
    %5397 = vmatpush1.msra.mxu0 %v5376
    %5398 = vmatprep.subr.mxu0 0.0
    %5399 = vmatpush1.msra.mxu0 %v5375
    %5400 = vmatprep.subr.mxu0 0.0
    %5401 = vmatpush1.msra.mxu0 %v5374
    %5402 = vmatprep.subr.mxu0 0.0
    %5403 = vmatpush1.msra.mxu0 %v5373
    %5404 = vmatprep.subr.mxu0 0.0
    %5405 = vmatpush1.msra.mxu0 %v5372
    %5406 = vmatprep.subr.mxu0 0.0
    %5407 = vmatpush1.msra.mxu0 %v5371
    %5408 = vmatprep.subr.mxu0 0.0
    %5409 = vmatpush1.msra.mxu0 %v5370
    %5410 = vmatprep.subr.mxu0 0.0
    %5411 = vmatpush1.msra.mxu0 %v5369
    %5412 = vmatprep.subr.mxu0 0.0
    %5413 = vmatpush2.msra.mxu0 0.0
    %5414 = vmatprep.subr.mxu0 0.0
    %5415 = vmatpush2.msra.mxu0 0.0
    %5416 = vmatprep.subr.mxu0 0.0
    %5417 = vmatpush2.msra.mxu0 0.0
    %5418 = vmatprep.subr.mxu0 0.0
    %5419 = vmatpush2.msra.mxu0 0.0
    %5420 = vmatprep.subr.mxu0 0.0
    %5421 = vmatpush2.msra.mxu0 0.0
    %5422 = vmatprep.subr.mxu0 0.0
    %5423 = vmatpush2.msra.mxu0 0.0
    %5424 = vmatprep.subr.mxu0 0.0
    %5425 = vmatpush2.msra.mxu0 0.0
    %5426 = vmatprep.subr.mxu0 0.0
    %5427 = vmatpush2.msra.mxu0 0.0
    %5428 = vmatprep.subr.mxu0 0.0
    %5429 = vmatpush2.msra.mxu0 0.0
    %5430 = vmatprep.subr.mxu0 0.0
    %5431 = vmatpush2.msra.mxu0 0.0
    %5432 = vmatprep.subr.mxu0 0.0
    %5433 = vmatpush2.msra.mxu0 0.0
    %5434 = vmatprep.subr.mxu0 0.0
    %5435 = vmatpush2.msra.mxu0 0.0
    %5436 = vmatprep.subr.mxu0 0.0
    %5437 = vmatpush2.msra.mxu0 0.0
    %5438 = vmatprep.subr.mxu0 0.0
    %5439 = vmatpush2.msra.mxu0 0.0
    %5440 = vmatprep.subr.mxu0 0.0
    %5441 = vmatpush2.msra.mxu0 0.0
    %5442 = vmatprep.subr.mxu0 0.0
    %5443 = vmatpush2.msra.mxu0 0.0
    %5444 = vmatprep.mubr.f32.mxu0 0.0
    %5445 = vmatmul.mubr.f32.gmra.mxu0 %v5378
    %v5446 = vpop.f32.mrf.mxu0
    %v5447 = vadd.f32 0.0, %v5446
    %v5448 = vpop.f32.mrf.mxu0
    %5449 = vdwg.mxu0
    %s5450 = sld [smem:[#allocation7 + $0x6]]
    %p5451 = scmp.gt.s32.totalorder %s5450, 0
    %s5452 = scalar_select %p5451, 1, 0
    %s5453 = scvt.s32.f32 %s5452
    %s5454 = scalar_lea.vmem [#allocation4], 48
    %v5455 = vld [vmem:[%s5454] sm:$0xff]
    %v5456 = vstv %s5453
    %v5457 = vmul.f32 %v5456, %v5455
    %s5458 = ssub.f32 1.0, %s5453
    %v5459 = vstv %s5458
    %v5460 = vmul.f32 %v5459, %v5447
    %v5461 = vadd.f32 %v5457, %v5460
    %v5462 = vmul.f32 %v5270, %v2800
    %5464 = vrot.lane.b32.xlu0 %v5462, 32
    %v5465 = vpop.permute.xlu0 %5464
    %v5467 = vsel %vm265, %v5465, 0.0
    %5468 = vadd.xlane.f32.xlu0 %v5467
    %v5469 = vpop.xlane.xlu0 %5468
    %5470 = vxpose.xlu0.b32.start [1/16] %v5469, 128
    %5471 = vxpose.xlu0.b32.cont [2/16] 0.0, 128
    %5472 = vxpose.xlu0.b32.cont [3/16] 0.0, 128
    %5473 = vxpose.xlu0.b32.cont [4/16] 0.0, 128
    %5474 = vxpose.xlu0.b32.cont [5/16] 0.0, 128
    %5475 = vxpose.xlu0.b32.cont [6/16] 0.0, 128
    %5476 = vxpose.xlu0.b32.cont [7/16] 0.0, 128
    %5477 = vxpose.xlu0.b32.cont [8/16] 0.0, 128
    %5478 = vxpose.xlu0.b32.cont [9/16] 0.0, 128
    %5479 = vxpose.xlu0.b32.cont [10/16] 0.0, 128
    %5480 = vxpose.xlu0.b32.cont [11/16] 0.0, 128
    %5481 = vxpose.xlu0.b32.cont [12/16] 0.0, 128
    %5482 = vxpose.xlu0.b32.cont [13/16] 0.0, 128
    %5483 = vxpose.xlu0.b32.cont [14/16] 0.0, 128
    %5484 = vxpose.xlu0.b32.cont [15/16] 0.0, 128
    %5485 = vxpose.xlu0.b32.end [16/16] 0.0, 128
    %v5486 = vpop.trf.xlu0
    %v5487 = vpop.trf.xlu0
    %v5488 = vpop.trf.xlu0
    %v5489 = vpop.trf.xlu0
    %v5490 = vpop.trf.xlu0
    %v5491 = vpop.trf.xlu0
    %v5492 = vpop.trf.xlu0
    %v5493 = vpop.trf.xlu0
    %v5494 = vpop.trf.xlu0
    %v5495 = vpop.trf.xlu0
    %v5496 = vpop.trf.xlu0
    %v5497 = vpop.trf.xlu0
    %v5498 = vpop.trf.xlu0
    %v5499 = vpop.trf.xlu0
    %v5500 = vpop.trf.xlu0
    %v5501 = vpop.trf.xlu0
    %v5502 = vlaneseq
    %v5503 = vshrl.u32 %v5502, 7
    %v5504 = vsub.s32 0, %v5503
    %v5505 = vrot.slane %v5486, %v5504
    %v5506 = vadd.f32 %v5505, %v2291
    %v5507 = vadd.f32 %v5506, %v2301
    %v5508 = vmax.f32 %v5507, 0.0
    %v5509 = vsel %vm2305, %v5508, -inf
    %v5510 = vrot.slane %v5509, 4
    %v5511 = vmax.f32 %v5509, %v5510
    %v5512 = vrot.slane %v5511, 2
    %v5513 = vmax.f32 %v5511, %v5512
    %v5514 = vrot.slane %v5513, 1
    %v5515 = vmax.f32 %v5513, %v5514
    %v5516 = vsub.f32 %v5508, %v5515
    %v5517 = vmul.f32 %v5516, 1.442695
    %v5518 = vpow.pop %v5517
    %v5519 = vsel %vm2305, %v5518, 0.0
    %v5520 = vrot.slane %v5519, 4
    %v5521 = vadd.f32 %v5519, %v5520
    %v5522 = vrot.slane %v5521, 2
    %v5523 = vadd.f32 %v5521, %v5522
    %v5524 = vrot.slane %v5523, 1
    %v5525 = vadd.f32 %v5523, %v5524
    %v5526 = vrcp.pop %v5525
    %v5527 = vmul.f32 %v5518, %v5526
    %v5528 = vlaneseq
    %v5529 = vshrl.u32 %v5528, 7
    %v5530 = vsub.s32 0, %v5529
    %v5531 = vrot.slane %v5527, %v5530
    %5533 = vbcast.lane.b32.xlu0 %v5531, 256
    %v5534 = vpop.permute.xlu0 %5533
    %v5535 = vlaneseq
    %v5536 = vshrl.u32 %v5535, 7
    %v5537 = vsub.s32 1, %v5536
    %v5538 = vrot.slane %v5527, %v5537
    %5540 = vbcast.lane.b32.xlu0 %v5538, 256
    %v5541 = vpop.permute.xlu0 %5540
    %v5542 = vlaneseq
    %v5543 = vshrl.u32 %v5542, 7
    %v5544 = vsub.s32 2, %v5543
    %v5545 = vrot.slane %v5527, %v5544
    %5547 = vbcast.lane.b32.xlu0 %v5545, 256
    %v5548 = vpop.permute.xlu0 %5547
    %v5549 = vlaneseq
    %v5550 = vshrl.u32 %v5549, 7
    %v5551 = vsub.s32 3, %v5550
    %v5552 = vrot.slane %v5527, %v5551
    %5554 = vbcast.lane.b32.xlu0 %v5552, 256
    %v5555 = vpop.permute.xlu0 %5554
    %v5556 = vlaneseq
    %v5557 = vshrl.u32 %v5556, 7
    %v5558 = vsub.s32 4, %v5557
    %v5559 = vrot.slane %v5527, %v5558
    %5561 = vbcast.lane.b32.xlu0 %v5559, 256
    %v5562 = vpop.permute.xlu0 %5561
    %v5563 = vlaneseq
    %v5564 = vshrl.u32 %v5563, 7
    %v5565 = vsub.s32 5, %v5564
    %v5566 = vrot.slane %v5527, %v5565
    %5568 = vbcast.lane.b32.xlu0 %v5566, 256
    %v5569 = vpop.permute.xlu0 %5568
    %v5570 = vlaneseq
    %v5571 = vshrl.u32 %v5570, 7
    %v5572 = vsub.s32 6, %v5571
    %v5573 = vrot.slane %v5527, %v5572
    %5575 = vbcast.lane.b32.xlu0 %v5573, 256
    %v5576 = vpop.permute.xlu0 %5575
    %v5577 = vlaneseq
    %v5578 = vshrl.u32 %v5577, 7
    %v5579 = vsub.s32 7, %v5578
    %v5580 = vrot.slane %v5527, %v5579
    %5582 = vbcast.lane.b32.xlu0 %v5580, 256
    %v5583 = vpop.permute.xlu0 %5582
    %v5584 = vld [vmem:[#allocation3] sm:$0xff]
    %v5585 = vld [vmem:[#allocation3 + $0x8] sm:$0xff]
    %v5586 = vld [vmem:[#allocation3 + $0x10] sm:$0xff]
    %v5587 = vld [vmem:[#allocation3 + $0x18] sm:$0xff]
    %v5588 = vld [vmem:[#allocation3 + $0x20] sm:$0xff]
    %v5589 = vld [vmem:[#allocation3 + $0x28] sm:$0xff]
    %v5590 = vld [vmem:[#allocation3 + $0x30] sm:$0xff]
    %v5591 = vld [vmem:[#allocation3 + $0x38] sm:$0xff]
    %v5592 = vmul.f32 %v5534, %v5584
    %v5593 = vmul.f32 %v5541, %v5585
    %v5594 = vmul.f32 %v5548, %v5586
    %v5595 = vmul.f32 %v5555, %v5587
    %v5596 = vmul.f32 %v5562, %v5588
    %v5597 = vmul.f32 %v5569, %v5589
    %v5598 = vmul.f32 %v5576, %v5590
    %v5599 = vmul.f32 %v5583, %v5591
    %v5600 = vsel %vm2160, %v5592, 0.0
    %v5601 = vsel %vm2160, %v5593, 0.0
    %v5602 = vadd.f32 %v5600, %v5601
    %v5603 = vsel %vm2160, %v5594, 0.0
    %v5604 = vadd.f32 %v5602, %v5603
    %v5605 = vsel %vm2160, %v5595, 0.0
    %v5606 = vadd.f32 %v5604, %v5605
    %v5607 = vsel %vm2160, %v5596, 0.0
    %v5608 = vadd.f32 %v5606, %v5607
    %v5609 = vsel %vm2160, %v5597, 0.0
    %v5610 = vadd.f32 %v5608, %v5609
    %v5611 = vsel %vm2160, %v5598, 0.0
    %v5612 = vadd.f32 %v5610, %v5611
    %v5613 = vsel %vm2160, %v5599, 0.0
    %v5614 = vadd.f32 %v5612, %v5613
    %v5615 = vld [vmem:[%s13] sm:$0xff]
    %v5616 = vld [vmem:[%s13 + $0x8] sm:$0xff]
    %v5617 = vld [vmem:[%s13 + $0x10] sm:$0xff]
    %v5618 = vld [vmem:[%s13 + $0x18] sm:$0xff]
    %v5619 = vld [vmem:[%s13 + $0x20] sm:$0xff]
    %v5620 = vld [vmem:[%s13 + $0x28] sm:$0xff]
    %v5621 = vld [vmem:[%s13 + $0x30] sm:$0xff]
    %v5622 = vld [vmem:[%s13 + $0x38] sm:$0xff]
    %v5624 = vsel %vm2160, %v5614, 0
    %5626 = vmatprep.subr.mxu0 0.0
    %5627 = vmatpush1.msra.mxu0 0.0
    %5628 = vmatprep.subr.mxu0 0.0
    %5629 = vmatpush1.msra.mxu0 0.0
    %5630 = vmatprep.subr.mxu0 0.0
    %5631 = vmatpush1.msra.mxu0 0.0
    %5632 = vmatprep.subr.mxu0 0.0
    %5633 = vmatpush1.msra.mxu0 0.0
    %5634 = vmatprep.subr.mxu0 0.0
    %5635 = vmatpush1.msra.mxu0 0.0
    %5636 = vmatprep.subr.mxu0 0.0
    %5637 = vmatpush1.msra.mxu0 0.0
    %5638 = vmatprep.subr.mxu0 0.0
    %5639 = vmatpush1.msra.mxu0 0.0
    %5640 = vmatprep.subr.mxu0 0.0
    %5641 = vmatpush1.msra.mxu0 0.0
    %5642 = vmatprep.subr.mxu0 0.0
    %5643 = vmatpush1.msra.mxu0 %v5622
    %5644 = vmatprep.subr.mxu0 0.0
    %5645 = vmatpush1.msra.mxu0 %v5621
    %5646 = vmatprep.subr.mxu0 0.0
    %5647 = vmatpush1.msra.mxu0 %v5620
    %5648 = vmatprep.subr.mxu0 0.0
    %5649 = vmatpush1.msra.mxu0 %v5619
    %5650 = vmatprep.subr.mxu0 0.0
    %5651 = vmatpush1.msra.mxu0 %v5618
    %5652 = vmatprep.subr.mxu0 0.0
    %5653 = vmatpush1.msra.mxu0 %v5617
    %5654 = vmatprep.subr.mxu0 0.0
    %5655 = vmatpush1.msra.mxu0 %v5616
    %5656 = vmatprep.subr.mxu0 0.0
    %5657 = vmatpush1.msra.mxu0 %v5615
    %5658 = vmatprep.subr.mxu0 0.0
    %5659 = vmatpush2.msra.mxu0 0.0
    %5660 = vmatprep.subr.mxu0 0.0
    %5661 = vmatpush2.msra.mxu0 0.0
    %5662 = vmatprep.subr.mxu0 0.0
    %5663 = vmatpush2.msra.mxu0 0.0
    %5664 = vmatprep.subr.mxu0 0.0
    %5665 = vmatpush2.msra.mxu0 0.0
    %5666 = vmatprep.subr.mxu0 0.0
    %5667 = vmatpush2.msra.mxu0 0.0
    %5668 = vmatprep.subr.mxu0 0.0
    %5669 = vmatpush2.msra.mxu0 0.0
    %5670 = vmatprep.subr.mxu0 0.0
    %5671 = vmatpush2.msra.mxu0 0.0
    %5672 = vmatprep.subr.mxu0 0.0
    %5673 = vmatpush2.msra.mxu0 0.0
    %5674 = vmatprep.subr.mxu0 0.0
    %5675 = vmatpush2.msra.mxu0 0.0
    %5676 = vmatprep.subr.mxu0 0.0
    %5677 = vmatpush2.msra.mxu0 0.0
    %5678 = vmatprep.subr.mxu0 0.0
    %5679 = vmatpush2.msra.mxu0 0.0
    %5680 = vmatprep.subr.mxu0 0.0
    %5681 = vmatpush2.msra.mxu0 0.0
    %5682 = vmatprep.subr.mxu0 0.0
    %5683 = vmatpush2.msra.mxu0 0.0
    %5684 = vmatprep.subr.mxu0 0.0
    %5685 = vmatpush2.msra.mxu0 0.0
    %5686 = vmatprep.subr.mxu0 0.0
    %5687 = vmatpush2.msra.mxu0 0.0
    %5688 = vmatprep.subr.mxu0 0.0
    %5689 = vmatpush2.msra.mxu0 0.0
    %5690 = vmatprep.mubr.f32.mxu0 0.0
    %5691 = vmatmul.mubr.f32.gmra.mxu0 %v5624
    %v5692 = vpop.f32.mrf.mxu0
    %v5693 = vadd.f32 %v5461, %v5692
    %v5694 = vpop.f32.mrf.mxu0
    %5695 = vdwg.mxu0
    %v5696 = vld [vmem:[%s15] sm:$0xff]
    %v5697 = vld [vmem:[%s15 + $0x8] sm:$0xff]
    %v5698 = vld [vmem:[%s15 + $0x10] sm:$0xff]
    %v5699 = vld [vmem:[%s15 + $0x18] sm:$0xff]
    %5700 = vmatprep.subr.mxu0 0.0
    %5701 = vmatpush1.msra.mxu0 0.0
    %5702 = vmatprep.subr.mxu0 0.0
    %5703 = vmatpush1.msra.mxu0 0.0
    %5704 = vmatprep.subr.mxu0 0.0
    %5705 = vmatpush1.msra.mxu0 0.0
    %5706 = vmatprep.subr.mxu0 0.0
    %5707 = vmatpush1.msra.mxu0 0.0
    %5708 = vmatprep.subr.mxu0 0.0
    %5709 = vmatpush1.msra.mxu0 0.0
    %5710 = vmatprep.subr.mxu0 0.0
    %5711 = vmatpush1.msra.mxu0 0.0
    %5712 = vmatprep.subr.mxu0 0.0
    %5713 = vmatpush1.msra.mxu0 0.0
    %5714 = vmatprep.subr.mxu0 0.0
    %5715 = vmatpush1.msra.mxu0 0.0
    %5716 = vmatprep.subr.mxu0 0.0
    %5717 = vmatpush1.msra.mxu0 0.0
    %5718 = vmatprep.subr.mxu0 0.0
    %5719 = vmatpush1.msra.mxu0 0.0
    %5720 = vmatprep.subr.mxu0 0.0
    %5721 = vmatpush1.msra.mxu0 0.0
    %5722 = vmatprep.subr.mxu0 0.0
    %5723 = vmatpush1.msra.mxu0 0.0
    %5724 = vmatprep.subr.mxu0 0.0
    %5725 = vmatpush1.msra.mxu0 %v5699
    %5726 = vmatprep.subr.mxu0 0.0
    %5727 = vmatpush1.msra.mxu0 %v5698
    %5728 = vmatprep.subr.mxu0 0.0
    %5729 = vmatpush1.msra.mxu0 %v5697
    %5730 = vmatprep.subr.mxu0 0.0
    %5731 = vmatpush1.msra.mxu0 %v5696
    %5732 = vmatprep.subr.mxu0 0.0
    %5733 = vmatpush2.msra.mxu0 0.0
    %5734 = vmatprep.subr.mxu0 0.0
    %5735 = vmatpush2.msra.mxu0 0.0
    %5736 = vmatprep.subr.mxu0 0.0
    %5737 = vmatpush2.msra.mxu0 0.0
    %5738 = vmatprep.subr.mxu0 0.0
    %5739 = vmatpush2.msra.mxu0 0.0
    %5740 = vmatprep.subr.mxu0 0.0
    %5741 = vmatpush2.msra.mxu0 0.0
    %5742 = vmatprep.subr.mxu0 0.0
    %5743 = vmatpush2.msra.mxu0 0.0
    %5744 = vmatprep.subr.mxu0 0.0
    %5745 = vmatpush2.msra.mxu0 0.0
    %5746 = vmatprep.subr.mxu0 0.0
    %5747 = vmatpush2.msra.mxu0 0.0
    %5748 = vmatprep.subr.mxu0 0.0
    %5749 = vmatpush2.msra.mxu0 0.0
    %5750 = vmatprep.subr.mxu0 0.0
    %5751 = vmatpush2.msra.mxu0 0.0
    %5752 = vmatprep.subr.mxu0 0.0
    %5753 = vmatpush2.msra.mxu0 0.0
    %5754 = vmatprep.subr.mxu0 0.0
    %5755 = vmatpush2.msra.mxu0 0.0
    %5756 = vmatprep.subr.mxu0 0.0
    %5757 = vmatpush2.msra.mxu0 0.0
    %5758 = vmatprep.subr.mxu0 0.0
    %5759 = vmatpush2.msra.mxu0 0.0
    %5760 = vmatprep.subr.mxu0 0.0
    %5761 = vmatpush2.msra.mxu0 0.0
    %5762 = vmatprep.subr.mxu0 0.0
    %5763 = vmatpush2.msra.mxu0 0.0
    %5764 = vmatprep.mubr.f32.mxu0 0.0
    %5765 = vmatmul.mubr.f32.gmra.mxu0 %v5285
    %v5766 = vpop.f32.mrf.mxu0
    %v5767 = vadd.f32 0.0, %v5766
    %v5768 = vpop.f32.mrf.mxu0
    %5769 = vdwg.mxu0
    %v5770 = vadd.f32 %v5693, %v5767
    %v5771 = vld [vmem:[%s16] sm:$0x1]
    %v5773 = vlaneseq
    %v5774 = vshrl.u32 %v5773, 7
    %v5775 = vsub.s32 0, %v5774
    %v5776 = vrot.slane %v5771, %v5775
    %v5778 = vadd.f32 %v5770, %v5776
    %v5779 = vxor.u32 %v5778, 2147483648
    %v5780 = vmul.f32 %v5779, 1.442695
    %v5781 = vpow.pop %v5780
    %v5782 = vadd.f32 %v5781, 1.0
    %v5783 = vrcp.pop %v5782
    %v5784 = vmul.f32 1.0, %v5783
    %v5785 = vtanh.pop %v5778
    %v5786 = vmul.f32 %v5784, %v5264
    %5788 = vrot.lane.b32.xlu0 %v5785, 64
    %v5789 = vpop.permute.xlu0 %5788
    %v5791 = vmul.f32 %v5784, %v5789
    %5793 = vrot.lane.b32.xlu0 %v5791, 32
    %v5794 = vpop.permute.xlu0 %5793
    %v5796 = vadd.f32 %v5786, %v5794
    %v5797 = vtanh.pop %v5796
    %5799 = vrot.lane.b32.xlu0 %v5797, 64
    %v5800 = vpop.permute.xlu0 %5799
    %v5802 = vmul.f32 %v5784, %v5800
    %v5803 = vld [vmem:[%s17] sm:$0xff]
    %v5804 = vld [vmem:[%s17 + $0x8] sm:$0xff]
    %v5805 = vld [vmem:[%s17 + $0x10] sm:$0xff]
    %v5806 = vld [vmem:[%s17 + $0x18] sm:$0xff]
    %v5807 = vld [vmem:[%s18] sm:$0x1]
    %v5809 = vlaneseq
    %v5810 = vshrl.u32 %v5809, 7
    %v5811 = vsub.s32 0, %v5810
    %v5812 = vrot.slane %v5807, %v5811
    %5815 = vrot.lane.b32.xlu0 %v5802, 32
    %v5816 = vpop.permute.xlu0 %5815
    %v5817 = vsel %vm265, %v5816, 0
    %5819 = vmatprep.subr.mxu0 0.0
    %5820 = vmatpush1.msra.mxu0 0.0
    %5821 = vmatprep.subr.mxu0 0.0
    %5822 = vmatpush1.msra.mxu0 0.0
    %5823 = vmatprep.subr.mxu0 0.0
    %5824 = vmatpush1.msra.mxu0 0.0
    %5825 = vmatprep.subr.mxu0 0.0
    %5826 = vmatpush1.msra.mxu0 0.0
    %5827 = vmatprep.subr.mxu0 0.0
    %5828 = vmatpush1.msra.mxu0 0.0
    %5829 = vmatprep.subr.mxu0 0.0
    %5830 = vmatpush1.msra.mxu0 0.0
    %5831 = vmatprep.subr.mxu0 0.0
    %5832 = vmatpush1.msra.mxu0 0.0
    %5833 = vmatprep.subr.mxu0 0.0
    %5834 = vmatpush1.msra.mxu0 0.0
    %5835 = vmatprep.subr.mxu0 0.0
    %5836 = vmatpush1.msra.mxu0 0.0
    %5837 = vmatprep.subr.mxu0 0.0
    %5838 = vmatpush1.msra.mxu0 0.0
    %5839 = vmatprep.subr.mxu0 0.0
    %5840 = vmatpush1.msra.mxu0 0.0
    %5841 = vmatprep.subr.mxu0 0.0
    %5842 = vmatpush1.msra.mxu0 0.0
    %5843 = vmatprep.subr.mxu0 0.0
    %5844 = vmatpush1.msra.mxu0 %v5806
    %5845 = vmatprep.subr.mxu0 0.0
    %5846 = vmatpush1.msra.mxu0 %v5805
    %5847 = vmatprep.subr.mxu0 0.0
    %5848 = vmatpush1.msra.mxu0 %v5804
    %5849 = vmatprep.subr.mxu0 0.0
    %5850 = vmatpush1.msra.mxu0 %v5803
    %5851 = vmatprep.subr.mxu0 0.0
    %5852 = vmatpush2.msra.mxu0 0.0
    %5853 = vmatprep.subr.mxu0 0.0
    %5854 = vmatpush2.msra.mxu0 0.0
    %5855 = vmatprep.subr.mxu0 0.0
    %5856 = vmatpush2.msra.mxu0 0.0
    %5857 = vmatprep.subr.mxu0 0.0
    %5858 = vmatpush2.msra.mxu0 0.0
    %5859 = vmatprep.subr.mxu0 0.0
    %5860 = vmatpush2.msra.mxu0 0.0
    %5861 = vmatprep.subr.mxu0 0.0
    %5862 = vmatpush2.msra.mxu0 0.0
    %5863 = vmatprep.subr.mxu0 0.0
    %5864 = vmatpush2.msra.mxu0 0.0
    %5865 = vmatprep.subr.mxu0 0.0
    %5866 = vmatpush2.msra.mxu0 0.0
    %5867 = vmatprep.subr.mxu0 0.0
    %5868 = vmatpush2.msra.mxu0 0.0
    %5869 = vmatprep.subr.mxu0 0.0
    %5870 = vmatpush2.msra.mxu0 0.0
    %5871 = vmatprep.subr.mxu0 0.0
    %5872 = vmatpush2.msra.mxu0 0.0
    %5873 = vmatprep.subr.mxu0 0.0
    %5874 = vmatpush2.msra.mxu0 0.0
    %5875 = vmatprep.subr.mxu0 0.0
    %5876 = vmatpush2.msra.mxu0 0.0
    %5877 = vmatprep.subr.mxu0 0.0
    %5878 = vmatpush2.msra.mxu0 0.0
    %5879 = vmatprep.subr.mxu0 0.0
    %5880 = vmatpush2.msra.mxu0 0.0
    %5881 = vmatprep.subr.mxu0 0.0
    %5882 = vmatpush2.msra.mxu0 0.0
    %5883 = vmatprep.mubr.f32.mxu0 0.0
    %5884 = vmatmul.mubr.f32.gmra.mxu0 %v5817
    %v5885 = vpop.f32.mrf.mxu0
    %v5886 = vadd.f32 %v5812, %v5885
    %v5887 = vpop.f32.mrf.mxu0
    %5888 = vdwg.mxu0
    %s5889 = scalar_lea.vmem [#allocation10], 56
    %5890 = vst [vmem:[%s5889] sm:$0xff] %v5886
    // Predicated region
    $region86: #{_forward_device.1} parent=1 // pred_check
      _
    $region87: #{_forward_device.1} parent=1 // pred_check_branch
      %5892 = sbr.rel (0) target = $region89
    $region88: #{_forward_device.1} parent=1 // pred_region
      %s5894 = ssub.s32 1024, 1024
      %5895 = vsyncadd [#allocation8], %s5894
      %s5896 = sshll.u32 [#allocation10], 4
      %s5897 = int_to_ptr.vmem [resolvable:$true] %s5896
      %5902 = dma.vmem_to_hbm [thread:$0]  %s5897, 1024, %s20, [#allocation8], 128, 128, 8
    $region89: #{_forward_device.1} parent=1 // pred_fallthru
      _
    // Predicated region
    $region90: #{_forward_device.1} parent=1 // pred_check
      _
    $region91: #{_forward_device.1} parent=1 // pred_check_branch
      %5904 = sbr.rel (0) target = $region93
    $region92: #{_forward_device.1} parent=1 // pred_region
      %5905 = dma.done [#allocation8], 1024
    $region93: #{_forward_device.1} parent=1 // pred_fallthru
      _
    %5906 = vsyncpa [#allocation8], 1
    %5907 = vsyncpa [#allocation9], 1

</llo_original>
